<compile_context>
chip_gen: v5e
topology: v5e:2x2
jax: 0.10.0
libtpu: 0.0.40
codegen_flags: <defaults>
</compile_context>

<pallas_src>
import functools
from typing import NamedTuple

import jax
import jax.numpy as jnp
from jax import lax
from jax.experimental import pallas as pl
from jax.experimental.pallas import tpu as pltpu

BN_EPS = 1e-5

# (cin, cout, kernel, dilation, padding, has_bn_relu) -- exactly the torch __init__.
BELUGA_LAYER_CFGS = (
    (5,    640,  8, 1,  3,   True),
    (640,  640,  8, 1,  4,   True),
    (640,  1280, 8, 4,  14,  True),
    (1280, 1280, 8, 4,  14,  True),
    (1280, 1280, 8, 16, 56,  True),
    (1280, 1280, 8, 16, 56,  True),
    (1280, 1280, 8, 64, 224, True),
    (1280, 1280, 8, 64, 224, True),
    (1280, 8008, 1, 1,  0,   True),
    (8008, 8008, 1, 1,  0,   False),   # final Conv1d, no BN / ReLU
)

# Structurally identical scaled-down config for the __main__ smoke test.
# The full config forces L=2000 and 8008 channels (hundreds of GFLOPs), which
# blows the sandbox time budget; the layer pattern, dilated convs (odd and
# even tap offsets), BN+ReLU placement, 1x1 tail chaining and the final
# (B, C/4, 4, L) reshape are all preserved and exercise the same kernels.
TEST_LAYER_CFGS = (
    (5,  32, 8, 1, 3, True),
    (32, 32, 8, 1, 4, True),
    (32, 64, 8, 2, 7, True),
    (64, 64, 8, 2, 7, True),
    (64, 64, 1, 1, 0, True),
    (64, 64, 1, 1, 0, False),
)


def _round_up(n, m):
    return ((n + m - 1) // m) * m


# ---------------------------------------------------------------------------
# Generation-aware tiling configuration
# ---------------------------------------------------------------------------
class HwConfig(NamedTuple):
    tm_cap: int          # max rows per output tile
    tn_cap: int          # max output-channel tile
    tk_cap: int          # max input-channel (reduction) tile
    block_budget: int    # bytes allowed for all pipelined blocks + scratch
    vmem_limit: int      # pltpu.CompilerParams(vmem_limit_bytes=...)
    wide_round: int      # channel rounding for very wide (>=2048) channel dims


def detect_hw():
    kind = ""
    try:
        kind = jax.devices()[0].device_kind.lower()
    except Exception:  # pragma: no cover
        pass
    if "v5e" in kind or "v5 lite" in kind or "v5lite" in kind:
        # 128 MiB VMEM, MXU-bound at these shapes: keep 128-aligned padding.
        return HwConfig(2048, 2048, 1024, 88 << 20, 100 << 20, 128)
    if "v6" in kind or "trillium" in kind:
        # 128 MiB VMEM, HBM-bound: big tiles, 256-aligned wide channels.
        return HwConfig(2048, 2048, 1024, 88 << 20, 100 << 20, 256)
    if "v7" in kind:
        # 64 MiB VMEM per TC, 2 TCs: keep blocks small, >=2 M-blocks.
        return HwConfig(1024, 2048, 1024, 38 << 20, 46 << 20, 256)
    # Unknown chip: conservative defaults.
    return HwConfig(1024, 1536, 1024, 36 << 20, 44 << 20, 128)


def _round_ch(c, hw):
    unit = hw.wide_round if c >= 2048 else 128
    return _round_up(c, unit)


def _divisor_tiles(dim, cap, unit=128):
    """Descending multiples of `unit` that divide `dim` and are <= cap."""
    out = []
    t = (min(dim, cap) // unit) * unit
    while t >= unit:
        if dim % t == 0:
            out.append(t)
        t -= unit
    return out if out else [dim]


def _block_bytes(tm, tk, tn, ksize, out_isz):
    n_x = 2 if ksize > 1 else 1
    w = ksize * tk * tn * 2 * 2          # bf16 weight block, double buffered
    x = n_x * tm * tk * 2 * 2            # activation block(s), double buffered
    o = tm * tn * out_isz * 2            # output block, double buffered
    acc = tm * tn * 4                    # f32 accumulator scratch
    tmp = (3 * tm * tk * 2) if ksize > 1 else 0   # halo scratch + tap temps
    return w + x + o + acc + tmp


def _plan_channel_tiles(cinp, coutp, ksize, dil, out_isz, hw):
    halo = (ksize - 1) * dil
    tm_lo = max(64, _round_up(max(halo, 1), 64))
    for tn in _divisor_tiles(coutp, hw.tn_cap):
        for tk in _divisor_tiles(cinp, hw.tk_cap):
            if _block_bytes(tm_lo, tk, tn, ksize, out_isz) <= hw.block_budget:
                return tn, tk
    return _divisor_tiles(coutp, hw.tn_cap)[-1], _divisor_tiles(cinp, hw.tk_cap)[-1]


def _plan_tm_free(lout, halo, tn, tk, ksize, out_isz, hw):
    lo = max(64, _round_up(max(halo, 1), 64))
    tm = max(lo, min(hw.tm_cap, _round_up(lout, 64)))
    while tm > lo and _block_bytes(tm, tk, tn, ksize, out_isz) > hw.block_budget:
        tm -= 64
    return tm


def _plan_tm_divisor(mp, tn, tk, out_isz, hw):
    """Largest tm (multiple of 8) dividing mp that fits the VMEM budget."""
    best = 8
    for tm in range(8, min(mp, hw.tm_cap) + 1, 8):
        if mp % tm == 0 and _block_bytes(tm, tk, tn, 1, out_isz) <= hw.block_budget:
            best = tm
    return best


def _halo_tile(tm, halo):
    """Smallest multiple of 16 dividing tm that covers the conv halo."""
    for th in range(16, tm + 1, 16):
        if tm % th == 0 and th >= halo:
            return th
    return tm


# ---------------------------------------------------------------------------
# Pallas kernels
# ---------------------------------------------------------------------------
def _dconv_bn_act_kernel(x0_ref, x1_ref, w_ref, scale_ref, bias_ref, o_ref,
                         acc_ref, xcat_ref, *, ksize, dil, apply_relu):
    """One (tm, tn) output tile of a dilated conv; one Cin chunk per grid step.

    x0_ref: (1, tm, tk)  rows [i*tm, (i+1)*tm) of the zero-padded activation
    x1_ref: (1, th, tk)  halo rows directly after x0
    w_ref : (K, tk, tn)  tap-major weight chunk
    """
    c = pl.program_id(3)
    tm = acc_ref.shape[0]
    th = x1_ref.shape[1]

    x0 = x0_ref[0]
    # Assemble the halo window [i*tm, i*tm + tm + th) once per step (aligned stores).
    xcat_ref[0:tm, :] = x0
    xcat_ref[tm:tm + th, :] = x1_ref[0]

    # Tap 0 reads the un-shifted block directly; first reduction step overwrites
    # the accumulator (no separate zero-fill pass).
    head = jnp.dot(x0, w_ref[0], preferred_element_type=jnp.float32)

    @pl.when(c == 0)
    def _():
        acc_ref[...] = head

    @pl.when(c != 0)
    def _():
        acc_ref[...] += head

    for t in range(1, ksize):
        xt = xcat_ref[pl.ds(t * dil, tm), :]          # row-shifted tap window
        acc_ref[...] += jnp.dot(xt, w_ref[t], preferred_element_type=jnp.float32)

    @pl.when(c == pl.num_programs(3) - 1)
    def _():
        y = acc_ref[...] * scale_ref[...] + bias_ref[...]
        if apply_relu:
            y = jnp.maximum(y, 0.0)
        o_ref[0] = y.astype(o_ref.dtype)


def _pw_bn_act_kernel(x_ref, w_ref, scale_ref, bias_ref, o_ref, acc_ref,
                      *, apply_relu):
    """1x1 conv (pointwise matmul) with fused folded-BN scale/bias (+ ReLU)."""
    c = pl.program_id(3)
    head = jnp.dot(x_ref[0], w_ref[0], preferred_element_type=jnp.float32)

    @pl.when(c == 0)
    def _():
        acc_ref[...] = head

    @pl.when(c != 0)
    def _():
        acc_ref[...] += head

    @pl.when(c == pl.num_programs(3) - 1)
    def _():
        y = acc_ref[...] * scale_ref[...] + bias_ref[...]
        if apply_relu:
            y = jnp.maximum(y, 0.0)
        o_ref[0] = y.astype(o_ref.dtype)


def _conv_layer(xin, w, scale, bias, *, ksize, dil, relu, tm, tn, tk, th,
                mblocks, out_dtype, hw):
    """Run one conv layer.  xin: (B, Lbig, Cinp) bf16 (zero-padded),
    w: (K, Cinp, Coutp) bf16, scale/bias: (1, Coutp) f32.
    Returns (B, mblocks*tm, Coutp) in out_dtype."""
    B = xin.shape[0]
    cinp = xin.shape[2]
    coutp = w.shape[2]
    mp = mblocks * tm
    grid = (B, mblocks, coutp // tn, cinp // tk)

    if ksize > 1:
        ratio = tm // th
        kernel = functools.partial(_dconv_bn_act_kernel,
                                   ksize=ksize, dil=dil, apply_relu=relu)
        in_specs = [
            pl.BlockSpec((1, tm, tk), lambda b, i, j, c: (b, i, c)),
            pl.BlockSpec((1, th, tk), lambda b, i, j, c: (b, (i + 1) * ratio, c)),
            pl.BlockSpec((ksize, tk, tn), lambda b, i, j, c: (0, c, j)),
            pl.BlockSpec((1, tn), lambda b, i, j, c: (0, j)),
            pl.BlockSpec((1, tn), lambda b, i, j, c: (0, j)),
        ]
        operands = (xin, xin, w, scale, bias)
        scratch = [pltpu.VMEM((tm, tn), jnp.float32),
                   pltpu.VMEM((tm + th, tk), xin.dtype)]
    else:
        kernel = functools.partial(_pw_bn_act_kernel, apply_relu=relu)
        in_specs = [
            pl.BlockSpec((1, tm, tk), lambda b, i, j, c: (b, i, c)),
            pl.BlockSpec((1, tk, tn), lambda b, i, j, c: (0, c, j)),
            pl.BlockSpec((1, tn), lambda b, i, j, c: (0, j)),
            pl.BlockSpec((1, tn), lambda b, i, j, c: (0, j)),
        ]
        operands = (xin, w, scale, bias)
        scratch = [pltpu.VMEM((tm, tn), jnp.float32)]

    out_isz = jnp.dtype(out_dtype).itemsize
    flops = 2 * B * mp * (ksize * cinp) * coutp
    bytes_accessed = (B * xin.shape[1] * cinp * 2 * (coutp // tn)   # x per N stripe
                      + w.size * 2 * B * mblocks                    # w per M block
                      + B * mp * coutp * out_isz)                   # output once

    return pl.pallas_call(
        kernel,
        out_shape=jax.ShapeDtypeStruct((B, mp, coutp), out_dtype),
        grid_spec=pltpu.PrefetchScalarGridSpec(
            num_scalar_prefetch=0,
            grid=grid,
            in_specs=in_specs,
            out_specs=pl.BlockSpec((1, tm, tn), lambda b, i, j, c: (b, i, j)),
            scratch_shapes=scratch,
        ),
        compiler_params=pltpu.CompilerParams(
            dimension_semantics=("parallel", "parallel", "parallel", "arbitrary"),
            vmem_limit_bytes=hw.vmem_limit),
        cost_estimate=pl.CostEstimate(flops=flops, transcendentals=0,
                                      bytes_accessed=bytes_accessed),
    )(*operands)


# ---------------------------------------------------------------------------
# One-time parameter preparation (transpose, BN fold, channel pad, bf16 cast)
# ---------------------------------------------------------------------------
class LayerPlan(NamedTuple):
    cin: int
    cout: int
    ksize: int
    dil: int
    pad: int
    relu: bool
    is_last: bool
    cinp: int
    coutp: int


def prepare_params(params, cfgs, hw):
    weights, plan = [], []
    n_layers = len(cfgs)
    for idx, (cfg, p) in enumerate(zip(cfgs, params)):
        cin, cout, ksize, dil, pad, has_bn = cfg
        cinp = _round_ch(cin, hw)
        coutp = _round_ch(cout, hw)

        # torch weight (Cout, Cin, K) -> (K, Cin, Cout), zero-padded channels.
        w = jnp.transpose(p["w"], (2, 1, 0))
        w = jnp.pad(w, ((0, 0), (0, cinp - cin), (0, coutp - cout))).astype(jnp.bfloat16)

        if has_bn:
            inv_std = p["gamma"] / jnp.sqrt(p["var"] + BN_EPS)
            scale = inv_std
            bias = (p["b"] - p["mean"]) * inv_std + p["beta"]
        else:
            scale = jnp.ones((cout,), jnp.float32)
            bias = p["b"].astype(jnp.float32)
        # Padded channel columns get scale=bias=0 so they stay exactly zero,
        # which is what allows padded activations to chain between layers.
        scale = jnp.pad(scale, (0, coutp - cout)).reshape(1, coutp).astype(jnp.float32)
        bias = jnp.pad(bias, (0, coutp - cout)).reshape(1, coutp).astype(jnp.float32)

        weights.append(dict(w=w, scale=scale, bias=bias))
        plan.append(LayerPlan(cin, cout, ksize, dil, pad, bool(has_bn),
                              idx == n_layers - 1, cinp, coutp))
    return weights, tuple(plan)


# ---------------------------------------------------------------------------
# Forward pass
# ---------------------------------------------------------------------------
def beluga_forward(x_ncl, weights, *, plan, hw):
    """x_ncl: (B, Cin, L) f32, PyTorch NCL layout.  Returns (B, Cout//4, 4, Lout)."""
    B, _, L = x_ncl.shape
    h_valid = jnp.transpose(x_ncl, (0, 2, 1)).astype(jnp.bfloat16)   # (B, L, C)
    lcur = L
    h_pad = None    # previous layer's padded (B, Mp, Coutp) Pallas output

    for lp, wts in zip(plan, weights):
        out_dtype = jnp.float32 if lp.is_last else jnp.bfloat16
        out_isz = 4 if lp.is_last else 2
        halo = (lp.ksize - 1) * lp.dil
        tn, tk = _plan_channel_tiles(lp.cinp, lp.coutp, lp.ksize, lp.dil, out_isz, hw)

        if lp.ksize > 1:
            lout = lcur + 2 * lp.pad - halo
            tm = _plan_tm_free(lout, halo, tn, tk, lp.ksize, out_isz, hw)
            th = _halo_tile(tm, halo)
            mblocks = pl.cdiv(lout, tm)
            lbig = (mblocks + 1) * tm               # one extra M block for the halo
            cin_cur = h_valid.shape[2]
            # ONE fused slice+pad per dilated layer: conv L padding, the extra
            # rows up to (mblocks+1)*tm, and the Cin->Cinp channel padding.
            xin = jnp.pad(h_valid,
                          ((0, 0),
                           (lp.pad, lbig - lp.pad - lcur),
                           (0, lp.cinp - cin_cur)))
        else:
            lout = lcur
            if (h_pad is not None and h_pad.shape[2] == lp.cinp
                    and h_pad.dtype == jnp.bfloat16):
                xin = h_pad                          # reuse padded output directly
            else:
                mp0 = _round_up(max(lout, 8), 64)
                cin_cur = h_valid.shape[2]
                xin = jnp.pad(h_valid, ((0, 0), (0, mp0 - lcur),
                                        (0, lp.cinp - cin_cur)))
            mp = xin.shape[1]
            tm = _plan_tm_divisor(mp, tn, tk, out_isz, hw)
            th = tm
            mblocks = mp // tm

        out_p = _conv_layer(xin, wts["w"], wts["scale"], wts["bias"],
                            ksize=lp.ksize, dil=lp.dil, relu=lp.relu,
                            tm=tm, tn=tn, tk=tk, th=th, mblocks=mblocks,
                            out_dtype=out_dtype, hw=hw)

        h_pad = out_p
        lcur = lout
        # Rows beyond lout hold bias garbage -> dropped; padded channel columns
        # are exact zeros and are kept for the next layer's input.
        h_valid = out_p[:, :lout, :]

    out = h_valid[:, :, :plan[-1].cout].astype(jnp.float32)      # (B, Lout, Cout)
    out_ncl = jnp.transpose(out, (0, 2, 1))                      # (B, Cout, Lout)
    return out_ncl.reshape(B, plan[-1].cout // 4, 4, lcur)


# ---------------------------------------------------------------------------
# Deterministic synthetic parameters + pure-JAX reference for validation
# ---------------------------------------------------------------------------
def init_params(key, cfgs):
    params = []
    for (cin, cout, ksize, _dil, _pad, has_bn) in cfgs:
        key, kw, kb, kg, kbe, km, kv = jax.random.split(key, 7)
        fan_in = cin * ksize
        w = jax.random.normal(kw, (cout, cin, ksize), jnp.float32) * jnp.sqrt(2.0 / fan_in)
        b = 0.01 * jax.random.normal(kb, (cout,), jnp.float32)
        d = dict(w=w, b=b)
        if has_bn:
            d["gamma"] = 1.0 + 0.05 * jax.random.normal(kg, (cout,), jnp.float32)
            d["beta"] = 0.05 * jax.random.normal(kbe, (cout,), jnp.float32)
            d["mean"] = 0.05 * jax.random.normal(km, (cout,), jnp.float32)
            d["var"] = 1.0 + 0.05 * jax.random.uniform(kv, (cout,), jnp.float32)
        params.append(d)
    return params


def beluga_reference(x, params, cfgs):
    """Pure-JAX f32 reference (eval-mode BN)."""
    h = x
    for (cin, cout, ksize, dil, pad, has_bn), p in zip(cfgs, params):
        h = lax.conv_general_dilated(
            h, p["w"], window_strides=(1,), padding=[(pad, pad)],
            rhs_dilation=(dil,), dimension_numbers=("NCH", "OIH", "NCH"))
        h = h + p["b"][None, :, None]
        if has_bn:
            inv = (p["gamma"] / jnp.sqrt(p["var"] + BN_EPS))[None, :, None]
            h = (h - p["mean"][None, :, None]) * inv + p["beta"][None, :, None]
            h = jnp.maximum(h, 0.0)
    return h.reshape(h.shape[0], h.shape[1] // 4, 4, h.shape[2])


if __name__ == "__main__":
    key = jax.random.PRNGKey(0)
    kx, kp = jax.random.split(key)

    # Small smoke-test configuration; the full BELUGA_LAYER_CFGS / L=2000 model
    # runs through the identical code path but is too heavy for the sandbox.
    cfgs = TEST_LAYER_CFGS
    B, L = 2, 64
    x = jax.random.normal(kx, (B, cfgs[0][0], L), jnp.float32)

    hw = detect_hw()
    raw_params = init_params(kp, cfgs)
    weights, plan = prepare_params(raw_params, cfgs, hw)   # one-time weight prep
    weights = jax.block_until_ready(weights)

    fwd = jax.jit(functools.partial(beluga_forward, plan=plan, hw=hw))
    out = jax.block_until_ready(fwd(x, weights))

    cout_last = cfgs[-1][1]
    assert out.shape == (B, cout_last // 4, 4, L), out.shape
    assert out.dtype == jnp.float32
    assert bool(jnp.all(jnp.isfinite(out)))

    # Validate against the pure-JAX f32 reference (bf16 intermediates in the
    # Pallas path -> small relative tolerance on the L2 norm).
    ref = jax.jit(functools.partial(beluga_reference, cfgs=cfgs))(x, raw_params)
    rel_err = jnp.linalg.norm((out - ref).ravel()) / (jnp.linalg.norm(ref.ravel()) + 1e-6)
    assert float(rel_err) < 0.08, float(rel_err)

    print("KERNEL_OK")
</pallas_src>

<mosaic_0001>
module attributes {stable_mosaic.version = 11 : i64} {
  func.func @_dconv_bn_act_kernel(%arg0: i32, %arg1: i32, %arg2: i32, %arg3: i32, %arg4: memref<1x64x128xbf16, #tpu.memory_space<vmem>>, %arg5: memref<1x16x128xbf16, #tpu.memory_space<vmem>>, %arg6: memref<8x128x128xbf16, #tpu.memory_space<vmem>>, %arg7: memref<1x128xf32, #tpu.memory_space<vmem>>, %arg8: memref<1x128xf32, #tpu.memory_space<vmem>>, %arg9: memref<1x64x128xbf16, #tpu.memory_space<vmem>>, %arg10: memref<64x128xf32, #tpu.memory_space<vmem>>, %arg11: memref<80x128xbf16, #tpu.memory_space<vmem>>) attributes {dimension_semantics = [#tpu.dimension_semantics<parallel>, #tpu.dimension_semantics<parallel>, #tpu.dimension_semantics<parallel>, #tpu.dimension_semantics<arbitrary>], iteration_bounds = array<i64: 2, 1, 1, 1>, scalar_prefetch = 0 : i64, scratch_operands = 2 : i64, tpu.core_type = #tpu.core_type<tc>, window_params = [{transform_indices = @transform_0, window_bounds = array<i64: 1, 64, 128>}, {transform_indices = @transform_1, window_bounds = array<i64: 1, 16, 128>}, {transform_indices = @transform_2, window_bounds = array<i64: 8, 128, 128>}, {transform_indices = @transform_3, window_bounds = array<i64: 1, 128>}, {transform_indices = @transform_4, window_bounds = array<i64: 1, 128>}, {transform_indices = @transform_5, window_bounds = array<i64: 1, 64, 128>}]} {
    %c0 = arith.constant 0 : index
    %c0_0 = arith.constant 0 : index
    %c0_1 = arith.constant 0 : index
    %0 = vector.load %arg4[%c0, %c0_0, %c0_1] : memref<1x64x128xbf16, #tpu.memory_space<vmem>>, vector<1x64x128xbf16>
    %1 = vector.shape_cast %0 : vector<1x64x128xbf16> to vector<64x128xbf16>
    %c0_2 = arith.constant 0 : index
    %c0_3 = arith.constant 0 : index
    %2 = vector.load %arg11[%c0_2, %c0_3] : memref<80x128xbf16, #tpu.memory_space<vmem>>, vector<64x128xbf16>
    tpu.vector_store %arg11[%c0_2, %c0_3], %1 {strides = array<i32>} : memref<80x128xbf16, #tpu.memory_space<vmem>>, vector<64x128xbf16>,
    %c0_4 = arith.constant 0 : index
    %c0_5 = arith.constant 0 : index
    %c0_6 = arith.constant 0 : index
    %3 = vector.load %arg5[%c0_4, %c0_5, %c0_6] : memref<1x16x128xbf16, #tpu.memory_space<vmem>>, vector<1x16x128xbf16>
    %4 = vector.shape_cast %3 : vector<1x16x128xbf16> to vector<16x128xbf16>
    %c64 = arith.constant 64 : index
    %c0_7 = arith.constant 0 : index
    %5 = vector.load %arg11[%c64, %c0_7] : memref<80x128xbf16, #tpu.memory_space<vmem>>, vector<16x128xbf16>
    tpu.vector_store %arg11[%c64, %c0_7], %4 {strides = array<i32>} : memref<80x128xbf16, #tpu.memory_space<vmem>>, vector<16x128xbf16>,
    %c0_8 = arith.constant 0 : index
    %c0_9 = arith.constant 0 : index
    %c0_10 = arith.constant 0 : index
    %6 = vector.load %arg6[%c0_8, %c0_9, %c0_10] : memref<8x128x128xbf16, #tpu.memory_space<vmem>>, vector<1x128x128xbf16>
    %7 = vector.shape_cast %6 : vector<1x128x128xbf16> to vector<128x128xbf16>
    %cst = arith.constant dense<0.000000e+00> : vector<64x128xf32>
    %8 = tpu.matmul %1, %7, %cst {dimension_numbers = #tpu.dot_dimension_numbers<[1], [0], [0], [1], [0, 0, 1, 1], [], []>} : vector<64x128xbf16>, vector<128x128xbf16>, vector<64x128xf32> -> vector<64x128xf32>
    %c0_i32 = arith.constant 0 : i32
    %9 = arith.cmpi eq, %arg3, %c0_i32 : i32
    %10 = arith.extui %9 : i1 to i32
    %c0_i32_11 = arith.constant 0 : i32
    %11 = arith.cmpi ne, %10, %c0_i32_11 : i32
    scf.if %11 {
      %c0_79 = arith.constant 0 : index
      %c0_80 = arith.constant 0 : index
      %67 = vector.load %arg10[%c0_79, %c0_80] : memref<64x128xf32, #tpu.memory_space<vmem>>, vector<64x128xf32>
      tpu.vector_store %arg10[%c0_79, %c0_80], %8 {strides = array<i32>} : memref<64x128xf32, #tpu.memory_space<vmem>>, vector<64x128xf32>,
    } else {
    }
    %c0_i32_12 = arith.constant 0 : i32
    %12 = arith.cmpi ne, %arg3, %c0_i32_12 : i32
    %13 = arith.extui %12 : i1 to i32
    %c0_i32_13 = arith.constant 0 : i32
    %14 = arith.cmpi ne, %13, %c0_i32_13 : i32
    scf.if %14 {
      %c0_79 = arith.constant 0 : index
      %c0_80 = arith.constant 0 : index
      %67 = vector.load %arg10[%c0_79, %c0_80] : memref<64x128xf32, #tpu.memory_space<vmem>>, vector<64x128xf32>
      %68 = arith.addf %67, %8 : vector<64x128xf32>
      %c0_81 = arith.constant 0 : index
      %c0_82 = arith.constant 0 : index
      %69 = vector.load %arg10[%c0_81, %c0_82] : memref<64x128xf32, #tpu.memory_space<vmem>>, vector<64x128xf32>
      tpu.vector_store %arg10[%c0_81, %c0_82], %68 {strides = array<i32>} : memref<64x128xf32, #tpu.memory_space<vmem>>, vector<64x128xf32>,
    } else {
    }
    %c1 = arith.constant 1 : index
    %c0_14 = arith.constant 0 : index
    %15 = vector.load %arg11[%c1, %c0_14] : memref<80x128xbf16, #tpu.memory_space<vmem>>, vector<64x128xbf16>
    %c0_15 = arith.constant 0 : index
    %c0_16 = arith.constant 0 : index
    %16 = vector.load %arg10[%c0_15, %c0_16] : memref<64x128xf32, #tpu.memory_space<vmem>>, vector<64x128xf32>
    %c1_17 = arith.constant 1 : index
    %c0_18 = arith.constant 0 : index
    %c0_19 = arith.constant 0 : index
    %17 = vector.load %arg6[%c1_17, %c0_18, %c0_19] : memref<8x128x128xbf16, #tpu.memory_space<vmem>>, vector<1x128x128xbf16>
    %18 = vector.shape_cast %17 : vector<1x128x128xbf16> to vector<128x128xbf16>
    %cst_20 = arith.constant dense<0.000000e+00> : vector<64x128xf32>
    %19 = tpu.matmul %15, %18, %cst_20 {dimension_numbers = #tpu.dot_dimension_numbers<[1], [0], [0], [1], [0, 0, 1, 1], [], []>} : vector<64x128xbf16>, vector<128x128xbf16>, vector<64x128xf32> -> vector<64x128xf32>
    %20 = arith.addf %16, %19 : vector<64x128xf32>
    %c0_21 = arith.constant 0 : index
    %c0_22 = arith.constant 0 : index
    %21 = vector.load %arg10[%c0_21, %c0_22] : memref<64x128xf32, #tpu.memory_space<vmem>>, vector<64x128xf32>
    tpu.vector_store %arg10[%c0_21, %c0_22], %20 {strides = array<i32>} : memref<64x128xf32, #tpu.memory_space<vmem>>, vector<64x128xf32>,
    %c2 = arith.constant 2 : index
    %c0_23 = arith.constant 0 : index
    %22 = vector.load %arg11[%c2, %c0_23] : memref<80x128xbf16, #tpu.memory_space<vmem>>, vector<64x128xbf16>
    %c0_24 = arith.constant 0 : index
    %c0_25 = arith.constant 0 : index
    %23 = vector.load %arg10[%c0_24, %c0_25] : memref<64x128xf32, #tpu.memory_space<vmem>>, vector<64x128xf32>
    %c2_26 = arith.constant 2 : index
    %c0_27 = arith.constant 0 : index
    %c0_28 = arith.constant 0 : index
    %24 = vector.load %arg6[%c2_26, %c0_27, %c0_28] : memref<8x128x128xbf16, #tpu.memory_space<vmem>>, vector<1x128x128xbf16>
    %25 = vector.shape_cast %24 : vector<1x128x128xbf16> to vector<128x128xbf16>
    %cst_29 = arith.constant dense<0.000000e+00> : vector<64x128xf32>
    %26 = tpu.matmul %22, %25, %cst_29 {dimension_numbers = #tpu.dot_dimension_numbers<[1], [0], [0], [1], [0, 0, 1, 1], [], []>} : vector<64x128xbf16>, vector<128x128xbf16>, vector<64x128xf32> -> vector<64x128xf32>
    %27 = arith.addf %23, %26 : vector<64x128xf32>
    %c0_30 = arith.constant 0 : index
    %c0_31 = arith.constant 0 : index
    %28 = vector.load %arg10[%c0_30, %c0_31] : memref<64x128xf32, #tpu.memory_space<vmem>>, vector<64x128xf32>
    tpu.vector_store %arg10[%c0_30, %c0_31], %27 {strides = array<i32>} : memref<64x128xf32, #tpu.memory_space<vmem>>, vector<64x128xf32>,
    %c3 = arith.constant 3 : index
    %c0_32 = arith.constant 0 : index
    %29 = vector.load %arg11[%c3, %c0_32] : memref<80x128xbf16, #tpu.memory_space<vmem>>, vector<64x128xbf16>
    %c0_33 = arith.constant 0 : index
    %c0_34 = arith.constant 0 : index
    %30 = vector.load %arg10[%c0_33, %c0_34] : memref<64x128xf32, #tpu.memory_space<vmem>>, vector<64x128xf32>
    %c3_35 = arith.constant 3 : index
    %c0_36 = arith.constant 0 : index
    %c0_37 = arith.constant 0 : index
    %31 = vector.load %arg6[%c3_35, %c0_36, %c0_37] : memref<8x128x128xbf16, #tpu.memory_space<vmem>>, vector<1x128x128xbf16>
    %32 = vector.shape_cast %31 : vector<1x128x128xbf16> to vector<128x128xbf16>
    %cst_38 = arith.constant dense<0.000000e+00> : vector<64x128xf32>
    %33 = tpu.matmul %29, %32, %cst_38 {dimension_numbers = #tpu.dot_dimension_numbers<[1], [0], [0], [1], [0, 0, 1, 1], [], []>} : vector<64x128xbf16>, vector<128x128xbf16>, vector<64x128xf32> -> vector<64x128xf32>
    %34 = arith.addf %30, %33 : vector<64x128xf32>
    %c0_39 = arith.constant 0 : index
    %c0_40 = arith.constant 0 : index
    %35 = vector.load %arg10[%c0_39, %c0_40] : memref<64x128xf32, #tpu.memory_space<vmem>>, vector<64x128xf32>
    tpu.vector_store %arg10[%c0_39, %c0_40], %34 {strides = array<i32>} : memref<64x128xf32, #tpu.memory_space<vmem>>, vector<64x128xf32>,
    %c4 = arith.constant 4 : index
    %c0_41 = arith.constant 0 : index
    %36 = vector.load %arg11[%c4, %c0_41] : memref<80x128xbf16, #tpu.memory_space<vmem>>, vector<64x128xbf16>
    %c0_42 = arith.constant 0 : index
    %c0_43 = arith.constant 0 : index
    %37 = vector.load %arg10[%c0_42, %c0_43] : memref<64x128xf32, #tpu.memory_space<vmem>>, vector<64x128xf32>
    %c4_44 = arith.constant 4 : index
    %c0_45 = arith.constant 0 : index
    %c0_46 = arith.constant 0 : index
    %38 = vector.load %arg6[%c4_44, %c0_45, %c0_46] : memref<8x128x128xbf16, #tpu.memory_space<vmem>>, vector<1x128x128xbf16>
    %39 = vector.shape_cast %38 : vector<1x128x128xbf16> to vector<128x128xbf16>
    %cst_47 = arith.constant dense<0.000000e+00> : vector<64x128xf32>
    %40 = tpu.matmul %36, %39, %cst_47 {dimension_numbers = #tpu.dot_dimension_numbers<[1], [0], [0], [1], [0, 0, 1, 1], [], []>} : vector<64x128xbf16>, vector<128x128xbf16>, vector<64x128xf32> -> vector<64x128xf32>
    %41 = arith.addf %37, %40 : vector<64x128xf32>
    %c0_48 = arith.constant 0 : index
    %c0_49 = arith.constant 0 : index
    %42 = vector.load %arg10[%c0_48, %c0_49] : memref<64x128xf32, #tpu.memory_space<vmem>>, vector<64x128xf32>
    tpu.vector_store %arg10[%c0_48, %c0_49], %41 {strides = array<i32>} : memref<64x128xf32, #tpu.memory_space<vmem>>, vector<64x128xf32>,
    %c5 = arith.constant 5 : index
    %c0_50 = arith.constant 0 : index
    %43 = vector.load %arg11[%c5, %c0_50] : memref<80x128xbf16, #tpu.memory_space<vmem>>, vector<64x128xbf16>
    %c0_51 = arith.constant 0 : index
    %c0_52 = arith.constant 0 : index
    %44 = vector.load %arg10[%c0_51, %c0_52] : memref<64x128xf32, #tpu.memory_space<vmem>>, vector<64x128xf32>
    %c5_53 = arith.constant 5 : index
    %c0_54 = arith.constant 0 : index
    %c0_55 = arith.constant 0 : index
    %45 = vector.load %arg6[%c5_53, %c0_54, %c0_55] : memref<8x128x128xbf16, #tpu.memory_space<vmem>>, vector<1x128x128xbf16>
    %46 = vector.shape_cast %45 : vector<1x128x128xbf16> to vector<128x128xbf16>
    %cst_56 = arith.constant dense<0.000000e+00> : vector<64x128xf32>
    %47 = tpu.matmul %43, %46, %cst_56 {dimension_numbers = #tpu.dot_dimension_numbers<[1], [0], [0], [1], [0, 0, 1, 1], [], []>} : vector<64x128xbf16>, vector<128x128xbf16>, vector<64x128xf32> -> vector<64x128xf32>
    %48 = arith.addf %44, %47 : vector<64x128xf32>
    %c0_57 = arith.constant 0 : index
    %c0_58 = arith.constant 0 : index
    %49 = vector.load %arg10[%c0_57, %c0_58] : memref<64x128xf32, #tpu.memory_space<vmem>>, vector<64x128xf32>
    tpu.vector_store %arg10[%c0_57, %c0_58], %48 {strides = array<i32>} : memref<64x128xf32, #tpu.memory_space<vmem>>, vector<64x128xf32>,
    %c6 = arith.constant 6 : index
    %c0_59 = arith.constant 0 : index
    %50 = vector.load %arg11[%c6, %c0_59] : memref<80x128xbf16, #tpu.memory_space<vmem>>, vector<64x128xbf16>
    %c0_60 = arith.constant 0 : index
    %c0_61 = arith.constant 0 : index
    %51 = vector.load %arg10[%c0_60, %c0_61] : memref<64x128xf32, #tpu.memory_space<vmem>>, vector<64x128xf32>
    %c6_62 = arith.constant 6 : index
    %c0_63 = arith.constant 0 : index
    %c0_64 = arith.constant 0 : index
    %52 = vector.load %arg6[%c6_62, %c0_63, %c0_64] : memref<8x128x128xbf16, #tpu.memory_space<vmem>>, vector<1x128x128xbf16>
    %53 = vector.shape_cast %52 : vector<1x128x128xbf16> to vector<128x128xbf16>
    %cst_65 = arith.constant dense<0.000000e+00> : vector<64x128xf32>
    %54 = tpu.matmul %50, %53, %cst_65 {dimension_numbers = #tpu.dot_dimension_numbers<[1], [0], [0], [1], [0, 0, 1, 1], [], []>} : vector<64x128xbf16>, vector<128x128xbf16>, vector<64x128xf32> -> vector<64x128xf32>
    %55 = arith.addf %51, %54 : vector<64x128xf32>
    %c0_66 = arith.constant 0 : index
    %c0_67 = arith.constant 0 : index
    %56 = vector.load %arg10[%c0_66, %c0_67] : memref<64x128xf32, #tpu.memory_space<vmem>>, vector<64x128xf32>
    tpu.vector_store %arg10[%c0_66, %c0_67], %55 {strides = array<i32>} : memref<64x128xf32, #tpu.memory_space<vmem>>, vector<64x128xf32>,
    %c7 = arith.constant 7 : index
    %c0_68 = arith.constant 0 : index
    %57 = vector.load %arg11[%c7, %c0_68] : memref<80x128xbf16, #tpu.memory_space<vmem>>, vector<64x128xbf16>
    %c0_69 = arith.constant 0 : index
    %c0_70 = arith.constant 0 : index
    %58 = vector.load %arg10[%c0_69, %c0_70] : memref<64x128xf32, #tpu.memory_space<vmem>>, vector<64x128xf32>
    %c7_71 = arith.constant 7 : index
    %c0_72 = arith.constant 0 : index
    %c0_73 = arith.constant 0 : index
    %59 = vector.load %arg6[%c7_71, %c0_72, %c0_73] : memref<8x128x128xbf16, #tpu.memory_space<vmem>>, vector<1x128x128xbf16>
    %60 = vector.shape_cast %59 : vector<1x128x128xbf16> to vector<128x128xbf16>
    %cst_74 = arith.constant dense<0.000000e+00> : vector<64x128xf32>
    %61 = tpu.matmul %57, %60, %cst_74 {dimension_numbers = #tpu.dot_dimension_numbers<[1], [0], [0], [1], [0, 0, 1, 1], [], []>} : vector<64x128xbf16>, vector<128x128xbf16>, vector<64x128xf32> -> vector<64x128xf32>
    %62 = arith.addf %58, %61 : vector<64x128xf32>
    %c0_75 = arith.constant 0 : index
    %c0_76 = arith.constant 0 : index
    %63 = vector.load %arg10[%c0_75, %c0_76] : memref<64x128xf32, #tpu.memory_space<vmem>>, vector<64x128xf32>
    tpu.vector_store %arg10[%c0_75, %c0_76], %62 {strides = array<i32>} : memref<64x128xf32, #tpu.memory_space<vmem>>, vector<64x128xf32>,
    %c0_i32_77 = arith.constant 0 : i32
    %64 = arith.cmpi eq, %arg3, %c0_i32_77 : i32
    %65 = arith.extui %64 : i1 to i32
    %c0_i32_78 = arith.constant 0 : i32
    %66 = arith.cmpi ne, %65, %c0_i32_78 : i32
    scf.if %66 {
      %c0_79 = arith.constant 0 : index
      %c0_80 = arith.constant 0 : index
      %67 = vector.load %arg10[%c0_79, %c0_80] : memref<64x128xf32, #tpu.memory_space<vmem>>, vector<64x128xf32>
      %c0_81 = arith.constant 0 : index
      %c0_82 = arith.constant 0 : index
      %68 = vector.load %arg7[%c0_81, %c0_82] : memref<1x128xf32, #tpu.memory_space<vmem>>, vector<1x128xf32>
      %69 = vector.broadcast %68 : vector<1x128xf32> to vector<64x128xf32>
      %70 = arith.mulf %67, %69 : vector<64x128xf32>
      %c0_83 = arith.constant 0 : index
      %c0_84 = arith.constant 0 : index
      %71 = vector.load %arg8[%c0_83, %c0_84] : memref<1x128xf32, #tpu.memory_space<vmem>>, vector<1x128xf32>
      %72 = vector.broadcast %71 : vector<1x128xf32> to vector<64x128xf32>
      %73 = arith.addf %70, %72 : vector<64x128xf32>
      %cst_85 = arith.constant 0.000000e+00 : f32
      %74 = vector.broadcast %cst_85 : f32 to vector<64x128xf32>
      %75 = arith.maximumf %73, %74 : vector<64x128xf32>
      %76 = arith.truncf %75 : vector<64x128xf32> to vector<64x128xbf16>
      %c0_86 = arith.constant 0 : index
      %c0_87 = arith.constant 0 : index
      %c0_88 = arith.constant 0 : index
      %77 = vector.load %arg9[%c0_86, %c0_87, %c0_88] : memref<1x64x128xbf16, #tpu.memory_space<vmem>>, vector<1x64x128xbf16>
      %78 = vector.shape_cast %77 : vector<1x64x128xbf16> to vector<64x128xbf16>
      %79 = vector.shape_cast %76 : vector<64x128xbf16> to vector<1x64x128xbf16>
      tpu.vector_store %arg9[%c0_86, %c0_87, %c0_88], %79 {strides = array<i32>} : memref<1x64x128xbf16, #tpu.memory_space<vmem>>, vector<1x64x128xbf16>,
    } else {
    }
    return
  }
  func.func @transform_0(%arg0: i32, %arg1: i32, %arg2: i32, %arg3: i32) -> (i32, i32, i32) {
    %c0_i32 = arith.constant 0 : i32
    return %arg0, %arg1, %arg3 : i32, i32, i32
  }
  func.func @transform_1(%arg0: i32, %arg1: i32, %arg2: i32, %arg3: i32) -> (i32, i32, i32) {
    %c1_i32 = arith.constant 1 : i32
    %0 = arith.addi %arg1, %c1_i32 : i32
    %c4_i32 = arith.constant 4 : i32
    %1 = arith.muli %0, %c4_i32 : i32
    %c0_i32 = arith.constant 0 : i32
    return %arg0, %1, %arg3 : i32, i32, i32
  }
  func.func @transform_2(%arg0: i32, %arg1: i32, %arg2: i32, %arg3: i32) -> (i32, i32, i32) {
    %c0_i32 = arith.constant 0 : i32
    %c0_i32_0 = arith.constant 0 : i32
    return %c0_i32, %arg3, %arg2 : i32, i32, i32
  }
  func.func @transform_3(%arg0: i32, %arg1: i32, %arg2: i32, %arg3: i32) -> (i32, i32) {
    %c0_i32 = arith.constant 0 : i32
    %c0_i32_0 = arith.constant 0 : i32
    return %c0_i32, %arg2 : i32, i32
  }
  func.func @transform_4(%arg0: i32, %arg1: i32, %arg2: i32, %arg3: i32) -> (i32, i32) {
    %c0_i32 = arith.constant 0 : i32
    %c0_i32_0 = arith.constant 0 : i32
    return %c0_i32, %arg2 : i32, i32
  }
  func.func @transform_5(%arg0: i32, %arg1: i32, %arg2: i32, %arg3: i32) -> (i32, i32, i32) {
    %c0_i32 = arith.constant 0 : i32
    return %arg0, %arg1, %arg2 : i32, i32, i32
  }
}

module attributes {stable_mosaic.version = 11 : i64} {
  func.func @_dconv_bn_act_kernel(%arg0: i32, %arg1: i32, %arg2: i32, %arg3: i32, %arg4: memref<1x64x128xbf16, #tpu.memory_space<vmem>>, %arg5: memref<1x16x128xbf16, #tpu.memory_space<vmem>>, %arg6: memref<8x128x128xbf16, #tpu.memory_space<vmem>>, %arg7: memref<1x128xf32, #tpu.memory_space<vmem>>, %arg8: memref<1x128xf32, #tpu.memory_space<vmem>>, %arg9: memref<1x64x128xbf16, #tpu.memory_space<vmem>>, %arg10: memref<64x128xf32, #tpu.memory_space<vmem>>, %arg11: memref<80x128xbf16, #tpu.memory_space<vmem>>) attributes {dimension_semantics = [#tpu.dimension_semantics<parallel>, #tpu.dimension_semantics<parallel>, #tpu.dimension_semantics<parallel>, #tpu.dimension_semantics<arbitrary>], iteration_bounds = array<i64: 2, 1, 1, 1>, scalar_prefetch = 0 : i64, scratch_operands = 2 : i64, tpu.core_type = #tpu.core_type<tc>, window_params = [{transform_indices = @transform_0, window_bounds = array<i64: 1, 64, 128>}, {transform_indices = @transform_1, window_bounds = array<i64: 1, 16, 128>}, {transform_indices = @transform_2, window_bounds = array<i64: 8, 128, 128>}, {transform_indices = @transform_3, window_bounds = array<i64: 1, 128>}, {transform_indices = @transform_4, window_bounds = array<i64: 1, 128>}, {transform_indices = @transform_5, window_bounds = array<i64: 1, 64, 128>}]} {
    %c0 = arith.constant 0 : index
    %c0_0 = arith.constant 0 : index
    %c0_1 = arith.constant 0 : index
    %0 = vector.load %arg4[%c0, %c0_0, %c0_1] : memref<1x64x128xbf16, #tpu.memory_space<vmem>>, vector<1x64x128xbf16>
    %1 = vector.shape_cast %0 : vector<1x64x128xbf16> to vector<64x128xbf16>
    %c0_2 = arith.constant 0 : index
    %c0_3 = arith.constant 0 : index
    %2 = vector.load %arg11[%c0_2, %c0_3] : memref<80x128xbf16, #tpu.memory_space<vmem>>, vector<64x128xbf16>
    tpu.vector_store %arg11[%c0_2, %c0_3], %1 {strides = array<i32>} : memref<80x128xbf16, #tpu.memory_space<vmem>>, vector<64x128xbf16>,
    %c0_4 = arith.constant 0 : index
    %c0_5 = arith.constant 0 : index
    %c0_6 = arith.constant 0 : index
    %3 = vector.load %arg5[%c0_4, %c0_5, %c0_6] : memref<1x16x128xbf16, #tpu.memory_space<vmem>>, vector<1x16x128xbf16>
    %4 = vector.shape_cast %3 : vector<1x16x128xbf16> to vector<16x128xbf16>
    %c64 = arith.constant 64 : index
    %c0_7 = arith.constant 0 : index
    %5 = vector.load %arg11[%c64, %c0_7] : memref<80x128xbf16, #tpu.memory_space<vmem>>, vector<16x128xbf16>
    tpu.vector_store %arg11[%c64, %c0_7], %4 {strides = array<i32>} : memref<80x128xbf16, #tpu.memory_space<vmem>>, vector<16x128xbf16>,
    %c0_8 = arith.constant 0 : index
    %c0_9 = arith.constant 0 : index
    %c0_10 = arith.constant 0 : index
    %6 = vector.load %arg6[%c0_8, %c0_9, %c0_10] : memref<8x128x128xbf16, #tpu.memory_space<vmem>>, vector<1x128x128xbf16>
    %7 = vector.shape_cast %6 : vector<1x128x128xbf16> to vector<128x128xbf16>
    %cst = arith.constant dense<0.000000e+00> : vector<64x128xf32>
    %8 = tpu.matmul %1, %7, %cst {dimension_numbers = #tpu.dot_dimension_numbers<[1], [0], [0], [1], [0, 0, 1, 1], [], []>} : vector<64x128xbf16>, vector<128x128xbf16>, vector<64x128xf32> -> vector<64x128xf32>
    %c0_i32 = arith.constant 0 : i32
    %9 = arith.cmpi eq, %arg3, %c0_i32 : i32
    %10 = arith.extui %9 : i1 to i32
    %c0_i32_11 = arith.constant 0 : i32
    %11 = arith.cmpi ne, %10, %c0_i32_11 : i32
    scf.if %11 {
      %c0_79 = arith.constant 0 : index
      %c0_80 = arith.constant 0 : index
      %67 = vector.load %arg10[%c0_79, %c0_80] : memref<64x128xf32, #tpu.memory_space<vmem>>, vector<64x128xf32>
      tpu.vector_store %arg10[%c0_79, %c0_80], %8 {strides = array<i32>} : memref<64x128xf32, #tpu.memory_space<vmem>>, vector<64x128xf32>,
    } else {
    }
    %c0_i32_12 = arith.constant 0 : i32
    %12 = arith.cmpi ne, %arg3, %c0_i32_12 : i32
    %13 = arith.extui %12 : i1 to i32
    %c0_i32_13 = arith.constant 0 : i32
    %14 = arith.cmpi ne, %13, %c0_i32_13 : i32
    scf.if %14 {
      %c0_79 = arith.constant 0 : index
      %c0_80 = arith.constant 0 : index
      %67 = vector.load %arg10[%c0_79, %c0_80] : memref<64x128xf32, #tpu.memory_space<vmem>>, vector<64x128xf32>
      %68 = arith.addf %67, %8 : vector<64x128xf32>
      %c0_81 = arith.constant 0 : index
      %c0_82 = arith.constant 0 : index
      %69 = vector.load %arg10[%c0_81, %c0_82] : memref<64x128xf32, #tpu.memory_space<vmem>>, vector<64x128xf32>
      tpu.vector_store %arg10[%c0_81, %c0_82], %68 {strides = array<i32>} : memref<64x128xf32, #tpu.memory_space<vmem>>, vector<64x128xf32>,
    } else {
    }
    %c1 = arith.constant 1 : index
    %c0_14 = arith.constant 0 : index
    %15 = vector.load %arg11[%c1, %c0_14] : memref<80x128xbf16, #tpu.memory_space<vmem>>, vector<64x128xbf16>
    %c0_15 = arith.constant 0 : index
    %c0_16 = arith.constant 0 : index
    %16 = vector.load %arg10[%c0_15, %c0_16] : memref<64x128xf32, #tpu.memory_space<vmem>>, vector<64x128xf32>
    %c1_17 = arith.constant 1 : index
    %c0_18 = arith.constant 0 : index
    %c0_19 = arith.constant 0 : index
    %17 = vector.load %arg6[%c1_17, %c0_18, %c0_19] : memref<8x128x128xbf16, #tpu.memory_space<vmem>>, vector<1x128x128xbf16>
    %18 = vector.shape_cast %17 : vector<1x128x128xbf16> to vector<128x128xbf16>
    %cst_20 = arith.constant dense<0.000000e+00> : vector<64x128xf32>
    %19 = tpu.matmul %15, %18, %cst_20 {dimension_numbers = #tpu.dot_dimension_numbers<[1], [0], [0], [1], [0, 0, 1, 1], [], []>} : vector<64x128xbf16>, vector<128x128xbf16>, vector<64x128xf32> -> vector<64x128xf32>
    %20 = arith.addf %16, %19 : vector<64x128xf32>
    %c0_21 = arith.constant 0 : index
    %c0_22 = arith.constant 0 : index
    %21 = vector.load %arg10[%c0_21, %c0_22] : memref<64x128xf32, #tpu.memory_space<vmem>>, vector<64x128xf32>
    tpu.vector_store %arg10[%c0_21, %c0_22], %20 {strides = array<i32>} : memref<64x128xf32, #tpu.memory_space<vmem>>, vector<64x128xf32>,
    %c2 = arith.constant 2 : index
    %c0_23 = arith.constant 0 : index
    %22 = vector.load %arg11[%c2, %c0_23] : memref<80x128xbf16, #tpu.memory_space<vmem>>, vector<64x128xbf16>
    %c0_24 = arith.constant 0 : index
    %c0_25 = arith.constant 0 : index
    %23 = vector.load %arg10[%c0_24, %c0_25] : memref<64x128xf32, #tpu.memory_space<vmem>>, vector<64x128xf32>
    %c2_26 = arith.constant 2 : index
    %c0_27 = arith.constant 0 : index
    %c0_28 = arith.constant 0 : index
    %24 = vector.load %arg6[%c2_26, %c0_27, %c0_28] : memref<8x128x128xbf16, #tpu.memory_space<vmem>>, vector<1x128x128xbf16>
    %25 = vector.shape_cast %24 : vector<1x128x128xbf16> to vector<128x128xbf16>
    %cst_29 = arith.constant dense<0.000000e+00> : vector<64x128xf32>
    %26 = tpu.matmul %22, %25, %cst_29 {dimension_numbers = #tpu.dot_dimension_numbers<[1], [0], [0], [1], [0, 0, 1, 1], [], []>} : vector<64x128xbf16>, vector<128x128xbf16>, vector<64x128xf32> -> vector<64x128xf32>
    %27 = arith.addf %23, %26 : vector<64x128xf32>
    %c0_30 = arith.constant 0 : index
    %c0_31 = arith.constant 0 : index
    %28 = vector.load %arg10[%c0_30, %c0_31] : memref<64x128xf32, #tpu.memory_space<vmem>>, vector<64x128xf32>
    tpu.vector_store %arg10[%c0_30, %c0_31], %27 {strides = array<i32>} : memref<64x128xf32, #tpu.memory_space<vmem>>, vector<64x128xf32>,
    %c3 = arith.constant 3 : index
    %c0_32 = arith.constant 0 : index
    %29 = vector.load %arg11[%c3, %c0_32] : memref<80x128xbf16, #tpu.memory_space<vmem>>, vector<64x128xbf16>
    %c0_33 = arith.constant 0 : index
    %c0_34 = arith.constant 0 : index
    %30 = vector.load %arg10[%c0_33, %c0_34] : memref<64x128xf32, #tpu.memory_space<vmem>>, vector<64x128xf32>
    %c3_35 = arith.constant 3 : index
    %c0_36 = arith.constant 0 : index
    %c0_37 = arith.constant 0 : index
    %31 = vector.load %arg6[%c3_35, %c0_36, %c0_37] : memref<8x128x128xbf16, #tpu.memory_space<vmem>>, vector<1x128x128xbf16>
    %32 = vector.shape_cast %31 : vector<1x128x128xbf16> to vector<128x128xbf16>
    %cst_38 = arith.constant dense<0.000000e+00> : vector<64x128xf32>
    %33 = tpu.matmul %29, %32, %cst_38 {dimension_numbers = #tpu.dot_dimension_numbers<[1], [0], [0], [1], [0, 0, 1, 1], [], []>} : vector<64x128xbf16>, vector<128x128xbf16>, vector<64x128xf32> -> vector<64x128xf32>
    %34 = arith.addf %30, %33 : vector<64x128xf32>
    %c0_39 = arith.constant 0 : index
    %c0_40 = arith.constant 0 : index
    %35 = vector.load %arg10[%c0_39, %c0_40] : memref<64x128xf32, #tpu.memory_space<vmem>>, vector<64x128xf32>
    tpu.vector_store %arg10[%c0_39, %c0_40], %34 {strides = array<i32>} : memref<64x128xf32, #tpu.memory_space<vmem>>, vector<64x128xf32>,
    %c4 = arith.constant 4 : index
    %c0_41 = arith.constant 0 : index
    %36 = vector.load %arg11[%c4, %c0_41] : memref<80x128xbf16, #tpu.memory_space<vmem>>, vector<64x128xbf16>
    %c0_42 = arith.constant 0 : index
    %c0_43 = arith.constant 0 : index
    %37 = vector.load %arg10[%c0_42, %c0_43] : memref<64x128xf32, #tpu.memory_space<vmem>>, vector<64x128xf32>
    %c4_44 = arith.constant 4 : index
    %c0_45 = arith.constant 0 : index
    %c0_46 = arith.constant 0 : index
    %38 = vector.load %arg6[%c4_44, %c0_45, %c0_46] : memref<8x128x128xbf16, #tpu.memory_space<vmem>>, vector<1x128x128xbf16>
    %39 = vector.shape_cast %38 : vector<1x128x128xbf16> to vector<128x128xbf16>
    %cst_47 = arith.constant dense<0.000000e+00> : vector<64x128xf32>
    %40 = tpu.matmul %36, %39, %cst_47 {dimension_numbers = #tpu.dot_dimension_numbers<[1], [0], [0], [1], [0, 0, 1, 1], [], []>} : vector<64x128xbf16>, vector<128x128xbf16>, vector<64x128xf32> -> vector<64x128xf32>
    %41 = arith.addf %37, %40 : vector<64x128xf32>
    %c0_48 = arith.constant 0 : index
    %c0_49 = arith.constant 0 : index
    %42 = vector.load %arg10[%c0_48, %c0_49] : memref<64x128xf32, #tpu.memory_space<vmem>>, vector<64x128xf32>
    tpu.vector_store %arg10[%c0_48, %c0_49], %41 {strides = array<i32>} : memref<64x128xf32, #tpu.memory_space<vmem>>, vector<64x128xf32>,
    %c5 = arith.constant 5 : index
    %c0_50 = arith.constant 0 : index
    %43 = vector.load %arg11[%c5, %c0_50] : memref<80x128xbf16, #tpu.memory_space<vmem>>, vector<64x128xbf16>
    %c0_51 = arith.constant 0 : index
    %c0_52 = arith.constant 0 : index
    %44 = vector.load %arg10[%c0_51, %c0_52] : memref<64x128xf32, #tpu.memory_space<vmem>>, vector<64x128xf32>
    %c5_53 = arith.constant 5 : index
    %c0_54 = arith.constant 0 : index
    %c0_55 = arith.constant 0 : index
    %45 = vector.load %arg6[%c5_53, %c0_54, %c0_55] : memref<8x128x128xbf16, #tpu.memory_space<vmem>>, vector<1x128x128xbf16>
    %46 = vector.shape_cast %45 : vector<1x128x128xbf16> to vector<128x128xbf16>
    %cst_56 = arith.constant dense<0.000000e+00> : vector<64x128xf32>
    %47 = tpu.matmul %43, %46, %cst_56 {dimension_numbers = #tpu.dot_dimension_numbers<[1], [0], [0], [1], [0, 0, 1, 1], [], []>} : vector<64x128xbf16>, vector<128x128xbf16>, vector<64x128xf32> -> vector<64x128xf32>
    %48 = arith.addf %44, %47 : vector<64x128xf32>
    %c0_57 = arith.constant 0 : index
    %c0_58 = arith.constant 0 : index
    %49 = vector.load %arg10[%c0_57, %c0_58] : memref<64x128xf32, #tpu.memory_space<vmem>>, vector<64x128xf32>
    tpu.vector_store %arg10[%c0_57, %c0_58], %48 {strides = array<i32>} : memref<64x128xf32, #tpu.memory_space<vmem>>, vector<64x128xf32>,
    %c6 = arith.constant 6 : index
    %c0_59 = arith.constant 0 : index
    %50 = vector.load %arg11[%c6, %c0_59] : memref<80x128xbf16, #tpu.memory_space<vmem>>, vector<64x128xbf16>
    %c0_60 = arith.constant 0 : index
    %c0_61 = arith.constant 0 : index
    %51 = vector.load %arg10[%c0_60, %c0_61] : memref<64x128xf32, #tpu.memory_space<vmem>>, vector<64x128xf32>
    %c6_62 = arith.constant 6 : index
    %c0_63 = arith.constant 0 : index
    %c0_64 = arith.constant 0 : index
    %52 = vector.load %arg6[%c6_62, %c0_63, %c0_64] : memref<8x128x128xbf16, #tpu.memory_space<vmem>>, vector<1x128x128xbf16>
    %53 = vector.shape_cast %52 : vector<1x128x128xbf16> to vector<128x128xbf16>
    %cst_65 = arith.constant dense<0.000000e+00> : vector<64x128xf32>
    %54 = tpu.matmul %50, %53, %cst_65 {dimension_numbers = #tpu.dot_dimension_numbers<[1], [0], [0], [1], [0, 0, 1, 1], [], []>} : vector<64x128xbf16>, vector<128x128xbf16>, vector<64x128xf32> -> vector<64x128xf32>
    %55 = arith.addf %51, %54 : vector<64x128xf32>
    %c0_66 = arith.constant 0 : index
    %c0_67 = arith.constant 0 : index
    %56 = vector.load %arg10[%c0_66, %c0_67] : memref<64x128xf32, #tpu.memory_space<vmem>>, vector<64x128xf32>
    tpu.vector_store %arg10[%c0_66, %c0_67], %55 {strides = array<i32>} : memref<64x128xf32, #tpu.memory_space<vmem>>, vector<64x128xf32>,
    %c7 = arith.constant 7 : index
    %c0_68 = arith.constant 0 : index
    %57 = vector.load %arg11[%c7, %c0_68] : memref<80x128xbf16, #tpu.memory_space<vmem>>, vector<64x128xbf16>
    %c0_69 = arith.constant 0 : index
    %c0_70 = arith.constant 0 : index
    %58 = vector.load %arg10[%c0_69, %c0_70] : memref<64x128xf32, #tpu.memory_space<vmem>>, vector<64x128xf32>
    %c7_71 = arith.constant 7 : index
    %c0_72 = arith.constant 0 : index
    %c0_73 = arith.constant 0 : index
    %59 = vector.load %arg6[%c7_71, %c0_72, %c0_73] : memref<8x128x128xbf16, #tpu.memory_space<vmem>>, vector<1x128x128xbf16>
    %60 = vector.shape_cast %59 : vector<1x128x128xbf16> to vector<128x128xbf16>
    %cst_74 = arith.constant dense<0.000000e+00> : vector<64x128xf32>
    %61 = tpu.matmul %57, %60, %cst_74 {dimension_numbers = #tpu.dot_dimension_numbers<[1], [0], [0], [1], [0, 0, 1, 1], [], []>} : vector<64x128xbf16>, vector<128x128xbf16>, vector<64x128xf32> -> vector<64x128xf32>
    %62 = arith.addf %58, %61 : vector<64x128xf32>
    %c0_75 = arith.constant 0 : index
    %c0_76 = arith.constant 0 : index
    %63 = vector.load %arg10[%c0_75, %c0_76] : memref<64x128xf32, #tpu.memory_space<vmem>>, vector<64x128xf32>
    tpu.vector_store %arg10[%c0_75, %c0_76], %62 {strides = array<i32>} : memref<64x128xf32, #tpu.memory_space<vmem>>, vector<64x128xf32>,
    %c0_i32_77 = arith.constant 0 : i32
    %64 = arith.cmpi eq, %arg3, %c0_i32_77 : i32
    %65 = arith.extui %64 : i1 to i32
    %c0_i32_78 = arith.constant 0 : i32
    %66 = arith.cmpi ne, %65, %c0_i32_78 : i32
    scf.if %66 {
      %c0_79 = arith.constant 0 : index
      %c0_80 = arith.constant 0 : index
      %67 = vector.load %arg10[%c0_79, %c0_80] : memref<64x128xf32, #tpu.memory_space<vmem>>, vector<64x128xf32>
      %c0_81 = arith.constant 0 : index
      %c0_82 = arith.constant 0 : index
      %68 = vector.load %arg7[%c0_81, %c0_82] : memref<1x128xf32, #tpu.memory_space<vmem>>, vector<1x128xf32>
      %69 = vector.broadcast %68 : vector<1x128xf32> to vector<64x128xf32>
      %70 = arith.mulf %67, %69 : vector<64x128xf32>
      %c0_83 = arith.constant 0 : index
      %c0_84 = arith.constant 0 : index
      %71 = vector.load %arg8[%c0_83, %c0_84] : memref<1x128xf32, #tpu.memory_space<vmem>>, vector<1x128xf32>
      %72 = vector.broadcast %71 : vector<1x128xf32> to vector<64x128xf32>
      %73 = arith.addf %70, %72 : vector<64x128xf32>
      %cst_85 = arith.constant 0.000000e+00 : f32
      %74 = vector.broadcast %cst_85 : f32 to vector<64x128xf32>
      %75 = arith.maximumf %73, %74 : vector<64x128xf32>
      %76 = arith.truncf %75 : vector<64x128xf32> to vector<64x128xbf16>
      %c0_86 = arith.constant 0 : index
      %c0_87 = arith.constant 0 : index
      %c0_88 = arith.constant 0 : index
      %77 = vector.load %arg9[%c0_86, %c0_87, %c0_88] : memref<1x64x128xbf16, #tpu.memory_space<vmem>>, vector<1x64x128xbf16>
      %78 = vector.shape_cast %77 : vector<1x64x128xbf16> to vector<64x128xbf16>
      %79 = vector.shape_cast %76 : vector<64x128xbf16> to vector<1x64x128xbf16>
      tpu.vector_store %arg9[%c0_86, %c0_87, %c0_88], %79 {strides = array<i32>} : memref<1x64x128xbf16, #tpu.memory_space<vmem>>, vector<1x64x128xbf16>,
    } else {
    }
    return
  }
  func.func @transform_0(%arg0: i32, %arg1: i32, %arg2: i32, %arg3: i32) -> (i32, i32, i32) {
    %c0_i32 = arith.constant 0 : i32
    return %arg0, %arg1, %arg3 : i32, i32, i32
  }
  func.func @transform_1(%arg0: i32, %arg1: i32, %arg2: i32, %arg3: i32) -> (i32, i32, i32) {
    %c1_i32 = arith.constant 1 : i32
    %0 = arith.addi %arg1, %c1_i32 : i32
    %c4_i32 = arith.constant 4 : i32
    %1 = arith.muli %0, %c4_i32 : i32
    %c0_i32 = arith.constant 0 : i32
    return %arg0, %1, %arg3 : i32, i32, i32
  }
  func.func @transform_2(%arg0: i32, %arg1: i32, %arg2: i32, %arg3: i32) -> (i32, i32, i32) {
    %c0_i32 = arith.constant 0 : i32
    %c0_i32_0 = arith.constant 0 : i32
    return %c0_i32, %arg3, %arg2 : i32, i32, i32
  }
  func.func @transform_3(%arg0: i32, %arg1: i32, %arg2: i32, %arg3: i32) -> (i32, i32) {
    %c0_i32 = arith.constant 0 : i32
    %c0_i32_0 = arith.constant 0 : i32
    return %c0_i32, %arg2 : i32, i32
  }
  func.func @transform_4(%arg0: i32, %arg1: i32, %arg2: i32, %arg3: i32) -> (i32, i32) {
    %c0_i32 = arith.constant 0 : i32
    %c0_i32_0 = arith.constant 0 : i32
    return %c0_i32, %arg2 : i32, i32
  }
  func.func @transform_5(%arg0: i32, %arg1: i32, %arg2: i32, %arg3: i32) -> (i32, i32, i32) {
    %c0_i32 = arith.constant 0 : i32
    return %arg0, %arg1, %arg2 : i32, i32, i32
  }
}

module attributes {stable_mosaic.version = 11 : i64} {
  func.func @_dconv_bn_act_kernel(%arg0: i32, %arg1: i32, %arg2: i32, %arg3: i32, %arg4: memref<1x64x128xbf16, #tpu.memory_space<vmem>>, %arg5: memref<1x16x128xbf16, #tpu.memory_space<vmem>>, %arg6: memref<8x128x128xbf16, #tpu.memory_space<vmem>>, %arg7: memref<1x128xf32, #tpu.memory_space<vmem>>, %arg8: memref<1x128xf32, #tpu.memory_space<vmem>>, %arg9: memref<1x64x128xbf16, #tpu.memory_space<vmem>>, %arg10: memref<64x128xf32, #tpu.memory_space<vmem>>, %arg11: memref<80x128xbf16, #tpu.memory_space<vmem>>) attributes {dimension_semantics = [#tpu.dimension_semantics<parallel>, #tpu.dimension_semantics<parallel>, #tpu.dimension_semantics<parallel>, #tpu.dimension_semantics<arbitrary>], iteration_bounds = array<i64: 2, 1, 1, 1>, scalar_prefetch = 0 : i64, scratch_operands = 2 : i64, tpu.core_type = #tpu.core_type<tc>, window_params = [{transform_indices = @transform_0, window_bounds = array<i64: 1, 64, 128>}, {transform_indices = @transform_1, window_bounds = array<i64: 1, 16, 128>}, {transform_indices = @transform_2, window_bounds = array<i64: 8, 128, 128>}, {transform_indices = @transform_3, window_bounds = array<i64: 1, 128>}, {transform_indices = @transform_4, window_bounds = array<i64: 1, 128>}, {transform_indices = @transform_5, window_bounds = array<i64: 1, 64, 128>}]} {
    %c0 = arith.constant 0 : index
    %c0_0 = arith.constant 0 : index
    %c0_1 = arith.constant 0 : index
    %0 = vector.load %arg4[%c0, %c0_0, %c0_1] : memref<1x64x128xbf16, #tpu.memory_space<vmem>>, vector<1x64x128xbf16>
    %1 = vector.shape_cast %0 : vector<1x64x128xbf16> to vector<64x128xbf16>
    %c0_2 = arith.constant 0 : index
    %c0_3 = arith.constant 0 : index
    %2 = vector.load %arg11[%c0_2, %c0_3] : memref<80x128xbf16, #tpu.memory_space<vmem>>, vector<64x128xbf16>
    tpu.vector_store %arg11[%c0_2, %c0_3], %1 {strides = array<i32>} : memref<80x128xbf16, #tpu.memory_space<vmem>>, vector<64x128xbf16>,
    %c0_4 = arith.constant 0 : index
    %c0_5 = arith.constant 0 : index
    %c0_6 = arith.constant 0 : index
    %3 = vector.load %arg5[%c0_4, %c0_5, %c0_6] : memref<1x16x128xbf16, #tpu.memory_space<vmem>>, vector<1x16x128xbf16>
    %4 = vector.shape_cast %3 : vector<1x16x128xbf16> to vector<16x128xbf16>
    %c64 = arith.constant 64 : index
    %c0_7 = arith.constant 0 : index
    %5 = vector.load %arg11[%c64, %c0_7] : memref<80x128xbf16, #tpu.memory_space<vmem>>, vector<16x128xbf16>
    tpu.vector_store %arg11[%c64, %c0_7], %4 {strides = array<i32>} : memref<80x128xbf16, #tpu.memory_space<vmem>>, vector<16x128xbf16>,
    %c0_8 = arith.constant 0 : index
    %c0_9 = arith.constant 0 : index
    %c0_10 = arith.constant 0 : index
    %6 = vector.load %arg6[%c0_8, %c0_9, %c0_10] : memref<8x128x128xbf16, #tpu.memory_space<vmem>>, vector<1x128x128xbf16>
    %7 = vector.shape_cast %6 : vector<1x128x128xbf16> to vector<128x128xbf16>
    %cst = arith.constant dense<0.000000e+00> : vector<64x128xf32>
    %8 = tpu.matmul %1, %7, %cst {dimension_numbers = #tpu.dot_dimension_numbers<[1], [0], [0], [1], [0, 0, 1, 1], [], []>} : vector<64x128xbf16>, vector<128x128xbf16>, vector<64x128xf32> -> vector<64x128xf32>
    %c0_i32 = arith.constant 0 : i32
    %9 = arith.cmpi eq, %arg3, %c0_i32 : i32
    %10 = arith.extui %9 : i1 to i32
    %c0_i32_11 = arith.constant 0 : i32
    %11 = arith.cmpi ne, %10, %c0_i32_11 : i32
    scf.if %11 {
      %c0_75 = arith.constant 0 : index
      %c0_76 = arith.constant 0 : index
      %67 = vector.load %arg10[%c0_75, %c0_76] : memref<64x128xf32, #tpu.memory_space<vmem>>, vector<64x128xf32>
      tpu.vector_store %arg10[%c0_75, %c0_76], %8 {strides = array<i32>} : memref<64x128xf32, #tpu.memory_space<vmem>>, vector<64x128xf32>,
    } else {
    }
    %c0_i32_12 = arith.constant 0 : i32
    %12 = arith.cmpi ne, %arg3, %c0_i32_12 : i32
    %13 = arith.extui %12 : i1 to i32
    %c0_i32_13 = arith.constant 0 : i32
    %14 = arith.cmpi ne, %13, %c0_i32_13 : i32
    scf.if %14 {
      %c0_75 = arith.constant 0 : index
      %c0_76 = arith.constant 0 : index
      %67 = vector.load %arg10[%c0_75, %c0_76] : memref<64x128xf32, #tpu.memory_space<vmem>>, vector<64x128xf32>
      %68 = arith.addf %67, %8 : vector<64x128xf32>
      %c0_77 = arith.constant 0 : index
      %c0_78 = arith.constant 0 : index
      %69 = vector.load %arg10[%c0_77, %c0_78] : memref<64x128xf32, #tpu.memory_space<vmem>>, vector<64x128xf32>
      tpu.vector_store %arg10[%c0_77, %c0_78], %68 {strides = array<i32>} : memref<64x128xf32, #tpu.memory_space<vmem>>, vector<64x128xf32>,
    } else {
    }
    %c2 = arith.constant 2 : index
    %c0_14 = arith.constant 0 : index
    %15 = vector.load %arg11[%c2, %c0_14] : memref<80x128xbf16, #tpu.memory_space<vmem>>, vector<64x128xbf16>
    %c0_15 = arith.constant 0 : index
    %c0_16 = arith.constant 0 : index
    %16 = vector.load %arg10[%c0_15, %c0_16] : memref<64x128xf32, #tpu.memory_space<vmem>>, vector<64x128xf32>
    %c1 = arith.constant 1 : index
    %c0_17 = arith.constant 0 : index
    %c0_18 = arith.constant 0 : index
    %17 = vector.load %arg6[%c1, %c0_17, %c0_18] : memref<8x128x128xbf16, #tpu.memory_space<vmem>>, vector<1x128x128xbf16>
    %18 = vector.shape_cast %17 : vector<1x128x128xbf16> to vector<128x128xbf16>
    %cst_19 = arith.constant dense<0.000000e+00> : vector<64x128xf32>
    %19 = tpu.matmul %15, %18, %cst_19 {dimension_numbers = #tpu.dot_dimension_numbers<[1], [0], [0], [1], [0, 0, 1, 1], [], []>} : vector<64x128xbf16>, vector<128x128xbf16>, vector<64x128xf32> -> vector<64x128xf32>
    %20 = arith.addf %16, %19 : vector<64x128xf32>
    %c0_20 = arith.constant 0 : index
    %c0_21 = arith.constant 0 : index
    %21 = vector.load %arg10[%c0_20, %c0_21] : memref<64x128xf32, #tpu.memory_space<vmem>>, vector<64x128xf32>
    tpu.vector_store %arg10[%c0_20, %c0_21], %20 {strides = array<i32>} : memref<64x128xf32, #tpu.memory_space<vmem>>, vector<64x128xf32>,
    %c4 = arith.constant 4 : index
    %c0_22 = arith.constant 0 : index
    %22 = vector.load %arg11[%c4, %c0_22] : memref<80x128xbf16, #tpu.memory_space<vmem>>, vector<64x128xbf16>
    %c0_23 = arith.constant 0 : index
    %c0_24 = arith.constant 0 : index
    %23 = vector.load %arg10[%c0_23, %c0_24] : memref<64x128xf32, #tpu.memory_space<vmem>>, vector<64x128xf32>
    %c2_25 = arith.constant 2 : index
    %c0_26 = arith.constant 0 : index
    %c0_27 = arith.constant 0 : index
    %24 = vector.load %arg6[%c2_25, %c0_26, %c0_27] : memref<8x128x128xbf16, #tpu.memory_space<vmem>>, vector<1x128x128xbf16>
    %25 = vector.shape_cast %24 : vector<1x128x128xbf16> to vector<128x128xbf16>
    %cst_28 = arith.constant dense<0.000000e+00> : vector<64x128xf32>
    %26 = tpu.matmul %22, %25, %cst_28 {dimension_numbers = #tpu.dot_dimension_numbers<[1], [0], [0], [1], [0, 0, 1, 1], [], []>} : vector<64x128xbf16>, vector<128x128xbf16>, vector<64x128xf32> -> vector<64x128xf32>
    %27 = arith.addf %23, %26 : vector<64x128xf32>
    %c0_29 = arith.constant 0 : index
    %c0_30 = arith.constant 0 : index
    %28 = vector.load %arg10[%c0_29, %c0_30] : memref<64x128xf32, #tpu.memory_space<vmem>>, vector<64x128xf32>
    tpu.vector_store %arg10[%c0_29, %c0_30], %27 {strides = array<i32>} : memref<64x128xf32, #tpu.memory_space<vmem>>, vector<64x128xf32>,
    %c6 = arith.constant 6 : index
    %c0_31 = arith.constant 0 : index
    %29 = vector.load %arg11[%c6, %c0_31] : memref<80x128xbf16, #tpu.memory_space<vmem>>, vector<64x128xbf16>
    %c0_32 = arith.constant 0 : index
    %c0_33 = arith.constant 0 : index
    %30 = vector.load %arg10[%c0_32, %c0_33] : memref<64x128xf32, #tpu.memory_space<vmem>>, vector<64x128xf32>
    %c3 = arith.constant 3 : index
    %c0_34 = arith.constant 0 : index
    %c0_35 = arith.constant 0 : index
    %31 = vector.load %arg6[%c3, %c0_34, %c0_35] : memref<8x128x128xbf16, #tpu.memory_space<vmem>>, vector<1x128x128xbf16>
    %32 = vector.shape_cast %31 : vector<1x128x128xbf16> to vector<128x128xbf16>
    %cst_36 = arith.constant dense<0.000000e+00> : vector<64x128xf32>
    %33 = tpu.matmul %29, %32, %cst_36 {dimension_numbers = #tpu.dot_dimension_numbers<[1], [0], [0], [1], [0, 0, 1, 1], [], []>} : vector<64x128xbf16>, vector<128x128xbf16>, vector<64x128xf32> -> vector<64x128xf32>
    %34 = arith.addf %30, %33 : vector<64x128xf32>
    %c0_37 = arith.constant 0 : index
    %c0_38 = arith.constant 0 : index
    %35 = vector.load %arg10[%c0_37, %c0_38] : memref<64x128xf32, #tpu.memory_space<vmem>>, vector<64x128xf32>
    tpu.vector_store %arg10[%c0_37, %c0_38], %34 {strides = array<i32>} : memref<64x128xf32, #tpu.memory_space<vmem>>, vector<64x128xf32>,
    %c8 = arith.constant 8 : index
    %c0_39 = arith.constant 0 : index
    %36 = vector.load %arg11[%c8, %c0_39] : memref<80x128xbf16, #tpu.memory_space<vmem>>, vector<64x128xbf16>
    %c0_40 = arith.constant 0 : index
    %c0_41 = arith.constant 0 : index
    %37 = vector.load %arg10[%c0_40, %c0_41] : memref<64x128xf32, #tpu.memory_space<vmem>>, vector<64x128xf32>
    %c4_42 = arith.constant 4 : index
    %c0_43 = arith.constant 0 : index
    %c0_44 = arith.constant 0 : index
    %38 = vector.load %arg6[%c4_42, %c0_43, %c0_44] : memref<8x128x128xbf16, #tpu.memory_space<vmem>>, vector<1x128x128xbf16>
    %39 = vector.shape_cast %38 : vector<1x128x128xbf16> to vector<128x128xbf16>
    %cst_45 = arith.constant dense<0.000000e+00> : vector<64x128xf32>
    %40 = tpu.matmul %36, %39, %cst_45 {dimension_numbers = #tpu.dot_dimension_numbers<[1], [0], [0], [1], [0, 0, 1, 1], [], []>} : vector<64x128xbf16>, vector<128x128xbf16>, vector<64x128xf32> -> vector<64x128xf32>
    %41 = arith.addf %37, %40 : vector<64x128xf32>
    %c0_46 = arith.constant 0 : index
    %c0_47 = arith.constant 0 : index
    %42 = vector.load %arg10[%c0_46, %c0_47] : memref<64x128xf32, #tpu.memory_space<vmem>>, vector<64x128xf32>
    tpu.vector_store %arg10[%c0_46, %c0_47], %41 {strides = array<i32>} : memref<64x128xf32, #tpu.memory_space<vmem>>, vector<64x128xf32>,
    %c10 = arith.constant 10 : index
    %c0_48 = arith.constant 0 : index
    %43 = vector.load %arg11[%c10, %c0_48] : memref<80x128xbf16, #tpu.memory_space<vmem>>, vector<64x128xbf16>
    %c0_49 = arith.constant 0 : index
    %c0_50 = arith.constant 0 : index
    %44 = vector.load %arg10[%c0_49, %c0_50] : memref<64x128xf32, #tpu.memory_space<vmem>>, vector<64x128xf32>
    %c5 = arith.constant 5 : index
    %c0_51 = arith.constant 0 : index
    %c0_52 = arith.constant 0 : index
    %45 = vector.load %arg6[%c5, %c0_51, %c0_52] : memref<8x128x128xbf16, #tpu.memory_space<vmem>>, vector<1x128x128xbf16>
    %46 = vector.shape_cast %45 : vector<1x128x128xbf16> to vector<128x128xbf16>
    %cst_53 = arith.constant dense<0.000000e+00> : vector<64x128xf32>
    %47 = tpu.matmul %43, %46, %cst_53 {dimension_numbers = #tpu.dot_dimension_numbers<[1], [0], [0], [1], [0, 0, 1, 1], [], []>} : vector<64x128xbf16>, vector<128x128xbf16>, vector<64x128xf32> -> vector<64x128xf32>
    %48 = arith.addf %44, %47 : vector<64x128xf32>
    %c0_54 = arith.constant 0 : index
    %c0_55 = arith.constant 0 : index
    %49 = vector.load %arg10[%c0_54, %c0_55] : memref<64x128xf32, #tpu.memory_space<vmem>>, vector<64x128xf32>
    tpu.vector_store %arg10[%c0_54, %c0_55], %48 {strides = array<i32>} : memref<64x128xf32, #tpu.memory_space<vmem>>, vector<64x128xf32>,
    %c12 = arith.constant 12 : index
    %c0_56 = arith.constant 0 : index
    %50 = vector.load %arg11[%c12, %c0_56] : memref<80x128xbf16, #tpu.memory_space<vmem>>, vector<64x128xbf16>
    %c0_57 = arith.constant 0 : index
    %c0_58 = arith.constant 0 : index
    %51 = vector.load %arg10[%c0_57, %c0_58] : memref<64x128xf32, #tpu.memory_space<vmem>>, vector<64x128xf32>
    %c6_59 = arith.constant 6 : index
    %c0_60 = arith.constant 0 : index
    %c0_61 = arith.constant 0 : index
    %52 = vector.load %arg6[%c6_59, %c0_60, %c0_61] : memref<8x128x128xbf16, #tpu.memory_space<vmem>>, vector<1x128x128xbf16>
    %53 = vector.shape_cast %52 : vector<1x128x128xbf16> to vector<128x128xbf16>
    %cst_62 = arith.constant dense<0.000000e+00> : vector<64x128xf32>
    %54 = tpu.matmul %50, %53, %cst_62 {dimension_numbers = #tpu.dot_dimension_numbers<[1], [0], [0], [1], [0, 0, 1, 1], [], []>} : vector<64x128xbf16>, vector<128x128xbf16>, vector<64x128xf32> -> vector<64x128xf32>
    %55 = arith.addf %51, %54 : vector<64x128xf32>
    %c0_63 = arith.constant 0 : index
    %c0_64 = arith.constant 0 : index
    %56 = vector.load %arg10[%c0_63, %c0_64] : memref<64x128xf32, #tpu.memory_space<vmem>>, vector<64x128xf32>
    tpu.vector_store %arg10[%c0_63, %c0_64], %55 {strides = array<i32>} : memref<64x128xf32, #tpu.memory_space<vmem>>, vector<64x128xf32>,
    %c14 = arith.constant 14 : index
    %c0_65 = arith.constant 0 : index
    %57 = vector.load %arg11[%c14, %c0_65] : memref<80x128xbf16, #tpu.memory_space<vmem>>, vector<64x128xbf16>
    %c0_66 = arith.constant 0 : index
    %c0_67 = arith.constant 0 : index
    %58 = vector.load %arg10[%c0_66, %c0_67] : memref<64x128xf32, #tpu.memory_space<vmem>>, vector<64x128xf32>
    %c7 = arith.constant 7 : index
    %c0_68 = arith.constant 0 : index
    %c0_69 = arith.constant 0 : index
    %59 = vector.load %arg6[%c7, %c0_68, %c0_69] : memref<8x128x128xbf16, #tpu.memory_space<vmem>>, vector<1x128x128xbf16>
    %60 = vector.shape_cast %59 : vector<1x128x128xbf16> to vector<128x128xbf16>
    %cst_70 = arith.constant dense<0.000000e+00> : vector<64x128xf32>
    %61 = tpu.matmul %57, %60, %cst_70 {dimension_numbers = #tpu.dot_dimension_numbers<[1], [0], [0], [1], [0, 0, 1, 1], [], []>} : vector<64x128xbf16>, vector<128x128xbf16>, vector<64x128xf32> -> vector<64x128xf32>
    %62 = arith.addf %58, %61 : vector<64x128xf32>
    %c0_71 = arith.constant 0 : index
    %c0_72 = arith.constant 0 : index
    %63 = vector.load %arg10[%c0_71, %c0_72] : memref<64x128xf32, #tpu.memory_space<vmem>>, vector<64x128xf32>
    tpu.vector_store %arg10[%c0_71, %c0_72], %62 {strides = array<i32>} : memref<64x128xf32, #tpu.memory_space<vmem>>, vector<64x128xf32>,
    %c0_i32_73 = arith.constant 0 : i32
    %64 = arith.cmpi eq, %arg3, %c0_i32_73 : i32
    %65 = arith.extui %64 : i1 to i32
    %c0_i32_74 = arith.constant 0 : i32
    %66 = arith.cmpi ne, %65, %c0_i32_74 : i32
    scf.if %66 {
      %c0_75 = arith.constant 0 : index
      %c0_76 = arith.constant 0 : index
      %67 = vector.load %arg10[%c0_75, %c0_76] : memref<64x128xf32, #tpu.memory_space<vmem>>, vector<64x128xf32>
      %c0_77 = arith.constant 0 : index
      %c0_78 = arith.constant 0 : index
      %68 = vector.load %arg7[%c0_77, %c0_78] : memref<1x128xf32, #tpu.memory_space<vmem>>, vector<1x128xf32>
      %69 = vector.broadcast %68 : vector<1x128xf32> to vector<64x128xf32>
      %70 = arith.mulf %67, %69 : vector<64x128xf32>
      %c0_79 = arith.constant 0 : index
      %c0_80 = arith.constant 0 : index
      %71 = vector.load %arg8[%c0_79, %c0_80] : memref<1x128xf32, #tpu.memory_space<vmem>>, vector<1x128xf32>
      %72 = vector.broadcast %71 : vector<1x128xf32> to vector<64x128xf32>
      %73 = arith.addf %70, %72 : vector<64x128xf32>
      %cst_81 = arith.constant 0.000000e+00 : f32
      %74 = vector.broadcast %cst_81 : f32 to vector<64x128xf32>
      %75 = arith.maximumf %73, %74 : vector<64x128xf32>
      %76 = arith.truncf %75 : vector<64x128xf32> to vector<64x128xbf16>
      %c0_82 = arith.constant 0 : index
      %c0_83 = arith.constant 0 : index
      %c0_84 = arith.constant 0 : index
      %77 = vector.load %arg9[%c0_82, %c0_83, %c0_84] : memref<1x64x128xbf16, #tpu.memory_space<vmem>>, vector<1x64x128xbf16>
      %78 = vector.shape_cast %77 : vector<1x64x128xbf16> to vector<64x128xbf16>
      %79 = vector.shape_cast %76 : vector<64x128xbf16> to vector<1x64x128xbf16>
      tpu.vector_store %arg9[%c0_82, %c0_83, %c0_84], %79 {strides = array<i32>} : memref<1x64x128xbf16, #tpu.memory_space<vmem>>, vector<1x64x128xbf16>,
    } else {
    }
    return
  }
  func.func @transform_0(%arg0: i32, %arg1: i32, %arg2: i32, %arg3: i32) -> (i32, i32, i32) {
    %c0_i32 = arith.constant 0 : i32
    return %arg0, %arg1, %arg3 : i32, i32, i32
  }
  func.func @transform_1(%arg0: i32, %arg1: i32, %arg2: i32, %arg3: i32) -> (i32, i32, i32) {
    %c1_i32 = arith.constant 1 : i32
    %0 = arith.addi %arg1, %c1_i32 : i32
    %c4_i32 = arith.constant 4 : i32
    %1 = arith.muli %0, %c4_i32 : i32
    %c0_i32 = arith.constant 0 : i32
    return %arg0, %1, %arg3 : i32, i32, i32
  }
  func.func @transform_2(%arg0: i32, %arg1: i32, %arg2: i32, %arg3: i32) -> (i32, i32, i32) {
    %c0_i32 = arith.constant 0 : i32
    %c0_i32_0 = arith.constant 0 : i32
    return %c0_i32, %arg3, %arg2 : i32, i32, i32
  }
  func.func @transform_3(%arg0: i32, %arg1: i32, %arg2: i32, %arg3: i32) -> (i32, i32) {
    %c0_i32 = arith.constant 0 : i32
    %c0_i32_0 = arith.constant 0 : i32
    return %c0_i32, %arg2 : i32, i32
  }
  func.func @transform_4(%arg0: i32, %arg1: i32, %arg2: i32, %arg3: i32) -> (i32, i32) {
    %c0_i32 = arith.constant 0 : i32
    %c0_i32_0 = arith.constant 0 : i32
    return %c0_i32, %arg2 : i32, i32
  }
  func.func @transform_5(%arg0: i32, %arg1: i32, %arg2: i32, %arg3: i32) -> (i32, i32, i32) {
    %c0_i32 = arith.constant 0 : i32
    return %arg0, %arg1, %arg2 : i32, i32, i32
  }
}

module attributes {stable_mosaic.version = 11 : i64} {
  func.func @_pw_bn_act_kernel(%arg0: i32, %arg1: i32, %arg2: i32, %arg3: i32, %arg4: memref<1x64x128xbf16, #tpu.memory_space<vmem>>, %arg5: memref<1x128x128xbf16, #tpu.memory_space<vmem>>, %arg6: memref<1x128xf32, #tpu.memory_space<vmem>>, %arg7: memref<1x128xf32, #tpu.memory_space<vmem>>, %arg8: memref<1x64x128xbf16, #tpu.memory_space<vmem>>, %arg9: memref<64x128xf32, #tpu.memory_space<vmem>>) attributes {dimension_semantics = [#tpu.dimension_semantics<parallel>, #tpu.dimension_semantics<parallel>, #tpu.dimension_semantics<parallel>, #tpu.dimension_semantics<arbitrary>], iteration_bounds = array<i64: 2, 1, 1, 1>, scalar_prefetch = 0 : i64, scratch_operands = 1 : i64, tpu.core_type = #tpu.core_type<tc>, window_params = [{transform_indices = @transform_0, window_bounds = array<i64: 1, 64, 128>}, {transform_indices = @transform_1, window_bounds = array<i64: 1, 128, 128>}, {transform_indices = @transform_2, window_bounds = array<i64: 1, 128>}, {transform_indices = @transform_3, window_bounds = array<i64: 1, 128>}, {transform_indices = @transform_4, window_bounds = array<i64: 1, 64, 128>}]} {
    %c0 = arith.constant 0 : index
    %c0_0 = arith.constant 0 : index
    %c0_1 = arith.constant 0 : index
    %0 = vector.load %arg4[%c0, %c0_0, %c0_1] : memref<1x64x128xbf16, #tpu.memory_space<vmem>>, vector<1x64x128xbf16>
    %1 = vector.shape_cast %0 : vector<1x64x128xbf16> to vector<64x128xbf16>
    %c0_2 = arith.constant 0 : index
    %c0_3 = arith.constant 0 : index
    %c0_4 = arith.constant 0 : index
    %2 = vector.load %arg5[%c0_2, %c0_3, %c0_4] : memref<1x128x128xbf16, #tpu.memory_space<vmem>>, vector<1x128x128xbf16>
    %3 = vector.shape_cast %2 : vector<1x128x128xbf16> to vector<128x128xbf16>
    %cst = arith.constant dense<0.000000e+00> : vector<64x128xf32>
    %4 = tpu.matmul %1, %3, %cst {dimension_numbers = #tpu.dot_dimension_numbers<[1], [0], [0], [1], [0, 0, 1, 1], [], []>} : vector<64x128xbf16>, vector<128x128xbf16>, vector<64x128xf32> -> vector<64x128xf32>
    %c0_i32 = arith.constant 0 : i32
    %5 = arith.cmpi eq, %arg3, %c0_i32 : i32
    %6 = arith.extui %5 : i1 to i32
    %c0_i32_5 = arith.constant 0 : i32
    %7 = arith.cmpi ne, %6, %c0_i32_5 : i32
    scf.if %7 {
      %c0_10 = arith.constant 0 : index
      %c0_11 = arith.constant 0 : index
      %14 = vector.load %arg9[%c0_10, %c0_11] : memref<64x128xf32, #tpu.memory_space<vmem>>, vector<64x128xf32>
      tpu.vector_store %arg9[%c0_10, %c0_11], %4 {strides = array<i32>} : memref<64x128xf32, #tpu.memory_space<vmem>>, vector<64x128xf32>,
    } else {
    }
    %c0_i32_6 = arith.constant 0 : i32
    %8 = arith.cmpi ne, %arg3, %c0_i32_6 : i32
    %9 = arith.extui %8 : i1 to i32
    %c0_i32_7 = arith.constant 0 : i32
    %10 = arith.cmpi ne, %9, %c0_i32_7 : i32
    scf.if %10 {
      %c0_10 = arith.constant 0 : index
      %c0_11 = arith.constant 0 : index
      %14 = vector.load %arg9[%c0_10, %c0_11] : memref<64x128xf32, #tpu.memory_space<vmem>>, vector<64x128xf32>
      %15 = arith.addf %14, %4 : vector<64x128xf32>
      %c0_12 = arith.constant 0 : index
      %c0_13 = arith.constant 0 : index
      %16 = vector.load %arg9[%c0_12, %c0_13] : memref<64x128xf32, #tpu.memory_space<vmem>>, vector<64x128xf32>
      tpu.vector_store %arg9[%c0_12, %c0_13], %15 {strides = array<i32>} : memref<64x128xf32, #tpu.memory_space<vmem>>, vector<64x128xf32>,
    } else {
    }
    %c0_i32_8 = arith.constant 0 : i32
    %11 = arith.cmpi eq, %arg3, %c0_i32_8 : i32
    %12 = arith.extui %11 : i1 to i32
    %c0_i32_9 = arith.constant 0 : i32
    %13 = arith.cmpi ne, %12, %c0_i32_9 : i32
    scf.if %13 {
      %c0_10 = arith.constant 0 : index
      %c0_11 = arith.constant 0 : index
      %14 = vector.load %arg9[%c0_10, %c0_11] : memref<64x128xf32, #tpu.memory_space<vmem>>, vector<64x128xf32>
      %c0_12 = arith.constant 0 : index
      %c0_13 = arith.constant 0 : index
      %15 = vector.load %arg6[%c0_12, %c0_13] : memref<1x128xf32, #tpu.memory_space<vmem>>, vector<1x128xf32>
      %16 = vector.broadcast %15 : vector<1x128xf32> to vector<64x128xf32>
      %17 = arith.mulf %14, %16 : vector<64x128xf32>
      %c0_14 = arith.constant 0 : index
      %c0_15 = arith.constant 0 : index
      %18 = vector.load %arg7[%c0_14, %c0_15] : memref<1x128xf32, #tpu.memory_space<vmem>>, vector<1x128xf32>
      %19 = vector.broadcast %18 : vector<1x128xf32> to vector<64x128xf32>
      %20 = arith.addf %17, %19 : vector<64x128xf32>
      %cst_16 = arith.constant 0.000000e+00 : f32
      %21 = vector.broadcast %cst_16 : f32 to vector<64x128xf32>
      %22 = arith.maximumf %20, %21 : vector<64x128xf32>
      %23 = arith.truncf %22 : vector<64x128xf32> to vector<64x128xbf16>
      %c0_17 = arith.constant 0 : index
      %c0_18 = arith.constant 0 : index
      %c0_19 = arith.constant 0 : index
      %24 = vector.load %arg8[%c0_17, %c0_18, %c0_19] : memref<1x64x128xbf16, #tpu.memory_space<vmem>>, vector<1x64x128xbf16>
      %25 = vector.shape_cast %24 : vector<1x64x128xbf16> to vector<64x128xbf16>
      %26 = vector.shape_cast %23 : vector<64x128xbf16> to vector<1x64x128xbf16>
      tpu.vector_store %arg8[%c0_17, %c0_18, %c0_19], %26 {strides = array<i32>} : memref<1x64x128xbf16, #tpu.memory_space<vmem>>, vector<1x64x128xbf16>,
    } else {
    }
    return
  }
  func.func @transform_0(%arg0: i32, %arg1: i32, %arg2: i32, %arg3: i32) -> (i32, i32, i32) {
    %c0_i32 = arith.constant 0 : i32
    return %arg0, %arg1, %arg3 : i32, i32, i32
  }
  func.func @transform_1(%arg0: i32, %arg1: i32, %arg2: i32, %arg3: i32) -> (i32, i32, i32) {
    %c0_i32 = arith.constant 0 : i32
    %c0_i32_0 = arith.constant 0 : i32
    return %c0_i32, %arg3, %arg2 : i32, i32, i32
  }
  func.func @transform_2(%arg0: i32, %arg1: i32, %arg2: i32, %arg3: i32) -> (i32, i32) {
    %c0_i32 = arith.constant 0 : i32
    %c0_i32_0 = arith.constant 0 : i32
    return %c0_i32, %arg2 : i32, i32
  }
  func.func @transform_3(%arg0: i32, %arg1: i32, %arg2: i32, %arg3: i32) -> (i32, i32) {
    %c0_i32 = arith.constant 0 : i32
    %c0_i32_0 = arith.constant 0 : i32
    return %c0_i32, %arg2 : i32, i32
  }
  func.func @transform_4(%arg0: i32, %arg1: i32, %arg2: i32, %arg3: i32) -> (i32, i32, i32) {
    %c0_i32 = arith.constant 0 : i32
    return %arg0, %arg1, %arg2 : i32, i32, i32
  }
}

module attributes {stable_mosaic.version = 11 : i64} {
  func.func @_pw_bn_act_kernel(%arg0: i32, %arg1: i32, %arg2: i32, %arg3: i32, %arg4: memref<1x64x128xbf16, #tpu.memory_space<vmem>>, %arg5: memref<1x128x128xbf16, #tpu.memory_space<vmem>>, %arg6: memref<1x128xf32, #tpu.memory_space<vmem>>, %arg7: memref<1x128xf32, #tpu.memory_space<vmem>>, %arg8: memref<1x64x128xf32, #tpu.memory_space<vmem>>, %arg9: memref<64x128xf32, #tpu.memory_space<vmem>>) attributes {dimension_semantics = [#tpu.dimension_semantics<parallel>, #tpu.dimension_semantics<parallel>, #tpu.dimension_semantics<parallel>, #tpu.dimension_semantics<arbitrary>], iteration_bounds = array<i64: 2, 1, 1, 1>, scalar_prefetch = 0 : i64, scratch_operands = 1 : i64, tpu.core_type = #tpu.core_type<tc>, window_params = [{transform_indices = @transform_0, window_bounds = array<i64: 1, 64, 128>}, {transform_indices = @transform_1, window_bounds = array<i64: 1, 128, 128>}, {transform_indices = @transform_2, window_bounds = array<i64: 1, 128>}, {transform_indices = @transform_3, window_bounds = array<i64: 1, 128>}, {transform_indices = @transform_4, window_bounds = array<i64: 1, 64, 128>}]} {
    %c0 = arith.constant 0 : index
    %c0_0 = arith.constant 0 : index
    %c0_1 = arith.constant 0 : index
    %0 = vector.load %arg4[%c0, %c0_0, %c0_1] : memref<1x64x128xbf16, #tpu.memory_space<vmem>>, vector<1x64x128xbf16>
    %1 = vector.shape_cast %0 : vector<1x64x128xbf16> to vector<64x128xbf16>
    %c0_2 = arith.constant 0 : index
    %c0_3 = arith.constant 0 : index
    %c0_4 = arith.constant 0 : index
    %2 = vector.load %arg5[%c0_2, %c0_3, %c0_4] : memref<1x128x128xbf16, #tpu.memory_space<vmem>>, vector<1x128x128xbf16>
    %3 = vector.shape_cast %2 : vector<1x128x128xbf16> to vector<128x128xbf16>
    %cst = arith.constant dense<0.000000e+00> : vector<64x128xf32>
    %4 = tpu.matmul %1, %3, %cst {dimension_numbers = #tpu.dot_dimension_numbers<[1], [0], [0], [1], [0, 0, 1, 1], [], []>} : vector<64x128xbf16>, vector<128x128xbf16>, vector<64x128xf32> -> vector<64x128xf32>
    %c0_i32 = arith.constant 0 : i32
    %5 = arith.cmpi eq, %arg3, %c0_i32 : i32
    %6 = arith.extui %5 : i1 to i32
    %c0_i32_5 = arith.constant 0 : i32
    %7 = arith.cmpi ne, %6, %c0_i32_5 : i32
    scf.if %7 {
      %c0_10 = arith.constant 0 : index
      %c0_11 = arith.constant 0 : index
      %14 = vector.load %arg9[%c0_10, %c0_11] : memref<64x128xf32, #tpu.memory_space<vmem>>, vector<64x128xf32>
      tpu.vector_store %arg9[%c0_10, %c0_11], %4 {strides = array<i32>} : memref<64x128xf32, #tpu.memory_space<vmem>>, vector<64x128xf32>,
    } else {
    }
    %c0_i32_6 = arith.constant 0 : i32
    %8 = arith.cmpi ne, %arg3, %c0_i32_6 : i32
    %9 = arith.extui %8 : i1 to i32
    %c0_i32_7 = arith.constant 0 : i32
    %10 = arith.cmpi ne, %9, %c0_i32_7 : i32
    scf.if %10 {
      %c0_10 = arith.constant 0 : index
      %c0_11 = arith.constant 0 : index
      %14 = vector.load %arg9[%c0_10, %c0_11] : memref<64x128xf32, #tpu.memory_space<vmem>>, vector<64x128xf32>
      %15 = arith.addf %14, %4 : vector<64x128xf32>
      %c0_12 = arith.constant 0 : index
      %c0_13 = arith.constant 0 : index
      %16 = vector.load %arg9[%c0_12, %c0_13] : memref<64x128xf32, #tpu.memory_space<vmem>>, vector<64x128xf32>
      tpu.vector_store %arg9[%c0_12, %c0_13], %15 {strides = array<i32>} : memref<64x128xf32, #tpu.memory_space<vmem>>, vector<64x128xf32>,
    } else {
    }
    %c0_i32_8 = arith.constant 0 : i32
    %11 = arith.cmpi eq, %arg3, %c0_i32_8 : i32
    %12 = arith.extui %11 : i1 to i32
    %c0_i32_9 = arith.constant 0 : i32
    %13 = arith.cmpi ne, %12, %c0_i32_9 : i32
    scf.if %13 {
      %c0_10 = arith.constant 0 : index
      %c0_11 = arith.constant 0 : index
      %14 = vector.load %arg9[%c0_10, %c0_11] : memref<64x128xf32, #tpu.memory_space<vmem>>, vector<64x128xf32>
      %c0_12 = arith.constant 0 : index
      %c0_13 = arith.constant 0 : index
      %15 = vector.load %arg6[%c0_12, %c0_13] : memref<1x128xf32, #tpu.memory_space<vmem>>, vector<1x128xf32>
      %16 = vector.broadcast %15 : vector<1x128xf32> to vector<64x128xf32>
      %17 = arith.mulf %14, %16 : vector<64x128xf32>
      %c0_14 = arith.constant 0 : index
      %c0_15 = arith.constant 0 : index
      %18 = vector.load %arg7[%c0_14, %c0_15] : memref<1x128xf32, #tpu.memory_space<vmem>>, vector<1x128xf32>
      %19 = vector.broadcast %18 : vector<1x128xf32> to vector<64x128xf32>
      %20 = arith.addf %17, %19 : vector<64x128xf32>
      %c0_16 = arith.constant 0 : index
      %c0_17 = arith.constant 0 : index
      %c0_18 = arith.constant 0 : index
      %21 = vector.load %arg8[%c0_16, %c0_17, %c0_18] : memref<1x64x128xf32, #tpu.memory_space<vmem>>, vector<1x64x128xf32>
      %22 = vector.shape_cast %21 : vector<1x64x128xf32> to vector<64x128xf32>
      %23 = vector.shape_cast %20 : vector<64x128xf32> to vector<1x64x128xf32>
      tpu.vector_store %arg8[%c0_16, %c0_17, %c0_18], %23 {strides = array<i32>} : memref<1x64x128xf32, #tpu.memory_space<vmem>>, vector<1x64x128xf32>,
    } else {
    }
    return
  }
  func.func @transform_0(%arg0: i32, %arg1: i32, %arg2: i32, %arg3: i32) -> (i32, i32, i32) {
    %c0_i32 = arith.constant 0 : i32
    return %arg0, %arg1, %arg3 : i32, i32, i32
  }
  func.func @transform_1(%arg0: i32, %arg1: i32, %arg2: i32, %arg3: i32) -> (i32, i32, i32) {
    %c0_i32 = arith.constant 0 : i32
    %c0_i32_0 = arith.constant 0 : i32
    return %c0_i32, %arg3, %arg2 : i32, i32, i32
  }
  func.func @transform_2(%arg0: i32, %arg1: i32, %arg2: i32, %arg3: i32) -> (i32, i32) {
    %c0_i32 = arith.constant 0 : i32
    %c0_i32_0 = arith.constant 0 : i32
    return %c0_i32, %arg2 : i32, i32
  }
  func.func @transform_3(%arg0: i32, %arg1: i32, %arg2: i32, %arg3: i32) -> (i32, i32) {
    %c0_i32 = arith.constant 0 : i32
    %c0_i32_0 = arith.constant 0 : i32
    return %c0_i32, %arg2 : i32, i32
  }
  func.func @transform_4(%arg0: i32, %arg1: i32, %arg2: i32, %arg3: i32) -> (i32, i32, i32) {
    %c0_i32 = arith.constant 0 : i32
    return %arg0, %arg1, %arg2 : i32, i32, i32
  }
}

</mosaic_0001>

<llo_original>
// kernel: beluga_forward.10
$region0: #{beluga_forward.10}
  #allocation0 [shape = 'u32[]', space=smem, size = 0x4, offset = 0x4, fixed_abs, tag = 'smem constant byte address 0x4 - core index']
  #allocation1 [shape = 'u32[72,128]{1,0:T(1,128)}', space=vmem, size = 0x9000, scoped, tag = 'internal scratch']
  #allocation2 [shape = 'f32[64,128]{1,0:T(8,128)}', space=vmem, size = 0x8000, scoped, tag = 'scratch operand']
  %s0 = inlined_call_operand.vmem [shape: bf16[2,64,128], index: 0, kind: input, shape index: {}]
  %s1 = inlined_call_operand.vmem [shape: bf16[1,128,128], index: 1, kind: input, shape index: {}]
  %s2 = inlined_call_operand.vmem [shape: f32[1,128], index: 2, kind: input, shape index: {}]
  %s3 = inlined_call_operand.vmem [shape: f32[1,128], index: 3, kind: input, shape index: {}]
  %s4 = inlined_call_operand.vmem [shape: bf16[2,64,128], index: 4, kind: output, shape index: {}]
  %s5 = sld [smem:[#allocation0]]
  $region61: #{beluga_forward.10} parent=0
    _
  %s7 = ssub.s32 1, %s5
  %s8 = scalar_select 0, %s7, %s5
  loop: start=0, step=1, limit=4
  $region2: #{beluga_forward.10} parent=0 // loop_pre_header
    _
  $region3: #{beluga_forward.10} parent=0 // loop_header
    %s10 = sphi 0, %s14
    %p11 = scmp.ge.s32.totalorder %s10, 4
    %s17 = sphi 0, %s43
    %s18 = sphi 0, %s39
    %s19 = sphi 0, %s35
    %s20 = sphi 0, %s31
    %s21 = sphi 0, %s17
    %s22 = sphi 0, %s18
    %s23 = sphi 0, %s19
    %s24 = sphi 0, %s20
    %s25 = sphi 0, %s21
    %s26 = sphi 0, %s22
    %s27 = sphi 0, %s23
    %s28 = sphi 0, %s24
    %s50 = sphi 0, %s52
    %s53 = sphi 0, %s50
    %s54 = sphi 0, %s53
    %s70 = sphi 0, %s54
    %s78 = sphi 0, %s80
    %s81 = sphi 0, %s78
    %s82 = sphi 0, %s81
    %s98 = sphi 0, %s82
    %s104 = sphi 0, %s106
    %s107 = sphi 0, %s104
    %s108 = sphi 0, %s107
    %s124 = sphi 0, %s108
    %s130 = sphi 0, %s132
    %s133 = sphi 0, %s130
    %s134 = sphi 0, %s133
    %s150 = sphi 0, %s134
    %s160 = sphi 0, %s162
    %s163 = sphi 0, %s160
    %s164 = sphi 0, %s163
    %s180 = sphi 0, %s164
  $region4: #{beluga_forward.10} parent=0 // loop_header_branch
    %13 = sbr.rel (%p11) target = $region8
  $region5: #{beluga_forward.10} parent=0 // loop_body
    %s15 = ssub.s32 %s10, 1
    %s16 = ssub.s32 %s10, 2
    %s29 = sadd.s32 1, %s20
    %p30 = scmp.ge.s32.totalorder %s29, 1
    %s31 = scalar_select %p30, 0, %s29
    %s32 = sadd.s32 1, %s19
    %s33 = scalar_select %p30, %s32, %s19
    %p34 = scmp.ge.s32.totalorder %s33, 1
    %s35 = scalar_select %p34, 0, %s33
    %s36 = sadd.s32 1, %s18
    %s37 = scalar_select %p34, %s36, %s18
    %p38 = scmp.ge.s32.totalorder %s37, 1
    %s39 = scalar_select %p38, 0, %s37
    %s40 = sadd.s32 1, %s17
    %s41 = scalar_select %p38, %s40, %s17
    %p42 = scmp.ge.s32.totalorder %s41, 2
    %s43 = scalar_select %p42, 0, %s41
    %s44 = ssub.s32 %s17, %s43
    %s45 = ssub.s32 %s18, %s39
    %s46 = sor.u32 %s44, %s45
    %s47 = ssub.s32 %s20, %s31
    %s48 = sor.u32 %s46, %s47
    %p49 = scmp.eq.s32.totalorder %s48, 0
    %s51 = sadd.s32 %s50, 1
    %s52 = scalar_select %p49, %s50, %s51
    %p55 = pneg %p49
    %p56 = scmp.eq.s32.totalorder %s10, 1
    %p57 = por %p55, %p56
    %p58 = scmp.ne.s32.totalorder %s50, %s53
    %p59 = scmp.eq.s32.totalorder %s10, 0
    %p60 = por %p58, %p59
    %p61 = scmp.ne.s32.totalorder %s50, %s53
    %p62 = scmp.eq.s32.totalorder %s15, 1
    %p63 = por %p61, %p62
    %p64 = scmp.ne.s32.totalorder %s53, %s54
    %p65 = scmp.eq.s32.totalorder %s15, 0
    %p66 = por %p64, %p65
    %p67 = scmp.ne.s32.totalorder %s53, %s54
    %p68 = scmp.eq.s32.totalorder %s16, 1
    %p69 = por %p67, %p68
    %p71 = scmp.ne.s32.totalorder %s54, %s70
    %p72 = scmp.eq.s32.totalorder %s16, 0
    %p73 = por %p71, %p72
    %s74 = ssub.s32 %s20, %s31
    %s75 = ssub.s32 %s19, %s35
    %s76 = sor.u32 %s74, %s75
    %p77 = scmp.eq.s32.totalorder %s76, 0
    %s79 = sadd.s32 %s78, 1
    %s80 = scalar_select %p77, %s78, %s79
    %p83 = pneg %p77
    %p84 = scmp.eq.s32.totalorder %s10, 1
    %p85 = por %p83, %p84
    %p86 = scmp.ne.s32.totalorder %s78, %s81
    %p87 = scmp.eq.s32.totalorder %s10, 0
    %p88 = por %p86, %p87
    %p89 = scmp.ne.s32.totalorder %s78, %s81
    %p90 = scmp.eq.s32.totalorder %s15, 1
    %p91 = por %p89, %p90
    %p92 = scmp.ne.s32.totalorder %s81, %s82
    %p93 = scmp.eq.s32.totalorder %s15, 0
    %p94 = por %p92, %p93
    %p95 = scmp.ne.s32.totalorder %s81, %s82
    %p96 = scmp.eq.s32.totalorder %s16, 1
    %p97 = por %p95, %p96
    %p99 = scmp.ne.s32.totalorder %s82, %s98
    %p100 = scmp.eq.s32.totalorder %s16, 0
    %p101 = por %p99, %p100
    %s102 = ssub.s32 %s19, %s35
    %p103 = scmp.eq.s32.totalorder %s102, 0
    %s105 = sadd.s32 %s104, 1
    %s106 = scalar_select %p103, %s104, %s105
    %p109 = pneg %p103
    %p110 = scmp.eq.s32.totalorder %s10, 1
    %p111 = por %p109, %p110
    %p112 = scmp.ne.s32.totalorder %s104, %s107
    %p113 = scmp.eq.s32.totalorder %s10, 0
    %p114 = por %p112, %p113
    %p115 = scmp.ne.s32.totalorder %s104, %s107
    %p116 = scmp.eq.s32.totalorder %s15, 1
    %p117 = por %p115, %p116
    %p118 = scmp.ne.s32.totalorder %s107, %s108
    %p119 = scmp.eq.s32.totalorder %s15, 0
    %p120 = por %p118, %p119
    %p121 = scmp.ne.s32.totalorder %s107, %s108
    %p122 = scmp.eq.s32.totalorder %s16, 1
    %p123 = por %p121, %p122
    %p125 = scmp.ne.s32.totalorder %s108, %s124
    %p126 = scmp.eq.s32.totalorder %s16, 0
    %p127 = por %p125, %p126
    %s128 = ssub.s32 %s19, %s35
    %p129 = scmp.eq.s32.totalorder %s128, 0
    %s131 = sadd.s32 %s130, 1
    %s132 = scalar_select %p129, %s130, %s131
    %p135 = pneg %p129
    %p136 = scmp.eq.s32.totalorder %s10, 1
    %p137 = por %p135, %p136
    %p138 = scmp.ne.s32.totalorder %s130, %s133
    %p139 = scmp.eq.s32.totalorder %s10, 0
    %p140 = por %p138, %p139
    %p141 = scmp.ne.s32.totalorder %s130, %s133
    %p142 = scmp.eq.s32.totalorder %s15, 1
    %p143 = por %p141, %p142
    %p144 = scmp.ne.s32.totalorder %s133, %s134
    %p145 = scmp.eq.s32.totalorder %s15, 0
    %p146 = por %p144, %p145
    %p147 = scmp.ne.s32.totalorder %s133, %s134
    %p148 = scmp.eq.s32.totalorder %s16, 1
    %p149 = por %p147, %p148
    %p151 = scmp.ne.s32.totalorder %s134, %s150
    %p152 = scmp.eq.s32.totalorder %s16, 0
    %p153 = por %p151, %p152
    %s154 = ssub.s32 %s17, %s43
    %s155 = ssub.s32 %s18, %s39
    %s156 = sor.u32 %s154, %s155
    %s157 = ssub.s32 %s19, %s35
    %s158 = sor.u32 %s156, %s157
    %p159 = scmp.eq.s32.totalorder %s158, 0
    %s161 = sadd.s32 %s160, 1
    %s162 = scalar_select %p159, %s160, %s161
    %p165 = pneg %p159
    %p166 = scmp.eq.s32.totalorder %s10, 1
    %p167 = por %p165, %p166
    %p168 = scmp.ne.s32.totalorder %s160, %s163
    %p169 = scmp.eq.s32.totalorder %s10, 0
    %p170 = por %p168, %p169
    %p171 = scmp.ne.s32.totalorder %s160, %s163
    %p172 = scmp.eq.s32.totalorder %s15, 1
    %p173 = por %p171, %p172
    %p174 = scmp.ne.s32.totalorder %s163, %s164
    %p175 = scmp.eq.s32.totalorder %s15, 0
    %p176 = por %p174, %p175
    %p177 = scmp.ne.s32.totalorder %s163, %s164
    %p178 = scmp.eq.s32.totalorder %s16, 1
    %p179 = por %p177, %p178
    %p181 = scmp.ne.s32.totalorder %s164, %s180
    %p182 = scmp.eq.s32.totalorder %s16, 0
    %p183 = por %p181, %p182
    %p184 = scmp.le.s32.totalorder 1, %s10
    %p185 = scmp.lt.s32.totalorder %s10, 3
    %p186 = pnand %p184, %p185
    %p187 = pneg %p186
    // Predicated region
    $region9: #{beluga_forward.10} parent=5 // pred_check
      _
    $region10: #{beluga_forward.10} parent=5 // pred_check_branch
      %189 = sbr.rel (%p186) target = $region12
    $region11: #{beluga_forward.10} parent=5 // pred_region
      %s190 = ssub.s32 %s10, 1
      // Predicated region
      $region13: #{beluga_forward.10} parent=11 // pred_check
        %p191 = pneg %p94
      $region14: #{beluga_forward.10} parent=11 // pred_check_branch
        %193 = sbr.rel (%p191) target = $region16
      $region15: #{beluga_forward.10} parent=11 // pred_region
        %s194 = smul.u32 16, %s24
        %p195 = scmp.lt.s32.totalorder %s194, 15
        %s196 = scalar_select %p195, %s194, 15
        %p197 = scmp.lt.s32.totalorder %s23, 0
        %s198 = scalar_select %p197, %s23, 0
        %s199 = sadd.s32 %s198, %s196
        %s200 = smul.addr %s199, 4
        %s201 = scalar_lea.vmem %s1, %s200
        %s202 = smul.u32 16, %s24
      $region16: #{beluga_forward.10} parent=11 // pred_fallthru
        _
      // Predicated region
      $region17: #{beluga_forward.10} parent=11 // pred_check
        %p203 = pneg %p120
      $region18: #{beluga_forward.10} parent=11 // pred_check_branch
        %205 = sbr.rel (%p203) target = $region20
      $region19: #{beluga_forward.10} parent=11 // pred_region
        %p206 = scmp.lt.s32.totalorder %s23, 0
        %s207 = scalar_select %p206, %s23, 0
        %s208 = scalar_lea.vmem %s2, %s207
      $region20: #{beluga_forward.10} parent=11 // pred_fallthru
        _
      // Predicated region
      $region21: #{beluga_forward.10} parent=11 // pred_check
        %p209 = pneg %p146
      $region22: #{beluga_forward.10} parent=11 // pred_check_branch
        %211 = sbr.rel (%p209) target = $region24
      $region23: #{beluga_forward.10} parent=11 // pred_region
        %p212 = scmp.lt.s32.totalorder %s23, 0
        %s213 = scalar_select %p212, %s23, 0
        %s214 = scalar_lea.vmem %s3, %s213
      $region24: #{beluga_forward.10} parent=11 // pred_fallthru
        _
    $region12: #{beluga_forward.10} parent=5 // pred_fallthru
      _
    %p215 = scmp.lt.s32.totalorder %s10, 2
    // Predicated region
    $region25: #{beluga_forward.10} parent=5 // pred_check
      %p216 = pneg %p215
    $region26: #{beluga_forward.10} parent=5 // pred_check_branch
      %218 = sbr.rel (%p216) target = $region28
    $region27: #{beluga_forward.10} parent=5 // pred_region
      // Predicated region
      $region29: #{beluga_forward.10} parent=27 // pred_check
        %p219 = pneg %p60
      $region30: #{beluga_forward.10} parent=27 // pred_check_branch
        %221 = sbr.rel (%p219) target = $region32
      $region31: #{beluga_forward.10} parent=27 // pred_region
        %s222 = smul.u32 8, %s18
        %p223 = scmp.lt.s32.totalorder %s17, 1
        %s224 = scalar_select %p223, %s17, 1
        %p225 = scmp.lt.s32.totalorder %s222, 7
        %s226 = scalar_select %p225, %s222, 7
        %p227 = scmp.lt.s32.totalorder %s20, 0
        %s228 = scalar_select %p227, %s20, 0
        %s229 = sadd.s32 %s228, %s226
        %s230 = smul.addr %s224, 8
        %s231 = sadd.s32 %s229, %s230
        %s232 = smul.addr %s231, 4
        %s233 = scalar_lea.vmem %s0, %s232
        %s234 = smul.u32 8, %s18
      $region32: #{beluga_forward.10} parent=27 // pred_fallthru
        _
    $region28: #{beluga_forward.10} parent=5 // pred_fallthru
      _
    %p235 = scmp.le.s32.totalorder 1, %s10
    %p236 = scmp.lt.s32.totalorder %s10, 3
    %p237 = pnand %p235, %p236
    %p238 = pneg %p237
    // Predicated region
    $region33: #{beluga_forward.10} parent=5 // pred_check
      _
    $region34: #{beluga_forward.10} parent=5 // pred_check_branch
      %240 = sbr.rel (%p237) target = $region36
    $region35: #{beluga_forward.10} parent=5 // pred_region
      %s241 = ssub.s32 %s10, 1
      %s242 = smul.u32 8, %s22
      %p243 = scmp.lt.s32.totalorder %s21, 1
      %s244 = scalar_select %p243, %s21, 1
      %p245 = scmp.lt.s32.totalorder %s242, 7
      %s246 = scalar_select %p245, %s242, 7
      %p247 = scmp.lt.s32.totalorder %s24, 0
      %s248 = scalar_select %p247, %s24, 0
      %s249 = sadd.s32 %s248, %s246
      %s250 = smul.addr %s244, 8
      %s251 = sadd.s32 %s249, %s250
      %s252 = smul.addr %s251, 4
      %s253 = scalar_lea.vmem %s0, %s252
      %p254 = pneg %p66
      %p255 = pneg %p63
      %s256 = smul.u32 16, %s24
      %p257 = scmp.lt.s32.totalorder %s256, 15
      %s258 = scalar_select %p257, %s256, 15
      %p259 = scmp.lt.s32.totalorder %s23, 0
      %s260 = scalar_select %p259, %s23, 0
      %s261 = sadd.s32 %s260, %s258
      %s262 = smul.addr %s261, 4
      %s263 = scalar_lea.vmem %s1, %s262
      %p264 = pneg %p94
      %p265 = pneg %p91
      %p266 = scmp.lt.s32.totalorder %s23, 0
      %s267 = scalar_select %p266, %s23, 0
      %s268 = scalar_lea.vmem %s2, %s267
      %p269 = pneg %p120
      %p270 = pneg %p117
      %p271 = scmp.lt.s32.totalorder %s23, 0
      %s272 = scalar_select %p271, %s23, 0
      %s273 = scalar_lea.vmem %s3, %s272
      %p274 = pneg %p146
      %p275 = pneg %p143
      %p276 = pneg %p176
      %p277 = pneg %p173
      %s278 = smul.u32 8, %s22
      %p279 = scmp.lt.s32.totalorder %s21, 1
      %s280 = scalar_select %p279, %s21, 1
      %p281 = scmp.lt.s32.totalorder %s278, 7
      %s282 = scalar_select %p281, %s278, 7
      %p283 = scmp.lt.s32.totalorder %s23, 0
      %s284 = scalar_select %p283, %s23, 0
      %s285 = sadd.s32 %s284, %s282
      %s286 = smul.addr %s280, 8
      %s287 = sadd.s32 %s285, %s286
      %s288 = smul.addr %s287, 4
      %s289 = scalar_lea.vmem %s4, %s288
      %s290 = smul.u32 8, %s22
      %p291 = scmp.lt.s32.totalorder %s21, 1
      %s292 = scalar_select %p291, %s21, 1
      %p293 = scmp.lt.s32.totalorder %s290, 7
      %s294 = scalar_select %p293, %s290, 7
      %p295 = scmp.lt.s32.totalorder %s24, 0
      %s296 = scalar_select %p295, %s24, 0
      %s297 = sadd.s32 %s296, %s294
      %s298 = smul.addr %s292, 8
      %s299 = sadd.s32 %s297, %s298
      %s300 = smul.addr %s299, 4
      %s301 = scalar_lea.vmem %s0, %s300
      %s302 = smul.u32 8, %s22
      %s303 = smul.u32 16, %s24
      %p304 = scmp.lt.s32.totalorder %s303, 15
      %s305 = scalar_select %p304, %s303, 15
      %p306 = scmp.lt.s32.totalorder %s23, 0
      %s307 = scalar_select %p306, %s23, 0
      %s308 = sadd.s32 %s307, %s305
      %s309 = smul.addr %s308, 4
      %s310 = scalar_lea.vmem %s1, %s309
      %s311 = smul.u32 16, %s24
      %p312 = scmp.lt.s32.totalorder %s23, 0
      %s313 = scalar_select %p312, %s23, 0
      %s314 = scalar_lea.vmem %s2, %s313
      %p315 = scmp.lt.s32.totalorder %s23, 0
      %s316 = scalar_select %p315, %s23, 0
      %s317 = scalar_lea.vmem %s3, %s316
      %s318 = smul.u32 8, %s22
      %p319 = scmp.lt.s32.totalorder %s21, 1
      %s320 = scalar_select %p319, %s21, 1
      %p321 = scmp.lt.s32.totalorder %s318, 7
      %s322 = scalar_select %p321, %s318, 7
      %p323 = scmp.lt.s32.totalorder %s23, 0
      %s324 = scalar_select %p323, %s23, 0
      %s325 = sadd.s32 %s324, %s322
      %s326 = smul.addr %s320, 8
      %s327 = sadd.s32 %s325, %s326
      %s328 = smul.addr %s327, 4
      %s329 = scalar_lea.vmem %s4, %s328
      %s330 = smul.u32 8, %s22
      %v331 = vld [vmem:[%s301] sm:$0xf]
      %v332 = vld [vmem:[%s301 + $0x4] sm:$0xf]
      %v333 = vld [vmem:[%s301 + $0x8] sm:$0xf]
      %v334 = vld [vmem:[%s301 + $0xc] sm:$0xf]
      %v335 = vld [vmem:[%s301 + $0x10] sm:$0xf]
      %v336 = vld [vmem:[%s301 + $0x14] sm:$0xf]
      %v337 = vld [vmem:[%s301 + $0x18] sm:$0xf]
      %v338 = vld [vmem:[%s301 + $0x1c] sm:$0xf]
      %v339 = vld [vmem:[%s310] sm:$0xf]
      %v340 = vld [vmem:[%s310 + $0x4] sm:$0xf]
      %v341 = vld [vmem:[%s310 + $0x8] sm:$0xf]
      %v342 = vld [vmem:[%s310 + $0xc] sm:$0xf]
      %v343 = vld [vmem:[%s310 + $0x10] sm:$0xf]
      %v344 = vld [vmem:[%s310 + $0x14] sm:$0xf]
      %v345 = vld [vmem:[%s310 + $0x18] sm:$0xf]
      %v346 = vld [vmem:[%s310 + $0x1c] sm:$0xf]
      %v347 = vld [vmem:[%s310 + $0x20] sm:$0xf]
      %v348 = vld [vmem:[%s310 + $0x24] sm:$0xf]
      %v349 = vld [vmem:[%s310 + $0x28] sm:$0xf]
      %v350 = vld [vmem:[%s310 + $0x2c] sm:$0xf]
      %v351 = vld [vmem:[%s310 + $0x30] sm:$0xf]
      %v352 = vld [vmem:[%s310 + $0x34] sm:$0xf]
      %v353 = vld [vmem:[%s310 + $0x38] sm:$0xf]
      %v354 = vld [vmem:[%s310 + $0x3c] sm:$0xf]
      %v363 = vunpack.c.l.b16 %v331
      %v364 = vunpack.c.l.b16 %v332
      %v365 = vunpack.c.l.b16 %v333
      %v366 = vunpack.c.l.b16 %v334
      %v367 = vunpack.c.l.b16 %v335
      %v368 = vunpack.c.l.b16 %v336
      %v369 = vunpack.c.l.b16 %v337
      %v370 = vunpack.c.l.b16 %v338
      %v371 = vpack.c.b16 %v364, %v363
      %v372 = vpack.c.b16 %v366, %v365
      %v373 = vpack.c.b16 %v368, %v367
      %v374 = vpack.c.b16 %v370, %v369
      %v395 = vunpack.c.l.b16 %v339
      %v396 = vunpack.c.l.b16 %v340
      %v397 = vunpack.c.l.b16 %v341
      %v398 = vunpack.c.l.b16 %v342
      %v399 = vunpack.c.l.b16 %v343
      %v400 = vunpack.c.l.b16 %v344
      %v401 = vunpack.c.l.b16 %v345
      %v402 = vunpack.c.l.b16 %v346
      %v403 = vunpack.c.l.b16 %v347
      %v404 = vunpack.c.l.b16 %v348
      %v405 = vunpack.c.l.b16 %v349
      %v406 = vunpack.c.l.b16 %v350
      %v407 = vunpack.c.l.b16 %v351
      %v408 = vunpack.c.l.b16 %v352
      %v409 = vunpack.c.l.b16 %v353
      %v410 = vunpack.c.l.b16 %v354
      %v411 = vpack.c.b16 %v396, %v395
      %v412 = vpack.c.b16 %v398, %v397
      %v413 = vpack.c.b16 %v400, %v399
      %v414 = vpack.c.b16 %v402, %v401
      %v415 = vpack.c.b16 %v404, %v403
      %v416 = vpack.c.b16 %v406, %v405
      %v417 = vpack.c.b16 %v408, %v407
      %v418 = vpack.c.b16 %v410, %v409
      %427 = vmatpush.bf16.msra.mxu0 %v418
      %428 = vmatpush.bf16.msra.mxu0 %v417
      %429 = vmatpush.bf16.msra.mxu0 %v416
      %430 = vmatpush.bf16.msra.mxu0 %v415
      %431 = vmatpush.bf16.msra.mxu0 %v414
      %432 = vmatpush.bf16.msra.mxu0 %v413
      %433 = vmatpush.bf16.msra.mxu0 %v412
      %434 = vmatpush.bf16.msra.mxu0 %v411
      %435 = vmatmul.bf16.gmra.mxu0 %v371
      %v436 = vpop.f32.mrf.mxu0
      %v437 = vadd.f32 0.0, %v436
      %v438 = vpop.f32.mrf.mxu0
      %v439 = vadd.f32 0.0, %v438
      %440 = vmatmul.bf16.gmra.mxu0 %v372
      %v441 = vpop.f32.mrf.mxu0
      %v442 = vadd.f32 0.0, %v441
      %v443 = vpop.f32.mrf.mxu0
      %v444 = vadd.f32 0.0, %v443
      %445 = vmatmul.bf16.gmra.mxu0 %v373
      %v446 = vpop.f32.mrf.mxu0
      %v447 = vadd.f32 0.0, %v446
      %v448 = vpop.f32.mrf.mxu0
      %v449 = vadd.f32 0.0, %v448
      %450 = vmatmul.bf16.gmra.mxu0 %v374
      %v451 = vpop.f32.mrf.mxu0
      %v452 = vadd.f32 0.0, %v451
      %v453 = vpop.f32.mrf.mxu0
      %v454 = vadd.f32 0.0, %v453
      %455 = vdwg.mxu0
      %p456 = scmp.eq.s32.totalorder %s24, 0
      // Predicated region
      $region37: #{beluga_forward.10} parent=35 // pred_check
        %p457 = pneg %p456
      $region38: #{beluga_forward.10} parent=35 // pred_check_branch
        %459 = sbr.rel (%p457) target = $region40
      $region39: #{beluga_forward.10} parent=35 // pred_region
        %460 = vst [vmem:[#allocation2] sm:$0xff] %v437
        %461 = vst [vmem:[#allocation2 + $0x8] sm:$0xff] %v439
        %462 = vst [vmem:[#allocation2 + $0x10] sm:$0xff] %v442
        %463 = vst [vmem:[#allocation2 + $0x18] sm:$0xff] %v444
        %464 = vst [vmem:[#allocation2 + $0x20] sm:$0xff] %v447
        %465 = vst [vmem:[#allocation2 + $0x28] sm:$0xff] %v449
        %466 = vst [vmem:[#allocation2 + $0x30] sm:$0xff] %v452
        %467 = vst [vmem:[#allocation2 + $0x38] sm:$0xff] %v454
      $region40: #{beluga_forward.10} parent=35 // pred_fallthru
        _
      %p468 = scmp.ne.s32.totalorder %s24, 0
      // Predicated region
      $region41: #{beluga_forward.10} parent=35 // pred_check
        %p469 = pneg %p468
      $region42: #{beluga_forward.10} parent=35 // pred_check_branch
        %471 = sbr.rel (%p469) target = $region44
      $region43: #{beluga_forward.10} parent=35 // pred_region
        %v472 = vld [vmem:[#allocation2] sm:$0xff]
        %v473 = vld [vmem:[#allocation2 + $0x8] sm:$0xff]
        %v474 = vld [vmem:[#allocation2 + $0x10] sm:$0xff]
        %v475 = vld [vmem:[#allocation2 + $0x18] sm:$0xff]
        %v476 = vld [vmem:[#allocation2 + $0x20] sm:$0xff]
        %v477 = vld [vmem:[#allocation2 + $0x28] sm:$0xff]
        %v478 = vld [vmem:[#allocation2 + $0x30] sm:$0xff]
        %v479 = vld [vmem:[#allocation2 + $0x38] sm:$0xff]
        %v480 = vadd.f32 %v472, %v437
        %v481 = vadd.f32 %v473, %v439
        %v482 = vadd.f32 %v474, %v442
        %v483 = vadd.f32 %v475, %v444
        %v484 = vadd.f32 %v476, %v447
        %v485 = vadd.f32 %v477, %v449
        %v486 = vadd.f32 %v478, %v452
        %v487 = vadd.f32 %v479, %v454
        %488 = vst [vmem:[#allocation2] sm:$0xff] %v480
        %489 = vst [vmem:[#allocation2 + $0x8] sm:$0xff] %v481
        %490 = vst [vmem:[#allocation2 + $0x10] sm:$0xff] %v482
        %491 = vst [vmem:[#allocation2 + $0x18] sm:$0xff] %v483
        %492 = vst [vmem:[#allocation2 + $0x20] sm:$0xff] %v484
        %493 = vst [vmem:[#allocation2 + $0x28] sm:$0xff] %v485
        %494 = vst [vmem:[#allocation2 + $0x30] sm:$0xff] %v486
        %495 = vst [vmem:[#allocation2 + $0x38] sm:$0xff] %v487
      $region44: #{beluga_forward.10} parent=35 // pred_fallthru
        _
      // Predicated region
      $region45: #{beluga_forward.10} parent=35 // pred_check
        %p496 = pneg %p456
      $region46: #{beluga_forward.10} parent=35 // pred_check_branch
        %498 = sbr.rel (%p496) target = $region48
      $region47: #{beluga_forward.10} parent=35 // pred_region
        %v499 = vld [vmem:[#allocation2] sm:$0xff]
        %v500 = vld [vmem:[#allocation2 + $0x8] sm:$0xff]
        %v501 = vld [vmem:[#allocation2 + $0x10] sm:$0xff]
        %v502 = vld [vmem:[#allocation2 + $0x18] sm:$0xff]
        %v503 = vld [vmem:[#allocation2 + $0x20] sm:$0xff]
        %v504 = vld [vmem:[#allocation2 + $0x28] sm:$0xff]
        %v505 = vld [vmem:[#allocation2 + $0x30] sm:$0xff]
        %v506 = vld [vmem:[#allocation2 + $0x38] sm:$0xff]
        %v507 = vld [vmem:[%s314] sm:$0x1]
        %v509 = vperm.slane %v507, 0
        %v511 = vmul.f32 %v499, %v509
        %v512 = vmul.f32 %v500, %v509
        %v513 = vmul.f32 %v501, %v509
        %v514 = vmul.f32 %v502, %v509
        %v515 = vmul.f32 %v503, %v509
        %v516 = vmul.f32 %v504, %v509
        %v517 = vmul.f32 %v505, %v509
        %v518 = vmul.f32 %v506, %v509
        %v519 = vld [vmem:[%s317] sm:$0x1]
        %v521 = vperm.slane %v519, 0
        %v523 = vadd.f32 %v511, %v521
        %v524 = vadd.f32 %v512, %v521
        %v525 = vadd.f32 %v513, %v521
        %v526 = vadd.f32 %v514, %v521
        %v527 = vadd.f32 %v515, %v521
        %v528 = vadd.f32 %v516, %v521
        %v529 = vadd.f32 %v517, %v521
        %v530 = vadd.f32 %v518, %v521
        %v531 = vmax.f32 %v523, 0.0
        %v532 = vmax.f32 %v524, 0.0
        %v533 = vmax.f32 %v525, 0.0
        %v534 = vmax.f32 %v526, 0.0
        %v535 = vmax.f32 %v527, 0.0
        %v536 = vmax.f32 %v528, 0.0
        %v537 = vmax.f32 %v529, 0.0
        %v538 = vmax.f32 %v530, 0.0
        %v539 = vpack.c.bf16 %v531, %v531
        %v540 = vpack.c.bf16 %v532, %v532
        %v541 = vpack.c.bf16 %v533, %v533
        %v542 = vpack.c.bf16 %v534, %v534
        %v543 = vpack.c.bf16 %v535, %v535
        %v544 = vpack.c.bf16 %v536, %v536
        %v545 = vpack.c.bf16 %v537, %v537
        %v546 = vpack.c.bf16 %v538, %v538
        %547 = vst [vmem:[%s329] sm:$0xf] %v539
        %548 = vst [vmem:[%s329 + $0x4] sm:$0xf] %v540
        %549 = vst [vmem:[%s329 + $0x8] sm:$0xf] %v541
        %550 = vst [vmem:[%s329 + $0xc] sm:$0xf] %v542
        %551 = vst [vmem:[%s329 + $0x10] sm:$0xf] %v543
        %552 = vst [vmem:[%s329 + $0x14] sm:$0xf] %v544
        %553 = vst [vmem:[%s329 + $0x18] sm:$0xf] %v545
        %554 = vst [vmem:[%s329 + $0x1c] sm:$0xf] %v546
      $region48: #{beluga_forward.10} parent=35 // pred_fallthru
        _
      %s555 = smul.u32 8, %s22
      %p556 = scmp.lt.s32.totalorder %s21, 1
      %s557 = scalar_select %p556, %s21, 1
      %p558 = scmp.lt.s32.totalorder %s555, 7
      %s559 = scalar_select %p558, %s555, 7
      %p560 = scmp.lt.s32.totalorder %s23, 0
      %s561 = scalar_select %p560, %s23, 0
      %s562 = sadd.s32 %s561, %s559
      %s563 = smul.addr %s557, 8
      %s564 = sadd.s32 %s562, %s563
      %s565 = smul.addr %s564, 4
      %s566 = scalar_lea.vmem %s4, %s565
      // Predicated region
      $region49: #{beluga_forward.10} parent=35 // pred_check
        %p567 = pneg %p173
      $region50: #{beluga_forward.10} parent=35 // pred_check_branch
        %569 = sbr.rel (%p567) target = $region52
      $region51: #{beluga_forward.10} parent=35 // pred_region
        %s570 = smul.u32 8, %s22
      $region52: #{beluga_forward.10} parent=35 // pred_fallthru
        _
    $region36: #{beluga_forward.10} parent=5 // pred_fallthru
      _
    %p571 = scmp.le.s32.totalorder 2, %s10
    // Predicated region
    $region53: #{beluga_forward.10} parent=5 // pred_check
      %p572 = pneg %p571
    $region54: #{beluga_forward.10} parent=5 // pred_check_branch
      %574 = sbr.rel (%p572) target = $region56
    $region55: #{beluga_forward.10} parent=5 // pred_region
      %s575 = ssub.s32 %s10, 2
      // Predicated region
      $region57: #{beluga_forward.10} parent=55 // pred_check
        %p576 = pneg %p179
      $region58: #{beluga_forward.10} parent=55 // pred_check_branch
        %578 = sbr.rel (%p576) target = $region60
      $region59: #{beluga_forward.10} parent=55 // pred_region
        %s579 = smul.u32 8, %s26
        %p580 = scmp.lt.s32.totalorder %s25, 1
        %s581 = scalar_select %p580, %s25, 1
        %p582 = scmp.lt.s32.totalorder %s579, 7
        %s583 = scalar_select %p582, %s579, 7
        %p584 = scmp.lt.s32.totalorder %s27, 0
        %s585 = scalar_select %p584, %s27, 0
        %s586 = sadd.s32 %s585, %s583
        %s587 = smul.addr %s581, 8
        %s588 = sadd.s32 %s586, %s587
        %s589 = smul.addr %s588, 4
        %s590 = scalar_lea.vmem %s4, %s589
      $region60: #{beluga_forward.10} parent=55 // pred_fallthru
        _
    $region56: #{beluga_forward.10} parent=5 // pred_fallthru
      _
  $region6: #{beluga_forward.10} parent=0 // loop_footer
    %s14 = sadd.s32 1, %s10
  $region7: #{beluga_forward.10} parent=0 // loop_footer_branch
    %9 = sbr.rel target = $region3
  $region8: #{beluga_forward.10} parent=0 // loop_exit
    _

// kernel: beluga_forward.7
$region0: #{beluga_forward.7}
  #allocation0 [shape = 'u32[]', space=smem, size = 0x4, offset = 0x4, fixed_abs, tag = 'smem constant byte address 0x4 - core index']
  #allocation1 [shape = 'u32[72,128]{1,0:T(1,128)}', space=vmem, size = 0x9000, scoped, tag = 'internal scratch']
  #allocation2 [shape = 'f32[64,128]{1,0:T(8,128)}', space=vmem, size = 0x8000, scoped, tag = 'scratch operand']
  #allocation3 [shape = 'bf16[80,128]{1,0:T(8,128)(2,1)}', space=vmem, size = 0x5000, scoped, tag = 'scratch operand']
  %s0 = inlined_call_operand.vmem [shape: bf16[2,128,128], index: 0, kind: input, shape index: {}, may-alias: {0,1}]
  %s1 = inlined_call_operand.vmem [shape: bf16[2,128,128], index: 1, kind: input, shape index: {}, may-alias: {0,1}]
  %s2 = inlined_call_operand.vmem [shape: bf16[8,128,128], index: 2, kind: input, shape index: {}]
  %s3 = inlined_call_operand.vmem [shape: f32[1,128], index: 3, kind: input, shape index: {}]
  %s4 = inlined_call_operand.vmem [shape: f32[1,128], index: 4, kind: input, shape index: {}]
  %s5 = inlined_call_operand.vmem [shape: bf16[2,64,128], index: 5, kind: output, shape index: {}]
  %s6 = sld [smem:[#allocation0]]
  $region65: #{beluga_forward.7} parent=0
    _
  %s8 = ssub.s32 1, %s6
  %s9 = scalar_select 0, %s8, %s6
  loop: start=0, step=1, limit=4
  $region2: #{beluga_forward.7} parent=0 // loop_pre_header
    _
  $region3: #{beluga_forward.7} parent=0 // loop_header
    %s11 = sphi 0, %s15
    %p12 = scmp.ge.s32.totalorder %s11, 4
    %s18 = sphi 0, %s44
    %s19 = sphi 0, %s40
    %s20 = sphi 0, %s36
    %s21 = sphi 0, %s32
    %s22 = sphi 0, %s18
    %s23 = sphi 0, %s19
    %s24 = sphi 0, %s20
    %s25 = sphi 0, %s21
    %s26 = sphi 0, %s22
    %s27 = sphi 0, %s23
    %s28 = sphi 0, %s24
    %s29 = sphi 0, %s25
    %s51 = sphi 0, %s53
    %s54 = sphi 0, %s51
    %s55 = sphi 0, %s54
    %s71 = sphi 0, %s55
    %s85 = sphi 0, %s87
    %s88 = sphi 0, %s85
    %s89 = sphi 0, %s88
    %s105 = sphi 0, %s89
    %s113 = sphi 0, %s115
    %s116 = sphi 0, %s113
    %s117 = sphi 0, %s116
    %s133 = sphi 0, %s117
    %s139 = sphi 0, %s141
    %s142 = sphi 0, %s139
    %s143 = sphi 0, %s142
    %s159 = sphi 0, %s143
    %s165 = sphi 0, %s167
    %s168 = sphi 0, %s165
    %s169 = sphi 0, %s168
    %s185 = sphi 0, %s169
    %s195 = sphi 0, %s197
    %s198 = sphi 0, %s195
    %s199 = sphi 0, %s198
    %s215 = sphi 0, %s199
  $region4: #{beluga_forward.7} parent=0 // loop_header_branch
    %14 = sbr.rel (%p12) target = $region8
  $region5: #{beluga_forward.7} parent=0 // loop_body
    %s16 = ssub.s32 %s11, 1
    %s17 = ssub.s32 %s11, 2
    %s30 = sadd.s32 1, %s21
    %p31 = scmp.ge.s32.totalorder %s30, 1
    %s32 = scalar_select %p31, 0, %s30
    %s33 = sadd.s32 1, %s20
    %s34 = scalar_select %p31, %s33, %s20
    %p35 = scmp.ge.s32.totalorder %s34, 1
    %s36 = scalar_select %p35, 0, %s34
    %s37 = sadd.s32 1, %s19
    %s38 = scalar_select %p35, %s37, %s19
    %p39 = scmp.ge.s32.totalorder %s38, 1
    %s40 = scalar_select %p39, 0, %s38
    %s41 = sadd.s32 1, %s18
    %s42 = scalar_select %p39, %s41, %s18
    %p43 = scmp.ge.s32.totalorder %s42, 2
    %s44 = scalar_select %p43, 0, %s42
    %s45 = ssub.s32 %s18, %s44
    %s46 = ssub.s32 %s19, %s40
    %s47 = sor.u32 %s45, %s46
    %s48 = ssub.s32 %s21, %s32
    %s49 = sor.u32 %s47, %s48
    %p50 = scmp.eq.s32.totalorder %s49, 0
    %s52 = sadd.s32 %s51, 1
    %s53 = scalar_select %p50, %s51, %s52
    %p56 = pneg %p50
    %p57 = scmp.eq.s32.totalorder %s11, 1
    %p58 = por %p56, %p57
    %p59 = scmp.ne.s32.totalorder %s51, %s54
    %p60 = scmp.eq.s32.totalorder %s11, 0
    %p61 = por %p59, %p60
    %p62 = scmp.ne.s32.totalorder %s51, %s54
    %p63 = scmp.eq.s32.totalorder %s16, 1
    %p64 = por %p62, %p63
    %p65 = scmp.ne.s32.totalorder %s54, %s55
    %p66 = scmp.eq.s32.totalorder %s16, 0
    %p67 = por %p65, %p66
    %p68 = scmp.ne.s32.totalorder %s54, %s55
    %p69 = scmp.eq.s32.totalorder %s17, 1
    %p70 = por %p68, %p69
    %p72 = scmp.ne.s32.totalorder %s55, %s71
    %p73 = scmp.eq.s32.totalorder %s17, 0
    %p74 = por %p72, %p73
    %s75 = sadd.s32 %s19, 1
    %s76 = smul.u32 %s75, 4
    %s77 = sadd.s32 %s40, 1
    %s78 = smul.u32 %s77, 4
    %s79 = ssub.s32 %s18, %s44
    %s80 = ssub.s32 %s76, %s78
    %s81 = sor.u32 %s79, %s80
    %s82 = ssub.s32 %s21, %s32
    %s83 = sor.u32 %s81, %s82
    %p84 = scmp.eq.s32.totalorder %s83, 0
    %s86 = sadd.s32 %s85, 1
    %s87 = scalar_select %p84, %s85, %s86
    %p90 = pneg %p84
    %p91 = scmp.eq.s32.totalorder %s11, 1
    %p92 = por %p90, %p91
    %p93 = scmp.ne.s32.totalorder %s85, %s88
    %p94 = scmp.eq.s32.totalorder %s11, 0
    %p95 = por %p93, %p94
    %p96 = scmp.ne.s32.totalorder %s85, %s88
    %p97 = scmp.eq.s32.totalorder %s16, 1
    %p98 = por %p96, %p97
    %p99 = scmp.ne.s32.totalorder %s88, %s89
    %p100 = scmp.eq.s32.totalorder %s16, 0
    %p101 = por %p99, %p100
    %p102 = scmp.ne.s32.totalorder %s88, %s89
    %p103 = scmp.eq.s32.totalorder %s17, 1
    %p104 = por %p102, %p103
    %p106 = scmp.ne.s32.totalorder %s89, %s105
    %p107 = scmp.eq.s32.totalorder %s17, 0
    %p108 = por %p106, %p107
    %s109 = ssub.s32 %s21, %s32
    %s110 = ssub.s32 %s20, %s36
    %s111 = sor.u32 %s109, %s110
    %p112 = scmp.eq.s32.totalorder %s111, 0
    %s114 = sadd.s32 %s113, 1
    %s115 = scalar_select %p112, %s113, %s114
    %p118 = pneg %p112
    %p119 = scmp.eq.s32.totalorder %s11, 1
    %p120 = por %p118, %p119
    %p121 = scmp.ne.s32.totalorder %s113, %s116
    %p122 = scmp.eq.s32.totalorder %s11, 0
    %p123 = por %p121, %p122
    %p124 = scmp.ne.s32.totalorder %s113, %s116
    %p125 = scmp.eq.s32.totalorder %s16, 1
    %p126 = por %p124, %p125
    %p127 = scmp.ne.s32.totalorder %s116, %s117
    %p128 = scmp.eq.s32.totalorder %s16, 0
    %p129 = por %p127, %p128
    %p130 = scmp.ne.s32.totalorder %s116, %s117
    %p131 = scmp.eq.s32.totalorder %s17, 1
    %p132 = por %p130, %p131
    %p134 = scmp.ne.s32.totalorder %s117, %s133
    %p135 = scmp.eq.s32.totalorder %s17, 0
    %p136 = por %p134, %p135
    %s137 = ssub.s32 %s20, %s36
    %p138 = scmp.eq.s32.totalorder %s137, 0
    %s140 = sadd.s32 %s139, 1
    %s141 = scalar_select %p138, %s139, %s140
    %p144 = pneg %p138
    %p145 = scmp.eq.s32.totalorder %s11, 1
    %p146 = por %p144, %p145
    %p147 = scmp.ne.s32.totalorder %s139, %s142
    %p148 = scmp.eq.s32.totalorder %s11, 0
    %p149 = por %p147, %p148
    %p150 = scmp.ne.s32.totalorder %s139, %s142
    %p151 = scmp.eq.s32.totalorder %s16, 1
    %p152 = por %p150, %p151
    %p153 = scmp.ne.s32.totalorder %s142, %s143
    %p154 = scmp.eq.s32.totalorder %s16, 0
    %p155 = por %p153, %p154
    %p156 = scmp.ne.s32.totalorder %s142, %s143
    %p157 = scmp.eq.s32.totalorder %s17, 1
    %p158 = por %p156, %p157
    %p160 = scmp.ne.s32.totalorder %s143, %s159
    %p161 = scmp.eq.s32.totalorder %s17, 0
    %p162 = por %p160, %p161
    %s163 = ssub.s32 %s20, %s36
    %p164 = scmp.eq.s32.totalorder %s163, 0
    %s166 = sadd.s32 %s165, 1
    %s167 = scalar_select %p164, %s165, %s166
    %p170 = pneg %p164
    %p171 = scmp.eq.s32.totalorder %s11, 1
    %p172 = por %p170, %p171
    %p173 = scmp.ne.s32.totalorder %s165, %s168
    %p174 = scmp.eq.s32.totalorder %s11, 0
    %p175 = por %p173, %p174
    %p176 = scmp.ne.s32.totalorder %s165, %s168
    %p177 = scmp.eq.s32.totalorder %s16, 1
    %p178 = por %p176, %p177
    %p179 = scmp.ne.s32.totalorder %s168, %s169
    %p180 = scmp.eq.s32.totalorder %s16, 0
    %p181 = por %p179, %p180
    %p182 = scmp.ne.s32.totalorder %s168, %s169
    %p183 = scmp.eq.s32.totalorder %s17, 1
    %p184 = por %p182, %p183
    %p186 = scmp.ne.s32.totalorder %s169, %s185
    %p187 = scmp.eq.s32.totalorder %s17, 0
    %p188 = por %p186, %p187
    %s189 = ssub.s32 %s18, %s44
    %s190 = ssub.s32 %s19, %s40
    %s191 = sor.u32 %s189, %s190
    %s192 = ssub.s32 %s20, %s36
    %s193 = sor.u32 %s191, %s192
    %p194 = scmp.eq.s32.totalorder %s193, 0
    %s196 = sadd.s32 %s195, 1
    %s197 = scalar_select %p194, %s195, %s196
    %p200 = pneg %p194
    %p201 = scmp.eq.s32.totalorder %s11, 1
    %p202 = por %p200, %p201
    %p203 = scmp.ne.s32.totalorder %s195, %s198
    %p204 = scmp.eq.s32.totalorder %s11, 0
    %p205 = por %p203, %p204
    %p206 = scmp.ne.s32.totalorder %s195, %s198
    %p207 = scmp.eq.s32.totalorder %s16, 1
    %p208 = por %p206, %p207
    %p209 = scmp.ne.s32.totalorder %s198, %s199
    %p210 = scmp.eq.s32.totalorder %s16, 0
    %p211 = por %p209, %p210
    %p212 = scmp.ne.s32.totalorder %s198, %s199
    %p213 = scmp.eq.s32.totalorder %s17, 1
    %p214 = por %p212, %p213
    %p216 = scmp.ne.s32.totalorder %s199, %s215
    %p217 = scmp.eq.s32.totalorder %s17, 0
    %p218 = por %p216, %p217
    %p219 = scmp.le.s32.totalorder 1, %s11
    %p220 = scmp.lt.s32.totalorder %s11, 3
    %p221 = pnand %p219, %p220
    %p222 = pneg %p221
    // Predicated region
    $region9: #{beluga_forward.7} parent=5 // pred_check
      _
    $region10: #{beluga_forward.7} parent=5 // pred_check_branch
      %224 = sbr.rel (%p221) target = $region12
    $region11: #{beluga_forward.7} parent=5 // pred_region
      %s225 = ssub.s32 %s11, 1
      // Predicated region
      $region13: #{beluga_forward.7} parent=11 // pred_check
        %p226 = pneg %p129
      $region14: #{beluga_forward.7} parent=11 // pred_check_branch
        %228 = sbr.rel (%p226) target = $region16
      $region15: #{beluga_forward.7} parent=11 // pred_region
        %s229 = smul.u32 16, %s25
        %p230 = scmp.lt.s32.totalorder %s229, 15
        %s231 = scalar_select %p230, %s229, 15
        %p232 = scmp.lt.s32.totalorder %s24, 0
        %s233 = scalar_select %p232, %s24, 0
        %s234 = sadd.s32 %s233, %s231
        %s235 = smul.addr %s234, 4
        %s236 = scalar_lea.vmem %s2, %s235
        %s237 = smul.u32 16, %s25
      $region16: #{beluga_forward.7} parent=11 // pred_fallthru
        _
      // Predicated region
      $region17: #{beluga_forward.7} parent=11 // pred_check
        %p238 = pneg %p155
      $region18: #{beluga_forward.7} parent=11 // pred_check_branch
        %240 = sbr.rel (%p238) target = $region20
      $region19: #{beluga_forward.7} parent=11 // pred_region
        %p241 = scmp.lt.s32.totalorder %s24, 0
        %s242 = scalar_select %p241, %s24, 0
        %s243 = scalar_lea.vmem %s3, %s242
      $region20: #{beluga_forward.7} parent=11 // pred_fallthru
        _
      // Predicated region
      $region21: #{beluga_forward.7} parent=11 // pred_check
        %p244 = pneg %p181
      $region22: #{beluga_forward.7} parent=11 // pred_check_branch
        %246 = sbr.rel (%p244) target = $region24
      $region23: #{beluga_forward.7} parent=11 // pred_region
        %p247 = scmp.lt.s32.totalorder %s24, 0
        %s248 = scalar_select %p247, %s24, 0
        %s249 = scalar_lea.vmem %s4, %s248
      $region24: #{beluga_forward.7} parent=11 // pred_fallthru
        _
    $region12: #{beluga_forward.7} parent=5 // pred_fallthru
      _
    %p250 = scmp.lt.s32.totalorder %s11, 2
    // Predicated region
    $region25: #{beluga_forward.7} parent=5 // pred_check
      %p251 = pneg %p250
    $region26: #{beluga_forward.7} parent=5 // pred_check_branch
      %253 = sbr.rel (%p251) target = $region28
    $region27: #{beluga_forward.7} parent=5 // pred_region
      // Predicated region
      $region29: #{beluga_forward.7} parent=27 // pred_check
        %p254 = pneg %p61
      $region30: #{beluga_forward.7} parent=27 // pred_check_branch
        %256 = sbr.rel (%p254) target = $region32
      $region31: #{beluga_forward.7} parent=27 // pred_region
        %s257 = smul.u32 8, %s19
        %p258 = scmp.lt.s32.totalorder %s18, 1
        %s259 = scalar_select %p258, %s18, 1
        %p260 = scmp.lt.s32.totalorder %s257, 15
        %s261 = scalar_select %p260, %s257, 15
        %p262 = scmp.lt.s32.totalorder %s21, 0
        %s263 = scalar_select %p262, %s21, 0
        %s264 = sadd.s32 %s263, %s261
        %s265 = smul.addr %s259, 16
        %s266 = sadd.s32 %s264, %s265
        %s267 = smul.addr %s266, 4
        %s268 = scalar_lea.vmem %s0, %s267
        %s269 = smul.u32 8, %s19
      $region32: #{beluga_forward.7} parent=27 // pred_fallthru
        _
      // Predicated region
      $region33: #{beluga_forward.7} parent=27 // pred_check
        %p270 = pneg %p95
      $region34: #{beluga_forward.7} parent=27 // pred_check_branch
        %272 = sbr.rel (%p270) target = $region36
      $region35: #{beluga_forward.7} parent=27 // pred_region
        %s273 = sadd.s32 %s19, 1
        %s274 = smul.u32 %s273, 4
        %s275 = smul.u32 2, %s274
        %p276 = scmp.lt.s32.totalorder %s18, 1
        %s277 = scalar_select %p276, %s18, 1
        %p278 = scmp.lt.s32.totalorder %s275, 15
        %s279 = scalar_select %p278, %s275, 15
        %p280 = scmp.lt.s32.totalorder %s21, 0
        %s281 = scalar_select %p280, %s21, 0
        %s282 = sadd.s32 %s281, %s279
        %s283 = smul.addr %s277, 16
        %s284 = sadd.s32 %s282, %s283
        %s285 = smul.addr %s284, 4
        %s286 = scalar_lea.vmem %s1, %s285
        %s287 = sadd.s32 %s19, 1
        %s288 = smul.u32 %s287, 4
        %s289 = smul.u32 2, %s288
      $region36: #{beluga_forward.7} parent=27 // pred_fallthru
        _
    $region28: #{beluga_forward.7} parent=5 // pred_fallthru
      _
    %p290 = scmp.le.s32.totalorder 1, %s11
    %p291 = scmp.lt.s32.totalorder %s11, 3
    %p292 = pnand %p290, %p291
    %p293 = pneg %p292
    // Predicated region
    $region37: #{beluga_forward.7} parent=5 // pred_check
      _
    $region38: #{beluga_forward.7} parent=5 // pred_check_branch
      %295 = sbr.rel (%p292) target = $region40
    $region39: #{beluga_forward.7} parent=5 // pred_region
      %s296 = ssub.s32 %s11, 1
      %s297 = smul.u32 8, %s23
      %p298 = scmp.lt.s32.totalorder %s22, 1
      %s299 = scalar_select %p298, %s22, 1
      %p300 = scmp.lt.s32.totalorder %s297, 15
      %s301 = scalar_select %p300, %s297, 15
      %p302 = scmp.lt.s32.totalorder %s25, 0
      %s303 = scalar_select %p302, %s25, 0
      %s304 = sadd.s32 %s303, %s301
      %s305 = smul.addr %s299, 16
      %s306 = sadd.s32 %s304, %s305
      %s307 = smul.addr %s306, 4
      %s308 = scalar_lea.vmem %s0, %s307
      %p309 = pneg %p67
      %p310 = pneg %p64
      %s311 = sadd.s32 %s23, 1
      %s312 = smul.u32 %s311, 4
      %s313 = smul.u32 2, %s312
      %p314 = scmp.lt.s32.totalorder %s22, 1
      %s315 = scalar_select %p314, %s22, 1
      %p316 = scmp.lt.s32.totalorder %s313, 15
      %s317 = scalar_select %p316, %s313, 15
      %p318 = scmp.lt.s32.totalorder %s25, 0
      %s319 = scalar_select %p318, %s25, 0
      %s320 = sadd.s32 %s319, %s317
      %s321 = smul.addr %s315, 16
      %s322 = sadd.s32 %s320, %s321
      %s323 = smul.addr %s322, 4
      %s324 = scalar_lea.vmem %s1, %s323
      %p325 = pneg %p101
      %p326 = pneg %p98
      %s327 = smul.u32 16, %s25
      %p328 = scmp.lt.s32.totalorder %s327, 15
      %s329 = scalar_select %p328, %s327, 15
      %p330 = scmp.lt.s32.totalorder %s24, 0
      %s331 = scalar_select %p330, %s24, 0
      %s332 = sadd.s32 %s331, %s329
      %s333 = smul.addr %s332, 4
      %s334 = scalar_lea.vmem %s2, %s333
      %p335 = pneg %p129
      %p336 = pneg %p126
      %p337 = scmp.lt.s32.totalorder %s24, 0
      %s338 = scalar_select %p337, %s24, 0
      %s339 = scalar_lea.vmem %s3, %s338
      %p340 = pneg %p155
      %p341 = pneg %p152
      %p342 = scmp.lt.s32.totalorder %s24, 0
      %s343 = scalar_select %p342, %s24, 0
      %s344 = scalar_lea.vmem %s4, %s343
      %p345 = pneg %p181
      %p346 = pneg %p178
      %p347 = pneg %p211
      %p348 = pneg %p208
      %s349 = smul.u32 8, %s23
      %p350 = scmp.lt.s32.totalorder %s22, 1
      %s351 = scalar_select %p350, %s22, 1
      %p352 = scmp.lt.s32.totalorder %s349, 7
      %s353 = scalar_select %p352, %s349, 7
      %p354 = scmp.lt.s32.totalorder %s24, 0
      %s355 = scalar_select %p354, %s24, 0
      %s356 = sadd.s32 %s355, %s353
      %s357 = smul.addr %s351, 8
      %s358 = sadd.s32 %s356, %s357
      %s359 = smul.addr %s358, 4
      %s360 = scalar_lea.vmem %s5, %s359
      %s361 = smul.u32 8, %s23
      %p362 = scmp.lt.s32.totalorder %s22, 1
      %s363 = scalar_select %p362, %s22, 1
      %p364 = scmp.lt.s32.totalorder %s361, 15
      %s365 = scalar_select %p364, %s361, 15
      %p366 = scmp.lt.s32.totalorder %s25, 0
      %s367 = scalar_select %p366, %s25, 0
      %s368 = sadd.s32 %s367, %s365
      %s369 = smul.addr %s363, 16
      %s370 = sadd.s32 %s368, %s369
      %s371 = smul.addr %s370, 4
      %s372 = scalar_lea.vmem %s0, %s371
      %s373 = smul.u32 8, %s23
      %s374 = sadd.s32 %s23, 1
      %s375 = smul.u32 %s374, 4
      %s376 = smul.u32 2, %s375
      %p377 = scmp.lt.s32.totalorder %s22, 1
      %s378 = scalar_select %p377, %s22, 1
      %p379 = scmp.lt.s32.totalorder %s376, 15
      %s380 = scalar_select %p379, %s376, 15
      %p381 = scmp.lt.s32.totalorder %s25, 0
      %s382 = scalar_select %p381, %s25, 0
      %s383 = sadd.s32 %s382, %s380
      %s384 = smul.addr %s378, 16
      %s385 = sadd.s32 %s383, %s384
      %s386 = smul.addr %s385, 4
      %s387 = scalar_lea.vmem %s1, %s386
      %s388 = sadd.s32 %s23, 1
      %s389 = smul.u32 %s388, 4
      %s390 = smul.u32 2, %s389
      %s391 = smul.u32 16, %s25
      %p392 = scmp.lt.s32.totalorder %s391, 15
      %s393 = scalar_select %p392, %s391, 15
      %p394 = scmp.lt.s32.totalorder %s24, 0
      %s395 = scalar_select %p394, %s24, 0
      %s396 = sadd.s32 %s395, %s393
      %s397 = smul.addr %s396, 4
      %s398 = scalar_lea.vmem %s2, %s397
      %s399 = smul.u32 16, %s25
      %p400 = scmp.lt.s32.totalorder %s24, 0
      %s401 = scalar_select %p400, %s24, 0
      %s402 = scalar_lea.vmem %s3, %s401
      %p403 = scmp.lt.s32.totalorder %s24, 0
      %s404 = scalar_select %p403, %s24, 0
      %s405 = scalar_lea.vmem %s4, %s404
      %s406 = smul.u32 8, %s23
      %p407 = scmp.lt.s32.totalorder %s22, 1
      %s408 = scalar_select %p407, %s22, 1
      %p409 = scmp.lt.s32.totalorder %s406, 7
      %s410 = scalar_select %p409, %s406, 7
      %p411 = scmp.lt.s32.totalorder %s24, 0
      %s412 = scalar_select %p411, %s24, 0
      %s413 = sadd.s32 %s412, %s410
      %s414 = smul.addr %s408, 8
      %s415 = sadd.s32 %s413, %s414
      %s416 = smul.addr %s415, 4
      %s417 = scalar_lea.vmem %s5, %s416
      %s418 = smul.u32 8, %s23
      %v419 = vld [vmem:[%s372] sm:$0xf]
      %v420 = vld [vmem:[%s372 + $0x4] sm:$0xf]
      %v421 = vld [vmem:[%s372 + $0x8] sm:$0xf]
      %v422 = vld [vmem:[%s372 + $0xc] sm:$0xf]
      %v423 = vld [vmem:[%s372 + $0x10] sm:$0xf]
      %v424 = vld [vmem:[%s372 + $0x14] sm:$0xf]
      %v425 = vld [vmem:[%s372 + $0x18] sm:$0xf]
      %v426 = vld [vmem:[%s372 + $0x1c] sm:$0xf]
      %427 = vst [vmem:[#allocation3] sm:$0xf] %v419
      %428 = vst [vmem:[#allocation3 + $0x4] sm:$0xf] %v420
      %429 = vst [vmem:[#allocation3 + $0x8] sm:$0xf] %v421
      %430 = vst [vmem:[#allocation3 + $0xc] sm:$0xf] %v422
      %431 = vst [vmem:[#allocation3 + $0x10] sm:$0xf] %v423
      %432 = vst [vmem:[#allocation3 + $0x14] sm:$0xf] %v424
      %433 = vst [vmem:[#allocation3 + $0x18] sm:$0xf] %v425
      %434 = vst [vmem:[#allocation3 + $0x1c] sm:$0xf] %v426
      %v435 = vld [vmem:[%s387] sm:$0xf]
      %v436 = vld [vmem:[%s387 + $0x4] sm:$0xf]
      %437 = vst [vmem:[#allocation3 + $0x20] sm:$0xf] %v435
      %438 = vst [vmem:[#allocation3 + $0x24] sm:$0xf] %v436
      %v439 = vld [vmem:[%s398] sm:$0xf]
      %v440 = vld [vmem:[%s398 + $0x4] sm:$0xf]
      %v441 = vld [vmem:[%s398 + $0x8] sm:$0xf]
      %v442 = vld [vmem:[%s398 + $0xc] sm:$0xf]
      %v443 = vld [vmem:[%s398 + $0x10] sm:$0xf]
      %v444 = vld [vmem:[%s398 + $0x14] sm:$0xf]
      %v445 = vld [vmem:[%s398 + $0x18] sm:$0xf]
      %v446 = vld [vmem:[%s398 + $0x1c] sm:$0xf]
      %v447 = vld [vmem:[%s398 + $0x20] sm:$0xf]
      %v448 = vld [vmem:[%s398 + $0x24] sm:$0xf]
      %v449 = vld [vmem:[%s398 + $0x28] sm:$0xf]
      %v450 = vld [vmem:[%s398 + $0x2c] sm:$0xf]
      %v451 = vld [vmem:[%s398 + $0x30] sm:$0xf]
      %v452 = vld [vmem:[%s398 + $0x34] sm:$0xf]
      %v453 = vld [vmem:[%s398 + $0x38] sm:$0xf]
      %v454 = vld [vmem:[%s398 + $0x3c] sm:$0xf]
      %v463 = vunpack.c.l.b16 %v419
      %v464 = vunpack.c.l.b16 %v420
      %v465 = vunpack.c.l.b16 %v421
      %v466 = vunpack.c.l.b16 %v422
      %v467 = vunpack.c.l.b16 %v423
      %v468 = vunpack.c.l.b16 %v424
      %v469 = vunpack.c.l.b16 %v425
      %v470 = vunpack.c.l.b16 %v426
      %v471 = vpack.c.b16 %v464, %v463
      %v472 = vpack.c.b16 %v466, %v465
      %v473 = vpack.c.b16 %v468, %v467
      %v474 = vpack.c.b16 %v470, %v469
      %v495 = vunpack.c.l.b16 %v439
      %v496 = vunpack.c.l.b16 %v440
      %v497 = vunpack.c.l.b16 %v441
      %v498 = vunpack.c.l.b16 %v442
      %v499 = vunpack.c.l.b16 %v443
      %v500 = vunpack.c.l.b16 %v444
      %v501 = vunpack.c.l.b16 %v445
      %v502 = vunpack.c.l.b16 %v446
      %v503 = vunpack.c.l.b16 %v447
      %v504 = vunpack.c.l.b16 %v448
      %v505 = vunpack.c.l.b16 %v449
      %v506 = vunpack.c.l.b16 %v450
      %v507 = vunpack.c.l.b16 %v451
      %v508 = vunpack.c.l.b16 %v452
      %v509 = vunpack.c.l.b16 %v453
      %v510 = vunpack.c.l.b16 %v454
      %v511 = vpack.c.b16 %v496, %v495
      %v512 = vpack.c.b16 %v498, %v497
      %v513 = vpack.c.b16 %v500, %v499
      %v514 = vpack.c.b16 %v502, %v501
      %v515 = vpack.c.b16 %v504, %v503
      %v516 = vpack.c.b16 %v506, %v505
      %v517 = vpack.c.b16 %v508, %v507
      %v518 = vpack.c.b16 %v510, %v509
      %527 = vmatpush.bf16.msra.mxu0 %v518
      %528 = vmatpush.bf16.msra.mxu0 %v517
      %529 = vmatpush.bf16.msra.mxu0 %v516
      %530 = vmatpush.bf16.msra.mxu0 %v515
      %531 = vmatpush.bf16.msra.mxu0 %v514
      %532 = vmatpush.bf16.msra.mxu0 %v513
      %533 = vmatpush.bf16.msra.mxu0 %v512
      %534 = vmatpush.bf16.msra.mxu0 %v511
      %535 = vmatmul.bf16.gmra.mxu0 %v471
      %v536 = vpop.f32.mrf.mxu0
      %v537 = vadd.f32 0.0, %v536
      %v538 = vpop.f32.mrf.mxu0
      %v539 = vadd.f32 0.0, %v538
      %540 = vmatmul.bf16.gmra.mxu0 %v472
      %v541 = vpop.f32.mrf.mxu0
      %v542 = vadd.f32 0.0, %v541
      %v543 = vpop.f32.mrf.mxu0
      %v544 = vadd.f32 0.0, %v543
      %545 = vmatmul.bf16.gmra.mxu0 %v473
      %v546 = vpop.f32.mrf.mxu0
      %v547 = vadd.f32 0.0, %v546
      %v548 = vpop.f32.mrf.mxu0
      %v549 = vadd.f32 0.0, %v548
      %550 = vmatmul.bf16.gmra.mxu0 %v474
      %v551 = vpop.f32.mrf.mxu0
      %v552 = vadd.f32 0.0, %v551
      %v553 = vpop.f32.mrf.mxu0
      %v554 = vadd.f32 0.0, %v553
      %555 = vdwg.mxu0
      %p556 = scmp.eq.s32.totalorder %s25, 0
      // Predicated region
      $region41: #{beluga_forward.7} parent=39 // pred_check
        %p557 = pneg %p556
      $region42: #{beluga_forward.7} parent=39 // pred_check_branch
        %559 = sbr.rel (%p557) target = $region44
      $region43: #{beluga_forward.7} parent=39 // pred_region
        %560 = vst [vmem:[#allocation2] sm:$0xff] %v537
        %561 = vst [vmem:[#allocation2 + $0x8] sm:$0xff] %v539
        %562 = vst [vmem:[#allocation2 + $0x10] sm:$0xff] %v542
        %563 = vst [vmem:[#allocation2 + $0x18] sm:$0xff] %v544
        %564 = vst [vmem:[#allocation2 + $0x20] sm:$0xff] %v547
        %565 = vst [vmem:[#allocation2 + $0x28] sm:$0xff] %v549
        %566 = vst [vmem:[#allocation2 + $0x30] sm:$0xff] %v552
        %567 = vst [vmem:[#allocation2 + $0x38] sm:$0xff] %v554
      $region44: #{beluga_forward.7} parent=39 // pred_fallthru
        _
      %p568 = scmp.ne.s32.totalorder %s25, 0
      // Predicated region
      $region45: #{beluga_forward.7} parent=39 // pred_check
        %p569 = pneg %p568
      $region46: #{beluga_forward.7} parent=39 // pred_check_branch
        %571 = sbr.rel (%p569) target = $region48
      $region47: #{beluga_forward.7} parent=39 // pred_region
        %v572 = vld [vmem:[#allocation2] sm:$0xff]
        %v573 = vld [vmem:[#allocation2 + $0x8] sm:$0xff]
        %v574 = vld [vmem:[#allocation2 + $0x10] sm:$0xff]
        %v575 = vld [vmem:[#allocation2 + $0x18] sm:$0xff]
        %v576 = vld [vmem:[#allocation2 + $0x20] sm:$0xff]
        %v577 = vld [vmem:[#allocation2 + $0x28] sm:$0xff]
        %v578 = vld [vmem:[#allocation2 + $0x30] sm:$0xff]
        %v579 = vld [vmem:[#allocation2 + $0x38] sm:$0xff]
        %v580 = vadd.f32 %v572, %v537
        %v581 = vadd.f32 %v573, %v539
        %v582 = vadd.f32 %v574, %v542
        %v583 = vadd.f32 %v575, %v544
        %v584 = vadd.f32 %v576, %v547
        %v585 = vadd.f32 %v577, %v549
        %v586 = vadd.f32 %v578, %v552
        %v587 = vadd.f32 %v579, %v554
        %588 = vst [vmem:[#allocation2] sm:$0xff] %v580
        %589 = vst [vmem:[#allocation2 + $0x8] sm:$0xff] %v581
        %590 = vst [vmem:[#allocation2 + $0x10] sm:$0xff] %v582
        %591 = vst [vmem:[#allocation2 + $0x18] sm:$0xff] %v583
        %592 = vst [vmem:[#allocation2 + $0x20] sm:$0xff] %v584
        %593 = vst [vmem:[#allocation2 + $0x28] sm:$0xff] %v585
        %594 = vst [vmem:[#allocation2 + $0x30] sm:$0xff] %v586
        %595 = vst [vmem:[#allocation2 + $0x38] sm:$0xff] %v587
      $region48: #{beluga_forward.7} parent=39 // pred_fallthru
        _
      %v596 = vld [vmem:[#allocation3] sm:$0xf]
      %v597 = vld [vmem:[#allocation3 + $0x4] sm:$0xf]
      %v598 = vld [vmem:[#allocation3 + $0x8] sm:$0xf]
      %v599 = vld [vmem:[#allocation3 + $0xc] sm:$0xf]
      %v600 = vld [vmem:[#allocation3 + $0x10] sm:$0xf]
      %v601 = vld [vmem:[#allocation3 + $0x14] sm:$0xf]
      %v602 = vld [vmem:[#allocation3 + $0x18] sm:$0xf]
      %v603 = vld [vmem:[#allocation3 + $0x1c] sm:$0xf]
      %v604 = vld [vmem:[#allocation3 + $0x20] sm:$0x1]
      %v605 = vld [vmem:[#allocation2] sm:$0xff]
      %v606 = vld [vmem:[#allocation2 + $0x8] sm:$0xff]
      %v607 = vld [vmem:[#allocation2 + $0x10] sm:$0xff]
      %v608 = vld [vmem:[#allocation2 + $0x18] sm:$0xff]
      %v609 = vld [vmem:[#allocation2 + $0x20] sm:$0xff]
      %v610 = vld [vmem:[#allocation2 + $0x28] sm:$0xff]
      %v611 = vld [vmem:[#allocation2 + $0x30] sm:$0xff]
      %v612 = vld [vmem:[#allocation2 + $0x38] sm:$0xff]
      %s613 = scalar_lea.vmem %s398, 64
      %v614 = vld [vmem:[%s613] sm:$0xf]
      %v615 = vld [vmem:[%s613 + $0x4] sm:$0xf]
      %v616 = vld [vmem:[%s613 + $0x8] sm:$0xf]
      %v617 = vld [vmem:[%s613 + $0xc] sm:$0xf]
      %v618 = vld [vmem:[%s613 + $0x10] sm:$0xf]
      %v619 = vld [vmem:[%s613 + $0x14] sm:$0xf]
      %v620 = vld [vmem:[%s613 + $0x18] sm:$0xf]
      %v621 = vld [vmem:[%s613 + $0x1c] sm:$0xf]
      %v622 = vld [vmem:[%s613 + $0x20] sm:$0xf]
      %v623 = vld [vmem:[%s613 + $0x24] sm:$0xf]
      %v624 = vld [vmem:[%s613 + $0x28] sm:$0xf]
      %v625 = vld [vmem:[%s613 + $0x2c] sm:$0xf]
      %v626 = vld [vmem:[%s613 + $0x30] sm:$0xf]
      %v627 = vld [vmem:[%s613 + $0x34] sm:$0xf]
      %v628 = vld [vmem:[%s613 + $0x38] sm:$0xf]
      %v629 = vld [vmem:[%s613 + $0x3c] sm:$0xf]
      %v639 = vunpack.c.l.b16 %v596
      %v640 = vunpack.c.l.b16 %v597
      %v641 = vunpack.c.l.b16 %v598
      %v642 = vunpack.c.l.b16 %v599
      %v643 = vunpack.c.l.b16 %v600
      %v644 = vunpack.c.l.b16 %v601
      %v645 = vunpack.c.l.b16 %v602
      %v646 = vunpack.c.l.b16 %v603
      %v647 = vunpack.c.l.b16 %v604
      %v648 = vpack.c.b16 %v640, %v639
      %v649 = vpack.c.b16 %v642, %v641
      %v650 = vpack.c.b16 %v644, %v643
      %v651 = vpack.c.b16 %v646, %v645
      %v652 = vpack.c.b16 %v647, %v647
      %vm653 = vsmask.f32 7424
      %v655 = vshrl.u32 %v648, 16
      %v657 = vshll.u32 %v648, 16
      %v659 = vrot.slane %v657, 1
      %v660 = vor.u32 %v655, %v659
      %v662 = vshll.u32 %v649, 16
      %v664 = vrot.slane %v662, 1
      %v665 = vsel %vm653, %v660, %v664
      %v666 = vshrl.u32 %v649, 16
      %v668 = vor.u32 %v666, %v664
      %v670 = vshll.u32 %v650, 16
      %v672 = vrot.slane %v670, 1
      %v673 = vsel %vm653, %v668, %v672
      %v674 = vshrl.u32 %v650, 16
      %v676 = vor.u32 %v674, %v672
      %v678 = vshll.u32 %v651, 16
      %v680 = vrot.slane %v678, 1
      %v681 = vsel %vm653, %v676, %v680
      %v682 = vshrl.u32 %v651, 16
      %v684 = vor.u32 %v682, %v680
      %v686 = vshll.u32 %v652, 16
      %v688 = vrot.slane %v686, 1
      %v689 = vsel %vm653, %v684, %v688
      %v710 = vunpack.c.l.b16 %v614
      %v711 = vunpack.c.l.b16 %v615
      %v712 = vunpack.c.l.b16 %v616
      %v713 = vunpack.c.l.b16 %v617
      %v714 = vunpack.c.l.b16 %v618
      %v715 = vunpack.c.l.b16 %v619
      %v716 = vunpack.c.l.b16 %v620
      %v717 = vunpack.c.l.b16 %v621
      %v718 = vunpack.c.l.b16 %v622
      %v719 = vunpack.c.l.b16 %v623
      %v720 = vunpack.c.l.b16 %v624
      %v721 = vunpack.c.l.b16 %v625
      %v722 = vunpack.c.l.b16 %v626
      %v723 = vunpack.c.l.b16 %v627
      %v724 = vunpack.c.l.b16 %v628
      %v725 = vunpack.c.l.b16 %v629
      %v726 = vpack.c.b16 %v711, %v710
      %v727 = vpack.c.b16 %v713, %v712
      %v728 = vpack.c.b16 %v715, %v714
      %v729 = vpack.c.b16 %v717, %v716
      %v730 = vpack.c.b16 %v719, %v718
      %v731 = vpack.c.b16 %v721, %v720
      %v732 = vpack.c.b16 %v723, %v722
      %v733 = vpack.c.b16 %v725, %v724
      %742 = vmatpush.bf16.msra.mxu0 %v733
      %743 = vmatpush.bf16.msra.mxu0 %v732
      %744 = vmatpush.bf16.msra.mxu0 %v731
      %745 = vmatpush.bf16.msra.mxu0 %v730
      %746 = vmatpush.bf16.msra.mxu0 %v729
      %747 = vmatpush.bf16.msra.mxu0 %v728
      %748 = vmatpush.bf16.msra.mxu0 %v727
      %749 = vmatpush.bf16.msra.mxu0 %v726
      %750 = vmatmul.bf16.gmra.mxu0 %v665
      %v751 = vpop.f32.mrf.mxu0
      %v752 = vadd.f32 0.0, %v751
      %v753 = vpop.f32.mrf.mxu0
      %v754 = vadd.f32 0.0, %v753
      %755 = vmatmul.bf16.gmra.mxu0 %v673
      %v756 = vpop.f32.mrf.mxu0
      %v757 = vadd.f32 0.0, %v756
      %v758 = vpop.f32.mrf.mxu0
      %v759 = vadd.f32 0.0, %v758
      %760 = vmatmul.bf16.gmra.mxu0 %v681
      %v761 = vpop.f32.mrf.mxu0
      %v762 = vadd.f32 0.0, %v761
      %v763 = vpop.f32.mrf.mxu0
      %v764 = vadd.f32 0.0, %v763
      %765 = vmatmul.bf16.gmra.mxu0 %v689
      %v766 = vpop.f32.mrf.mxu0
      %v767 = vadd.f32 0.0, %v766
      %v768 = vpop.f32.mrf.mxu0
      %v769 = vadd.f32 0.0, %v768
      %770 = vdwg.mxu0
      %v771 = vadd.f32 %v605, %v752
      %v772 = vadd.f32 %v606, %v754
      %v773 = vadd.f32 %v607, %v757
      %v774 = vadd.f32 %v608, %v759
      %v775 = vadd.f32 %v609, %v762
      %v776 = vadd.f32 %v610, %v764
      %v777 = vadd.f32 %v611, %v767
      %v778 = vadd.f32 %v612, %v769
      %779 = vst [vmem:[#allocation2] sm:$0xff] %v771
      %780 = vst [vmem:[#allocation2 + $0x8] sm:$0xff] %v772
      %781 = vst [vmem:[#allocation2 + $0x10] sm:$0xff] %v773
      %782 = vst [vmem:[#allocation2 + $0x18] sm:$0xff] %v774
      %783 = vst [vmem:[#allocation2 + $0x20] sm:$0xff] %v775
      %784 = vst [vmem:[#allocation2 + $0x28] sm:$0xff] %v776
      %785 = vst [vmem:[#allocation2 + $0x30] sm:$0xff] %v777
      %786 = vst [vmem:[#allocation2 + $0x38] sm:$0xff] %v778
      %v787 = vld [vmem:[#allocation3] sm:$0xe]
      %v788 = vld [vmem:[#allocation3 + $0x4] sm:$0xf]
      %v789 = vld [vmem:[#allocation3 + $0x8] sm:$0xf]
      %v790 = vld [vmem:[#allocation3 + $0xc] sm:$0xf]
      %v791 = vld [vmem:[#allocation3 + $0x10] sm:$0xf]
      %v792 = vld [vmem:[#allocation3 + $0x14] sm:$0xf]
      %v793 = vld [vmem:[#allocation3 + $0x18] sm:$0xf]
      %v794 = vld [vmem:[#allocation3 + $0x1c] sm:$0xf]
      %v795 = vld [vmem:[#allocation3 + $0x20] sm:$0x1]
      %v796 = vld [vmem:[#allocation2] sm:$0xff]
      %v797 = vld [vmem:[#allocation2 + $0x8] sm:$0xff]
      %v798 = vld [vmem:[#allocation2 + $0x10] sm:$0xff]
      %v799 = vld [vmem:[#allocation2 + $0x18] sm:$0xff]
      %v800 = vld [vmem:[#allocation2 + $0x20] sm:$0xff]
      %v801 = vld [vmem:[#allocation2 + $0x28] sm:$0xff]
      %v802 = vld [vmem:[#allocation2 + $0x30] sm:$0xff]
      %v803 = vld [vmem:[#allocation2 + $0x38] sm:$0xff]
      %s804 = scalar_lea.vmem %s398, 128
      %v805 = vld [vmem:[%s804] sm:$0xf]
      %v806 = vld [vmem:[%s804 + $0x4] sm:$0xf]
      %v807 = vld [vmem:[%s804 + $0x8] sm:$0xf]
      %v808 = vld [vmem:[%s804 + $0xc] sm:$0xf]
      %v809 = vld [vmem:[%s804 + $0x10] sm:$0xf]
      %v810 = vld [vmem:[%s804 + $0x14] sm:$0xf]
      %v811 = vld [vmem:[%s804 + $0x18] sm:$0xf]
      %v812 = vld [vmem:[%s804 + $0x1c] sm:$0xf]
      %v813 = vld [vmem:[%s804 + $0x20] sm:$0xf]
      %v814 = vld [vmem:[%s804 + $0x24] sm:$0xf]
      %v815 = vld [vmem:[%s804 + $0x28] sm:$0xf]
      %v816 = vld [vmem:[%s804 + $0x2c] sm:$0xf]
      %v817 = vld [vmem:[%s804 + $0x30] sm:$0xf]
      %v818 = vld [vmem:[%s804 + $0x34] sm:$0xf]
      %v819 = vld [vmem:[%s804 + $0x38] sm:$0xf]
      %v820 = vld [vmem:[%s804 + $0x3c] sm:$0xf]
      %v830 = vunpack.c.l.b16 %v787
      %v831 = vunpack.c.l.b16 %v788
      %v832 = vunpack.c.l.b16 %v789
      %v833 = vunpack.c.l.b16 %v790
      %v834 = vunpack.c.l.b16 %v791
      %v835 = vunpack.c.l.b16 %v792
      %v836 = vunpack.c.l.b16 %v793
      %v837 = vunpack.c.l.b16 %v794
      %v838 = vunpack.c.l.b16 %v795
      %v839 = vpack.c.b16 %v831, %v830
      %v840 = vpack.c.b16 %v833, %v832
      %v841 = vpack.c.b16 %v835, %v834
      %v842 = vpack.c.b16 %v837, %v836
      %v843 = vpack.c.b16 %v838, %v838
      %vm844 = vcmask 1046528
      %v845 = vrot.slane %v839, 1
      %v846 = vrot.slane %v840, 1
      %v847 = vsel %vm844, %v845, %v846
      %v848 = vrot.slane %v841, 1
      %v849 = vsel %vm844, %v846, %v848
      %v850 = vrot.slane %v842, 1
      %v851 = vsel %vm844, %v848, %v850
      %v852 = vrot.slane %v843, 1
      %v853 = vsel %vm844, %v850, %v852
      %v874 = vunpack.c.l.b16 %v805
      %v875 = vunpack.c.l.b16 %v806
      %v876 = vunpack.c.l.b16 %v807
      %v877 = vunpack.c.l.b16 %v808
      %v878 = vunpack.c.l.b16 %v809
      %v879 = vunpack.c.l.b16 %v810
      %v880 = vunpack.c.l.b16 %v811
      %v881 = vunpack.c.l.b16 %v812
      %v882 = vunpack.c.l.b16 %v813
      %v883 = vunpack.c.l.b16 %v814
      %v884 = vunpack.c.l.b16 %v815
      %v885 = vunpack.c.l.b16 %v816
      %v886 = vunpack.c.l.b16 %v817
      %v887 = vunpack.c.l.b16 %v818
      %v888 = vunpack.c.l.b16 %v819
      %v889 = vunpack.c.l.b16 %v820
      %v890 = vpack.c.b16 %v875, %v874
      %v891 = vpack.c.b16 %v877, %v876
      %v892 = vpack.c.b16 %v879, %v878
      %v893 = vpack.c.b16 %v881, %v880
      %v894 = vpack.c.b16 %v883, %v882
      %v895 = vpack.c.b16 %v885, %v884
      %v896 = vpack.c.b16 %v887, %v886
      %v897 = vpack.c.b16 %v889, %v888
      %906 = vmatpush.bf16.msra.mxu0 %v897
      %907 = vmatpush.bf16.msra.mxu0 %v896
      %908 = vmatpush.bf16.msra.mxu0 %v895
      %909 = vmatpush.bf16.msra.mxu0 %v894
      %910 = vmatpush.bf16.msra.mxu0 %v893
      %911 = vmatpush.bf16.msra.mxu0 %v892
      %912 = vmatpush.bf16.msra.mxu0 %v891
      %913 = vmatpush.bf16.msra.mxu0 %v890
      %914 = vmatmul.bf16.gmra.mxu0 %v847
      %v915 = vpop.f32.mrf.mxu0
      %v916 = vadd.f32 0.0, %v915
      %v917 = vpop.f32.mrf.mxu0
      %v918 = vadd.f32 0.0, %v917
      %919 = vmatmul.bf16.gmra.mxu0 %v849
      %v920 = vpop.f32.mrf.mxu0
      %v921 = vadd.f32 0.0, %v920
      %v922 = vpop.f32.mrf.mxu0
      %v923 = vadd.f32 0.0, %v922
      %924 = vmatmul.bf16.gmra.mxu0 %v851
      %v925 = vpop.f32.mrf.mxu0
      %v926 = vadd.f32 0.0, %v925
      %v927 = vpop.f32.mrf.mxu0
      %v928 = vadd.f32 0.0, %v927
      %929 = vmatmul.bf16.gmra.mxu0 %v853
      %v930 = vpop.f32.mrf.mxu0
      %v931 = vadd.f32 0.0, %v930
      %v932 = vpop.f32.mrf.mxu0
      %v933 = vadd.f32 0.0, %v932
      %934 = vdwg.mxu0
      %v935 = vadd.f32 %v796, %v916
      %v936 = vadd.f32 %v797, %v918
      %v937 = vadd.f32 %v798, %v921
      %v938 = vadd.f32 %v799, %v923
      %v939 = vadd.f32 %v800, %v926
      %v940 = vadd.f32 %v801, %v928
      %v941 = vadd.f32 %v802, %v931
      %v942 = vadd.f32 %v803, %v933
      %943 = vst [vmem:[#allocation2] sm:$0xff] %v935
      %944 = vst [vmem:[#allocation2 + $0x8] sm:$0xff] %v936
      %945 = vst [vmem:[#allocation2 + $0x10] sm:$0xff] %v937
      %946 = vst [vmem:[#allocation2 + $0x18] sm:$0xff] %v938
      %947 = vst [vmem:[#allocation2 + $0x20] sm:$0xff] %v939
      %948 = vst [vmem:[#allocation2 + $0x28] sm:$0xff] %v940
      %949 = vst [vmem:[#allocation2 + $0x30] sm:$0xff] %v941
      %950 = vst [vmem:[#allocation2 + $0x38] sm:$0xff] %v942
      %v951 = vld [vmem:[#allocation3] sm:$0xe]
      %v952 = vld [vmem:[#allocation3 + $0x4] sm:$0xf]
      %v953 = vld [vmem:[#allocation3 + $0x8] sm:$0xf]
      %v954 = vld [vmem:[#allocation3 + $0xc] sm:$0xf]
      %v955 = vld [vmem:[#allocation3 + $0x10] sm:$0xf]
      %v956 = vld [vmem:[#allocation3 + $0x14] sm:$0xf]
      %v957 = vld [vmem:[#allocation3 + $0x18] sm:$0xf]
      %v958 = vld [vmem:[#allocation3 + $0x1c] sm:$0xf]
      %v959 = vld [vmem:[#allocation3 + $0x20] sm:$0x3]
      %v960 = vld [vmem:[#allocation2] sm:$0xff]
      %v961 = vld [vmem:[#allocation2 + $0x8] sm:$0xff]
      %v962 = vld [vmem:[#allocation2 + $0x10] sm:$0xff]
      %v963 = vld [vmem:[#allocation2 + $0x18] sm:$0xff]
      %v964 = vld [vmem:[#allocation2 + $0x20] sm:$0xff]
      %v965 = vld [vmem:[#allocation2 + $0x28] sm:$0xff]
      %v966 = vld [vmem:[#allocation2 + $0x30] sm:$0xff]
      %v967 = vld [vmem:[#allocation2 + $0x38] sm:$0xff]
      %s968 = scalar_lea.vmem %s398, 192
      %v969 = vld [vmem:[%s968] sm:$0xf]
      %v970 = vld [vmem:[%s968 + $0x4] sm:$0xf]
      %v971 = vld [vmem:[%s968 + $0x8] sm:$0xf]
      %v972 = vld [vmem:[%s968 + $0xc] sm:$0xf]
      %v973 = vld [vmem:[%s968 + $0x10] sm:$0xf]
      %v974 = vld [vmem:[%s968 + $0x14] sm:$0xf]
      %v975 = vld [vmem:[%s968 + $0x18] sm:$0xf]
      %v976 = vld [vmem:[%s968 + $0x1c] sm:$0xf]
      %v977 = vld [vmem:[%s968 + $0x20] sm:$0xf]
      %v978 = vld [vmem:[%s968 + $0x24] sm:$0xf]
      %v979 = vld [vmem:[%s968 + $0x28] sm:$0xf]
      %v980 = vld [vmem:[%s968 + $0x2c] sm:$0xf]
      %v981 = vld [vmem:[%s968 + $0x30] sm:$0xf]
      %v982 = vld [vmem:[%s968 + $0x34] sm:$0xf]
      %v983 = vld [vmem:[%s968 + $0x38] sm:$0xf]
      %v984 = vld [vmem:[%s968 + $0x3c] sm:$0xf]
      %v994 = vunpack.c.l.b16 %v951
      %v995 = vunpack.c.l.b16 %v952
      %v996 = vunpack.c.l.b16 %v953
      %v997 = vunpack.c.l.b16 %v954
      %v998 = vunpack.c.l.b16 %v955
      %v999 = vunpack.c.l.b16 %v956
      %v1000 = vunpack.c.l.b16 %v957
      %v1001 = vunpack.c.l.b16 %v958
      %v1002 = vunpack.c.l.b16 %v959
      %v1003 = vpack.c.b16 %v995, %v994
      %v1004 = vpack.c.b16 %v997, %v996
      %v1005 = vpack.c.b16 %v999, %v998
      %v1006 = vpack.c.b16 %v1001, %v1000
      %v1007 = vpack.c.b16 %v1002, %v1002
      %vm1008 = vsmask.f32 6400
      %v1010 = vshrl.u32 %v1003, 16
      %v1012 = vrot.slane %v1010, 1
      %v1013 = vshll.u32 %v1003, 16
      %v1015 = vrot.slane %v1013, 2
      %v1016 = vor.u32 %v1012, %v1015
      %v1018 = vshrl.u32 %v1004, 16
      %v1020 = vrot.slane %v1018, 1
      %v1021 = vshll.u32 %v1004, 16
      %v1023 = vrot.slane %v1021, 2
      %v1024 = vor.u32 %v1020, %v1023
      %v1025 = vsel %vm1008, %v1016, %v1024
      %v1027 = vshrl.u32 %v1005, 16
      %v1029 = vrot.slane %v1027, 1
      %v1030 = vshll.u32 %v1005, 16
      %v1032 = vrot.slane %v1030, 2
      %v1033 = vor.u32 %v1029, %v1032
      %v1034 = vsel %vm1008, %v1024, %v1033
      %v1036 = vshrl.u32 %v1006, 16
      %v1038 = vrot.slane %v1036, 1
      %v1039 = vshll.u32 %v1006, 16
      %v1041 = vrot.slane %v1039, 2
      %v1042 = vor.u32 %v1038, %v1041
      %v1043 = vsel %vm1008, %v1033, %v1042
      %v1045 = vshrl.u32 %v1007, 16
      %v1047 = vrot.slane %v1045, 1
      %v1048 = vshll.u32 %v1007, 16
      %v1050 = vrot.slane %v1048, 2
      %v1051 = vor.u32 %v1047, %v1050
      %v1052 = vsel %vm1008, %v1042, %v1051
      %v1073 = vunpack.c.l.b16 %v969
      %v1074 = vunpack.c.l.b16 %v970
      %v1075 = vunpack.c.l.b16 %v971
      %v1076 = vunpack.c.l.b16 %v972
      %v1077 = vunpack.c.l.b16 %v973
      %v1078 = vunpack.c.l.b16 %v974
      %v1079 = vunpack.c.l.b16 %v975
      %v1080 = vunpack.c.l.b16 %v976
      %v1081 = vunpack.c.l.b16 %v977
      %v1082 = vunpack.c.l.b16 %v978
      %v1083 = vunpack.c.l.b16 %v979
      %v1084 = vunpack.c.l.b16 %v980
      %v1085 = vunpack.c.l.b16 %v981
      %v1086 = vunpack.c.l.b16 %v982
      %v1087 = vunpack.c.l.b16 %v983
      %v1088 = vunpack.c.l.b16 %v984
      %v1089 = vpack.c.b16 %v1074, %v1073
      %v1090 = vpack.c.b16 %v1076, %v1075
      %v1091 = vpack.c.b16 %v1078, %v1077
      %v1092 = vpack.c.b16 %v1080, %v1079
      %v1093 = vpack.c.b16 %v1082, %v1081
      %v1094 = vpack.c.b16 %v1084, %v1083
      %v1095 = vpack.c.b16 %v1086, %v1085
      %v1096 = vpack.c.b16 %v1088, %v1087
      %1105 = vmatpush.bf16.msra.mxu0 %v1096
      %1106 = vmatpush.bf16.msra.mxu0 %v1095
      %1107 = vmatpush.bf16.msra.mxu0 %v1094
      %1108 = vmatpush.bf16.msra.mxu0 %v1093
      %1109 = vmatpush.bf16.msra.mxu0 %v1092
      %1110 = vmatpush.bf16.msra.mxu0 %v1091
      %1111 = vmatpush.bf16.msra.mxu0 %v1090
      %1112 = vmatpush.bf16.msra.mxu0 %v1089
      %1113 = vmatmul.bf16.gmra.mxu0 %v1025
      %v1114 = vpop.f32.mrf.mxu0
      %v1115 = vadd.f32 0.0, %v1114
      %v1116 = vpop.f32.mrf.mxu0
      %v1117 = vadd.f32 0.0, %v1116
      %1118 = vmatmul.bf16.gmra.mxu0 %v1034
      %v1119 = vpop.f32.mrf.mxu0
      %v1120 = vadd.f32 0.0, %v1119
      %v1121 = vpop.f32.mrf.mxu0
      %v1122 = vadd.f32 0.0, %v1121
      %1123 = vmatmul.bf16.gmra.mxu0 %v1043
      %v1124 = vpop.f32.mrf.mxu0
      %v1125 = vadd.f32 0.0, %v1124
      %v1126 = vpop.f32.mrf.mxu0
      %v1127 = vadd.f32 0.0, %v1126
      %1128 = vmatmul.bf16.gmra.mxu0 %v1052
      %v1129 = vpop.f32.mrf.mxu0
      %v1130 = vadd.f32 0.0, %v1129
      %v1131 = vpop.f32.mrf.mxu0
      %v1132 = vadd.f32 0.0, %v1131
      %1133 = vdwg.mxu0
      %v1134 = vadd.f32 %v960, %v1115
      %v1135 = vadd.f32 %v961, %v1117
      %v1136 = vadd.f32 %v962, %v1120
      %v1137 = vadd.f32 %v963, %v1122
      %v1138 = vadd.f32 %v964, %v1125
      %v1139 = vadd.f32 %v965, %v1127
      %v1140 = vadd.f32 %v966, %v1130
      %v1141 = vadd.f32 %v967, %v1132
      %1142 = vst [vmem:[#allocation2] sm:$0xff] %v1134
      %1143 = vst [vmem:[#allocation2 + $0x8] sm:$0xff] %v1135
      %1144 = vst [vmem:[#allocation2 + $0x10] sm:$0xff] %v1136
      %1145 = vst [vmem:[#allocation2 + $0x18] sm:$0xff] %v1137
      %1146 = vst [vmem:[#allocation2 + $0x20] sm:$0xff] %v1138
      %1147 = vst [vmem:[#allocation2 + $0x28] sm:$0xff] %v1139
      %1148 = vst [vmem:[#allocation2 + $0x30] sm:$0xff] %v1140
      %1149 = vst [vmem:[#allocation2 + $0x38] sm:$0xff] %v1141
      %v1150 = vld [vmem:[#allocation3] sm:$0xc]
      %v1151 = vld [vmem:[#allocation3 + $0x4] sm:$0xf]
      %v1152 = vld [vmem:[#allocation3 + $0x8] sm:$0xf]
      %v1153 = vld [vmem:[#allocation3 + $0xc] sm:$0xf]
      %v1154 = vld [vmem:[#allocation3 + $0x10] sm:$0xf]
      %v1155 = vld [vmem:[#allocation3 + $0x14] sm:$0xf]
      %v1156 = vld [vmem:[#allocation3 + $0x18] sm:$0xf]
      %v1157 = vld [vmem:[#allocation3 + $0x1c] sm:$0xf]
      %v1158 = vld [vmem:[#allocation3 + $0x20] sm:$0x3]
      %v1159 = vld [vmem:[#allocation2] sm:$0xff]
      %v1160 = vld [vmem:[#allocation2 + $0x8] sm:$0xff]
      %v1161 = vld [vmem:[#allocation2 + $0x10] sm:$0xff]
      %v1162 = vld [vmem:[#allocation2 + $0x18] sm:$0xff]
      %v1163 = vld [vmem:[#allocation2 + $0x20] sm:$0xff]
      %v1164 = vld [vmem:[#allocation2 + $0x28] sm:$0xff]
      %v1165 = vld [vmem:[#allocation2 + $0x30] sm:$0xff]
      %v1166 = vld [vmem:[#allocation2 + $0x38] sm:$0xff]
      %s1167 = scalar_lea.vmem %s398, 256
      %v1168 = vld [vmem:[%s1167] sm:$0xf]
      %v1169 = vld [vmem:[%s1167 + $0x4] sm:$0xf]
      %v1170 = vld [vmem:[%s1167 + $0x8] sm:$0xf]
      %v1171 = vld [vmem:[%s1167 + $0xc] sm:$0xf]
      %v1172 = vld [vmem:[%s1167 + $0x10] sm:$0xf]
      %v1173 = vld [vmem:[%s1167 + $0x14] sm:$0xf]
      %v1174 = vld [vmem:[%s1167 + $0x18] sm:$0xf]
      %v1175 = vld [vmem:[%s1167 + $0x1c] sm:$0xf]
      %v1176 = vld [vmem:[%s1167 + $0x20] sm:$0xf]
      %v1177 = vld [vmem:[%s1167 + $0x24] sm:$0xf]
      %v1178 = vld [vmem:[%s1167 + $0x28] sm:$0xf]
      %v1179 = vld [vmem:[%s1167 + $0x2c] sm:$0xf]
      %v1180 = vld [vmem:[%s1167 + $0x30] sm:$0xf]
      %v1181 = vld [vmem:[%s1167 + $0x34] sm:$0xf]
      %v1182 = vld [vmem:[%s1167 + $0x38] sm:$0xf]
      %v1183 = vld [vmem:[%s1167 + $0x3c] sm:$0xf]
      %v1193 = vunpack.c.l.b16 %v1150
      %v1194 = vunpack.c.l.b16 %v1151
      %v1195 = vunpack.c.l.b16 %v1152
      %v1196 = vunpack.c.l.b16 %v1153
      %v1197 = vunpack.c.l.b16 %v1154
      %v1198 = vunpack.c.l.b16 %v1155
      %v1199 = vunpack.c.l.b16 %v1156
      %v1200 = vunpack.c.l.b16 %v1157
      %v1201 = vunpack.c.l.b16 %v1158
      %v1202 = vpack.c.b16 %v1194, %v1193
      %v1203 = vpack.c.b16 %v1196, %v1195
      %v1204 = vpack.c.b16 %v1198, %v1197
      %v1205 = vpack.c.b16 %v1200, %v1199
      %v1206 = vpack.c.b16 %v1201, %v1201
      %vm1207 = vcmask 1045504
      %v1208 = vrot.slane %v1202, 2
      %v1209 = vrot.slane %v1203, 2
      %v1210 = vsel %vm1207, %v1208, %v1209
      %v1211 = vrot.slane %v1204, 2
      %v1212 = vsel %vm1207, %v1209, %v1211
      %v1213 = vrot.slane %v1205, 2
      %v1214 = vsel %vm1207, %v1211, %v1213
      %v1215 = vrot.slane %v1206, 2
      %v1216 = vsel %vm1207, %v1213, %v1215
      %v1237 = vunpack.c.l.b16 %v1168
      %v1238 = vunpack.c.l.b16 %v1169
      %v1239 = vunpack.c.l.b16 %v1170
      %v1240 = vunpack.c.l.b16 %v1171
      %v1241 = vunpack.c.l.b16 %v1172
      %v1242 = vunpack.c.l.b16 %v1173
      %v1243 = vunpack.c.l.b16 %v1174
      %v1244 = vunpack.c.l.b16 %v1175
      %v1245 = vunpack.c.l.b16 %v1176
      %v1246 = vunpack.c.l.b16 %v1177
      %v1247 = vunpack.c.l.b16 %v1178
      %v1248 = vunpack.c.l.b16 %v1179
      %v1249 = vunpack.c.l.b16 %v1180
      %v1250 = vunpack.c.l.b16 %v1181
      %v1251 = vunpack.c.l.b16 %v1182
      %v1252 = vunpack.c.l.b16 %v1183
      %v1253 = vpack.c.b16 %v1238, %v1237
      %v1254 = vpack.c.b16 %v1240, %v1239
      %v1255 = vpack.c.b16 %v1242, %v1241
      %v1256 = vpack.c.b16 %v1244, %v1243
      %v1257 = vpack.c.b16 %v1246, %v1245
      %v1258 = vpack.c.b16 %v1248, %v1247
      %v1259 = vpack.c.b16 %v1250, %v1249
      %v1260 = vpack.c.b16 %v1252, %v1251
      %1269 = vmatpush.bf16.msra.mxu0 %v1260
      %1270 = vmatpush.bf16.msra.mxu0 %v1259
      %1271 = vmatpush.bf16.msra.mxu0 %v1258
      %1272 = vmatpush.bf16.msra.mxu0 %v1257
      %1273 = vmatpush.bf16.msra.mxu0 %v1256
      %1274 = vmatpush.bf16.msra.mxu0 %v1255
      %1275 = vmatpush.bf16.msra.mxu0 %v1254
      %1276 = vmatpush.bf16.msra.mxu0 %v1253
      %1277 = vmatmul.bf16.gmra.mxu0 %v1210
      %v1278 = vpop.f32.mrf.mxu0
      %v1279 = vadd.f32 0.0, %v1278
      %v1280 = vpop.f32.mrf.mxu0
      %v1281 = vadd.f32 0.0, %v1280
      %1282 = vmatmul.bf16.gmra.mxu0 %v1212
      %v1283 = vpop.f32.mrf.mxu0
      %v1284 = vadd.f32 0.0, %v1283
      %v1285 = vpop.f32.mrf.mxu0
      %v1286 = vadd.f32 0.0, %v1285
      %1287 = vmatmul.bf16.gmra.mxu0 %v1214
      %v1288 = vpop.f32.mrf.mxu0
      %v1289 = vadd.f32 0.0, %v1288
      %v1290 = vpop.f32.mrf.mxu0
      %v1291 = vadd.f32 0.0, %v1290
      %1292 = vmatmul.bf16.gmra.mxu0 %v1216
      %v1293 = vpop.f32.mrf.mxu0
      %v1294 = vadd.f32 0.0, %v1293
      %v1295 = vpop.f32.mrf.mxu0
      %v1296 = vadd.f32 0.0, %v1295
      %1297 = vdwg.mxu0
      %v1298 = vadd.f32 %v1159, %v1279
      %v1299 = vadd.f32 %v1160, %v1281
      %v1300 = vadd.f32 %v1161, %v1284
      %v1301 = vadd.f32 %v1162, %v1286
      %v1302 = vadd.f32 %v1163, %v1289
      %v1303 = vadd.f32 %v1164, %v1291
      %v1304 = vadd.f32 %v1165, %v1294
      %v1305 = vadd.f32 %v1166, %v1296
      %1306 = vst [vmem:[#allocation2] sm:$0xff] %v1298
      %1307 = vst [vmem:[#allocation2 + $0x8] sm:$0xff] %v1299
      %1308 = vst [vmem:[#allocation2 + $0x10] sm:$0xff] %v1300
      %1309 = vst [vmem:[#allocation2 + $0x18] sm:$0xff] %v1301
      %1310 = vst [vmem:[#allocation2 + $0x20] sm:$0xff] %v1302
      %1311 = vst [vmem:[#allocation2 + $0x28] sm:$0xff] %v1303
      %1312 = vst [vmem:[#allocation2 + $0x30] sm:$0xff] %v1304
      %1313 = vst [vmem:[#allocation2 + $0x38] sm:$0xff] %v1305
      %v1314 = vld [vmem:[#allocation3] sm:$0xc]
      %v1315 = vld [vmem:[#allocation3 + $0x4] sm:$0xf]
      %v1316 = vld [vmem:[#allocation3 + $0x8] sm:$0xf]
      %v1317 = vld [vmem:[#allocation3 + $0xc] sm:$0xf]
      %v1318 = vld [vmem:[#allocation3 + $0x10] sm:$0xf]
      %v1319 = vld [vmem:[#allocation3 + $0x14] sm:$0xf]
      %v1320 = vld [vmem:[#allocation3 + $0x18] sm:$0xf]
      %v1321 = vld [vmem:[#allocation3 + $0x1c] sm:$0xf]
      %v1322 = vld [vmem:[#allocation3 + $0x20] sm:$0x7]
      %v1323 = vld [vmem:[#allocation2] sm:$0xff]
      %v1324 = vld [vmem:[#allocation2 + $0x8] sm:$0xff]
      %v1325 = vld [vmem:[#allocation2 + $0x10] sm:$0xff]
      %v1326 = vld [vmem:[#allocation2 + $0x18] sm:$0xff]
      %v1327 = vld [vmem:[#allocation2 + $0x20] sm:$0xff]
      %v1328 = vld [vmem:[#allocation2 + $0x28] sm:$0xff]
      %v1329 = vld [vmem:[#allocation2 + $0x30] sm:$0xff]
      %v1330 = vld [vmem:[#allocation2 + $0x38] sm:$0xff]
      %s1331 = scalar_lea.vmem %s398, 320
      %v1332 = vld [vmem:[%s1331] sm:$0xf]
      %v1333 = vld [vmem:[%s1331 + $0x4] sm:$0xf]
      %v1334 = vld [vmem:[%s1331 + $0x8] sm:$0xf]
      %v1335 = vld [vmem:[%s1331 + $0xc] sm:$0xf]
      %v1336 = vld [vmem:[%s1331 + $0x10] sm:$0xf]
      %v1337 = vld [vmem:[%s1331 + $0x14] sm:$0xf]
      %v1338 = vld [vmem:[%s1331 + $0x18] sm:$0xf]
      %v1339 = vld [vmem:[%s1331 + $0x1c] sm:$0xf]
      %v1340 = vld [vmem:[%s1331 + $0x20] sm:$0xf]
      %v1341 = vld [vmem:[%s1331 + $0x24] sm:$0xf]
      %v1342 = vld [vmem:[%s1331 + $0x28] sm:$0xf]
      %v1343 = vld [vmem:[%s1331 + $0x2c] sm:$0xf]
      %v1344 = vld [vmem:[%s1331 + $0x30] sm:$0xf]
      %v1345 = vld [vmem:[%s1331 + $0x34] sm:$0xf]
      %v1346 = vld [vmem:[%s1331 + $0x38] sm:$0xf]
      %v1347 = vld [vmem:[%s1331 + $0x3c] sm:$0xf]
      %v1357 = vunpack.c.l.b16 %v1314
      %v1358 = vunpack.c.l.b16 %v1315
      %v1359 = vunpack.c.l.b16 %v1316
      %v1360 = vunpack.c.l.b16 %v1317
      %v1361 = vunpack.c.l.b16 %v1318
      %v1362 = vunpack.c.l.b16 %v1319
      %v1363 = vunpack.c.l.b16 %v1320
      %v1364 = vunpack.c.l.b16 %v1321
      %v1365 = vunpack.c.l.b16 %v1322
      %v1366 = vpack.c.b16 %v1358, %v1357
      %v1367 = vpack.c.b16 %v1360, %v1359
      %v1368 = vpack.c.b16 %v1362, %v1361
      %v1369 = vpack.c.b16 %v1364, %v1363
      %v1370 = vpack.c.b16 %v1365, %v1365
      %vm1371 = vsmask.f32 5376
      %v1373 = vshrl.u32 %v1366, 16
      %v1375 = vrot.slane %v1373, 2
      %v1376 = vshll.u32 %v1366, 16
      %v1378 = vrot.slane %v1376, 3
      %v1379 = vor.u32 %v1375, %v1378
      %v1381 = vshrl.u32 %v1367, 16
      %v1383 = vrot.slane %v1381, 2
      %v1384 = vshll.u32 %v1367, 16
      %v1386 = vrot.slane %v1384, 3
      %v1387 = vor.u32 %v1383, %v1386
      %v1388 = vsel %vm1371, %v1379, %v1387
      %v1390 = vshrl.u32 %v1368, 16
      %v1392 = vrot.slane %v1390, 2
      %v1393 = vshll.u32 %v1368, 16
      %v1395 = vrot.slane %v1393, 3
      %v1396 = vor.u32 %v1392, %v1395
      %v1397 = vsel %vm1371, %v1387, %v1396
      %v1399 = vshrl.u32 %v1369, 16
      %v1401 = vrot.slane %v1399, 2
      %v1402 = vshll.u32 %v1369, 16
      %v1404 = vrot.slane %v1402, 3
      %v1405 = vor.u32 %v1401, %v1404
      %v1406 = vsel %vm1371, %v1396, %v1405
      %v1408 = vshrl.u32 %v1370, 16
      %v1410 = vrot.slane %v1408, 2
      %v1411 = vshll.u32 %v1370, 16
      %v1413 = vrot.slane %v1411, 3
      %v1414 = vor.u32 %v1410, %v1413
      %v1415 = vsel %vm1371, %v1405, %v1414
      %v1436 = vunpack.c.l.b16 %v1332
      %v1437 = vunpack.c.l.b16 %v1333
      %v1438 = vunpack.c.l.b16 %v1334
      %v1439 = vunpack.c.l.b16 %v1335
      %v1440 = vunpack.c.l.b16 %v1336
      %v1441 = vunpack.c.l.b16 %v1337
      %v1442 = vunpack.c.l.b16 %v1338
      %v1443 = vunpack.c.l.b16 %v1339
      %v1444 = vunpack.c.l.b16 %v1340
      %v1445 = vunpack.c.l.b16 %v1341
      %v1446 = vunpack.c.l.b16 %v1342
      %v1447 = vunpack.c.l.b16 %v1343
      %v1448 = vunpack.c.l.b16 %v1344
      %v1449 = vunpack.c.l.b16 %v1345
      %v1450 = vunpack.c.l.b16 %v1346
      %v1451 = vunpack.c.l.b16 %v1347
      %v1452 = vpack.c.b16 %v1437, %v1436
      %v1453 = vpack.c.b16 %v1439, %v1438
      %v1454 = vpack.c.b16 %v1441, %v1440
      %v1455 = vpack.c.b16 %v1443, %v1442
      %v1456 = vpack.c.b16 %v1445, %v1444
      %v1457 = vpack.c.b16 %v1447, %v1446
      %v1458 = vpack.c.b16 %v1449, %v1448
      %v1459 = vpack.c.b16 %v1451, %v1450
      %1468 = vmatpush.bf16.msra.mxu0 %v1459
      %1469 = vmatpush.bf16.msra.mxu0 %v1458
      %1470 = vmatpush.bf16.msra.mxu0 %v1457
      %1471 = vmatpush.bf16.msra.mxu0 %v1456
      %1472 = vmatpush.bf16.msra.mxu0 %v1455
      %1473 = vmatpush.bf16.msra.mxu0 %v1454
      %1474 = vmatpush.bf16.msra.mxu0 %v1453
      %1475 = vmatpush.bf16.msra.mxu0 %v1452
      %1476 = vmatmul.bf16.gmra.mxu0 %v1388
      %v1477 = vpop.f32.mrf.mxu0
      %v1478 = vadd.f32 0.0, %v1477
      %v1479 = vpop.f32.mrf.mxu0
      %v1480 = vadd.f32 0.0, %v1479
      %1481 = vmatmul.bf16.gmra.mxu0 %v1397
      %v1482 = vpop.f32.mrf.mxu0
      %v1483 = vadd.f32 0.0, %v1482
      %v1484 = vpop.f32.mrf.mxu0
      %v1485 = vadd.f32 0.0, %v1484
      %1486 = vmatmul.bf16.gmra.mxu0 %v1406
      %v1487 = vpop.f32.mrf.mxu0
      %v1488 = vadd.f32 0.0, %v1487
      %v1489 = vpop.f32.mrf.mxu0
      %v1490 = vadd.f32 0.0, %v1489
      %1491 = vmatmul.bf16.gmra.mxu0 %v1415
      %v1492 = vpop.f32.mrf.mxu0
      %v1493 = vadd.f32 0.0, %v1492
      %v1494 = vpop.f32.mrf.mxu0
      %v1495 = vadd.f32 0.0, %v1494
      %1496 = vdwg.mxu0
      %v1497 = vadd.f32 %v1323, %v1478
      %v1498 = vadd.f32 %v1324, %v1480
      %v1499 = vadd.f32 %v1325, %v1483
      %v1500 = vadd.f32 %v1326, %v1485
      %v1501 = vadd.f32 %v1327, %v1488
      %v1502 = vadd.f32 %v1328, %v1490
      %v1503 = vadd.f32 %v1329, %v1493
      %v1504 = vadd.f32 %v1330, %v1495
      %1505 = vst [vmem:[#allocation2] sm:$0xff] %v1497
      %1506 = vst [vmem:[#allocation2 + $0x8] sm:$0xff] %v1498
      %1507 = vst [vmem:[#allocation2 + $0x10] sm:$0xff] %v1499
      %1508 = vst [vmem:[#allocation2 + $0x18] sm:$0xff] %v1500
      %1509 = vst [vmem:[#allocation2 + $0x20] sm:$0xff] %v1501
      %1510 = vst [vmem:[#allocation2 + $0x28] sm:$0xff] %v1502
      %1511 = vst [vmem:[#allocation2 + $0x30] sm:$0xff] %v1503
      %1512 = vst [vmem:[#allocation2 + $0x38] sm:$0xff] %v1504
      %v1513 = vld [vmem:[#allocation3] sm:$0x8]
      %v1514 = vld [vmem:[#allocation3 + $0x4] sm:$0xf]
      %v1515 = vld [vmem:[#allocation3 + $0x8] sm:$0xf]
      %v1516 = vld [vmem:[#allocation3 + $0xc] sm:$0xf]
      %v1517 = vld [vmem:[#allocation3 + $0x10] sm:$0xf]
      %v1518 = vld [vmem:[#allocation3 + $0x14] sm:$0xf]
      %v1519 = vld [vmem:[#allocation3 + $0x18] sm:$0xf]
      %v1520 = vld [vmem:[#allocation3 + $0x1c] sm:$0xf]
      %v1521 = vld [vmem:[#allocation3 + $0x20] sm:$0x7]
      %v1522 = vld [vmem:[#allocation2] sm:$0xff]
      %v1523 = vld [vmem:[#allocation2 + $0x8] sm:$0xff]
      %v1524 = vld [vmem:[#allocation2 + $0x10] sm:$0xff]
      %v1525 = vld [vmem:[#allocation2 + $0x18] sm:$0xff]
      %v1526 = vld [vmem:[#allocation2 + $0x20] sm:$0xff]
      %v1527 = vld [vmem:[#allocation2 + $0x28] sm:$0xff]
      %v1528 = vld [vmem:[#allocation2 + $0x30] sm:$0xff]
      %v1529 = vld [vmem:[#allocation2 + $0x38] sm:$0xff]
      %s1530 = scalar_lea.vmem %s398, 384
      %v1531 = vld [vmem:[%s1530] sm:$0xf]
      %v1532 = vld [vmem:[%s1530 + $0x4] sm:$0xf]
      %v1533 = vld [vmem:[%s1530 + $0x8] sm:$0xf]
      %v1534 = vld [vmem:[%s1530 + $0xc] sm:$0xf]
      %v1535 = vld [vmem:[%s1530 + $0x10] sm:$0xf]
      %v1536 = vld [vmem:[%s1530 + $0x14] sm:$0xf]
      %v1537 = vld [vmem:[%s1530 + $0x18] sm:$0xf]
      %v1538 = vld [vmem:[%s1530 + $0x1c] sm:$0xf]
      %v1539 = vld [vmem:[%s1530 + $0x20] sm:$0xf]
      %v1540 = vld [vmem:[%s1530 + $0x24] sm:$0xf]
      %v1541 = vld [vmem:[%s1530 + $0x28] sm:$0xf]
      %v1542 = vld [vmem:[%s1530 + $0x2c] sm:$0xf]
      %v1543 = vld [vmem:[%s1530 + $0x30] sm:$0xf]
      %v1544 = vld [vmem:[%s1530 + $0x34] sm:$0xf]
      %v1545 = vld [vmem:[%s1530 + $0x38] sm:$0xf]
      %v1546 = vld [vmem:[%s1530 + $0x3c] sm:$0xf]
      %v1556 = vunpack.c.l.b16 %v1513
      %v1557 = vunpack.c.l.b16 %v1514
      %v1558 = vunpack.c.l.b16 %v1515
      %v1559 = vunpack.c.l.b16 %v1516
      %v1560 = vunpack.c.l.b16 %v1517
      %v1561 = vunpack.c.l.b16 %v1518
      %v1562 = vunpack.c.l.b16 %v1519
      %v1563 = vunpack.c.l.b16 %v1520
      %v1564 = vunpack.c.l.b16 %v1521
      %v1565 = vpack.c.b16 %v1557, %v1556
      %v1566 = vpack.c.b16 %v1559, %v1558
      %v1567 = vpack.c.b16 %v1561, %v1560
      %v1568 = vpack.c.b16 %v1563, %v1562
      %v1569 = vpack.c.b16 %v1564, %v1564
      %vm1570 = vcmask 1044480
      %v1571 = vrot.slane %v1565, 3
      %v1572 = vrot.slane %v1566, 3
      %v1573 = vsel %vm1570, %v1571, %v1572
      %v1574 = vrot.slane %v1567, 3
      %v1575 = vsel %vm1570, %v1572, %v1574
      %v1576 = vrot.slane %v1568, 3
      %v1577 = vsel %vm1570, %v1574, %v1576
      %v1578 = vrot.slane %v1569, 3
      %v1579 = vsel %vm1570, %v1576, %v1578
      %v1600 = vunpack.c.l.b16 %v1531
      %v1601 = vunpack.c.l.b16 %v1532
      %v1602 = vunpack.c.l.b16 %v1533
      %v1603 = vunpack.c.l.b16 %v1534
      %v1604 = vunpack.c.l.b16 %v1535
      %v1605 = vunpack.c.l.b16 %v1536
      %v1606 = vunpack.c.l.b16 %v1537
      %v1607 = vunpack.c.l.b16 %v1538
      %v1608 = vunpack.c.l.b16 %v1539
      %v1609 = vunpack.c.l.b16 %v1540
      %v1610 = vunpack.c.l.b16 %v1541
      %v1611 = vunpack.c.l.b16 %v1542
      %v1612 = vunpack.c.l.b16 %v1543
      %v1613 = vunpack.c.l.b16 %v1544
      %v1614 = vunpack.c.l.b16 %v1545
      %v1615 = vunpack.c.l.b16 %v1546
      %v1616 = vpack.c.b16 %v1601, %v1600
      %v1617 = vpack.c.b16 %v1603, %v1602
      %v1618 = vpack.c.b16 %v1605, %v1604
      %v1619 = vpack.c.b16 %v1607, %v1606
      %v1620 = vpack.c.b16 %v1609, %v1608
      %v1621 = vpack.c.b16 %v1611, %v1610
      %v1622 = vpack.c.b16 %v1613, %v1612
      %v1623 = vpack.c.b16 %v1615, %v1614
      %1632 = vmatpush.bf16.msra.mxu0 %v1623
      %1633 = vmatpush.bf16.msra.mxu0 %v1622
      %1634 = vmatpush.bf16.msra.mxu0 %v1621
      %1635 = vmatpush.bf16.msra.mxu0 %v1620
      %1636 = vmatpush.bf16.msra.mxu0 %v1619
      %1637 = vmatpush.bf16.msra.mxu0 %v1618
      %1638 = vmatpush.bf16.msra.mxu0 %v1617
      %1639 = vmatpush.bf16.msra.mxu0 %v1616
      %1640 = vmatmul.bf16.gmra.mxu0 %v1573
      %v1641 = vpop.f32.mrf.mxu0
      %v1642 = vadd.f32 0.0, %v1641
      %v1643 = vpop.f32.mrf.mxu0
      %v1644 = vadd.f32 0.0, %v1643
      %1645 = vmatmul.bf16.gmra.mxu0 %v1575
      %v1646 = vpop.f32.mrf.mxu0
      %v1647 = vadd.f32 0.0, %v1646
      %v1648 = vpop.f32.mrf.mxu0
      %v1649 = vadd.f32 0.0, %v1648
      %1650 = vmatmul.bf16.gmra.mxu0 %v1577
      %v1651 = vpop.f32.mrf.mxu0
      %v1652 = vadd.f32 0.0, %v1651
      %v1653 = vpop.f32.mrf.mxu0
      %v1654 = vadd.f32 0.0, %v1653
      %1655 = vmatmul.bf16.gmra.mxu0 %v1579
      %v1656 = vpop.f32.mrf.mxu0
      %v1657 = vadd.f32 0.0, %v1656
      %v1658 = vpop.f32.mrf.mxu0
      %v1659 = vadd.f32 0.0, %v1658
      %1660 = vdwg.mxu0
      %v1661 = vadd.f32 %v1522, %v1642
      %v1662 = vadd.f32 %v1523, %v1644
      %v1663 = vadd.f32 %v1524, %v1647
      %v1664 = vadd.f32 %v1525, %v1649
      %v1665 = vadd.f32 %v1526, %v1652
      %v1666 = vadd.f32 %v1527, %v1654
      %v1667 = vadd.f32 %v1528, %v1657
      %v1668 = vadd.f32 %v1529, %v1659
      %1669 = vst [vmem:[#allocation2] sm:$0xff] %v1661
      %1670 = vst [vmem:[#allocation2 + $0x8] sm:$0xff] %v1662
      %1671 = vst [vmem:[#allocation2 + $0x10] sm:$0xff] %v1663
      %1672 = vst [vmem:[#allocation2 + $0x18] sm:$0xff] %v1664
      %1673 = vst [vmem:[#allocation2 + $0x20] sm:$0xff] %v1665
      %1674 = vst [vmem:[#allocation2 + $0x28] sm:$0xff] %v1666
      %1675 = vst [vmem:[#allocation2 + $0x30] sm:$0xff] %v1667
      %1676 = vst [vmem:[#allocation2 + $0x38] sm:$0xff] %v1668
      %v1677 = vld [vmem:[#allocation3] sm:$0x8]
      %v1678 = vld [vmem:[#allocation3 + $0x4] sm:$0xf]
      %v1679 = vld [vmem:[#allocation3 + $0x8] sm:$0xf]
      %v1680 = vld [vmem:[#allocation3 + $0xc] sm:$0xf]
      %v1681 = vld [vmem:[#allocation3 + $0x10] sm:$0xf]
      %v1682 = vld [vmem:[#allocation3 + $0x14] sm:$0xf]
      %v1683 = vld [vmem:[#allocation3 + $0x18] sm:$0xf]
      %v1684 = vld [vmem:[#allocation3 + $0x1c] sm:$0xf]
      %v1685 = vld [vmem:[#allocation3 + $0x20] sm:$0xf]
      %v1686 = vld [vmem:[#allocation2] sm:$0xff]
      %v1687 = vld [vmem:[#allocation2 + $0x8] sm:$0xff]
      %v1688 = vld [vmem:[#allocation2 + $0x10] sm:$0xff]
      %v1689 = vld [vmem:[#allocation2 + $0x18] sm:$0xff]
      %v1690 = vld [vmem:[#allocation2 + $0x20] sm:$0xff]
      %v1691 = vld [vmem:[#allocation2 + $0x28] sm:$0xff]
      %v1692 = vld [vmem:[#allocation2 + $0x30] sm:$0xff]
      %v1693 = vld [vmem:[#allocation2 + $0x38] sm:$0xff]
      %s1694 = scalar_lea.vmem %s398, 448
      %v1695 = vld [vmem:[%s1694] sm:$0xf]
      %v1696 = vld [vmem:[%s1694 + $0x4] sm:$0xf]
      %v1697 = vld [vmem:[%s1694 + $0x8] sm:$0xf]
      %v1698 = vld [vmem:[%s1694 + $0xc] sm:$0xf]
      %v1699 = vld [vmem:[%s1694 + $0x10] sm:$0xf]
      %v1700 = vld [vmem:[%s1694 + $0x14] sm:$0xf]
      %v1701 = vld [vmem:[%s1694 + $0x18] sm:$0xf]
      %v1702 = vld [vmem:[%s1694 + $0x1c] sm:$0xf]
      %v1703 = vld [vmem:[%s1694 + $0x20] sm:$0xf]
      %v1704 = vld [vmem:[%s1694 + $0x24] sm:$0xf]
      %v1705 = vld [vmem:[%s1694 + $0x28] sm:$0xf]
      %v1706 = vld [vmem:[%s1694 + $0x2c] sm:$0xf]
      %v1707 = vld [vmem:[%s1694 + $0x30] sm:$0xf]
      %v1708 = vld [vmem:[%s1694 + $0x34] sm:$0xf]
      %v1709 = vld [vmem:[%s1694 + $0x38] sm:$0xf]
      %v1710 = vld [vmem:[%s1694 + $0x3c] sm:$0xf]
      %v1720 = vunpack.c.l.b16 %v1677
      %v1721 = vunpack.c.l.b16 %v1678
      %v1722 = vunpack.c.l.b16 %v1679
      %v1723 = vunpack.c.l.b16 %v1680
      %v1724 = vunpack.c.l.b16 %v1681
      %v1725 = vunpack.c.l.b16 %v1682
      %v1726 = vunpack.c.l.b16 %v1683
      %v1727 = vunpack.c.l.b16 %v1684
      %v1728 = vunpack.c.l.b16 %v1685
      %v1729 = vpack.c.b16 %v1721, %v1720
      %v1730 = vpack.c.b16 %v1723, %v1722
      %v1731 = vpack.c.b16 %v1725, %v1724
      %v1732 = vpack.c.b16 %v1727, %v1726
      %v1733 = vpack.c.b16 %v1728, %v1728
      %vm1734 = vsmask.f32 4352
      %v1736 = vshrl.u32 %v1729, 16
      %v1738 = vrot.slane %v1736, 3
      %v1739 = vshll.u32 %v1729, 16
      %v1741 = vrot.slane %v1739, 4
      %v1742 = vor.u32 %v1738, %v1741
      %v1744 = vshrl.u32 %v1730, 16
      %v1746 = vrot.slane %v1744, 3
      %v1747 = vshll.u32 %v1730, 16
      %v1749 = vrot.slane %v1747, 4
      %v1750 = vor.u32 %v1746, %v1749
      %v1751 = vsel %vm1734, %v1742, %v1750
      %v1753 = vshrl.u32 %v1731, 16
      %v1755 = vrot.slane %v1753, 3
      %v1756 = vshll.u32 %v1731, 16
      %v1758 = vrot.slane %v1756, 4
      %v1759 = vor.u32 %v1755, %v1758
      %v1760 = vsel %vm1734, %v1750, %v1759
      %v1762 = vshrl.u32 %v1732, 16
      %v1764 = vrot.slane %v1762, 3
      %v1765 = vshll.u32 %v1732, 16
      %v1767 = vrot.slane %v1765, 4
      %v1768 = vor.u32 %v1764, %v1767
      %v1769 = vsel %vm1734, %v1759, %v1768
      %v1771 = vshrl.u32 %v1733, 16
      %v1773 = vrot.slane %v1771, 3
      %v1774 = vshll.u32 %v1733, 16
      %v1776 = vrot.slane %v1774, 4
      %v1777 = vor.u32 %v1773, %v1776
      %v1778 = vsel %vm1734, %v1768, %v1777
      %v1799 = vunpack.c.l.b16 %v1695
      %v1800 = vunpack.c.l.b16 %v1696
      %v1801 = vunpack.c.l.b16 %v1697
      %v1802 = vunpack.c.l.b16 %v1698
      %v1803 = vunpack.c.l.b16 %v1699
      %v1804 = vunpack.c.l.b16 %v1700
      %v1805 = vunpack.c.l.b16 %v1701
      %v1806 = vunpack.c.l.b16 %v1702
      %v1807 = vunpack.c.l.b16 %v1703
      %v1808 = vunpack.c.l.b16 %v1704
      %v1809 = vunpack.c.l.b16 %v1705
      %v1810 = vunpack.c.l.b16 %v1706
      %v1811 = vunpack.c.l.b16 %v1707
      %v1812 = vunpack.c.l.b16 %v1708
      %v1813 = vunpack.c.l.b16 %v1709
      %v1814 = vunpack.c.l.b16 %v1710
      %v1815 = vpack.c.b16 %v1800, %v1799
      %v1816 = vpack.c.b16 %v1802, %v1801
      %v1817 = vpack.c.b16 %v1804, %v1803
      %v1818 = vpack.c.b16 %v1806, %v1805
      %v1819 = vpack.c.b16 %v1808, %v1807
      %v1820 = vpack.c.b16 %v1810, %v1809
      %v1821 = vpack.c.b16 %v1812, %v1811
      %v1822 = vpack.c.b16 %v1814, %v1813
      %1831 = vmatpush.bf16.msra.mxu0 %v1822
      %1832 = vmatpush.bf16.msra.mxu0 %v1821
      %1833 = vmatpush.bf16.msra.mxu0 %v1820
      %1834 = vmatpush.bf16.msra.mxu0 %v1819
      %1835 = vmatpush.bf16.msra.mxu0 %v1818
      %1836 = vmatpush.bf16.msra.mxu0 %v1817
      %1837 = vmatpush.bf16.msra.mxu0 %v1816
      %1838 = vmatpush.bf16.msra.mxu0 %v1815
      %1839 = vmatmul.bf16.gmra.mxu0 %v1751
      %v1840 = vpop.f32.mrf.mxu0
      %v1841 = vadd.f32 0.0, %v1840
      %v1842 = vpop.f32.mrf.mxu0
      %v1843 = vadd.f32 0.0, %v1842
      %1844 = vmatmul.bf16.gmra.mxu0 %v1760
      %v1845 = vpop.f32.mrf.mxu0
      %v1846 = vadd.f32 0.0, %v1845
      %v1847 = vpop.f32.mrf.mxu0
      %v1848 = vadd.f32 0.0, %v1847
      %1849 = vmatmul.bf16.gmra.mxu0 %v1769
      %v1850 = vpop.f32.mrf.mxu0
      %v1851 = vadd.f32 0.0, %v1850
      %v1852 = vpop.f32.mrf.mxu0
      %v1853 = vadd.f32 0.0, %v1852
      %1854 = vmatmul.bf16.gmra.mxu0 %v1778
      %v1855 = vpop.f32.mrf.mxu0
      %v1856 = vadd.f32 0.0, %v1855
      %v1857 = vpop.f32.mrf.mxu0
      %v1858 = vadd.f32 0.0, %v1857
      %1859 = vdwg.mxu0
      %v1860 = vadd.f32 %v1686, %v1841
      %v1861 = vadd.f32 %v1687, %v1843
      %v1862 = vadd.f32 %v1688, %v1846
      %v1863 = vadd.f32 %v1689, %v1848
      %v1864 = vadd.f32 %v1690, %v1851
      %v1865 = vadd.f32 %v1691, %v1853
      %v1866 = vadd.f32 %v1692, %v1856
      %v1867 = vadd.f32 %v1693, %v1858
      %1868 = vst [vmem:[#allocation2] sm:$0xff] %v1860
      %1869 = vst [vmem:[#allocation2 + $0x8] sm:$0xff] %v1861
      %1870 = vst [vmem:[#allocation2 + $0x10] sm:$0xff] %v1862
      %1871 = vst [vmem:[#allocation2 + $0x18] sm:$0xff] %v1863
      %1872 = vst [vmem:[#allocation2 + $0x20] sm:$0xff] %v1864
      %1873 = vst [vmem:[#allocation2 + $0x28] sm:$0xff] %v1865
      %1874 = vst [vmem:[#allocation2 + $0x30] sm:$0xff] %v1866
      %1875 = vst [vmem:[#allocation2 + $0x38] sm:$0xff] %v1867
      // Predicated region
      $region49: #{beluga_forward.7} parent=39 // pred_check
        %p1876 = pneg %p556
      $region50: #{beluga_forward.7} parent=39 // pred_check_branch
        %1878 = sbr.rel (%p1876) target = $region52
      $region51: #{beluga_forward.7} parent=39 // pred_region
        %v1879 = vld [vmem:[#allocation2] sm:$0xff]
        %v1880 = vld [vmem:[#allocation2 + $0x8] sm:$0xff]
        %v1881 = vld [vmem:[#allocation2 + $0x10] sm:$0xff]
        %v1882 = vld [vmem:[#allocation2 + $0x18] sm:$0xff]
        %v1883 = vld [vmem:[#allocation2 + $0x20] sm:$0xff]
        %v1884 = vld [vmem:[#allocation2 + $0x28] sm:$0xff]
        %v1885 = vld [vmem:[#allocation2 + $0x30] sm:$0xff]
        %v1886 = vld [vmem:[#allocation2 + $0x38] sm:$0xff]
        %v1887 = vld [vmem:[%s402] sm:$0x1]
        %v1889 = vperm.slane %v1887, 0
        %v1891 = vmul.f32 %v1879, %v1889
        %v1892 = vmul.f32 %v1880, %v1889
        %v1893 = vmul.f32 %v1881, %v1889
        %v1894 = vmul.f32 %v1882, %v1889
        %v1895 = vmul.f32 %v1883, %v1889
        %v1896 = vmul.f32 %v1884, %v1889
        %v1897 = vmul.f32 %v1885, %v1889
        %v1898 = vmul.f32 %v1886, %v1889
        %v1899 = vld [vmem:[%s405] sm:$0x1]
        %v1901 = vperm.slane %v1899, 0
        %v1903 = vadd.f32 %v1891, %v1901
        %v1904 = vadd.f32 %v1892, %v1901
        %v1905 = vadd.f32 %v1893, %v1901
        %v1906 = vadd.f32 %v1894, %v1901
        %v1907 = vadd.f32 %v1895, %v1901
        %v1908 = vadd.f32 %v1896, %v1901
        %v1909 = vadd.f32 %v1897, %v1901
        %v1910 = vadd.f32 %v1898, %v1901
        %v1911 = vmax.f32 %v1903, 0.0
        %v1912 = vmax.f32 %v1904, 0.0
        %v1913 = vmax.f32 %v1905, 0.0
        %v1914 = vmax.f32 %v1906, 0.0
        %v1915 = vmax.f32 %v1907, 0.0
        %v1916 = vmax.f32 %v1908, 0.0
        %v1917 = vmax.f32 %v1909, 0.0
        %v1918 = vmax.f32 %v1910, 0.0
        %v1919 = vpack.c.bf16 %v1911, %v1911
        %v1920 = vpack.c.bf16 %v1912, %v1912
        %v1921 = vpack.c.bf16 %v1913, %v1913
        %v1922 = vpack.c.bf16 %v1914, %v1914
        %v1923 = vpack.c.bf16 %v1915, %v1915
        %v1924 = vpack.c.bf16 %v1916, %v1916
        %v1925 = vpack.c.bf16 %v1917, %v1917
        %v1926 = vpack.c.bf16 %v1918, %v1918
        %1927 = vst [vmem:[%s417] sm:$0xf] %v1919
        %1928 = vst [vmem:[%s417 + $0x4] sm:$0xf] %v1920
        %1929 = vst [vmem:[%s417 + $0x8] sm:$0xf] %v1921
        %1930 = vst [vmem:[%s417 + $0xc] sm:$0xf] %v1922
        %1931 = vst [vmem:[%s417 + $0x10] sm:$0xf] %v1923
        %1932 = vst [vmem:[%s417 + $0x14] sm:$0xf] %v1924
        %1933 = vst [vmem:[%s417 + $0x18] sm:$0xf] %v1925
        %1934 = vst [vmem:[%s417 + $0x1c] sm:$0xf] %v1926
      $region52: #{beluga_forward.7} parent=39 // pred_fallthru
        _
      %s1935 = smul.u32 8, %s23
      %p1936 = scmp.lt.s32.totalorder %s22, 1
      %s1937 = scalar_select %p1936, %s22, 1
      %p1938 = scmp.lt.s32.totalorder %s1935, 7
      %s1939 = scalar_select %p1938, %s1935, 7
      %p1940 = scmp.lt.s32.totalorder %s24, 0
      %s1941 = scalar_select %p1940, %s24, 0
      %s1942 = sadd.s32 %s1941, %s1939
      %s1943 = smul.addr %s1937, 8
      %s1944 = sadd.s32 %s1942, %s1943
      %s1945 = smul.addr %s1944, 4
      %s1946 = scalar_lea.vmem %s5, %s1945
      // Predicated region
      $region53: #{beluga_forward.7} parent=39 // pred_check
        %p1947 = pneg %p208
      $region54: #{beluga_forward.7} parent=39 // pred_check_branch
        %1949 = sbr.rel (%p1947) target = $region56
      $region55: #{beluga_forward.7} parent=39 // pred_region
        %s1950 = smul.u32 8, %s23
      $region56: #{beluga_forward.7} parent=39 // pred_fallthru
        _
    $region40: #{beluga_forward.7} parent=5 // pred_fallthru
      _
    %p1951 = scmp.le.s32.totalorder 2, %s11
    // Predicated region
    $region57: #{beluga_forward.7} parent=5 // pred_check
      %p1952 = pneg %p1951
    $region58: #{beluga_forward.7} parent=5 // pred_check_branch
      %1954 = sbr.rel (%p1952) target = $region60
    $region59: #{beluga_forward.7} parent=5 // pred_region
      %s1955 = ssub.s32 %s11, 2
      // Predicated region
      $region61: #{beluga_forward.7} parent=59 // pred_check
        %p1956 = pneg %p214
      $region62: #{beluga_forward.7} parent=59 // pred_check_branch
        %1958 = sbr.rel (%p1956) target = $region64
      $region63: #{beluga_forward.7} parent=59 // pred_region
        %s1959 = smul.u32 8, %s27
        %p1960 = scmp.lt.s32.totalorder %s26, 1
        %s1961 = scalar_select %p1960, %s26, 1
        %p1962 = scmp.lt.s32.totalorder %s1959, 7
        %s1963 = scalar_select %p1962, %s1959, 7
        %p1964 = scmp.lt.s32.totalorder %s28, 0
        %s1965 = scalar_select %p1964, %s28, 0
        %s1966 = sadd.s32 %s1965, %s1963
        %s1967 = smul.addr %s1961, 8
        %s1968 = sadd.s32 %s1966, %s1967
        %s1969 = smul.addr %s1968, 4
        %s1970 = scalar_lea.vmem %s5, %s1969
      $region64: #{beluga_forward.7} parent=59 // pred_fallthru
        _
    $region60: #{beluga_forward.7} parent=5 // pred_fallthru
      _
  $region6: #{beluga_forward.7} parent=0 // loop_footer
    %s15 = sadd.s32 1, %s11
  $region7: #{beluga_forward.7} parent=0 // loop_footer_branch
    %10 = sbr.rel target = $region3
  $region8: #{beluga_forward.7} parent=0 // loop_exit
    _

// kernel: beluga_forward.6
$region0: #{beluga_forward.6}
  #allocation0 [shape = 'u32[]', space=smem, size = 0x4, offset = 0x4, fixed_abs, tag = 'smem constant byte address 0x4 - core index']
  #allocation1 [shape = 'u32[72,128]{1,0:T(1,128)}', space=vmem, size = 0x9000, scoped, tag = 'internal scratch']
  #allocation2 [shape = 'f32[64,128]{1,0:T(8,128)}', space=vmem, size = 0x8000, scoped, tag = 'scratch operand']
  #allocation3 [shape = 'bf16[80,128]{1,0:T(8,128)(2,1)}', space=vmem, size = 0x5000, scoped, tag = 'scratch operand']
  %s0 = inlined_call_operand.vmem [shape: bf16[2,128,128], index: 0, kind: input, shape index: {}, may-alias: {0,1}]
  %s1 = inlined_call_operand.vmem [shape: bf16[2,128,128], index: 1, kind: input, shape index: {}, may-alias: {0,1}]
  %s2 = inlined_call_operand.hbm [shape: bf16[8,128,128], index: 2, kind: input, shape index: {}]
  %s3 = inlined_call_operand.vmem [shape: f32[1,128], index: 3, kind: input, shape index: {}]
  %s4 = inlined_call_operand.vmem [shape: f32[1,128], index: 4, kind: input, shape index: {}]
  %s5 = inlined_call_operand.vmem [shape: bf16[2,64,128], index: 5, kind: output, shape index: {}]
  %s6 = sld [smem:[#allocation0]]
  $region69: #{beluga_forward.6} parent=0
    _
  %s8 = ssub.s32 1, %s6
  %s9 = scalar_select 0, %s8, %s6
  $region1: #{beluga_forward.6} parent=0
    #allocation4 [shape = 'u8[262144]{0}', space=vmem, size = 0x40000, scoped, tag = 'input window, operand 2, single buffered']
    #allocation5 [shape = 's32[2]{0}', space=sflag, size = 0x8, scoped, tag = 'scoped memory for beluga_forward.6']
    %10 = vsyncpa [#allocation5], 0
    loop: start=0, step=1, limit=4
    $region2: #{beluga_forward.6} parent=1 // loop_pre_header
      _
    $region3: #{beluga_forward.6} parent=1 // loop_header
      %s12 = sphi 0, %s16
      %p13 = scmp.ge.s32.totalorder %s12, 4
      %s19 = sphi 0, %s45
      %s20 = sphi 0, %s41
      %s21 = sphi 0, %s37
      %s22 = sphi 0, %s33
      %s23 = sphi 0, %s19
      %s24 = sphi 0, %s20
      %s25 = sphi 0, %s21
      %s26 = sphi 0, %s22
      %s27 = sphi 0, %s23
      %s28 = sphi 0, %s24
      %s29 = sphi 0, %s25
      %s30 = sphi 0, %s26
      %s52 = sphi 0, %s54
      %s55 = sphi 0, %s52
      %s56 = sphi 0, %s55
      %s72 = sphi 0, %s56
      %s86 = sphi 0, %s88
      %s89 = sphi 0, %s86
      %s90 = sphi 0, %s89
      %s106 = sphi 0, %s90
      %s114 = sphi 0, %s116
      %s117 = sphi 0, %s114
      %s118 = sphi 0, %s117
      %s134 = sphi 0, %s118
      %s140 = sphi 0, %s142
      %s143 = sphi 0, %s140
      %s144 = sphi 0, %s143
      %s160 = sphi 0, %s144
      %s166 = sphi 0, %s168
      %s169 = sphi 0, %s166
      %s170 = sphi 0, %s169
      %s186 = sphi 0, %s170
      %s196 = sphi 0, %s198
      %s199 = sphi 0, %s196
      %s200 = sphi 0, %s199
      %s216 = sphi 0, %s200
    $region4: #{beluga_forward.6} parent=1 // loop_header_branch
      %15 = sbr.rel (%p13) target = $region8
    $region5: #{beluga_forward.6} parent=1 // loop_body
      %s17 = ssub.s32 %s12, 1
      %s18 = ssub.s32 %s12, 2
      %s31 = sadd.s32 1, %s22
      %p32 = scmp.ge.s32.totalorder %s31, 1
      %s33 = scalar_select %p32, 0, %s31
      %s34 = sadd.s32 1, %s21
      %s35 = scalar_select %p32, %s34, %s21
      %p36 = scmp.ge.s32.totalorder %s35, 1
      %s37 = scalar_select %p36, 0, %s35
      %s38 = sadd.s32 1, %s20
      %s39 = scalar_select %p36, %s38, %s20
      %p40 = scmp.ge.s32.totalorder %s39, 1
      %s41 = scalar_select %p40, 0, %s39
      %s42 = sadd.s32 1, %s19
      %s43 = scalar_select %p40, %s42, %s19
      %p44 = scmp.ge.s32.totalorder %s43, 2
      %s45 = scalar_select %p44, 0, %s43
      %s46 = ssub.s32 %s19, %s45
      %s47 = ssub.s32 %s20, %s41
      %s48 = sor.u32 %s46, %s47
      %s49 = ssub.s32 %s22, %s33
      %s50 = sor.u32 %s48, %s49
      %p51 = scmp.eq.s32.totalorder %s50, 0
      %s53 = sadd.s32 %s52, 1
      %s54 = scalar_select %p51, %s52, %s53
      %p57 = pneg %p51
      %p58 = scmp.eq.s32.totalorder %s12, 1
      %p59 = por %p57, %p58
      %p60 = scmp.ne.s32.totalorder %s52, %s55
      %p61 = scmp.eq.s32.totalorder %s12, 0
      %p62 = por %p60, %p61
      %p63 = scmp.ne.s32.totalorder %s52, %s55
      %p64 = scmp.eq.s32.totalorder %s17, 1
      %p65 = por %p63, %p64
      %p66 = scmp.ne.s32.totalorder %s55, %s56
      %p67 = scmp.eq.s32.totalorder %s17, 0
      %p68 = por %p66, %p67
      %p69 = scmp.ne.s32.totalorder %s55, %s56
      %p70 = scmp.eq.s32.totalorder %s18, 1
      %p71 = por %p69, %p70
      %p73 = scmp.ne.s32.totalorder %s56, %s72
      %p74 = scmp.eq.s32.totalorder %s18, 0
      %p75 = por %p73, %p74
      %s76 = sadd.s32 %s20, 1
      %s77 = smul.u32 %s76, 4
      %s78 = sadd.s32 %s41, 1
      %s79 = smul.u32 %s78, 4
      %s80 = ssub.s32 %s19, %s45
      %s81 = ssub.s32 %s77, %s79
      %s82 = sor.u32 %s80, %s81
      %s83 = ssub.s32 %s22, %s33
      %s84 = sor.u32 %s82, %s83
      %p85 = scmp.eq.s32.totalorder %s84, 0
      %s87 = sadd.s32 %s86, 1
      %s88 = scalar_select %p85, %s86, %s87
      %p91 = pneg %p85
      %p92 = scmp.eq.s32.totalorder %s12, 1
      %p93 = por %p91, %p92
      %p94 = scmp.ne.s32.totalorder %s86, %s89
      %p95 = scmp.eq.s32.totalorder %s12, 0
      %p96 = por %p94, %p95
      %p97 = scmp.ne.s32.totalorder %s86, %s89
      %p98 = scmp.eq.s32.totalorder %s17, 1
      %p99 = por %p97, %p98
      %p100 = scmp.ne.s32.totalorder %s89, %s90
      %p101 = scmp.eq.s32.totalorder %s17, 0
      %p102 = por %p100, %p101
      %p103 = scmp.ne.s32.totalorder %s89, %s90
      %p104 = scmp.eq.s32.totalorder %s18, 1
      %p105 = por %p103, %p104
      %p107 = scmp.ne.s32.totalorder %s90, %s106
      %p108 = scmp.eq.s32.totalorder %s18, 0
      %p109 = por %p107, %p108
      %s110 = ssub.s32 %s22, %s33
      %s111 = ssub.s32 %s21, %s37
      %s112 = sor.u32 %s110, %s111
      %p113 = scmp.eq.s32.totalorder %s112, 0
      %s115 = sadd.s32 %s114, 1
      %s116 = scalar_select %p113, %s114, %s115
      %p119 = pneg %p113
      %p120 = scmp.eq.s32.totalorder %s12, 1
      %p121 = por %p119, %p120
      %p122 = scmp.ne.s32.totalorder %s114, %s117
      %p123 = scmp.eq.s32.totalorder %s12, 0
      %p124 = por %p122, %p123
      %p125 = scmp.ne.s32.totalorder %s114, %s117
      %p126 = scmp.eq.s32.totalorder %s17, 1
      %p127 = por %p125, %p126
      %p128 = scmp.ne.s32.totalorder %s117, %s118
      %p129 = scmp.eq.s32.totalorder %s17, 0
      %p130 = por %p128, %p129
      %p131 = scmp.ne.s32.totalorder %s117, %s118
      %p132 = scmp.eq.s32.totalorder %s18, 1
      %p133 = por %p131, %p132
      %p135 = scmp.ne.s32.totalorder %s118, %s134
      %p136 = scmp.eq.s32.totalorder %s18, 0
      %p137 = por %p135, %p136
      %s138 = ssub.s32 %s21, %s37
      %p139 = scmp.eq.s32.totalorder %s138, 0
      %s141 = sadd.s32 %s140, 1
      %s142 = scalar_select %p139, %s140, %s141
      %p145 = pneg %p139
      %p146 = scmp.eq.s32.totalorder %s12, 1
      %p147 = por %p145, %p146
      %p148 = scmp.ne.s32.totalorder %s140, %s143
      %p149 = scmp.eq.s32.totalorder %s12, 0
      %p150 = por %p148, %p149
      %p151 = scmp.ne.s32.totalorder %s140, %s143
      %p152 = scmp.eq.s32.totalorder %s17, 1
      %p153 = por %p151, %p152
      %p154 = scmp.ne.s32.totalorder %s143, %s144
      %p155 = scmp.eq.s32.totalorder %s17, 0
      %p156 = por %p154, %p155
      %p157 = scmp.ne.s32.totalorder %s143, %s144
      %p158 = scmp.eq.s32.totalorder %s18, 1
      %p159 = por %p157, %p158
      %p161 = scmp.ne.s32.totalorder %s144, %s160
      %p162 = scmp.eq.s32.totalorder %s18, 0
      %p163 = por %p161, %p162
      %s164 = ssub.s32 %s21, %s37
      %p165 = scmp.eq.s32.totalorder %s164, 0
      %s167 = sadd.s32 %s166, 1
      %s168 = scalar_select %p165, %s166, %s167
      %p171 = pneg %p165
      %p172 = scmp.eq.s32.totalorder %s12, 1
      %p173 = por %p171, %p172
      %p174 = scmp.ne.s32.totalorder %s166, %s169
      %p175 = scmp.eq.s32.totalorder %s12, 0
      %p176 = por %p174, %p175
      %p177 = scmp.ne.s32.totalorder %s166, %s169
      %p178 = scmp.eq.s32.totalorder %s17, 1
      %p179 = por %p177, %p178
      %p180 = scmp.ne.s32.totalorder %s169, %s170
      %p181 = scmp.eq.s32.totalorder %s17, 0
      %p182 = por %p180, %p181
      %p183 = scmp.ne.s32.totalorder %s169, %s170
      %p184 = scmp.eq.s32.totalorder %s18, 1
      %p185 = por %p183, %p184
      %p187 = scmp.ne.s32.totalorder %s170, %s186
      %p188 = scmp.eq.s32.totalorder %s18, 0
      %p189 = por %p187, %p188
      %s190 = ssub.s32 %s19, %s45
      %s191 = ssub.s32 %s20, %s41
      %s192 = sor.u32 %s190, %s191
      %s193 = ssub.s32 %s21, %s37
      %s194 = sor.u32 %s192, %s193
      %p195 = scmp.eq.s32.totalorder %s194, 0
      %s197 = sadd.s32 %s196, 1
      %s198 = scalar_select %p195, %s196, %s197
      %p201 = pneg %p195
      %p202 = scmp.eq.s32.totalorder %s12, 1
      %p203 = por %p201, %p202
      %p204 = scmp.ne.s32.totalorder %s196, %s199
      %p205 = scmp.eq.s32.totalorder %s12, 0
      %p206 = por %p204, %p205
      %p207 = scmp.ne.s32.totalorder %s196, %s199
      %p208 = scmp.eq.s32.totalorder %s17, 1
      %p209 = por %p207, %p208
      %p210 = scmp.ne.s32.totalorder %s199, %s200
      %p211 = scmp.eq.s32.totalorder %s17, 0
      %p212 = por %p210, %p211
      %p213 = scmp.ne.s32.totalorder %s199, %s200
      %p214 = scmp.eq.s32.totalorder %s18, 1
      %p215 = por %p213, %p214
      %p217 = scmp.ne.s32.totalorder %s200, %s216
      %p218 = scmp.eq.s32.totalorder %s18, 0
      %p219 = por %p217, %p218
      %p220 = scmp.le.s32.totalorder 1, %s12
      %p221 = scmp.lt.s32.totalorder %s12, 3
      %p222 = pnand %p220, %p221
      %p223 = pneg %p222
      // Predicated region
      $region9: #{beluga_forward.6} parent=5 // pred_check
        _
      $region10: #{beluga_forward.6} parent=5 // pred_check_branch
        %225 = sbr.rel (%p222) target = $region12
      $region11: #{beluga_forward.6} parent=5 // pred_region
        %s226 = ssub.s32 %s12, 1
        // Predicated region
        $region13: #{beluga_forward.6} parent=11 // pred_check
          %p227 = pneg %p130
        $region14: #{beluga_forward.6} parent=11 // pred_check_branch
          %229 = sbr.rel (%p227) target = $region16
        $region15: #{beluga_forward.6} parent=11 // pred_region
          %s230 = smul.u32 16, %s26
          %232 = vsyncadd [#allocation5], 0
          %s233 = sadd.s32 %s25, %s230
          %s234 = smul.addr %s233, 4
          %s235 = scalar_lea.hbm %s2, %s234
          %s236 = sshll.u32 %s235, 4
          %s237 = int_to_ptr.hbm [resolvable:$true] %s236
          %s238 = sshll.u32 [#allocation4], 4
          %s239 = int_to_ptr.vmem [resolvable:$true] %s238
          %244 = dma.hbm_to_vmem [thread:$0]  %s237, 8192, %s239, [#allocation5], 64, 64, 4
        $region16: #{beluga_forward.6} parent=11 // pred_fallthru
          _
        // Predicated region
        $region17: #{beluga_forward.6} parent=11 // pred_check
          %p245 = pneg %p156
        $region18: #{beluga_forward.6} parent=11 // pred_check_branch
          %247 = sbr.rel (%p245) target = $region20
        $region19: #{beluga_forward.6} parent=11 // pred_region
          %p248 = scmp.lt.s32.totalorder %s25, 0
          %s249 = scalar_select %p248, %s25, 0
          %s250 = scalar_lea.vmem %s3, %s249
        $region20: #{beluga_forward.6} parent=11 // pred_fallthru
          _
        // Predicated region
        $region21: #{beluga_forward.6} parent=11 // pred_check
          %p251 = pneg %p182
        $region22: #{beluga_forward.6} parent=11 // pred_check_branch
          %253 = sbr.rel (%p251) target = $region24
        $region23: #{beluga_forward.6} parent=11 // pred_region
          %p254 = scmp.lt.s32.totalorder %s25, 0
          %s255 = scalar_select %p254, %s25, 0
          %s256 = scalar_lea.vmem %s4, %s255
        $region24: #{beluga_forward.6} parent=11 // pred_fallthru
          _
      $region12: #{beluga_forward.6} parent=5 // pred_fallthru
        _
      %p257 = scmp.lt.s32.totalorder %s12, 2
      // Predicated region
      $region25: #{beluga_forward.6} parent=5 // pred_check
        %p258 = pneg %p257
      $region26: #{beluga_forward.6} parent=5 // pred_check_branch
        %260 = sbr.rel (%p258) target = $region28
      $region27: #{beluga_forward.6} parent=5 // pred_region
        // Predicated region
        $region29: #{beluga_forward.6} parent=27 // pred_check
          %p261 = pneg %p62
        $region30: #{beluga_forward.6} parent=27 // pred_check_branch
          %263 = sbr.rel (%p261) target = $region32
        $region31: #{beluga_forward.6} parent=27 // pred_region
          %s264 = smul.u32 8, %s20
          %p265 = scmp.lt.s32.totalorder %s19, 1
          %s266 = scalar_select %p265, %s19, 1
          %p267 = scmp.lt.s32.totalorder %s264, 15
          %s268 = scalar_select %p267, %s264, 15
          %p269 = scmp.lt.s32.totalorder %s22, 0
          %s270 = scalar_select %p269, %s22, 0
          %s271 = sadd.s32 %s270, %s268
          %s272 = smul.addr %s266, 16
          %s273 = sadd.s32 %s271, %s272
          %s274 = smul.addr %s273, 4
          %s275 = scalar_lea.vmem %s0, %s274
          %s276 = smul.u32 8, %s20
        $region32: #{beluga_forward.6} parent=27 // pred_fallthru
          _
        // Predicated region
        $region33: #{beluga_forward.6} parent=27 // pred_check
          %p277 = pneg %p96
        $region34: #{beluga_forward.6} parent=27 // pred_check_branch
          %279 = sbr.rel (%p277) target = $region36
        $region35: #{beluga_forward.6} parent=27 // pred_region
          %s280 = sadd.s32 %s20, 1
          %s281 = smul.u32 %s280, 4
          %s282 = smul.u32 2, %s281
          %p283 = scmp.lt.s32.totalorder %s19, 1
          %s284 = scalar_select %p283, %s19, 1
          %p285 = scmp.lt.s32.totalorder %s282, 15
          %s286 = scalar_select %p285, %s282, 15
          %p287 = scmp.lt.s32.totalorder %s22, 0
          %s288 = scalar_select %p287, %s22, 0
          %s289 = sadd.s32 %s288, %s286
          %s290 = smul.addr %s284, 16
          %s291 = sadd.s32 %s289, %s290
          %s292 = smul.addr %s291, 4
          %s293 = scalar_lea.vmem %s1, %s292
          %s294 = sadd.s32 %s20, 1
          %s295 = smul.u32 %s294, 4
          %s296 = smul.u32 2, %s295
        $region36: #{beluga_forward.6} parent=27 // pred_fallthru
          _
      $region28: #{beluga_forward.6} parent=5 // pred_fallthru
        _
      %p297 = scmp.le.s32.totalorder 1, %s12
      %p298 = scmp.lt.s32.totalorder %s12, 3
      %p299 = pnand %p297, %p298
      %p300 = pneg %p299
      // Predicated region
      $region37: #{beluga_forward.6} parent=5 // pred_check
        _
      $region38: #{beluga_forward.6} parent=5 // pred_check_branch
        %302 = sbr.rel (%p299) target = $region40
      $region39: #{beluga_forward.6} parent=5 // pred_region
        %s303 = ssub.s32 %s12, 1
        // Predicated region
        $region41: #{beluga_forward.6} parent=39 // pred_check
          %p304 = pneg %p130
        $region42: #{beluga_forward.6} parent=39 // pred_check_branch
          %306 = sbr.rel (%p304) target = $region44
        $region43: #{beluga_forward.6} parent=39 // pred_region
          %308 = dma.done [#allocation5], 8192
        $region44: #{beluga_forward.6} parent=39 // pred_fallthru
          _
        %s309 = smul.u32 8, %s24
        %p310 = scmp.lt.s32.totalorder %s23, 1
        %s311 = scalar_select %p310, %s23, 1
        %p312 = scmp.lt.s32.totalorder %s309, 15
        %s313 = scalar_select %p312, %s309, 15
        %p314 = scmp.lt.s32.totalorder %s26, 0
        %s315 = scalar_select %p314, %s26, 0
        %s316 = sadd.s32 %s315, %s313
        %s317 = smul.addr %s311, 16
        %s318 = sadd.s32 %s316, %s317
        %s319 = smul.addr %s318, 4
        %s320 = scalar_lea.vmem %s0, %s319
        %p321 = pneg %p68
        %p322 = pneg %p65
        %s323 = sadd.s32 %s24, 1
        %s324 = smul.u32 %s323, 4
        %s325 = smul.u32 2, %s324
        %p326 = scmp.lt.s32.totalorder %s23, 1
        %s327 = scalar_select %p326, %s23, 1
        %p328 = scmp.lt.s32.totalorder %s325, 15
        %s329 = scalar_select %p328, %s325, 15
        %p330 = scmp.lt.s32.totalorder %s26, 0
        %s331 = scalar_select %p330, %s26, 0
        %s332 = sadd.s32 %s331, %s329
        %s333 = smul.addr %s327, 16
        %s334 = sadd.s32 %s332, %s333
        %s335 = smul.addr %s334, 4
        %s336 = scalar_lea.vmem %s1, %s335
        %p337 = pneg %p102
        %p338 = pneg %p99
        %p339 = pneg %p130
        %p340 = pneg %p127
        %p341 = scmp.lt.s32.totalorder %s25, 0
        %s342 = scalar_select %p341, %s25, 0
        %s343 = scalar_lea.vmem %s3, %s342
        %p344 = pneg %p156
        %p345 = pneg %p153
        %p346 = scmp.lt.s32.totalorder %s25, 0
        %s347 = scalar_select %p346, %s25, 0
        %s348 = scalar_lea.vmem %s4, %s347
        %p349 = pneg %p182
        %p350 = pneg %p179
        %p351 = pneg %p212
        %p352 = pneg %p209
        %s353 = smul.u32 8, %s24
        %p354 = scmp.lt.s32.totalorder %s23, 1
        %s355 = scalar_select %p354, %s23, 1
        %p356 = scmp.lt.s32.totalorder %s353, 7
        %s357 = scalar_select %p356, %s353, 7
        %p358 = scmp.lt.s32.totalorder %s25, 0
        %s359 = scalar_select %p358, %s25, 0
        %s360 = sadd.s32 %s359, %s357
        %s361 = smul.addr %s355, 8
        %s362 = sadd.s32 %s360, %s361
        %s363 = smul.addr %s362, 4
        %s364 = scalar_lea.vmem %s5, %s363
        %s365 = smul.u32 8, %s24
        %p366 = scmp.lt.s32.totalorder %s23, 1
        %s367 = scalar_select %p366, %s23, 1
        %p368 = scmp.lt.s32.totalorder %s365, 15
        %s369 = scalar_select %p368, %s365, 15
        %p370 = scmp.lt.s32.totalorder %s26, 0
        %s371 = scalar_select %p370, %s26, 0
        %s372 = sadd.s32 %s371, %s369
        %s373 = smul.addr %s367, 16
        %s374 = sadd.s32 %s372, %s373
        %s375 = smul.addr %s374, 4
        %s376 = scalar_lea.vmem %s0, %s375
        %s377 = smul.u32 8, %s24
        %s378 = sadd.s32 %s24, 1
        %s379 = smul.u32 %s378, 4
        %s380 = smul.u32 2, %s379
        %p381 = scmp.lt.s32.totalorder %s23, 1
        %s382 = scalar_select %p381, %s23, 1
        %p383 = scmp.lt.s32.totalorder %s380, 15
        %s384 = scalar_select %p383, %s380, 15
        %p385 = scmp.lt.s32.totalorder %s26, 0
        %s386 = scalar_select %p385, %s26, 0
        %s387 = sadd.s32 %s386, %s384
        %s388 = smul.addr %s382, 16
        %s389 = sadd.s32 %s387, %s388
        %s390 = smul.addr %s389, 4
        %s391 = scalar_lea.vmem %s1, %s390
        %s392 = sadd.s32 %s24, 1
        %s393 = smul.u32 %s392, 4
        %s394 = smul.u32 2, %s393
        %s395 = smul.u32 16, %s26
        %p396 = scmp.lt.s32.totalorder %s25, 0
        %s397 = scalar_select %p396, %s25, 0
        %s398 = scalar_lea.vmem %s3, %s397
        %p399 = scmp.lt.s32.totalorder %s25, 0
        %s400 = scalar_select %p399, %s25, 0
        %s401 = scalar_lea.vmem %s4, %s400
        %s402 = smul.u32 8, %s24
        %p403 = scmp.lt.s32.totalorder %s23, 1
        %s404 = scalar_select %p403, %s23, 1
        %p405 = scmp.lt.s32.totalorder %s402, 7
        %s406 = scalar_select %p405, %s402, 7
        %p407 = scmp.lt.s32.totalorder %s25, 0
        %s408 = scalar_select %p407, %s25, 0
        %s409 = sadd.s32 %s408, %s406
        %s410 = smul.addr %s404, 8
        %s411 = sadd.s32 %s409, %s410
        %s412 = smul.addr %s411, 4
        %s413 = scalar_lea.vmem %s5, %s412
        %s414 = smul.u32 8, %s24
        %v415 = vld [vmem:[%s376] sm:$0xf]
        %v416 = vld [vmem:[%s376 + $0x4] sm:$0xf]
        %v417 = vld [vmem:[%s376 + $0x8] sm:$0xf]
        %v418 = vld [vmem:[%s376 + $0xc] sm:$0xf]
        %v419 = vld [vmem:[%s376 + $0x10] sm:$0xf]
        %v420 = vld [vmem:[%s376 + $0x14] sm:$0xf]
        %v421 = vld [vmem:[%s376 + $0x18] sm:$0xf]
        %v422 = vld [vmem:[%s376 + $0x1c] sm:$0xf]
        %423 = vst [vmem:[#allocation3] sm:$0xf] %v415
        %424 = vst [vmem:[#allocation3 + $0x4] sm:$0xf] %v416
        %425 = vst [vmem:[#allocation3 + $0x8] sm:$0xf] %v417
        %426 = vst [vmem:[#allocation3 + $0xc] sm:$0xf] %v418
        %427 = vst [vmem:[#allocation3 + $0x10] sm:$0xf] %v419
        %428 = vst [vmem:[#allocation3 + $0x14] sm:$0xf] %v420
        %429 = vst [vmem:[#allocation3 + $0x18] sm:$0xf] %v421
        %430 = vst [vmem:[#allocation3 + $0x1c] sm:$0xf] %v422
        %v431 = vld [vmem:[%s391] sm:$0xf]
        %v432 = vld [vmem:[%s391 + $0x4] sm:$0xf]
        %433 = vst [vmem:[#allocation3 + $0x20] sm:$0xf] %v431
        %434 = vst [vmem:[#allocation3 + $0x24] sm:$0xf] %v432
        %v435 = vld [vmem:[#allocation4] sm:$0xf]
        %v436 = vld [vmem:[#allocation4 + $0x4] sm:$0xf]
        %v437 = vld [vmem:[#allocation4 + $0x8] sm:$0xf]
        %v438 = vld [vmem:[#allocation4 + $0xc] sm:$0xf]
        %v439 = vld [vmem:[#allocation4 + $0x10] sm:$0xf]
        %v440 = vld [vmem:[#allocation4 + $0x14] sm:$0xf]
        %v441 = vld [vmem:[#allocation4 + $0x18] sm:$0xf]
        %v442 = vld [vmem:[#allocation4 + $0x1c] sm:$0xf]
        %v443 = vld [vmem:[#allocation4 + $0x20] sm:$0xf]
        %v444 = vld [vmem:[#allocation4 + $0x24] sm:$0xf]
        %v445 = vld [vmem:[#allocation4 + $0x28] sm:$0xf]
        %v446 = vld [vmem:[#allocation4 + $0x2c] sm:$0xf]
        %v447 = vld [vmem:[#allocation4 + $0x30] sm:$0xf]
        %v448 = vld [vmem:[#allocation4 + $0x34] sm:$0xf]
        %v449 = vld [vmem:[#allocation4 + $0x38] sm:$0xf]
        %v450 = vld [vmem:[#allocation4 + $0x3c] sm:$0xf]
        %v459 = vunpack.c.l.b16 %v415
        %v460 = vunpack.c.l.b16 %v416
        %v461 = vunpack.c.l.b16 %v417
        %v462 = vunpack.c.l.b16 %v418
        %v463 = vunpack.c.l.b16 %v419
        %v464 = vunpack.c.l.b16 %v420
        %v465 = vunpack.c.l.b16 %v421
        %v466 = vunpack.c.l.b16 %v422
        %v467 = vpack.c.b16 %v460, %v459
        %v468 = vpack.c.b16 %v462, %v461
        %v469 = vpack.c.b16 %v464, %v463
        %v470 = vpack.c.b16 %v466, %v465
        %v491 = vunpack.c.l.b16 %v435
        %v492 = vunpack.c.l.b16 %v436
        %v493 = vunpack.c.l.b16 %v437
        %v494 = vunpack.c.l.b16 %v438
        %v495 = vunpack.c.l.b16 %v439
        %v496 = vunpack.c.l.b16 %v440
        %v497 = vunpack.c.l.b16 %v441
        %v498 = vunpack.c.l.b16 %v442
        %v499 = vunpack.c.l.b16 %v443
        %v500 = vunpack.c.l.b16 %v444
        %v501 = vunpack.c.l.b16 %v445
        %v502 = vunpack.c.l.b16 %v446
        %v503 = vunpack.c.l.b16 %v447
        %v504 = vunpack.c.l.b16 %v448
        %v505 = vunpack.c.l.b16 %v449
        %v506 = vunpack.c.l.b16 %v450
        %v507 = vpack.c.b16 %v492, %v491
        %v508 = vpack.c.b16 %v494, %v493
        %v509 = vpack.c.b16 %v496, %v495
        %v510 = vpack.c.b16 %v498, %v497
        %v511 = vpack.c.b16 %v500, %v499
        %v512 = vpack.c.b16 %v502, %v501
        %v513 = vpack.c.b16 %v504, %v503
        %v514 = vpack.c.b16 %v506, %v505
        %523 = vmatpush.bf16.msra.mxu0 %v514
        %524 = vmatpush.bf16.msra.mxu0 %v513
        %525 = vmatpush.bf16.msra.mxu0 %v512
        %526 = vmatpush.bf16.msra.mxu0 %v511
        %527 = vmatpush.bf16.msra.mxu0 %v510
        %528 = vmatpush.bf16.msra.mxu0 %v509
        %529 = vmatpush.bf16.msra.mxu0 %v508
        %530 = vmatpush.bf16.msra.mxu0 %v507
        %531 = vmatmul.bf16.gmra.mxu0 %v467
        %v532 = vpop.f32.mrf.mxu0
        %v533 = vadd.f32 0.0, %v532
        %v534 = vpop.f32.mrf.mxu0
        %v535 = vadd.f32 0.0, %v534
        %536 = vmatmul.bf16.gmra.mxu0 %v468
        %v537 = vpop.f32.mrf.mxu0
        %v538 = vadd.f32 0.0, %v537
        %v539 = vpop.f32.mrf.mxu0
        %v540 = vadd.f32 0.0, %v539
        %541 = vmatmul.bf16.gmra.mxu0 %v469
        %v542 = vpop.f32.mrf.mxu0
        %v543 = vadd.f32 0.0, %v542
        %v544 = vpop.f32.mrf.mxu0
        %v545 = vadd.f32 0.0, %v544
        %546 = vmatmul.bf16.gmra.mxu0 %v470
        %v547 = vpop.f32.mrf.mxu0
        %v548 = vadd.f32 0.0, %v547
        %v549 = vpop.f32.mrf.mxu0
        %v550 = vadd.f32 0.0, %v549
        %551 = vdwg.mxu0
        %p552 = scmp.eq.s32.totalorder %s26, 0
        // Predicated region
        $region45: #{beluga_forward.6} parent=39 // pred_check
          %p553 = pneg %p552
        $region46: #{beluga_forward.6} parent=39 // pred_check_branch
          %555 = sbr.rel (%p553) target = $region48
        $region47: #{beluga_forward.6} parent=39 // pred_region
          %556 = vst [vmem:[#allocation2] sm:$0xff] %v533
          %557 = vst [vmem:[#allocation2 + $0x8] sm:$0xff] %v535
          %558 = vst [vmem:[#allocation2 + $0x10] sm:$0xff] %v538
          %559 = vst [vmem:[#allocation2 + $0x18] sm:$0xff] %v540
          %560 = vst [vmem:[#allocation2 + $0x20] sm:$0xff] %v543
          %561 = vst [vmem:[#allocation2 + $0x28] sm:$0xff] %v545
          %562 = vst [vmem:[#allocation2 + $0x30] sm:$0xff] %v548
          %563 = vst [vmem:[#allocation2 + $0x38] sm:$0xff] %v550
        $region48: #{beluga_forward.6} parent=39 // pred_fallthru
          _
        %p564 = scmp.ne.s32.totalorder %s26, 0
        // Predicated region
        $region49: #{beluga_forward.6} parent=39 // pred_check
          %p565 = pneg %p564
        $region50: #{beluga_forward.6} parent=39 // pred_check_branch
          %567 = sbr.rel (%p565) target = $region52
        $region51: #{beluga_forward.6} parent=39 // pred_region
          %v568 = vld [vmem:[#allocation2] sm:$0xff]
          %v569 = vld [vmem:[#allocation2 + $0x8] sm:$0xff]
          %v570 = vld [vmem:[#allocation2 + $0x10] sm:$0xff]
          %v571 = vld [vmem:[#allocation2 + $0x18] sm:$0xff]
          %v572 = vld [vmem:[#allocation2 + $0x20] sm:$0xff]
          %v573 = vld [vmem:[#allocation2 + $0x28] sm:$0xff]
          %v574 = vld [vmem:[#allocation2 + $0x30] sm:$0xff]
          %v575 = vld [vmem:[#allocation2 + $0x38] sm:$0xff]
          %v576 = vadd.f32 %v568, %v533
          %v577 = vadd.f32 %v569, %v535
          %v578 = vadd.f32 %v570, %v538
          %v579 = vadd.f32 %v571, %v540
          %v580 = vadd.f32 %v572, %v543
          %v581 = vadd.f32 %v573, %v545
          %v582 = vadd.f32 %v574, %v548
          %v583 = vadd.f32 %v575, %v550
          %584 = vst [vmem:[#allocation2] sm:$0xff] %v576
          %585 = vst [vmem:[#allocation2 + $0x8] sm:$0xff] %v577
          %586 = vst [vmem:[#allocation2 + $0x10] sm:$0xff] %v578
          %587 = vst [vmem:[#allocation2 + $0x18] sm:$0xff] %v579
          %588 = vst [vmem:[#allocation2 + $0x20] sm:$0xff] %v580
          %589 = vst [vmem:[#allocation2 + $0x28] sm:$0xff] %v581
          %590 = vst [vmem:[#allocation2 + $0x30] sm:$0xff] %v582
          %591 = vst [vmem:[#allocation2 + $0x38] sm:$0xff] %v583
        $region52: #{beluga_forward.6} parent=39 // pred_fallthru
          _
        %v592 = vld [vmem:[#allocation3] sm:$0xf]
        %v593 = vld [vmem:[#allocation3 + $0x4] sm:$0xf]
        %v594 = vld [vmem:[#allocation3 + $0x8] sm:$0xf]
        %v595 = vld [vmem:[#allocation3 + $0xc] sm:$0xf]
        %v596 = vld [vmem:[#allocation3 + $0x10] sm:$0xf]
        %v597 = vld [vmem:[#allocation3 + $0x14] sm:$0xf]
        %v598 = vld [vmem:[#allocation3 + $0x18] sm:$0xf]
        %v599 = vld [vmem:[#allocation3 + $0x1c] sm:$0xf]
        %v600 = vld [vmem:[#allocation3 + $0x20] sm:$0x1]
        %v601 = vld [vmem:[#allocation2] sm:$0xff]
        %v602 = vld [vmem:[#allocation2 + $0x8] sm:$0xff]
        %v603 = vld [vmem:[#allocation2 + $0x10] sm:$0xff]
        %v604 = vld [vmem:[#allocation2 + $0x18] sm:$0xff]
        %v605 = vld [vmem:[#allocation2 + $0x20] sm:$0xff]
        %v606 = vld [vmem:[#allocation2 + $0x28] sm:$0xff]
        %v607 = vld [vmem:[#allocation2 + $0x30] sm:$0xff]
        %v608 = vld [vmem:[#allocation2 + $0x38] sm:$0xff]
        %s609 = scalar_lea.vmem [#allocation4], 64
        %v610 = vld [vmem:[%s609] sm:$0xf]
        %v611 = vld [vmem:[%s609 + $0x4] sm:$0xf]
        %v612 = vld [vmem:[%s609 + $0x8] sm:$0xf]
        %v613 = vld [vmem:[%s609 + $0xc] sm:$0xf]
        %v614 = vld [vmem:[%s609 + $0x10] sm:$0xf]
        %v615 = vld [vmem:[%s609 + $0x14] sm:$0xf]
        %v616 = vld [vmem:[%s609 + $0x18] sm:$0xf]
        %v617 = vld [vmem:[%s609 + $0x1c] sm:$0xf]
        %v618 = vld [vmem:[%s609 + $0x20] sm:$0xf]
        %v619 = vld [vmem:[%s609 + $0x24] sm:$0xf]
        %v620 = vld [vmem:[%s609 + $0x28] sm:$0xf]
        %v621 = vld [vmem:[%s609 + $0x2c] sm:$0xf]
        %v622 = vld [vmem:[%s609 + $0x30] sm:$0xf]
        %v623 = vld [vmem:[%s609 + $0x34] sm:$0xf]
        %v624 = vld [vmem:[%s609 + $0x38] sm:$0xf]
        %v625 = vld [vmem:[%s609 + $0x3c] sm:$0xf]
        %v635 = vunpack.c.l.b16 %v592
        %v636 = vunpack.c.l.b16 %v593
        %v637 = vunpack.c.l.b16 %v594
        %v638 = vunpack.c.l.b16 %v595
        %v639 = vunpack.c.l.b16 %v596
        %v640 = vunpack.c.l.b16 %v597
        %v641 = vunpack.c.l.b16 %v598
        %v642 = vunpack.c.l.b16 %v599
        %v643 = vunpack.c.l.b16 %v600
        %v644 = vpack.c.b16 %v636, %v635
        %v645 = vpack.c.b16 %v638, %v637
        %v646 = vpack.c.b16 %v640, %v639
        %v647 = vpack.c.b16 %v642, %v641
        %v648 = vpack.c.b16 %v643, %v643
        %vm649 = vsmask.f32 7424
        %v651 = vshrl.u32 %v644, 16
        %v653 = vshll.u32 %v644, 16
        %v655 = vrot.slane %v653, 1
        %v656 = vor.u32 %v651, %v655
        %v658 = vshll.u32 %v645, 16
        %v660 = vrot.slane %v658, 1
        %v661 = vsel %vm649, %v656, %v660
        %v662 = vshrl.u32 %v645, 16
        %v664 = vor.u32 %v662, %v660
        %v666 = vshll.u32 %v646, 16
        %v668 = vrot.slane %v666, 1
        %v669 = vsel %vm649, %v664, %v668
        %v670 = vshrl.u32 %v646, 16
        %v672 = vor.u32 %v670, %v668
        %v674 = vshll.u32 %v647, 16
        %v676 = vrot.slane %v674, 1
        %v677 = vsel %vm649, %v672, %v676
        %v678 = vshrl.u32 %v647, 16
        %v680 = vor.u32 %v678, %v676
        %v682 = vshll.u32 %v648, 16
        %v684 = vrot.slane %v682, 1
        %v685 = vsel %vm649, %v680, %v684
        %v706 = vunpack.c.l.b16 %v610
        %v707 = vunpack.c.l.b16 %v611
        %v708 = vunpack.c.l.b16 %v612
        %v709 = vunpack.c.l.b16 %v613
        %v710 = vunpack.c.l.b16 %v614
        %v711 = vunpack.c.l.b16 %v615
        %v712 = vunpack.c.l.b16 %v616
        %v713 = vunpack.c.l.b16 %v617
        %v714 = vunpack.c.l.b16 %v618
        %v715 = vunpack.c.l.b16 %v619
        %v716 = vunpack.c.l.b16 %v620
        %v717 = vunpack.c.l.b16 %v621
        %v718 = vunpack.c.l.b16 %v622
        %v719 = vunpack.c.l.b16 %v623
        %v720 = vunpack.c.l.b16 %v624
        %v721 = vunpack.c.l.b16 %v625
        %v722 = vpack.c.b16 %v707, %v706
        %v723 = vpack.c.b16 %v709, %v708
        %v724 = vpack.c.b16 %v711, %v710
        %v725 = vpack.c.b16 %v713, %v712
        %v726 = vpack.c.b16 %v715, %v714
        %v727 = vpack.c.b16 %v717, %v716
        %v728 = vpack.c.b16 %v719, %v718
        %v729 = vpack.c.b16 %v721, %v720
        %738 = vmatpush.bf16.msra.mxu0 %v729
        %739 = vmatpush.bf16.msra.mxu0 %v728
        %740 = vmatpush.bf16.msra.mxu0 %v727
        %741 = vmatpush.bf16.msra.mxu0 %v726
        %742 = vmatpush.bf16.msra.mxu0 %v725
        %743 = vmatpush.bf16.msra.mxu0 %v724
        %744 = vmatpush.bf16.msra.mxu0 %v723
        %745 = vmatpush.bf16.msra.mxu0 %v722
        %746 = vmatmul.bf16.gmra.mxu0 %v661
        %v747 = vpop.f32.mrf.mxu0
        %v748 = vadd.f32 0.0, %v747
        %v749 = vpop.f32.mrf.mxu0
        %v750 = vadd.f32 0.0, %v749
        %751 = vmatmul.bf16.gmra.mxu0 %v669
        %v752 = vpop.f32.mrf.mxu0
        %v753 = vadd.f32 0.0, %v752
        %v754 = vpop.f32.mrf.mxu0
        %v755 = vadd.f32 0.0, %v754
        %756 = vmatmul.bf16.gmra.mxu0 %v677
        %v757 = vpop.f32.mrf.mxu0
        %v758 = vadd.f32 0.0, %v757
        %v759 = vpop.f32.mrf.mxu0
        %v760 = vadd.f32 0.0, %v759
        %761 = vmatmul.bf16.gmra.mxu0 %v685
        %v762 = vpop.f32.mrf.mxu0
        %v763 = vadd.f32 0.0, %v762
        %v764 = vpop.f32.mrf.mxu0
        %v765 = vadd.f32 0.0, %v764
        %766 = vdwg.mxu0
        %v767 = vadd.f32 %v601, %v748
        %v768 = vadd.f32 %v602, %v750
        %v769 = vadd.f32 %v603, %v753
        %v770 = vadd.f32 %v604, %v755
        %v771 = vadd.f32 %v605, %v758
        %v772 = vadd.f32 %v606, %v760
        %v773 = vadd.f32 %v607, %v763
        %v774 = vadd.f32 %v608, %v765
        %775 = vst [vmem:[#allocation2] sm:$0xff] %v767
        %776 = vst [vmem:[#allocation2 + $0x8] sm:$0xff] %v768
        %777 = vst [vmem:[#allocation2 + $0x10] sm:$0xff] %v769
        %778 = vst [vmem:[#allocation2 + $0x18] sm:$0xff] %v770
        %779 = vst [vmem:[#allocation2 + $0x20] sm:$0xff] %v771
        %780 = vst [vmem:[#allocation2 + $0x28] sm:$0xff] %v772
        %781 = vst [vmem:[#allocation2 + $0x30] sm:$0xff] %v773
        %782 = vst [vmem:[#allocation2 + $0x38] sm:$0xff] %v774
        %v783 = vld [vmem:[#allocation3] sm:$0xe]
        %v784 = vld [vmem:[#allocation3 + $0x4] sm:$0xf]
        %v785 = vld [vmem:[#allocation3 + $0x8] sm:$0xf]
        %v786 = vld [vmem:[#allocation3 + $0xc] sm:$0xf]
        %v787 = vld [vmem:[#allocation3 + $0x10] sm:$0xf]
        %v788 = vld [vmem:[#allocation3 + $0x14] sm:$0xf]
        %v789 = vld [vmem:[#allocation3 + $0x18] sm:$0xf]
        %v790 = vld [vmem:[#allocation3 + $0x1c] sm:$0xf]
        %v791 = vld [vmem:[#allocation3 + $0x20] sm:$0x1]
        %v792 = vld [vmem:[#allocation2] sm:$0xff]
        %v793 = vld [vmem:[#allocation2 + $0x8] sm:$0xff]
        %v794 = vld [vmem:[#allocation2 + $0x10] sm:$0xff]
        %v795 = vld [vmem:[#allocation2 + $0x18] sm:$0xff]
        %v796 = vld [vmem:[#allocation2 + $0x20] sm:$0xff]
        %v797 = vld [vmem:[#allocation2 + $0x28] sm:$0xff]
        %v798 = vld [vmem:[#allocation2 + $0x30] sm:$0xff]
        %v799 = vld [vmem:[#allocation2 + $0x38] sm:$0xff]
        %s800 = scalar_lea.vmem [#allocation4], 128
        %v801 = vld [vmem:[%s800] sm:$0xf]
        %v802 = vld [vmem:[%s800 + $0x4] sm:$0xf]
        %v803 = vld [vmem:[%s800 + $0x8] sm:$0xf]
        %v804 = vld [vmem:[%s800 + $0xc] sm:$0xf]
        %v805 = vld [vmem:[%s800 + $0x10] sm:$0xf]
        %v806 = vld [vmem:[%s800 + $0x14] sm:$0xf]
        %v807 = vld [vmem:[%s800 + $0x18] sm:$0xf]
        %v808 = vld [vmem:[%s800 + $0x1c] sm:$0xf]
        %v809 = vld [vmem:[%s800 + $0x20] sm:$0xf]
        %v810 = vld [vmem:[%s800 + $0x24] sm:$0xf]
        %v811 = vld [vmem:[%s800 + $0x28] sm:$0xf]
        %v812 = vld [vmem:[%s800 + $0x2c] sm:$0xf]
        %v813 = vld [vmem:[%s800 + $0x30] sm:$0xf]
        %v814 = vld [vmem:[%s800 + $0x34] sm:$0xf]
        %v815 = vld [vmem:[%s800 + $0x38] sm:$0xf]
        %v816 = vld [vmem:[%s800 + $0x3c] sm:$0xf]
        %v826 = vunpack.c.l.b16 %v783
        %v827 = vunpack.c.l.b16 %v784
        %v828 = vunpack.c.l.b16 %v785
        %v829 = vunpack.c.l.b16 %v786
        %v830 = vunpack.c.l.b16 %v787
        %v831 = vunpack.c.l.b16 %v788
        %v832 = vunpack.c.l.b16 %v789
        %v833 = vunpack.c.l.b16 %v790
        %v834 = vunpack.c.l.b16 %v791
        %v835 = vpack.c.b16 %v827, %v826
        %v836 = vpack.c.b16 %v829, %v828
        %v837 = vpack.c.b16 %v831, %v830
        %v838 = vpack.c.b16 %v833, %v832
        %v839 = vpack.c.b16 %v834, %v834
        %vm840 = vcmask 1046528
        %v841 = vrot.slane %v835, 1
        %v842 = vrot.slane %v836, 1
        %v843 = vsel %vm840, %v841, %v842
        %v844 = vrot.slane %v837, 1
        %v845 = vsel %vm840, %v842, %v844
        %v846 = vrot.slane %v838, 1
        %v847 = vsel %vm840, %v844, %v846
        %v848 = vrot.slane %v839, 1
        %v849 = vsel %vm840, %v846, %v848
        %v870 = vunpack.c.l.b16 %v801
        %v871 = vunpack.c.l.b16 %v802
        %v872 = vunpack.c.l.b16 %v803
        %v873 = vunpack.c.l.b16 %v804
        %v874 = vunpack.c.l.b16 %v805
        %v875 = vunpack.c.l.b16 %v806
        %v876 = vunpack.c.l.b16 %v807
        %v877 = vunpack.c.l.b16 %v808
        %v878 = vunpack.c.l.b16 %v809
        %v879 = vunpack.c.l.b16 %v810
        %v880 = vunpack.c.l.b16 %v811
        %v881 = vunpack.c.l.b16 %v812
        %v882 = vunpack.c.l.b16 %v813
        %v883 = vunpack.c.l.b16 %v814
        %v884 = vunpack.c.l.b16 %v815
        %v885 = vunpack.c.l.b16 %v816
        %v886 = vpack.c.b16 %v871, %v870
        %v887 = vpack.c.b16 %v873, %v872
        %v888 = vpack.c.b16 %v875, %v874
        %v889 = vpack.c.b16 %v877, %v876
        %v890 = vpack.c.b16 %v879, %v878
        %v891 = vpack.c.b16 %v881, %v880
        %v892 = vpack.c.b16 %v883, %v882
        %v893 = vpack.c.b16 %v885, %v884
        %902 = vmatpush.bf16.msra.mxu0 %v893
        %903 = vmatpush.bf16.msra.mxu0 %v892
        %904 = vmatpush.bf16.msra.mxu0 %v891
        %905 = vmatpush.bf16.msra.mxu0 %v890
        %906 = vmatpush.bf16.msra.mxu0 %v889
        %907 = vmatpush.bf16.msra.mxu0 %v888
        %908 = vmatpush.bf16.msra.mxu0 %v887
        %909 = vmatpush.bf16.msra.mxu0 %v886
        %910 = vmatmul.bf16.gmra.mxu0 %v843
        %v911 = vpop.f32.mrf.mxu0
        %v912 = vadd.f32 0.0, %v911
        %v913 = vpop.f32.mrf.mxu0
        %v914 = vadd.f32 0.0, %v913
        %915 = vmatmul.bf16.gmra.mxu0 %v845
        %v916 = vpop.f32.mrf.mxu0
        %v917 = vadd.f32 0.0, %v916
        %v918 = vpop.f32.mrf.mxu0
        %v919 = vadd.f32 0.0, %v918
        %920 = vmatmul.bf16.gmra.mxu0 %v847
        %v921 = vpop.f32.mrf.mxu0
        %v922 = vadd.f32 0.0, %v921
        %v923 = vpop.f32.mrf.mxu0
        %v924 = vadd.f32 0.0, %v923
        %925 = vmatmul.bf16.gmra.mxu0 %v849
        %v926 = vpop.f32.mrf.mxu0
        %v927 = vadd.f32 0.0, %v926
        %v928 = vpop.f32.mrf.mxu0
        %v929 = vadd.f32 0.0, %v928
        %930 = vdwg.mxu0
        %v931 = vadd.f32 %v792, %v912
        %v932 = vadd.f32 %v793, %v914
        %v933 = vadd.f32 %v794, %v917
        %v934 = vadd.f32 %v795, %v919
        %v935 = vadd.f32 %v796, %v922
        %v936 = vadd.f32 %v797, %v924
        %v937 = vadd.f32 %v798, %v927
        %v938 = vadd.f32 %v799, %v929
        %939 = vst [vmem:[#allocation2] sm:$0xff] %v931
        %940 = vst [vmem:[#allocation2 + $0x8] sm:$0xff] %v932
        %941 = vst [vmem:[#allocation2 + $0x10] sm:$0xff] %v933
        %942 = vst [vmem:[#allocation2 + $0x18] sm:$0xff] %v934
        %943 = vst [vmem:[#allocation2 + $0x20] sm:$0xff] %v935
        %944 = vst [vmem:[#allocation2 + $0x28] sm:$0xff] %v936
        %945 = vst [vmem:[#allocation2 + $0x30] sm:$0xff] %v937
        %946 = vst [vmem:[#allocation2 + $0x38] sm:$0xff] %v938
        %v947 = vld [vmem:[#allocation3] sm:$0xe]
        %v948 = vld [vmem:[#allocation3 + $0x4] sm:$0xf]
        %v949 = vld [vmem:[#allocation3 + $0x8] sm:$0xf]
        %v950 = vld [vmem:[#allocation3 + $0xc] sm:$0xf]
        %v951 = vld [vmem:[#allocation3 + $0x10] sm:$0xf]
        %v952 = vld [vmem:[#allocation3 + $0x14] sm:$0xf]
        %v953 = vld [vmem:[#allocation3 + $0x18] sm:$0xf]
        %v954 = vld [vmem:[#allocation3 + $0x1c] sm:$0xf]
        %v955 = vld [vmem:[#allocation3 + $0x20] sm:$0x3]
        %v956 = vld [vmem:[#allocation2] sm:$0xff]
        %v957 = vld [vmem:[#allocation2 + $0x8] sm:$0xff]
        %v958 = vld [vmem:[#allocation2 + $0x10] sm:$0xff]
        %v959 = vld [vmem:[#allocation2 + $0x18] sm:$0xff]
        %v960 = vld [vmem:[#allocation2 + $0x20] sm:$0xff]
        %v961 = vld [vmem:[#allocation2 + $0x28] sm:$0xff]
        %v962 = vld [vmem:[#allocation2 + $0x30] sm:$0xff]
        %v963 = vld [vmem:[#allocation2 + $0x38] sm:$0xff]
        %s964 = scalar_lea.vmem [#allocation4], 192
        %v965 = vld [vmem:[%s964] sm:$0xf]
        %v966 = vld [vmem:[%s964 + $0x4] sm:$0xf]
        %v967 = vld [vmem:[%s964 + $0x8] sm:$0xf]
        %v968 = vld [vmem:[%s964 + $0xc] sm:$0xf]
        %v969 = vld [vmem:[%s964 + $0x10] sm:$0xf]
        %v970 = vld [vmem:[%s964 + $0x14] sm:$0xf]
        %v971 = vld [vmem:[%s964 + $0x18] sm:$0xf]
        %v972 = vld [vmem:[%s964 + $0x1c] sm:$0xf]
        %v973 = vld [vmem:[%s964 + $0x20] sm:$0xf]
        %v974 = vld [vmem:[%s964 + $0x24] sm:$0xf]
        %v975 = vld [vmem:[%s964 + $0x28] sm:$0xf]
        %v976 = vld [vmem:[%s964 + $0x2c] sm:$0xf]
        %v977 = vld [vmem:[%s964 + $0x30] sm:$0xf]
        %v978 = vld [vmem:[%s964 + $0x34] sm:$0xf]
        %v979 = vld [vmem:[%s964 + $0x38] sm:$0xf]
        %v980 = vld [vmem:[%s964 + $0x3c] sm:$0xf]
        %v990 = vunpack.c.l.b16 %v947
        %v991 = vunpack.c.l.b16 %v948
        %v992 = vunpack.c.l.b16 %v949
        %v993 = vunpack.c.l.b16 %v950
        %v994 = vunpack.c.l.b16 %v951
        %v995 = vunpack.c.l.b16 %v952
        %v996 = vunpack.c.l.b16 %v953
        %v997 = vunpack.c.l.b16 %v954
        %v998 = vunpack.c.l.b16 %v955
        %v999 = vpack.c.b16 %v991, %v990
        %v1000 = vpack.c.b16 %v993, %v992
        %v1001 = vpack.c.b16 %v995, %v994
        %v1002 = vpack.c.b16 %v997, %v996
        %v1003 = vpack.c.b16 %v998, %v998
        %vm1004 = vsmask.f32 6400
        %v1006 = vshrl.u32 %v999, 16
        %v1008 = vrot.slane %v1006, 1
        %v1009 = vshll.u32 %v999, 16
        %v1011 = vrot.slane %v1009, 2
        %v1012 = vor.u32 %v1008, %v1011
        %v1014 = vshrl.u32 %v1000, 16
        %v1016 = vrot.slane %v1014, 1
        %v1017 = vshll.u32 %v1000, 16
        %v1019 = vrot.slane %v1017, 2
        %v1020 = vor.u32 %v1016, %v1019
        %v1021 = vsel %vm1004, %v1012, %v1020
        %v1023 = vshrl.u32 %v1001, 16
        %v1025 = vrot.slane %v1023, 1
        %v1026 = vshll.u32 %v1001, 16
        %v1028 = vrot.slane %v1026, 2
        %v1029 = vor.u32 %v1025, %v1028
        %v1030 = vsel %vm1004, %v1020, %v1029
        %v1032 = vshrl.u32 %v1002, 16
        %v1034 = vrot.slane %v1032, 1
        %v1035 = vshll.u32 %v1002, 16
        %v1037 = vrot.slane %v1035, 2
        %v1038 = vor.u32 %v1034, %v1037
        %v1039 = vsel %vm1004, %v1029, %v1038
        %v1041 = vshrl.u32 %v1003, 16
        %v1043 = vrot.slane %v1041, 1
        %v1044 = vshll.u32 %v1003, 16
        %v1046 = vrot.slane %v1044, 2
        %v1047 = vor.u32 %v1043, %v1046
        %v1048 = vsel %vm1004, %v1038, %v1047
        %v1069 = vunpack.c.l.b16 %v965
        %v1070 = vunpack.c.l.b16 %v966
        %v1071 = vunpack.c.l.b16 %v967
        %v1072 = vunpack.c.l.b16 %v968
        %v1073 = vunpack.c.l.b16 %v969
        %v1074 = vunpack.c.l.b16 %v970
        %v1075 = vunpack.c.l.b16 %v971
        %v1076 = vunpack.c.l.b16 %v972
        %v1077 = vunpack.c.l.b16 %v973
        %v1078 = vunpack.c.l.b16 %v974
        %v1079 = vunpack.c.l.b16 %v975
        %v1080 = vunpack.c.l.b16 %v976
        %v1081 = vunpack.c.l.b16 %v977
        %v1082 = vunpack.c.l.b16 %v978
        %v1083 = vunpack.c.l.b16 %v979
        %v1084 = vunpack.c.l.b16 %v980
        %v1085 = vpack.c.b16 %v1070, %v1069
        %v1086 = vpack.c.b16 %v1072, %v1071
        %v1087 = vpack.c.b16 %v1074, %v1073
        %v1088 = vpack.c.b16 %v1076, %v1075
        %v1089 = vpack.c.b16 %v1078, %v1077
        %v1090 = vpack.c.b16 %v1080, %v1079
        %v1091 = vpack.c.b16 %v1082, %v1081
        %v1092 = vpack.c.b16 %v1084, %v1083
        %1101 = vmatpush.bf16.msra.mxu0 %v1092
        %1102 = vmatpush.bf16.msra.mxu0 %v1091
        %1103 = vmatpush.bf16.msra.mxu0 %v1090
        %1104 = vmatpush.bf16.msra.mxu0 %v1089
        %1105 = vmatpush.bf16.msra.mxu0 %v1088
        %1106 = vmatpush.bf16.msra.mxu0 %v1087
        %1107 = vmatpush.bf16.msra.mxu0 %v1086
        %1108 = vmatpush.bf16.msra.mxu0 %v1085
        %1109 = vmatmul.bf16.gmra.mxu0 %v1021
        %v1110 = vpop.f32.mrf.mxu0
        %v1111 = vadd.f32 0.0, %v1110
        %v1112 = vpop.f32.mrf.mxu0
        %v1113 = vadd.f32 0.0, %v1112
        %1114 = vmatmul.bf16.gmra.mxu0 %v1030
        %v1115 = vpop.f32.mrf.mxu0
        %v1116 = vadd.f32 0.0, %v1115
        %v1117 = vpop.f32.mrf.mxu0
        %v1118 = vadd.f32 0.0, %v1117
        %1119 = vmatmul.bf16.gmra.mxu0 %v1039
        %v1120 = vpop.f32.mrf.mxu0
        %v1121 = vadd.f32 0.0, %v1120
        %v1122 = vpop.f32.mrf.mxu0
        %v1123 = vadd.f32 0.0, %v1122
        %1124 = vmatmul.bf16.gmra.mxu0 %v1048
        %v1125 = vpop.f32.mrf.mxu0
        %v1126 = vadd.f32 0.0, %v1125
        %v1127 = vpop.f32.mrf.mxu0
        %v1128 = vadd.f32 0.0, %v1127
        %1129 = vdwg.mxu0
        %v1130 = vadd.f32 %v956, %v1111
        %v1131 = vadd.f32 %v957, %v1113
        %v1132 = vadd.f32 %v958, %v1116
        %v1133 = vadd.f32 %v959, %v1118
        %v1134 = vadd.f32 %v960, %v1121
        %v1135 = vadd.f32 %v961, %v1123
        %v1136 = vadd.f32 %v962, %v1126
        %v1137 = vadd.f32 %v963, %v1128
        %1138 = vst [vmem:[#allocation2] sm:$0xff] %v1130
        %1139 = vst [vmem:[#allocation2 + $0x8] sm:$0xff] %v1131
        %1140 = vst [vmem:[#allocation2 + $0x10] sm:$0xff] %v1132
        %1141 = vst [vmem:[#allocation2 + $0x18] sm:$0xff] %v1133
        %1142 = vst [vmem:[#allocation2 + $0x20] sm:$0xff] %v1134
        %1143 = vst [vmem:[#allocation2 + $0x28] sm:$0xff] %v1135
        %1144 = vst [vmem:[#allocation2 + $0x30] sm:$0xff] %v1136
        %1145 = vst [vmem:[#allocation2 + $0x38] sm:$0xff] %v1137
        %v1146 = vld [vmem:[#allocation3] sm:$0xc]
        %v1147 = vld [vmem:[#allocation3 + $0x4] sm:$0xf]
        %v1148 = vld [vmem:[#allocation3 + $0x8] sm:$0xf]
        %v1149 = vld [vmem:[#allocation3 + $0xc] sm:$0xf]
        %v1150 = vld [vmem:[#allocation3 + $0x10] sm:$0xf]
        %v1151 = vld [vmem:[#allocation3 + $0x14] sm:$0xf]
        %v1152 = vld [vmem:[#allocation3 + $0x18] sm:$0xf]
        %v1153 = vld [vmem:[#allocation3 + $0x1c] sm:$0xf]
        %v1154 = vld [vmem:[#allocation3 + $0x20] sm:$0x3]
        %v1155 = vld [vmem:[#allocation2] sm:$0xff]
        %v1156 = vld [vmem:[#allocation2 + $0x8] sm:$0xff]
        %v1157 = vld [vmem:[#allocation2 + $0x10] sm:$0xff]
        %v1158 = vld [vmem:[#allocation2 + $0x18] sm:$0xff]
        %v1159 = vld [vmem:[#allocation2 + $0x20] sm:$0xff]
        %v1160 = vld [vmem:[#allocation2 + $0x28] sm:$0xff]
        %v1161 = vld [vmem:[#allocation2 + $0x30] sm:$0xff]
        %v1162 = vld [vmem:[#allocation2 + $0x38] sm:$0xff]
        %s1163 = scalar_lea.vmem [#allocation4], 256
        %v1164 = vld [vmem:[%s1163] sm:$0xf]
        %v1165 = vld [vmem:[%s1163 + $0x4] sm:$0xf]
        %v1166 = vld [vmem:[%s1163 + $0x8] sm:$0xf]
        %v1167 = vld [vmem:[%s1163 + $0xc] sm:$0xf]
        %v1168 = vld [vmem:[%s1163 + $0x10] sm:$0xf]
        %v1169 = vld [vmem:[%s1163 + $0x14] sm:$0xf]
        %v1170 = vld [vmem:[%s1163 + $0x18] sm:$0xf]
        %v1171 = vld [vmem:[%s1163 + $0x1c] sm:$0xf]
        %v1172 = vld [vmem:[%s1163 + $0x20] sm:$0xf]
        %v1173 = vld [vmem:[%s1163 + $0x24] sm:$0xf]
        %v1174 = vld [vmem:[%s1163 + $0x28] sm:$0xf]
        %v1175 = vld [vmem:[%s1163 + $0x2c] sm:$0xf]
        %v1176 = vld [vmem:[%s1163 + $0x30] sm:$0xf]
        %v1177 = vld [vmem:[%s1163 + $0x34] sm:$0xf]
        %v1178 = vld [vmem:[%s1163 + $0x38] sm:$0xf]
        %v1179 = vld [vmem:[%s1163 + $0x3c] sm:$0xf]
        %v1189 = vunpack.c.l.b16 %v1146
        %v1190 = vunpack.c.l.b16 %v1147
        %v1191 = vunpack.c.l.b16 %v1148
        %v1192 = vunpack.c.l.b16 %v1149
        %v1193 = vunpack.c.l.b16 %v1150
        %v1194 = vunpack.c.l.b16 %v1151
        %v1195 = vunpack.c.l.b16 %v1152
        %v1196 = vunpack.c.l.b16 %v1153
        %v1197 = vunpack.c.l.b16 %v1154
        %v1198 = vpack.c.b16 %v1190, %v1189
        %v1199 = vpack.c.b16 %v1192, %v1191
        %v1200 = vpack.c.b16 %v1194, %v1193
        %v1201 = vpack.c.b16 %v1196, %v1195
        %v1202 = vpack.c.b16 %v1197, %v1197
        %vm1203 = vcmask 1045504
        %v1204 = vrot.slane %v1198, 2
        %v1205 = vrot.slane %v1199, 2
        %v1206 = vsel %vm1203, %v1204, %v1205
        %v1207 = vrot.slane %v1200, 2
        %v1208 = vsel %vm1203, %v1205, %v1207
        %v1209 = vrot.slane %v1201, 2
        %v1210 = vsel %vm1203, %v1207, %v1209
        %v1211 = vrot.slane %v1202, 2
        %v1212 = vsel %vm1203, %v1209, %v1211
        %v1233 = vunpack.c.l.b16 %v1164
        %v1234 = vunpack.c.l.b16 %v1165
        %v1235 = vunpack.c.l.b16 %v1166
        %v1236 = vunpack.c.l.b16 %v1167
        %v1237 = vunpack.c.l.b16 %v1168
        %v1238 = vunpack.c.l.b16 %v1169
        %v1239 = vunpack.c.l.b16 %v1170
        %v1240 = vunpack.c.l.b16 %v1171
        %v1241 = vunpack.c.l.b16 %v1172
        %v1242 = vunpack.c.l.b16 %v1173
        %v1243 = vunpack.c.l.b16 %v1174
        %v1244 = vunpack.c.l.b16 %v1175
        %v1245 = vunpack.c.l.b16 %v1176
        %v1246 = vunpack.c.l.b16 %v1177
        %v1247 = vunpack.c.l.b16 %v1178
        %v1248 = vunpack.c.l.b16 %v1179
        %v1249 = vpack.c.b16 %v1234, %v1233
        %v1250 = vpack.c.b16 %v1236, %v1235
        %v1251 = vpack.c.b16 %v1238, %v1237
        %v1252 = vpack.c.b16 %v1240, %v1239
        %v1253 = vpack.c.b16 %v1242, %v1241
        %v1254 = vpack.c.b16 %v1244, %v1243
        %v1255 = vpack.c.b16 %v1246, %v1245
        %v1256 = vpack.c.b16 %v1248, %v1247
        %1265 = vmatpush.bf16.msra.mxu0 %v1256
        %1266 = vmatpush.bf16.msra.mxu0 %v1255
        %1267 = vmatpush.bf16.msra.mxu0 %v1254
        %1268 = vmatpush.bf16.msra.mxu0 %v1253
        %1269 = vmatpush.bf16.msra.mxu0 %v1252
        %1270 = vmatpush.bf16.msra.mxu0 %v1251
        %1271 = vmatpush.bf16.msra.mxu0 %v1250
        %1272 = vmatpush.bf16.msra.mxu0 %v1249
        %1273 = vmatmul.bf16.gmra.mxu0 %v1206
        %v1274 = vpop.f32.mrf.mxu0
        %v1275 = vadd.f32 0.0, %v1274
        %v1276 = vpop.f32.mrf.mxu0
        %v1277 = vadd.f32 0.0, %v1276
        %1278 = vmatmul.bf16.gmra.mxu0 %v1208
        %v1279 = vpop.f32.mrf.mxu0
        %v1280 = vadd.f32 0.0, %v1279
        %v1281 = vpop.f32.mrf.mxu0
        %v1282 = vadd.f32 0.0, %v1281
        %1283 = vmatmul.bf16.gmra.mxu0 %v1210
        %v1284 = vpop.f32.mrf.mxu0
        %v1285 = vadd.f32 0.0, %v1284
        %v1286 = vpop.f32.mrf.mxu0
        %v1287 = vadd.f32 0.0, %v1286
        %1288 = vmatmul.bf16.gmra.mxu0 %v1212
        %v1289 = vpop.f32.mrf.mxu0
        %v1290 = vadd.f32 0.0, %v1289
        %v1291 = vpop.f32.mrf.mxu0
        %v1292 = vadd.f32 0.0, %v1291
        %1293 = vdwg.mxu0
        %v1294 = vadd.f32 %v1155, %v1275
        %v1295 = vadd.f32 %v1156, %v1277
        %v1296 = vadd.f32 %v1157, %v1280
        %v1297 = vadd.f32 %v1158, %v1282
        %v1298 = vadd.f32 %v1159, %v1285
        %v1299 = vadd.f32 %v1160, %v1287
        %v1300 = vadd.f32 %v1161, %v1290
        %v1301 = vadd.f32 %v1162, %v1292
        %1302 = vst [vmem:[#allocation2] sm:$0xff] %v1294
        %1303 = vst [vmem:[#allocation2 + $0x8] sm:$0xff] %v1295
        %1304 = vst [vmem:[#allocation2 + $0x10] sm:$0xff] %v1296
        %1305 = vst [vmem:[#allocation2 + $0x18] sm:$0xff] %v1297
        %1306 = vst [vmem:[#allocation2 + $0x20] sm:$0xff] %v1298
        %1307 = vst [vmem:[#allocation2 + $0x28] sm:$0xff] %v1299
        %1308 = vst [vmem:[#allocation2 + $0x30] sm:$0xff] %v1300
        %1309 = vst [vmem:[#allocation2 + $0x38] sm:$0xff] %v1301
        %v1310 = vld [vmem:[#allocation3] sm:$0xc]
        %v1311 = vld [vmem:[#allocation3 + $0x4] sm:$0xf]
        %v1312 = vld [vmem:[#allocation3 + $0x8] sm:$0xf]
        %v1313 = vld [vmem:[#allocation3 + $0xc] sm:$0xf]
        %v1314 = vld [vmem:[#allocation3 + $0x10] sm:$0xf]
        %v1315 = vld [vmem:[#allocation3 + $0x14] sm:$0xf]
        %v1316 = vld [vmem:[#allocation3 + $0x18] sm:$0xf]
        %v1317 = vld [vmem:[#allocation3 + $0x1c] sm:$0xf]
        %v1318 = vld [vmem:[#allocation3 + $0x20] sm:$0x7]
        %v1319 = vld [vmem:[#allocation2] sm:$0xff]
        %v1320 = vld [vmem:[#allocation2 + $0x8] sm:$0xff]
        %v1321 = vld [vmem:[#allocation2 + $0x10] sm:$0xff]
        %v1322 = vld [vmem:[#allocation2 + $0x18] sm:$0xff]
        %v1323 = vld [vmem:[#allocation2 + $0x20] sm:$0xff]
        %v1324 = vld [vmem:[#allocation2 + $0x28] sm:$0xff]
        %v1325 = vld [vmem:[#allocation2 + $0x30] sm:$0xff]
        %v1326 = vld [vmem:[#allocation2 + $0x38] sm:$0xff]
        %s1327 = scalar_lea.vmem [#allocation4], 320
        %v1328 = vld [vmem:[%s1327] sm:$0xf]
        %v1329 = vld [vmem:[%s1327 + $0x4] sm:$0xf]
        %v1330 = vld [vmem:[%s1327 + $0x8] sm:$0xf]
        %v1331 = vld [vmem:[%s1327 + $0xc] sm:$0xf]
        %v1332 = vld [vmem:[%s1327 + $0x10] sm:$0xf]
        %v1333 = vld [vmem:[%s1327 + $0x14] sm:$0xf]
        %v1334 = vld [vmem:[%s1327 + $0x18] sm:$0xf]
        %v1335 = vld [vmem:[%s1327 + $0x1c] sm:$0xf]
        %v1336 = vld [vmem:[%s1327 + $0x20] sm:$0xf]
        %v1337 = vld [vmem:[%s1327 + $0x24] sm:$0xf]
        %v1338 = vld [vmem:[%s1327 + $0x28] sm:$0xf]
        %v1339 = vld [vmem:[%s1327 + $0x2c] sm:$0xf]
        %v1340 = vld [vmem:[%s1327 + $0x30] sm:$0xf]
        %v1341 = vld [vmem:[%s1327 + $0x34] sm:$0xf]
        %v1342 = vld [vmem:[%s1327 + $0x38] sm:$0xf]
        %v1343 = vld [vmem:[%s1327 + $0x3c] sm:$0xf]
        %v1353 = vunpack.c.l.b16 %v1310
        %v1354 = vunpack.c.l.b16 %v1311
        %v1355 = vunpack.c.l.b16 %v1312
        %v1356 = vunpack.c.l.b16 %v1313
        %v1357 = vunpack.c.l.b16 %v1314
        %v1358 = vunpack.c.l.b16 %v1315
        %v1359 = vunpack.c.l.b16 %v1316
        %v1360 = vunpack.c.l.b16 %v1317
        %v1361 = vunpack.c.l.b16 %v1318
        %v1362 = vpack.c.b16 %v1354, %v1353
        %v1363 = vpack.c.b16 %v1356, %v1355
        %v1364 = vpack.c.b16 %v1358, %v1357
        %v1365 = vpack.c.b16 %v1360, %v1359
        %v1366 = vpack.c.b16 %v1361, %v1361
        %vm1367 = vsmask.f32 5376
        %v1369 = vshrl.u32 %v1362, 16
        %v1371 = vrot.slane %v1369, 2
        %v1372 = vshll.u32 %v1362, 16
        %v1374 = vrot.slane %v1372, 3
        %v1375 = vor.u32 %v1371, %v1374
        %v1377 = vshrl.u32 %v1363, 16
        %v1379 = vrot.slane %v1377, 2
        %v1380 = vshll.u32 %v1363, 16
        %v1382 = vrot.slane %v1380, 3
        %v1383 = vor.u32 %v1379, %v1382
        %v1384 = vsel %vm1367, %v1375, %v1383
        %v1386 = vshrl.u32 %v1364, 16
        %v1388 = vrot.slane %v1386, 2
        %v1389 = vshll.u32 %v1364, 16
        %v1391 = vrot.slane %v1389, 3
        %v1392 = vor.u32 %v1388, %v1391
        %v1393 = vsel %vm1367, %v1383, %v1392
        %v1395 = vshrl.u32 %v1365, 16
        %v1397 = vrot.slane %v1395, 2
        %v1398 = vshll.u32 %v1365, 16
        %v1400 = vrot.slane %v1398, 3
        %v1401 = vor.u32 %v1397, %v1400
        %v1402 = vsel %vm1367, %v1392, %v1401
        %v1404 = vshrl.u32 %v1366, 16
        %v1406 = vrot.slane %v1404, 2
        %v1407 = vshll.u32 %v1366, 16
        %v1409 = vrot.slane %v1407, 3
        %v1410 = vor.u32 %v1406, %v1409
        %v1411 = vsel %vm1367, %v1401, %v1410
        %v1432 = vunpack.c.l.b16 %v1328
        %v1433 = vunpack.c.l.b16 %v1329
        %v1434 = vunpack.c.l.b16 %v1330
        %v1435 = vunpack.c.l.b16 %v1331
        %v1436 = vunpack.c.l.b16 %v1332
        %v1437 = vunpack.c.l.b16 %v1333
        %v1438 = vunpack.c.l.b16 %v1334
        %v1439 = vunpack.c.l.b16 %v1335
        %v1440 = vunpack.c.l.b16 %v1336
        %v1441 = vunpack.c.l.b16 %v1337
        %v1442 = vunpack.c.l.b16 %v1338
        %v1443 = vunpack.c.l.b16 %v1339
        %v1444 = vunpack.c.l.b16 %v1340
        %v1445 = vunpack.c.l.b16 %v1341
        %v1446 = vunpack.c.l.b16 %v1342
        %v1447 = vunpack.c.l.b16 %v1343
        %v1448 = vpack.c.b16 %v1433, %v1432
        %v1449 = vpack.c.b16 %v1435, %v1434
        %v1450 = vpack.c.b16 %v1437, %v1436
        %v1451 = vpack.c.b16 %v1439, %v1438
        %v1452 = vpack.c.b16 %v1441, %v1440
        %v1453 = vpack.c.b16 %v1443, %v1442
        %v1454 = vpack.c.b16 %v1445, %v1444
        %v1455 = vpack.c.b16 %v1447, %v1446
        %1464 = vmatpush.bf16.msra.mxu0 %v1455
        %1465 = vmatpush.bf16.msra.mxu0 %v1454
        %1466 = vmatpush.bf16.msra.mxu0 %v1453
        %1467 = vmatpush.bf16.msra.mxu0 %v1452
        %1468 = vmatpush.bf16.msra.mxu0 %v1451
        %1469 = vmatpush.bf16.msra.mxu0 %v1450
        %1470 = vmatpush.bf16.msra.mxu0 %v1449
        %1471 = vmatpush.bf16.msra.mxu0 %v1448
        %1472 = vmatmul.bf16.gmra.mxu0 %v1384
        %v1473 = vpop.f32.mrf.mxu0
        %v1474 = vadd.f32 0.0, %v1473
        %v1475 = vpop.f32.mrf.mxu0
        %v1476 = vadd.f32 0.0, %v1475
        %1477 = vmatmul.bf16.gmra.mxu0 %v1393
        %v1478 = vpop.f32.mrf.mxu0
        %v1479 = vadd.f32 0.0, %v1478
        %v1480 = vpop.f32.mrf.mxu0
        %v1481 = vadd.f32 0.0, %v1480
        %1482 = vmatmul.bf16.gmra.mxu0 %v1402
        %v1483 = vpop.f32.mrf.mxu0
        %v1484 = vadd.f32 0.0, %v1483
        %v1485 = vpop.f32.mrf.mxu0
        %v1486 = vadd.f32 0.0, %v1485
        %1487 = vmatmul.bf16.gmra.mxu0 %v1411
        %v1488 = vpop.f32.mrf.mxu0
        %v1489 = vadd.f32 0.0, %v1488
        %v1490 = vpop.f32.mrf.mxu0
        %v1491 = vadd.f32 0.0, %v1490
        %1492 = vdwg.mxu0
        %v1493 = vadd.f32 %v1319, %v1474
        %v1494 = vadd.f32 %v1320, %v1476
        %v1495 = vadd.f32 %v1321, %v1479
        %v1496 = vadd.f32 %v1322, %v1481
        %v1497 = vadd.f32 %v1323, %v1484
        %v1498 = vadd.f32 %v1324, %v1486
        %v1499 = vadd.f32 %v1325, %v1489
        %v1500 = vadd.f32 %v1326, %v1491
        %1501 = vst [vmem:[#allocation2] sm:$0xff] %v1493
        %1502 = vst [vmem:[#allocation2 + $0x8] sm:$0xff] %v1494
        %1503 = vst [vmem:[#allocation2 + $0x10] sm:$0xff] %v1495
        %1504 = vst [vmem:[#allocation2 + $0x18] sm:$0xff] %v1496
        %1505 = vst [vmem:[#allocation2 + $0x20] sm:$0xff] %v1497
        %1506 = vst [vmem:[#allocation2 + $0x28] sm:$0xff] %v1498
        %1507 = vst [vmem:[#allocation2 + $0x30] sm:$0xff] %v1499
        %1508 = vst [vmem:[#allocation2 + $0x38] sm:$0xff] %v1500
        %v1509 = vld [vmem:[#allocation3] sm:$0x8]
        %v1510 = vld [vmem:[#allocation3 + $0x4] sm:$0xf]
        %v1511 = vld [vmem:[#allocation3 + $0x8] sm:$0xf]
        %v1512 = vld [vmem:[#allocation3 + $0xc] sm:$0xf]
        %v1513 = vld [vmem:[#allocation3 + $0x10] sm:$0xf]
        %v1514 = vld [vmem:[#allocation3 + $0x14] sm:$0xf]
        %v1515 = vld [vmem:[#allocation3 + $0x18] sm:$0xf]
        %v1516 = vld [vmem:[#allocation3 + $0x1c] sm:$0xf]
        %v1517 = vld [vmem:[#allocation3 + $0x20] sm:$0x7]
        %v1518 = vld [vmem:[#allocation2] sm:$0xff]
        %v1519 = vld [vmem:[#allocation2 + $0x8] sm:$0xff]
        %v1520 = vld [vmem:[#allocation2 + $0x10] sm:$0xff]
        %v1521 = vld [vmem:[#allocation2 + $0x18] sm:$0xff]
        %v1522 = vld [vmem:[#allocation2 + $0x20] sm:$0xff]
        %v1523 = vld [vmem:[#allocation2 + $0x28] sm:$0xff]
        %v1524 = vld [vmem:[#allocation2 + $0x30] sm:$0xff]
        %v1525 = vld [vmem:[#allocation2 + $0x38] sm:$0xff]
        %s1526 = scalar_lea.vmem [#allocation4], 384
        %v1527 = vld [vmem:[%s1526] sm:$0xf]
        %v1528 = vld [vmem:[%s1526 + $0x4] sm:$0xf]
        %v1529 = vld [vmem:[%s1526 + $0x8] sm:$0xf]
        %v1530 = vld [vmem:[%s1526 + $0xc] sm:$0xf]
        %v1531 = vld [vmem:[%s1526 + $0x10] sm:$0xf]
        %v1532 = vld [vmem:[%s1526 + $0x14] sm:$0xf]
        %v1533 = vld [vmem:[%s1526 + $0x18] sm:$0xf]
        %v1534 = vld [vmem:[%s1526 + $0x1c] sm:$0xf]
        %v1535 = vld [vmem:[%s1526 + $0x20] sm:$0xf]
        %v1536 = vld [vmem:[%s1526 + $0x24] sm:$0xf]
        %v1537 = vld [vmem:[%s1526 + $0x28] sm:$0xf]
        %v1538 = vld [vmem:[%s1526 + $0x2c] sm:$0xf]
        %v1539 = vld [vmem:[%s1526 + $0x30] sm:$0xf]
        %v1540 = vld [vmem:[%s1526 + $0x34] sm:$0xf]
        %v1541 = vld [vmem:[%s1526 + $0x38] sm:$0xf]
        %v1542 = vld [vmem:[%s1526 + $0x3c] sm:$0xf]
        %v1552 = vunpack.c.l.b16 %v1509
        %v1553 = vunpack.c.l.b16 %v1510
        %v1554 = vunpack.c.l.b16 %v1511
        %v1555 = vunpack.c.l.b16 %v1512
        %v1556 = vunpack.c.l.b16 %v1513
        %v1557 = vunpack.c.l.b16 %v1514
        %v1558 = vunpack.c.l.b16 %v1515
        %v1559 = vunpack.c.l.b16 %v1516
        %v1560 = vunpack.c.l.b16 %v1517
        %v1561 = vpack.c.b16 %v1553, %v1552
        %v1562 = vpack.c.b16 %v1555, %v1554
        %v1563 = vpack.c.b16 %v1557, %v1556
        %v1564 = vpack.c.b16 %v1559, %v1558
        %v1565 = vpack.c.b16 %v1560, %v1560
        %vm1566 = vcmask 1044480
        %v1567 = vrot.slane %v1561, 3
        %v1568 = vrot.slane %v1562, 3
        %v1569 = vsel %vm1566, %v1567, %v1568
        %v1570 = vrot.slane %v1563, 3
        %v1571 = vsel %vm1566, %v1568, %v1570
        %v1572 = vrot.slane %v1564, 3
        %v1573 = vsel %vm1566, %v1570, %v1572
        %v1574 = vrot.slane %v1565, 3
        %v1575 = vsel %vm1566, %v1572, %v1574
        %v1596 = vunpack.c.l.b16 %v1527
        %v1597 = vunpack.c.l.b16 %v1528
        %v1598 = vunpack.c.l.b16 %v1529
        %v1599 = vunpack.c.l.b16 %v1530
        %v1600 = vunpack.c.l.b16 %v1531
        %v1601 = vunpack.c.l.b16 %v1532
        %v1602 = vunpack.c.l.b16 %v1533
        %v1603 = vunpack.c.l.b16 %v1534
        %v1604 = vunpack.c.l.b16 %v1535
        %v1605 = vunpack.c.l.b16 %v1536
        %v1606 = vunpack.c.l.b16 %v1537
        %v1607 = vunpack.c.l.b16 %v1538
        %v1608 = vunpack.c.l.b16 %v1539
        %v1609 = vunpack.c.l.b16 %v1540
        %v1610 = vunpack.c.l.b16 %v1541
        %v1611 = vunpack.c.l.b16 %v1542
        %v1612 = vpack.c.b16 %v1597, %v1596
        %v1613 = vpack.c.b16 %v1599, %v1598
        %v1614 = vpack.c.b16 %v1601, %v1600
        %v1615 = vpack.c.b16 %v1603, %v1602
        %v1616 = vpack.c.b16 %v1605, %v1604
        %v1617 = vpack.c.b16 %v1607, %v1606
        %v1618 = vpack.c.b16 %v1609, %v1608
        %v1619 = vpack.c.b16 %v1611, %v1610
        %1628 = vmatpush.bf16.msra.mxu0 %v1619
        %1629 = vmatpush.bf16.msra.mxu0 %v1618
        %1630 = vmatpush.bf16.msra.mxu0 %v1617
        %1631 = vmatpush.bf16.msra.mxu0 %v1616
        %1632 = vmatpush.bf16.msra.mxu0 %v1615
        %1633 = vmatpush.bf16.msra.mxu0 %v1614
        %1634 = vmatpush.bf16.msra.mxu0 %v1613
        %1635 = vmatpush.bf16.msra.mxu0 %v1612
        %1636 = vmatmul.bf16.gmra.mxu0 %v1569
        %v1637 = vpop.f32.mrf.mxu0
        %v1638 = vadd.f32 0.0, %v1637
        %v1639 = vpop.f32.mrf.mxu0
        %v1640 = vadd.f32 0.0, %v1639
        %1641 = vmatmul.bf16.gmra.mxu0 %v1571
        %v1642 = vpop.f32.mrf.mxu0
        %v1643 = vadd.f32 0.0, %v1642
        %v1644 = vpop.f32.mrf.mxu0
        %v1645 = vadd.f32 0.0, %v1644
        %1646 = vmatmul.bf16.gmra.mxu0 %v1573
        %v1647 = vpop.f32.mrf.mxu0
        %v1648 = vadd.f32 0.0, %v1647
        %v1649 = vpop.f32.mrf.mxu0
        %v1650 = vadd.f32 0.0, %v1649
        %1651 = vmatmul.bf16.gmra.mxu0 %v1575
        %v1652 = vpop.f32.mrf.mxu0
        %v1653 = vadd.f32 0.0, %v1652
        %v1654 = vpop.f32.mrf.mxu0
        %v1655 = vadd.f32 0.0, %v1654
        %1656 = vdwg.mxu0
        %v1657 = vadd.f32 %v1518, %v1638
        %v1658 = vadd.f32 %v1519, %v1640
        %v1659 = vadd.f32 %v1520, %v1643
        %v1660 = vadd.f32 %v1521, %v1645
        %v1661 = vadd.f32 %v1522, %v1648
        %v1662 = vadd.f32 %v1523, %v1650
        %v1663 = vadd.f32 %v1524, %v1653
        %v1664 = vadd.f32 %v1525, %v1655
        %1665 = vst [vmem:[#allocation2] sm:$0xff] %v1657
        %1666 = vst [vmem:[#allocation2 + $0x8] sm:$0xff] %v1658
        %1667 = vst [vmem:[#allocation2 + $0x10] sm:$0xff] %v1659
        %1668 = vst [vmem:[#allocation2 + $0x18] sm:$0xff] %v1660
        %1669 = vst [vmem:[#allocation2 + $0x20] sm:$0xff] %v1661
        %1670 = vst [vmem:[#allocation2 + $0x28] sm:$0xff] %v1662
        %1671 = vst [vmem:[#allocation2 + $0x30] sm:$0xff] %v1663
        %1672 = vst [vmem:[#allocation2 + $0x38] sm:$0xff] %v1664
        %v1673 = vld [vmem:[#allocation3] sm:$0x8]
        %v1674 = vld [vmem:[#allocation3 + $0x4] sm:$0xf]
        %v1675 = vld [vmem:[#allocation3 + $0x8] sm:$0xf]
        %v1676 = vld [vmem:[#allocation3 + $0xc] sm:$0xf]
        %v1677 = vld [vmem:[#allocation3 + $0x10] sm:$0xf]
        %v1678 = vld [vmem:[#allocation3 + $0x14] sm:$0xf]
        %v1679 = vld [vmem:[#allocation3 + $0x18] sm:$0xf]
        %v1680 = vld [vmem:[#allocation3 + $0x1c] sm:$0xf]
        %v1681 = vld [vmem:[#allocation3 + $0x20] sm:$0xf]
        %v1682 = vld [vmem:[#allocation2] sm:$0xff]
        %v1683 = vld [vmem:[#allocation2 + $0x8] sm:$0xff]
        %v1684 = vld [vmem:[#allocation2 + $0x10] sm:$0xff]
        %v1685 = vld [vmem:[#allocation2 + $0x18] sm:$0xff]
        %v1686 = vld [vmem:[#allocation2 + $0x20] sm:$0xff]
        %v1687 = vld [vmem:[#allocation2 + $0x28] sm:$0xff]
        %v1688 = vld [vmem:[#allocation2 + $0x30] sm:$0xff]
        %v1689 = vld [vmem:[#allocation2 + $0x38] sm:$0xff]
        %s1690 = scalar_lea.vmem [#allocation4], 448
        %v1691 = vld [vmem:[%s1690] sm:$0xf]
        %v1692 = vld [vmem:[%s1690 + $0x4] sm:$0xf]
        %v1693 = vld [vmem:[%s1690 + $0x8] sm:$0xf]
        %v1694 = vld [vmem:[%s1690 + $0xc] sm:$0xf]
        %v1695 = vld [vmem:[%s1690 + $0x10] sm:$0xf]
        %v1696 = vld [vmem:[%s1690 + $0x14] sm:$0xf]
        %v1697 = vld [vmem:[%s1690 + $0x18] sm:$0xf]
        %v1698 = vld [vmem:[%s1690 + $0x1c] sm:$0xf]
        %v1699 = vld [vmem:[%s1690 + $0x20] sm:$0xf]
        %v1700 = vld [vmem:[%s1690 + $0x24] sm:$0xf]
        %v1701 = vld [vmem:[%s1690 + $0x28] sm:$0xf]
        %v1702 = vld [vmem:[%s1690 + $0x2c] sm:$0xf]
        %v1703 = vld [vmem:[%s1690 + $0x30] sm:$0xf]
        %v1704 = vld [vmem:[%s1690 + $0x34] sm:$0xf]
        %v1705 = vld [vmem:[%s1690 + $0x38] sm:$0xf]
        %v1706 = vld [vmem:[%s1690 + $0x3c] sm:$0xf]
        %v1716 = vunpack.c.l.b16 %v1673
        %v1717 = vunpack.c.l.b16 %v1674
        %v1718 = vunpack.c.l.b16 %v1675
        %v1719 = vunpack.c.l.b16 %v1676
        %v1720 = vunpack.c.l.b16 %v1677
        %v1721 = vunpack.c.l.b16 %v1678
        %v1722 = vunpack.c.l.b16 %v1679
        %v1723 = vunpack.c.l.b16 %v1680
        %v1724 = vunpack.c.l.b16 %v1681
        %v1725 = vpack.c.b16 %v1717, %v1716
        %v1726 = vpack.c.b16 %v1719, %v1718
        %v1727 = vpack.c.b16 %v1721, %v1720
        %v1728 = vpack.c.b16 %v1723, %v1722
        %v1729 = vpack.c.b16 %v1724, %v1724
        %vm1730 = vsmask.f32 4352
        %v1732 = vshrl.u32 %v1725, 16
        %v1734 = vrot.slane %v1732, 3
        %v1735 = vshll.u32 %v1725, 16
        %v1737 = vrot.slane %v1735, 4
        %v1738 = vor.u32 %v1734, %v1737
        %v1740 = vshrl.u32 %v1726, 16
        %v1742 = vrot.slane %v1740, 3
        %v1743 = vshll.u32 %v1726, 16
        %v1745 = vrot.slane %v1743, 4
        %v1746 = vor.u32 %v1742, %v1745
        %v1747 = vsel %vm1730, %v1738, %v1746
        %v1749 = vshrl.u32 %v1727, 16
        %v1751 = vrot.slane %v1749, 3
        %v1752 = vshll.u32 %v1727, 16
        %v1754 = vrot.slane %v1752, 4
        %v1755 = vor.u32 %v1751, %v1754
        %v1756 = vsel %vm1730, %v1746, %v1755
        %v1758 = vshrl.u32 %v1728, 16
        %v1760 = vrot.slane %v1758, 3
        %v1761 = vshll.u32 %v1728, 16
        %v1763 = vrot.slane %v1761, 4
        %v1764 = vor.u32 %v1760, %v1763
        %v1765 = vsel %vm1730, %v1755, %v1764
        %v1767 = vshrl.u32 %v1729, 16
        %v1769 = vrot.slane %v1767, 3
        %v1770 = vshll.u32 %v1729, 16
        %v1772 = vrot.slane %v1770, 4
        %v1773 = vor.u32 %v1769, %v1772
        %v1774 = vsel %vm1730, %v1764, %v1773
        %v1795 = vunpack.c.l.b16 %v1691
        %v1796 = vunpack.c.l.b16 %v1692
        %v1797 = vunpack.c.l.b16 %v1693
        %v1798 = vunpack.c.l.b16 %v1694
        %v1799 = vunpack.c.l.b16 %v1695
        %v1800 = vunpack.c.l.b16 %v1696
        %v1801 = vunpack.c.l.b16 %v1697
        %v1802 = vunpack.c.l.b16 %v1698
        %v1803 = vunpack.c.l.b16 %v1699
        %v1804 = vunpack.c.l.b16 %v1700
        %v1805 = vunpack.c.l.b16 %v1701
        %v1806 = vunpack.c.l.b16 %v1702
        %v1807 = vunpack.c.l.b16 %v1703
        %v1808 = vunpack.c.l.b16 %v1704
        %v1809 = vunpack.c.l.b16 %v1705
        %v1810 = vunpack.c.l.b16 %v1706
        %v1811 = vpack.c.b16 %v1796, %v1795
        %v1812 = vpack.c.b16 %v1798, %v1797
        %v1813 = vpack.c.b16 %v1800, %v1799
        %v1814 = vpack.c.b16 %v1802, %v1801
        %v1815 = vpack.c.b16 %v1804, %v1803
        %v1816 = vpack.c.b16 %v1806, %v1805
        %v1817 = vpack.c.b16 %v1808, %v1807
        %v1818 = vpack.c.b16 %v1810, %v1809
        %1827 = vmatpush.bf16.msra.mxu0 %v1818
        %1828 = vmatpush.bf16.msra.mxu0 %v1817
        %1829 = vmatpush.bf16.msra.mxu0 %v1816
        %1830 = vmatpush.bf16.msra.mxu0 %v1815
        %1831 = vmatpush.bf16.msra.mxu0 %v1814
        %1832 = vmatpush.bf16.msra.mxu0 %v1813
        %1833 = vmatpush.bf16.msra.mxu0 %v1812
        %1834 = vmatpush.bf16.msra.mxu0 %v1811
        %1835 = vmatmul.bf16.gmra.mxu0 %v1747
        %v1836 = vpop.f32.mrf.mxu0
        %v1837 = vadd.f32 0.0, %v1836
        %v1838 = vpop.f32.mrf.mxu0
        %v1839 = vadd.f32 0.0, %v1838
        %1840 = vmatmul.bf16.gmra.mxu0 %v1756
        %v1841 = vpop.f32.mrf.mxu0
        %v1842 = vadd.f32 0.0, %v1841
        %v1843 = vpop.f32.mrf.mxu0
        %v1844 = vadd.f32 0.0, %v1843
        %1845 = vmatmul.bf16.gmra.mxu0 %v1765
        %v1846 = vpop.f32.mrf.mxu0
        %v1847 = vadd.f32 0.0, %v1846
        %v1848 = vpop.f32.mrf.mxu0
        %v1849 = vadd.f32 0.0, %v1848
        %1850 = vmatmul.bf16.gmra.mxu0 %v1774
        %v1851 = vpop.f32.mrf.mxu0
        %v1852 = vadd.f32 0.0, %v1851
        %v1853 = vpop.f32.mrf.mxu0
        %v1854 = vadd.f32 0.0, %v1853
        %1855 = vdwg.mxu0
        %v1856 = vadd.f32 %v1682, %v1837
        %v1857 = vadd.f32 %v1683, %v1839
        %v1858 = vadd.f32 %v1684, %v1842
        %v1859 = vadd.f32 %v1685, %v1844
        %v1860 = vadd.f32 %v1686, %v1847
        %v1861 = vadd.f32 %v1687, %v1849
        %v1862 = vadd.f32 %v1688, %v1852
        %v1863 = vadd.f32 %v1689, %v1854
        %1864 = vst [vmem:[#allocation2] sm:$0xff] %v1856
        %1865 = vst [vmem:[#allocation2 + $0x8] sm:$0xff] %v1857
        %1866 = vst [vmem:[#allocation2 + $0x10] sm:$0xff] %v1858
        %1867 = vst [vmem:[#allocation2 + $0x18] sm:$0xff] %v1859
        %1868 = vst [vmem:[#allocation2 + $0x20] sm:$0xff] %v1860
        %1869 = vst [vmem:[#allocation2 + $0x28] sm:$0xff] %v1861
        %1870 = vst [vmem:[#allocation2 + $0x30] sm:$0xff] %v1862
        %1871 = vst [vmem:[#allocation2 + $0x38] sm:$0xff] %v1863
        // Predicated region
        $region53: #{beluga_forward.6} parent=39 // pred_check
          %p1872 = pneg %p552
        $region54: #{beluga_forward.6} parent=39 // pred_check_branch
          %1874 = sbr.rel (%p1872) target = $region56
        $region55: #{beluga_forward.6} parent=39 // pred_region
          %v1875 = vld [vmem:[#allocation2] sm:$0xff]
          %v1876 = vld [vmem:[#allocation2 + $0x8] sm:$0xff]
          %v1877 = vld [vmem:[#allocation2 + $0x10] sm:$0xff]
          %v1878 = vld [vmem:[#allocation2 + $0x18] sm:$0xff]
          %v1879 = vld [vmem:[#allocation2 + $0x20] sm:$0xff]
          %v1880 = vld [vmem:[#allocation2 + $0x28] sm:$0xff]
          %v1881 = vld [vmem:[#allocation2 + $0x30] sm:$0xff]
          %v1882 = vld [vmem:[#allocation2 + $0x38] sm:$0xff]
          %v1883 = vld [vmem:[%s398] sm:$0x1]
          %v1885 = vperm.slane %v1883, 0
          %v1887 = vmul.f32 %v1875, %v1885
          %v1888 = vmul.f32 %v1876, %v1885
          %v1889 = vmul.f32 %v1877, %v1885
          %v1890 = vmul.f32 %v1878, %v1885
          %v1891 = vmul.f32 %v1879, %v1885
          %v1892 = vmul.f32 %v1880, %v1885
          %v1893 = vmul.f32 %v1881, %v1885
          %v1894 = vmul.f32 %v1882, %v1885
          %v1895 = vld [vmem:[%s401] sm:$0x1]
          %v1897 = vperm.slane %v1895, 0
          %v1899 = vadd.f32 %v1887, %v1897
          %v1900 = vadd.f32 %v1888, %v1897
          %v1901 = vadd.f32 %v1889, %v1897
          %v1902 = vadd.f32 %v1890, %v1897
          %v1903 = vadd.f32 %v1891, %v1897
          %v1904 = vadd.f32 %v1892, %v1897
          %v1905 = vadd.f32 %v1893, %v1897
          %v1906 = vadd.f32 %v1894, %v1897
          %v1907 = vmax.f32 %v1899, 0.0
          %v1908 = vmax.f32 %v1900, 0.0
          %v1909 = vmax.f32 %v1901, 0.0
          %v1910 = vmax.f32 %v1902, 0.0
          %v1911 = vmax.f32 %v1903, 0.0
          %v1912 = vmax.f32 %v1904, 0.0
          %v1913 = vmax.f32 %v1905, 0.0
          %v1914 = vmax.f32 %v1906, 0.0
          %v1915 = vpack.c.bf16 %v1907, %v1907
          %v1916 = vpack.c.bf16 %v1908, %v1908
          %v1917 = vpack.c.bf16 %v1909, %v1909
          %v1918 = vpack.c.bf16 %v1910, %v1910
          %v1919 = vpack.c.bf16 %v1911, %v1911
          %v1920 = vpack.c.bf16 %v1912, %v1912
          %v1921 = vpack.c.bf16 %v1913, %v1913
          %v1922 = vpack.c.bf16 %v1914, %v1914
          %1923 = vst [vmem:[%s413] sm:$0xf] %v1915
          %1924 = vst [vmem:[%s413 + $0x4] sm:$0xf] %v1916
          %1925 = vst [vmem:[%s413 + $0x8] sm:$0xf] %v1917
          %1926 = vst [vmem:[%s413 + $0xc] sm:$0xf] %v1918
          %1927 = vst [vmem:[%s413 + $0x10] sm:$0xf] %v1919
          %1928 = vst [vmem:[%s413 + $0x14] sm:$0xf] %v1920
          %1929 = vst [vmem:[%s413 + $0x18] sm:$0xf] %v1921
          %1930 = vst [vmem:[%s413 + $0x1c] sm:$0xf] %v1922
        $region56: #{beluga_forward.6} parent=39 // pred_fallthru
          _
        %s1931 = smul.u32 8, %s24
        %p1932 = scmp.lt.s32.totalorder %s23, 1
        %s1933 = scalar_select %p1932, %s23, 1
        %p1934 = scmp.lt.s32.totalorder %s1931, 7
        %s1935 = scalar_select %p1934, %s1931, 7
        %p1936 = scmp.lt.s32.totalorder %s25, 0
        %s1937 = scalar_select %p1936, %s25, 0
        %s1938 = sadd.s32 %s1937, %s1935
        %s1939 = smul.addr %s1933, 8
        %s1940 = sadd.s32 %s1938, %s1939
        %s1941 = smul.addr %s1940, 4
        %s1942 = scalar_lea.vmem %s5, %s1941
        // Predicated region
        $region57: #{beluga_forward.6} parent=39 // pred_check
          %p1943 = pneg %p209
        $region58: #{beluga_forward.6} parent=39 // pred_check_branch
          %1945 = sbr.rel (%p1943) target = $region60
        $region59: #{beluga_forward.6} parent=39 // pred_region
          %s1946 = smul.u32 8, %s24
        $region60: #{beluga_forward.6} parent=39 // pred_fallthru
          _
      $region40: #{beluga_forward.6} parent=5 // pred_fallthru
        _
      %p1947 = scmp.le.s32.totalorder 2, %s12
      // Predicated region
      $region61: #{beluga_forward.6} parent=5 // pred_check
        %p1948 = pneg %p1947
      $region62: #{beluga_forward.6} parent=5 // pred_check_branch
        %1950 = sbr.rel (%p1948) target = $region64
      $region63: #{beluga_forward.6} parent=5 // pred_region
        %s1951 = ssub.s32 %s12, 2
        // Predicated region
        $region65: #{beluga_forward.6} parent=63 // pred_check
          %p1952 = pneg %p215
        $region66: #{beluga_forward.6} parent=63 // pred_check_branch
          %1954 = sbr.rel (%p1952) target = $region68
        $region67: #{beluga_forward.6} parent=63 // pred_region
          %s1955 = smul.u32 8, %s28
          %p1956 = scmp.lt.s32.totalorder %s27, 1
          %s1957 = scalar_select %p1956, %s27, 1
          %p1958 = scmp.lt.s32.totalorder %s1955, 7
          %s1959 = scalar_select %p1958, %s1955, 7
          %p1960 = scmp.lt.s32.totalorder %s29, 0
          %s1961 = scalar_select %p1960, %s29, 0
          %s1962 = sadd.s32 %s1961, %s1959
          %s1963 = smul.addr %s1957, 8
          %s1964 = sadd.s32 %s1962, %s1963
          %s1965 = smul.addr %s1964, 4
          %s1966 = scalar_lea.vmem %s5, %s1965
        $region68: #{beluga_forward.6} parent=63 // pred_fallthru
          _
      $region64: #{beluga_forward.6} parent=5 // pred_fallthru
        _
    $region6: #{beluga_forward.6} parent=1 // loop_footer
      %s16 = sadd.s32 1, %s12
    $region7: #{beluga_forward.6} parent=1 // loop_footer_branch
      %11 = sbr.rel target = $region3
    $region8: #{beluga_forward.6} parent=1 // loop_exit
      _
    %1967 = vsyncpa [#allocation5], 1
    %s1968 = scalar_lea.sflag [#allocation5], 1
    %1969 = vsyncpa %s1968, 1

// kernel: beluga_forward.8
$region0: #{beluga_forward.8}
  #allocation0 [shape = 'u32[]', space=smem, size = 0x4, offset = 0x4, fixed_abs, tag = 'smem constant byte address 0x4 - core index']
  #allocation1 [shape = 'u32[72,128]{1,0:T(1,128)}', space=vmem, size = 0x9000, scoped, tag = 'internal scratch']
  #allocation2 [shape = 'f32[64,128]{1,0:T(8,128)}', space=vmem, size = 0x8000, scoped, tag = 'scratch operand']
  #allocation3 [shape = 'bf16[80,128]{1,0:T(8,128)(2,1)}', space=vmem, size = 0x5000, scoped, tag = 'scratch operand']
  %s0 = inlined_call_operand.vmem [shape: bf16[2,128,128], index: 0, kind: input, shape index: {}, may-alias: {0,1}]
  %s1 = inlined_call_operand.vmem [shape: bf16[2,128,128], index: 1, kind: input, shape index: {}, may-alias: {0,1}]
  %s2 = inlined_call_operand.vmem [shape: bf16[8,128,128], index: 2, kind: input, shape index: {}]
  %s3 = inlined_call_operand.vmem [shape: f32[1,128], index: 3, kind: input, shape index: {}]
  %s4 = inlined_call_operand.vmem [shape: f32[1,128], index: 4, kind: input, shape index: {}]
  %s5 = inlined_call_operand.vmem [shape: bf16[2,64,128], index: 5, kind: output, shape index: {}]
  %s6 = sld [smem:[#allocation0]]
  $region65: #{beluga_forward.8} parent=0
    _
  %s8 = ssub.s32 1, %s6
  %s9 = scalar_select 0, %s8, %s6
  loop: start=0, step=1, limit=4
  $region2: #{beluga_forward.8} parent=0 // loop_pre_header
    _
  $region3: #{beluga_forward.8} parent=0 // loop_header
    %s11 = sphi 0, %s15
    %p12 = scmp.ge.s32.totalorder %s11, 4
    %s18 = sphi 0, %s44
    %s19 = sphi 0, %s40
    %s20 = sphi 0, %s36
    %s21 = sphi 0, %s32
    %s22 = sphi 0, %s18
    %s23 = sphi 0, %s19
    %s24 = sphi 0, %s20
    %s25 = sphi 0, %s21
    %s26 = sphi 0, %s22
    %s27 = sphi 0, %s23
    %s28 = sphi 0, %s24
    %s29 = sphi 0, %s25
    %s51 = sphi 0, %s53
    %s54 = sphi 0, %s51
    %s55 = sphi 0, %s54
    %s71 = sphi 0, %s55
    %s85 = sphi 0, %s87
    %s88 = sphi 0, %s85
    %s89 = sphi 0, %s88
    %s105 = sphi 0, %s89
    %s113 = sphi 0, %s115
    %s116 = sphi 0, %s113
    %s117 = sphi 0, %s116
    %s133 = sphi 0, %s117
    %s139 = sphi 0, %s141
    %s142 = sphi 0, %s139
    %s143 = sphi 0, %s142
    %s159 = sphi 0, %s143
    %s165 = sphi 0, %s167
    %s168 = sphi 0, %s165
    %s169 = sphi 0, %s168
    %s185 = sphi 0, %s169
    %s195 = sphi 0, %s197
    %s198 = sphi 0, %s195
    %s199 = sphi 0, %s198
    %s215 = sphi 0, %s199
  $region4: #{beluga_forward.8} parent=0 // loop_header_branch
    %14 = sbr.rel (%p12) target = $region8
  $region5: #{beluga_forward.8} parent=0 // loop_body
    %s16 = ssub.s32 %s11, 1
    %s17 = ssub.s32 %s11, 2
    %s30 = sadd.s32 1, %s21
    %p31 = scmp.ge.s32.totalorder %s30, 1
    %s32 = scalar_select %p31, 0, %s30
    %s33 = sadd.s32 1, %s20
    %s34 = scalar_select %p31, %s33, %s20
    %p35 = scmp.ge.s32.totalorder %s34, 1
    %s36 = scalar_select %p35, 0, %s34
    %s37 = sadd.s32 1, %s19
    %s38 = scalar_select %p35, %s37, %s19
    %p39 = scmp.ge.s32.totalorder %s38, 1
    %s40 = scalar_select %p39, 0, %s38
    %s41 = sadd.s32 1, %s18
    %s42 = scalar_select %p39, %s41, %s18
    %p43 = scmp.ge.s32.totalorder %s42, 2
    %s44 = scalar_select %p43, 0, %s42
    %s45 = ssub.s32 %s18, %s44
    %s46 = ssub.s32 %s19, %s40
    %s47 = sor.u32 %s45, %s46
    %s48 = ssub.s32 %s21, %s32
    %s49 = sor.u32 %s47, %s48
    %p50 = scmp.eq.s32.totalorder %s49, 0
    %s52 = sadd.s32 %s51, 1
    %s53 = scalar_select %p50, %s51, %s52
    %p56 = pneg %p50
    %p57 = scmp.eq.s32.totalorder %s11, 1
    %p58 = por %p56, %p57
    %p59 = scmp.ne.s32.totalorder %s51, %s54
    %p60 = scmp.eq.s32.totalorder %s11, 0
    %p61 = por %p59, %p60
    %p62 = scmp.ne.s32.totalorder %s51, %s54
    %p63 = scmp.eq.s32.totalorder %s16, 1
    %p64 = por %p62, %p63
    %p65 = scmp.ne.s32.totalorder %s54, %s55
    %p66 = scmp.eq.s32.totalorder %s16, 0
    %p67 = por %p65, %p66
    %p68 = scmp.ne.s32.totalorder %s54, %s55
    %p69 = scmp.eq.s32.totalorder %s17, 1
    %p70 = por %p68, %p69
    %p72 = scmp.ne.s32.totalorder %s55, %s71
    %p73 = scmp.eq.s32.totalorder %s17, 0
    %p74 = por %p72, %p73
    %s75 = sadd.s32 %s19, 1
    %s76 = smul.u32 %s75, 4
    %s77 = sadd.s32 %s40, 1
    %s78 = smul.u32 %s77, 4
    %s79 = ssub.s32 %s18, %s44
    %s80 = ssub.s32 %s76, %s78
    %s81 = sor.u32 %s79, %s80
    %s82 = ssub.s32 %s21, %s32
    %s83 = sor.u32 %s81, %s82
    %p84 = scmp.eq.s32.totalorder %s83, 0
    %s86 = sadd.s32 %s85, 1
    %s87 = scalar_select %p84, %s85, %s86
    %p90 = pneg %p84
    %p91 = scmp.eq.s32.totalorder %s11, 1
    %p92 = por %p90, %p91
    %p93 = scmp.ne.s32.totalorder %s85, %s88
    %p94 = scmp.eq.s32.totalorder %s11, 0
    %p95 = por %p93, %p94
    %p96 = scmp.ne.s32.totalorder %s85, %s88
    %p97 = scmp.eq.s32.totalorder %s16, 1
    %p98 = por %p96, %p97
    %p99 = scmp.ne.s32.totalorder %s88, %s89
    %p100 = scmp.eq.s32.totalorder %s16, 0
    %p101 = por %p99, %p100
    %p102 = scmp.ne.s32.totalorder %s88, %s89
    %p103 = scmp.eq.s32.totalorder %s17, 1
    %p104 = por %p102, %p103
    %p106 = scmp.ne.s32.totalorder %s89, %s105
    %p107 = scmp.eq.s32.totalorder %s17, 0
    %p108 = por %p106, %p107
    %s109 = ssub.s32 %s21, %s32
    %s110 = ssub.s32 %s20, %s36
    %s111 = sor.u32 %s109, %s110
    %p112 = scmp.eq.s32.totalorder %s111, 0
    %s114 = sadd.s32 %s113, 1
    %s115 = scalar_select %p112, %s113, %s114
    %p118 = pneg %p112
    %p119 = scmp.eq.s32.totalorder %s11, 1
    %p120 = por %p118, %p119
    %p121 = scmp.ne.s32.totalorder %s113, %s116
    %p122 = scmp.eq.s32.totalorder %s11, 0
    %p123 = por %p121, %p122
    %p124 = scmp.ne.s32.totalorder %s113, %s116
    %p125 = scmp.eq.s32.totalorder %s16, 1
    %p126 = por %p124, %p125
    %p127 = scmp.ne.s32.totalorder %s116, %s117
    %p128 = scmp.eq.s32.totalorder %s16, 0
    %p129 = por %p127, %p128
    %p130 = scmp.ne.s32.totalorder %s116, %s117
    %p131 = scmp.eq.s32.totalorder %s17, 1
    %p132 = por %p130, %p131
    %p134 = scmp.ne.s32.totalorder %s117, %s133
    %p135 = scmp.eq.s32.totalorder %s17, 0
    %p136 = por %p134, %p135
    %s137 = ssub.s32 %s20, %s36
    %p138 = scmp.eq.s32.totalorder %s137, 0
    %s140 = sadd.s32 %s139, 1
    %s141 = scalar_select %p138, %s139, %s140
    %p144 = pneg %p138
    %p145 = scmp.eq.s32.totalorder %s11, 1
    %p146 = por %p144, %p145
    %p147 = scmp.ne.s32.totalorder %s139, %s142
    %p148 = scmp.eq.s32.totalorder %s11, 0
    %p149 = por %p147, %p148
    %p150 = scmp.ne.s32.totalorder %s139, %s142
    %p151 = scmp.eq.s32.totalorder %s16, 1
    %p152 = por %p150, %p151
    %p153 = scmp.ne.s32.totalorder %s142, %s143
    %p154 = scmp.eq.s32.totalorder %s16, 0
    %p155 = por %p153, %p154
    %p156 = scmp.ne.s32.totalorder %s142, %s143
    %p157 = scmp.eq.s32.totalorder %s17, 1
    %p158 = por %p156, %p157
    %p160 = scmp.ne.s32.totalorder %s143, %s159
    %p161 = scmp.eq.s32.totalorder %s17, 0
    %p162 = por %p160, %p161
    %s163 = ssub.s32 %s20, %s36
    %p164 = scmp.eq.s32.totalorder %s163, 0
    %s166 = sadd.s32 %s165, 1
    %s167 = scalar_select %p164, %s165, %s166
    %p170 = pneg %p164
    %p171 = scmp.eq.s32.totalorder %s11, 1
    %p172 = por %p170, %p171
    %p173 = scmp.ne.s32.totalorder %s165, %s168
    %p174 = scmp.eq.s32.totalorder %s11, 0
    %p175 = por %p173, %p174
    %p176 = scmp.ne.s32.totalorder %s165, %s168
    %p177 = scmp.eq.s32.totalorder %s16, 1
    %p178 = por %p176, %p177
    %p179 = scmp.ne.s32.totalorder %s168, %s169
    %p180 = scmp.eq.s32.totalorder %s16, 0
    %p181 = por %p179, %p180
    %p182 = scmp.ne.s32.totalorder %s168, %s169
    %p183 = scmp.eq.s32.totalorder %s17, 1
    %p184 = por %p182, %p183
    %p186 = scmp.ne.s32.totalorder %s169, %s185
    %p187 = scmp.eq.s32.totalorder %s17, 0
    %p188 = por %p186, %p187
    %s189 = ssub.s32 %s18, %s44
    %s190 = ssub.s32 %s19, %s40
    %s191 = sor.u32 %s189, %s190
    %s192 = ssub.s32 %s20, %s36
    %s193 = sor.u32 %s191, %s192
    %p194 = scmp.eq.s32.totalorder %s193, 0
    %s196 = sadd.s32 %s195, 1
    %s197 = scalar_select %p194, %s195, %s196
    %p200 = pneg %p194
    %p201 = scmp.eq.s32.totalorder %s11, 1
    %p202 = por %p200, %p201
    %p203 = scmp.ne.s32.totalorder %s195, %s198
    %p204 = scmp.eq.s32.totalorder %s11, 0
    %p205 = por %p203, %p204
    %p206 = scmp.ne.s32.totalorder %s195, %s198
    %p207 = scmp.eq.s32.totalorder %s16, 1
    %p208 = por %p206, %p207
    %p209 = scmp.ne.s32.totalorder %s198, %s199
    %p210 = scmp.eq.s32.totalorder %s16, 0
    %p211 = por %p209, %p210
    %p212 = scmp.ne.s32.totalorder %s198, %s199
    %p213 = scmp.eq.s32.totalorder %s17, 1
    %p214 = por %p212, %p213
    %p216 = scmp.ne.s32.totalorder %s199, %s215
    %p217 = scmp.eq.s32.totalorder %s17, 0
    %p218 = por %p216, %p217
    %p219 = scmp.le.s32.totalorder 1, %s11
    %p220 = scmp.lt.s32.totalorder %s11, 3
    %p221 = pnand %p219, %p220
    %p222 = pneg %p221
    // Predicated region
    $region9: #{beluga_forward.8} parent=5 // pred_check
      _
    $region10: #{beluga_forward.8} parent=5 // pred_check_branch
      %224 = sbr.rel (%p221) target = $region12
    $region11: #{beluga_forward.8} parent=5 // pred_region
      %s225 = ssub.s32 %s11, 1
      // Predicated region
      $region13: #{beluga_forward.8} parent=11 // pred_check
        %p226 = pneg %p129
      $region14: #{beluga_forward.8} parent=11 // pred_check_branch
        %228 = sbr.rel (%p226) target = $region16
      $region15: #{beluga_forward.8} parent=11 // pred_region
        %s229 = smul.u32 16, %s25
        %p230 = scmp.lt.s32.totalorder %s229, 15
        %s231 = scalar_select %p230, %s229, 15
        %p232 = scmp.lt.s32.totalorder %s24, 0
        %s233 = scalar_select %p232, %s24, 0
        %s234 = sadd.s32 %s233, %s231
        %s235 = smul.addr %s234, 4
        %s236 = scalar_lea.vmem %s2, %s235
        %s237 = smul.u32 16, %s25
      $region16: #{beluga_forward.8} parent=11 // pred_fallthru
        _
      // Predicated region
      $region17: #{beluga_forward.8} parent=11 // pred_check
        %p238 = pneg %p155
      $region18: #{beluga_forward.8} parent=11 // pred_check_branch
        %240 = sbr.rel (%p238) target = $region20
      $region19: #{beluga_forward.8} parent=11 // pred_region
        %p241 = scmp.lt.s32.totalorder %s24, 0
        %s242 = scalar_select %p241, %s24, 0
        %s243 = scalar_lea.vmem %s3, %s242
      $region20: #{beluga_forward.8} parent=11 // pred_fallthru
        _
      // Predicated region
      $region21: #{beluga_forward.8} parent=11 // pred_check
        %p244 = pneg %p181
      $region22: #{beluga_forward.8} parent=11 // pred_check_branch
        %246 = sbr.rel (%p244) target = $region24
      $region23: #{beluga_forward.8} parent=11 // pred_region
        %p247 = scmp.lt.s32.totalorder %s24, 0
        %s248 = scalar_select %p247, %s24, 0
        %s249 = scalar_lea.vmem %s4, %s248
      $region24: #{beluga_forward.8} parent=11 // pred_fallthru
        _
    $region12: #{beluga_forward.8} parent=5 // pred_fallthru
      _
    %p250 = scmp.lt.s32.totalorder %s11, 2
    // Predicated region
    $region25: #{beluga_forward.8} parent=5 // pred_check
      %p251 = pneg %p250
    $region26: #{beluga_forward.8} parent=5 // pred_check_branch
      %253 = sbr.rel (%p251) target = $region28
    $region27: #{beluga_forward.8} parent=5 // pred_region
      // Predicated region
      $region29: #{beluga_forward.8} parent=27 // pred_check
        %p254 = pneg %p61
      $region30: #{beluga_forward.8} parent=27 // pred_check_branch
        %256 = sbr.rel (%p254) target = $region32
      $region31: #{beluga_forward.8} parent=27 // pred_region
        %s257 = smul.u32 8, %s19
        %p258 = scmp.lt.s32.totalorder %s18, 1
        %s259 = scalar_select %p258, %s18, 1
        %p260 = scmp.lt.s32.totalorder %s257, 15
        %s261 = scalar_select %p260, %s257, 15
        %p262 = scmp.lt.s32.totalorder %s21, 0
        %s263 = scalar_select %p262, %s21, 0
        %s264 = sadd.s32 %s263, %s261
        %s265 = smul.addr %s259, 16
        %s266 = sadd.s32 %s264, %s265
        %s267 = smul.addr %s266, 4
        %s268 = scalar_lea.vmem %s0, %s267
        %s269 = smul.u32 8, %s19
      $region32: #{beluga_forward.8} parent=27 // pred_fallthru
        _
      // Predicated region
      $region33: #{beluga_forward.8} parent=27 // pred_check
        %p270 = pneg %p95
      $region34: #{beluga_forward.8} parent=27 // pred_check_branch
        %272 = sbr.rel (%p270) target = $region36
      $region35: #{beluga_forward.8} parent=27 // pred_region
        %s273 = sadd.s32 %s19, 1
        %s274 = smul.u32 %s273, 4
        %s275 = smul.u32 2, %s274
        %p276 = scmp.lt.s32.totalorder %s18, 1
        %s277 = scalar_select %p276, %s18, 1
        %p278 = scmp.lt.s32.totalorder %s275, 15
        %s279 = scalar_select %p278, %s275, 15
        %p280 = scmp.lt.s32.totalorder %s21, 0
        %s281 = scalar_select %p280, %s21, 0
        %s282 = sadd.s32 %s281, %s279
        %s283 = smul.addr %s277, 16
        %s284 = sadd.s32 %s282, %s283
        %s285 = smul.addr %s284, 4
        %s286 = scalar_lea.vmem %s1, %s285
        %s287 = sadd.s32 %s19, 1
        %s288 = smul.u32 %s287, 4
        %s289 = smul.u32 2, %s288
      $region36: #{beluga_forward.8} parent=27 // pred_fallthru
        _
    $region28: #{beluga_forward.8} parent=5 // pred_fallthru
      _
    %p290 = scmp.le.s32.totalorder 1, %s11
    %p291 = scmp.lt.s32.totalorder %s11, 3
    %p292 = pnand %p290, %p291
    %p293 = pneg %p292
    // Predicated region
    $region37: #{beluga_forward.8} parent=5 // pred_check
      _
    $region38: #{beluga_forward.8} parent=5 // pred_check_branch
      %295 = sbr.rel (%p292) target = $region40
    $region39: #{beluga_forward.8} parent=5 // pred_region
      %s296 = ssub.s32 %s11, 1
      %s297 = smul.u32 8, %s23
      %p298 = scmp.lt.s32.totalorder %s22, 1
      %s299 = scalar_select %p298, %s22, 1
      %p300 = scmp.lt.s32.totalorder %s297, 15
      %s301 = scalar_select %p300, %s297, 15
      %p302 = scmp.lt.s32.totalorder %s25, 0
      %s303 = scalar_select %p302, %s25, 0
      %s304 = sadd.s32 %s303, %s301
      %s305 = smul.addr %s299, 16
      %s306 = sadd.s32 %s304, %s305
      %s307 = smul.addr %s306, 4
      %s308 = scalar_lea.vmem %s0, %s307
      %p309 = pneg %p67
      %p310 = pneg %p64
      %s311 = sadd.s32 %s23, 1
      %s312 = smul.u32 %s311, 4
      %s313 = smul.u32 2, %s312
      %p314 = scmp.lt.s32.totalorder %s22, 1
      %s315 = scalar_select %p314, %s22, 1
      %p316 = scmp.lt.s32.totalorder %s313, 15
      %s317 = scalar_select %p316, %s313, 15
      %p318 = scmp.lt.s32.totalorder %s25, 0
      %s319 = scalar_select %p318, %s25, 0
      %s320 = sadd.s32 %s319, %s317
      %s321 = smul.addr %s315, 16
      %s322 = sadd.s32 %s320, %s321
      %s323 = smul.addr %s322, 4
      %s324 = scalar_lea.vmem %s1, %s323
      %p325 = pneg %p101
      %p326 = pneg %p98
      %s327 = smul.u32 16, %s25
      %p328 = scmp.lt.s32.totalorder %s327, 15
      %s329 = scalar_select %p328, %s327, 15
      %p330 = scmp.lt.s32.totalorder %s24, 0
      %s331 = scalar_select %p330, %s24, 0
      %s332 = sadd.s32 %s331, %s329
      %s333 = smul.addr %s332, 4
      %s334 = scalar_lea.vmem %s2, %s333
      %p335 = pneg %p129
      %p336 = pneg %p126
      %p337 = scmp.lt.s32.totalorder %s24, 0
      %s338 = scalar_select %p337, %s24, 0
      %s339 = scalar_lea.vmem %s3, %s338
      %p340 = pneg %p155
      %p341 = pneg %p152
      %p342 = scmp.lt.s32.totalorder %s24, 0
      %s343 = scalar_select %p342, %s24, 0
      %s344 = scalar_lea.vmem %s4, %s343
      %p345 = pneg %p181
      %p346 = pneg %p178
      %p347 = pneg %p211
      %p348 = pneg %p208
      %s349 = smul.u32 8, %s23
      %p350 = scmp.lt.s32.totalorder %s22, 1
      %s351 = scalar_select %p350, %s22, 1
      %p352 = scmp.lt.s32.totalorder %s349, 7
      %s353 = scalar_select %p352, %s349, 7
      %p354 = scmp.lt.s32.totalorder %s24, 0
      %s355 = scalar_select %p354, %s24, 0
      %s356 = sadd.s32 %s355, %s353
      %s357 = smul.addr %s351, 8
      %s358 = sadd.s32 %s356, %s357
      %s359 = smul.addr %s358, 4
      %s360 = scalar_lea.vmem %s5, %s359
      %s361 = smul.u32 8, %s23
      %p362 = scmp.lt.s32.totalorder %s22, 1
      %s363 = scalar_select %p362, %s22, 1
      %p364 = scmp.lt.s32.totalorder %s361, 15
      %s365 = scalar_select %p364, %s361, 15
      %p366 = scmp.lt.s32.totalorder %s25, 0
      %s367 = scalar_select %p366, %s25, 0
      %s368 = sadd.s32 %s367, %s365
      %s369 = smul.addr %s363, 16
      %s370 = sadd.s32 %s368, %s369
      %s371 = smul.addr %s370, 4
      %s372 = scalar_lea.vmem %s0, %s371
      %s373 = smul.u32 8, %s23
      %s374 = sadd.s32 %s23, 1
      %s375 = smul.u32 %s374, 4
      %s376 = smul.u32 2, %s375
      %p377 = scmp.lt.s32.totalorder %s22, 1
      %s378 = scalar_select %p377, %s22, 1
      %p379 = scmp.lt.s32.totalorder %s376, 15
      %s380 = scalar_select %p379, %s376, 15
      %p381 = scmp.lt.s32.totalorder %s25, 0
      %s382 = scalar_select %p381, %s25, 0
      %s383 = sadd.s32 %s382, %s380
      %s384 = smul.addr %s378, 16
      %s385 = sadd.s32 %s383, %s384
      %s386 = smul.addr %s385, 4
      %s387 = scalar_lea.vmem %s1, %s386
      %s388 = sadd.s32 %s23, 1
      %s389 = smul.u32 %s388, 4
      %s390 = smul.u32 2, %s389
      %s391 = smul.u32 16, %s25
      %p392 = scmp.lt.s32.totalorder %s391, 15
      %s393 = scalar_select %p392, %s391, 15
      %p394 = scmp.lt.s32.totalorder %s24, 0
      %s395 = scalar_select %p394, %s24, 0
      %s396 = sadd.s32 %s395, %s393
      %s397 = smul.addr %s396, 4
      %s398 = scalar_lea.vmem %s2, %s397
      %s399 = smul.u32 16, %s25
      %p400 = scmp.lt.s32.totalorder %s24, 0
      %s401 = scalar_select %p400, %s24, 0
      %s402 = scalar_lea.vmem %s3, %s401
      %p403 = scmp.lt.s32.totalorder %s24, 0
      %s404 = scalar_select %p403, %s24, 0
      %s405 = scalar_lea.vmem %s4, %s404
      %s406 = smul.u32 8, %s23
      %p407 = scmp.lt.s32.totalorder %s22, 1
      %s408 = scalar_select %p407, %s22, 1
      %p409 = scmp.lt.s32.totalorder %s406, 7
      %s410 = scalar_select %p409, %s406, 7
      %p411 = scmp.lt.s32.totalorder %s24, 0
      %s412 = scalar_select %p411, %s24, 0
      %s413 = sadd.s32 %s412, %s410
      %s414 = smul.addr %s408, 8
      %s415 = sadd.s32 %s413, %s414
      %s416 = smul.addr %s415, 4
      %s417 = scalar_lea.vmem %s5, %s416
      %s418 = smul.u32 8, %s23
      %v419 = vld [vmem:[%s372] sm:$0xf]
      %v420 = vld [vmem:[%s372 + $0x4] sm:$0xf]
      %v421 = vld [vmem:[%s372 + $0x8] sm:$0xf]
      %v422 = vld [vmem:[%s372 + $0xc] sm:$0xf]
      %v423 = vld [vmem:[%s372 + $0x10] sm:$0xf]
      %v424 = vld [vmem:[%s372 + $0x14] sm:$0xf]
      %v425 = vld [vmem:[%s372 + $0x18] sm:$0xf]
      %v426 = vld [vmem:[%s372 + $0x1c] sm:$0xf]
      %427 = vst [vmem:[#allocation3] sm:$0xf] %v419
      %428 = vst [vmem:[#allocation3 + $0x4] sm:$0xf] %v420
      %429 = vst [vmem:[#allocation3 + $0x8] sm:$0xf] %v421
      %430 = vst [vmem:[#allocation3 + $0xc] sm:$0xf] %v422
      %431 = vst [vmem:[#allocation3 + $0x10] sm:$0xf] %v423
      %432 = vst [vmem:[#allocation3 + $0x14] sm:$0xf] %v424
      %433 = vst [vmem:[#allocation3 + $0x18] sm:$0xf] %v425
      %434 = vst [vmem:[#allocation3 + $0x1c] sm:$0xf] %v426
      %v435 = vld [vmem:[%s387] sm:$0xf]
      %v436 = vld [vmem:[%s387 + $0x4] sm:$0xf]
      %437 = vst [vmem:[#allocation3 + $0x20] sm:$0xf] %v435
      %438 = vst [vmem:[#allocation3 + $0x24] sm:$0xf] %v436
      %v439 = vld [vmem:[%s398] sm:$0xf]
      %v440 = vld [vmem:[%s398 + $0x4] sm:$0xf]
      %v441 = vld [vmem:[%s398 + $0x8] sm:$0xf]
      %v442 = vld [vmem:[%s398 + $0xc] sm:$0xf]
      %v443 = vld [vmem:[%s398 + $0x10] sm:$0xf]
      %v444 = vld [vmem:[%s398 + $0x14] sm:$0xf]
      %v445 = vld [vmem:[%s398 + $0x18] sm:$0xf]
      %v446 = vld [vmem:[%s398 + $0x1c] sm:$0xf]
      %v447 = vld [vmem:[%s398 + $0x20] sm:$0xf]
      %v448 = vld [vmem:[%s398 + $0x24] sm:$0xf]
      %v449 = vld [vmem:[%s398 + $0x28] sm:$0xf]
      %v450 = vld [vmem:[%s398 + $0x2c] sm:$0xf]
      %v451 = vld [vmem:[%s398 + $0x30] sm:$0xf]
      %v452 = vld [vmem:[%s398 + $0x34] sm:$0xf]
      %v453 = vld [vmem:[%s398 + $0x38] sm:$0xf]
      %v454 = vld [vmem:[%s398 + $0x3c] sm:$0xf]
      %v463 = vunpack.c.l.b16 %v419
      %v464 = vunpack.c.l.b16 %v420
      %v465 = vunpack.c.l.b16 %v421
      %v466 = vunpack.c.l.b16 %v422
      %v467 = vunpack.c.l.b16 %v423
      %v468 = vunpack.c.l.b16 %v424
      %v469 = vunpack.c.l.b16 %v425
      %v470 = vunpack.c.l.b16 %v426
      %v471 = vpack.c.b16 %v464, %v463
      %v472 = vpack.c.b16 %v466, %v465
      %v473 = vpack.c.b16 %v468, %v467
      %v474 = vpack.c.b16 %v470, %v469
      %v495 = vunpack.c.l.b16 %v439
      %v496 = vunpack.c.l.b16 %v440
      %v497 = vunpack.c.l.b16 %v441
      %v498 = vunpack.c.l.b16 %v442
      %v499 = vunpack.c.l.b16 %v443
      %v500 = vunpack.c.l.b16 %v444
      %v501 = vunpack.c.l.b16 %v445
      %v502 = vunpack.c.l.b16 %v446
      %v503 = vunpack.c.l.b16 %v447
      %v504 = vunpack.c.l.b16 %v448
      %v505 = vunpack.c.l.b16 %v449
      %v506 = vunpack.c.l.b16 %v450
      %v507 = vunpack.c.l.b16 %v451
      %v508 = vunpack.c.l.b16 %v452
      %v509 = vunpack.c.l.b16 %v453
      %v510 = vunpack.c.l.b16 %v454
      %v511 = vpack.c.b16 %v496, %v495
      %v512 = vpack.c.b16 %v498, %v497
      %v513 = vpack.c.b16 %v500, %v499
      %v514 = vpack.c.b16 %v502, %v501
      %v515 = vpack.c.b16 %v504, %v503
      %v516 = vpack.c.b16 %v506, %v505
      %v517 = vpack.c.b16 %v508, %v507
      %v518 = vpack.c.b16 %v510, %v509
      %527 = vmatpush.bf16.msra.mxu0 %v518
      %528 = vmatpush.bf16.msra.mxu0 %v517
      %529 = vmatpush.bf16.msra.mxu0 %v516
      %530 = vmatpush.bf16.msra.mxu0 %v515
      %531 = vmatpush.bf16.msra.mxu0 %v514
      %532 = vmatpush.bf16.msra.mxu0 %v513
      %533 = vmatpush.bf16.msra.mxu0 %v512
      %534 = vmatpush.bf16.msra.mxu0 %v511
      %535 = vmatmul.bf16.gmra.mxu0 %v471
      %v536 = vpop.f32.mrf.mxu0
      %v537 = vadd.f32 0.0, %v536
      %v538 = vpop.f32.mrf.mxu0
      %v539 = vadd.f32 0.0, %v538
      %540 = vmatmul.bf16.gmra.mxu0 %v472
      %v541 = vpop.f32.mrf.mxu0
      %v542 = vadd.f32 0.0, %v541
      %v543 = vpop.f32.mrf.mxu0
      %v544 = vadd.f32 0.0, %v543
      %545 = vmatmul.bf16.gmra.mxu0 %v473
      %v546 = vpop.f32.mrf.mxu0
      %v547 = vadd.f32 0.0, %v546
      %v548 = vpop.f32.mrf.mxu0
      %v549 = vadd.f32 0.0, %v548
      %550 = vmatmul.bf16.gmra.mxu0 %v474
      %v551 = vpop.f32.mrf.mxu0
      %v552 = vadd.f32 0.0, %v551
      %v553 = vpop.f32.mrf.mxu0
      %v554 = vadd.f32 0.0, %v553
      %555 = vdwg.mxu0
      %p556 = scmp.eq.s32.totalorder %s25, 0
      // Predicated region
      $region41: #{beluga_forward.8} parent=39 // pred_check
        %p557 = pneg %p556
      $region42: #{beluga_forward.8} parent=39 // pred_check_branch
        %559 = sbr.rel (%p557) target = $region44
      $region43: #{beluga_forward.8} parent=39 // pred_region
        %560 = vst [vmem:[#allocation2] sm:$0xff] %v537
        %561 = vst [vmem:[#allocation2 + $0x8] sm:$0xff] %v539
        %562 = vst [vmem:[#allocation2 + $0x10] sm:$0xff] %v542
        %563 = vst [vmem:[#allocation2 + $0x18] sm:$0xff] %v544
        %564 = vst [vmem:[#allocation2 + $0x20] sm:$0xff] %v547
        %565 = vst [vmem:[#allocation2 + $0x28] sm:$0xff] %v549
        %566 = vst [vmem:[#allocation2 + $0x30] sm:$0xff] %v552
        %567 = vst [vmem:[#allocation2 + $0x38] sm:$0xff] %v554
      $region44: #{beluga_forward.8} parent=39 // pred_fallthru
        _
      %p568 = scmp.ne.s32.totalorder %s25, 0
      // Predicated region
      $region45: #{beluga_forward.8} parent=39 // pred_check
        %p569 = pneg %p568
      $region46: #{beluga_forward.8} parent=39 // pred_check_branch
        %571 = sbr.rel (%p569) target = $region48
      $region47: #{beluga_forward.8} parent=39 // pred_region
        %v572 = vld [vmem:[#allocation2] sm:$0xff]
        %v573 = vld [vmem:[#allocation2 + $0x8] sm:$0xff]
        %v574 = vld [vmem:[#allocation2 + $0x10] sm:$0xff]
        %v575 = vld [vmem:[#allocation2 + $0x18] sm:$0xff]
        %v576 = vld [vmem:[#allocation2 + $0x20] sm:$0xff]
        %v577 = vld [vmem:[#allocation2 + $0x28] sm:$0xff]
        %v578 = vld [vmem:[#allocation2 + $0x30] sm:$0xff]
        %v579 = vld [vmem:[#allocation2 + $0x38] sm:$0xff]
        %v580 = vadd.f32 %v572, %v537
        %v581 = vadd.f32 %v573, %v539
        %v582 = vadd.f32 %v574, %v542
        %v583 = vadd.f32 %v575, %v544
        %v584 = vadd.f32 %v576, %v547
        %v585 = vadd.f32 %v577, %v549
        %v586 = vadd.f32 %v578, %v552
        %v587 = vadd.f32 %v579, %v554
        %588 = vst [vmem:[#allocation2] sm:$0xff] %v580
        %589 = vst [vmem:[#allocation2 + $0x8] sm:$0xff] %v581
        %590 = vst [vmem:[#allocation2 + $0x10] sm:$0xff] %v582
        %591 = vst [vmem:[#allocation2 + $0x18] sm:$0xff] %v583
        %592 = vst [vmem:[#allocation2 + $0x20] sm:$0xff] %v584
        %593 = vst [vmem:[#allocation2 + $0x28] sm:$0xff] %v585
        %594 = vst [vmem:[#allocation2 + $0x30] sm:$0xff] %v586
        %595 = vst [vmem:[#allocation2 + $0x38] sm:$0xff] %v587
      $region48: #{beluga_forward.8} parent=39 // pred_fallthru
        _
      %v596 = vld [vmem:[#allocation3] sm:$0xe]
      %v597 = vld [vmem:[#allocation3 + $0x4] sm:$0xf]
      %v598 = vld [vmem:[#allocation3 + $0x8] sm:$0xf]
      %v599 = vld [vmem:[#allocation3 + $0xc] sm:$0xf]
      %v600 = vld [vmem:[#allocation3 + $0x10] sm:$0xf]
      %v601 = vld [vmem:[#allocation3 + $0x14] sm:$0xf]
      %v602 = vld [vmem:[#allocation3 + $0x18] sm:$0xf]
      %v603 = vld [vmem:[#allocation3 + $0x1c] sm:$0xf]
      %v604 = vld [vmem:[#allocation3 + $0x20] sm:$0x1]
      %v605 = vld [vmem:[#allocation2] sm:$0xff]
      %v606 = vld [vmem:[#allocation2 + $0x8] sm:$0xff]
      %v607 = vld [vmem:[#allocation2 + $0x10] sm:$0xff]
      %v608 = vld [vmem:[#allocation2 + $0x18] sm:$0xff]
      %v609 = vld [vmem:[#allocation2 + $0x20] sm:$0xff]
      %v610 = vld [vmem:[#allocation2 + $0x28] sm:$0xff]
      %v611 = vld [vmem:[#allocation2 + $0x30] sm:$0xff]
      %v612 = vld [vmem:[#allocation2 + $0x38] sm:$0xff]
      %s613 = scalar_lea.vmem %s398, 64
      %v614 = vld [vmem:[%s613] sm:$0xf]
      %v615 = vld [vmem:[%s613 + $0x4] sm:$0xf]
      %v616 = vld [vmem:[%s613 + $0x8] sm:$0xf]
      %v617 = vld [vmem:[%s613 + $0xc] sm:$0xf]
      %v618 = vld [vmem:[%s613 + $0x10] sm:$0xf]
      %v619 = vld [vmem:[%s613 + $0x14] sm:$0xf]
      %v620 = vld [vmem:[%s613 + $0x18] sm:$0xf]
      %v621 = vld [vmem:[%s613 + $0x1c] sm:$0xf]
      %v622 = vld [vmem:[%s613 + $0x20] sm:$0xf]
      %v623 = vld [vmem:[%s613 + $0x24] sm:$0xf]
      %v624 = vld [vmem:[%s613 + $0x28] sm:$0xf]
      %v625 = vld [vmem:[%s613 + $0x2c] sm:$0xf]
      %v626 = vld [vmem:[%s613 + $0x30] sm:$0xf]
      %v627 = vld [vmem:[%s613 + $0x34] sm:$0xf]
      %v628 = vld [vmem:[%s613 + $0x38] sm:$0xf]
      %v629 = vld [vmem:[%s613 + $0x3c] sm:$0xf]
      %v639 = vunpack.c.l.b16 %v596
      %v640 = vunpack.c.l.b16 %v597
      %v641 = vunpack.c.l.b16 %v598
      %v642 = vunpack.c.l.b16 %v599
      %v643 = vunpack.c.l.b16 %v600
      %v644 = vunpack.c.l.b16 %v601
      %v645 = vunpack.c.l.b16 %v602
      %v646 = vunpack.c.l.b16 %v603
      %v647 = vunpack.c.l.b16 %v604
      %v648 = vpack.c.b16 %v640, %v639
      %v649 = vpack.c.b16 %v642, %v641
      %v650 = vpack.c.b16 %v644, %v643
      %v651 = vpack.c.b16 %v646, %v645
      %v652 = vpack.c.b16 %v647, %v647
      %vm653 = vcmask 1046528
      %v654 = vrot.slane %v648, 1
      %v655 = vrot.slane %v649, 1
      %v656 = vsel %vm653, %v654, %v655
      %v657 = vrot.slane %v650, 1
      %v658 = vsel %vm653, %v655, %v657
      %v659 = vrot.slane %v651, 1
      %v660 = vsel %vm653, %v657, %v659
      %v661 = vrot.slane %v652, 1
      %v662 = vsel %vm653, %v659, %v661
      %v683 = vunpack.c.l.b16 %v614
      %v684 = vunpack.c.l.b16 %v615
      %v685 = vunpack.c.l.b16 %v616
      %v686 = vunpack.c.l.b16 %v617
      %v687 = vunpack.c.l.b16 %v618
      %v688 = vunpack.c.l.b16 %v619
      %v689 = vunpack.c.l.b16 %v620
      %v690 = vunpack.c.l.b16 %v621
      %v691 = vunpack.c.l.b16 %v622
      %v692 = vunpack.c.l.b16 %v623
      %v693 = vunpack.c.l.b16 %v624
      %v694 = vunpack.c.l.b16 %v625
      %v695 = vunpack.c.l.b16 %v626
      %v696 = vunpack.c.l.b16 %v627
      %v697 = vunpack.c.l.b16 %v628
      %v698 = vunpack.c.l.b16 %v629
      %v699 = vpack.c.b16 %v684, %v683
      %v700 = vpack.c.b16 %v686, %v685
      %v701 = vpack.c.b16 %v688, %v687
      %v702 = vpack.c.b16 %v690, %v689
      %v703 = vpack.c.b16 %v692, %v691
      %v704 = vpack.c.b16 %v694, %v693
      %v705 = vpack.c.b16 %v696, %v695
      %v706 = vpack.c.b16 %v698, %v697
      %715 = vmatpush.bf16.msra.mxu0 %v706
      %716 = vmatpush.bf16.msra.mxu0 %v705
      %717 = vmatpush.bf16.msra.mxu0 %v704
      %718 = vmatpush.bf16.msra.mxu0 %v703
      %719 = vmatpush.bf16.msra.mxu0 %v702
      %720 = vmatpush.bf16.msra.mxu0 %v701
      %721 = vmatpush.bf16.msra.mxu0 %v700
      %722 = vmatpush.bf16.msra.mxu0 %v699
      %723 = vmatmul.bf16.gmra.mxu0 %v656
      %v724 = vpop.f32.mrf.mxu0
      %v725 = vadd.f32 0.0, %v724
      %v726 = vpop.f32.mrf.mxu0
      %v727 = vadd.f32 0.0, %v726
      %728 = vmatmul.bf16.gmra.mxu0 %v658
      %v729 = vpop.f32.mrf.mxu0
      %v730 = vadd.f32 0.0, %v729
      %v731 = vpop.f32.mrf.mxu0
      %v732 = vadd.f32 0.0, %v731
      %733 = vmatmul.bf16.gmra.mxu0 %v660
      %v734 = vpop.f32.mrf.mxu0
      %v735 = vadd.f32 0.0, %v734
      %v736 = vpop.f32.mrf.mxu0
      %v737 = vadd.f32 0.0, %v736
      %738 = vmatmul.bf16.gmra.mxu0 %v662
      %v739 = vpop.f32.mrf.mxu0
      %v740 = vadd.f32 0.0, %v739
      %v741 = vpop.f32.mrf.mxu0
      %v742 = vadd.f32 0.0, %v741
      %743 = vdwg.mxu0
      %v744 = vadd.f32 %v605, %v725
      %v745 = vadd.f32 %v606, %v727
      %v746 = vadd.f32 %v607, %v730
      %v747 = vadd.f32 %v608, %v732
      %v748 = vadd.f32 %v609, %v735
      %v749 = vadd.f32 %v610, %v737
      %v750 = vadd.f32 %v611, %v740
      %v751 = vadd.f32 %v612, %v742
      %752 = vst [vmem:[#allocation2] sm:$0xff] %v744
      %753 = vst [vmem:[#allocation2 + $0x8] sm:$0xff] %v745
      %754 = vst [vmem:[#allocation2 + $0x10] sm:$0xff] %v746
      %755 = vst [vmem:[#allocation2 + $0x18] sm:$0xff] %v747
      %756 = vst [vmem:[#allocation2 + $0x20] sm:$0xff] %v748
      %757 = vst [vmem:[#allocation2 + $0x28] sm:$0xff] %v749
      %758 = vst [vmem:[#allocation2 + $0x30] sm:$0xff] %v750
      %759 = vst [vmem:[#allocation2 + $0x38] sm:$0xff] %v751
      %v760 = vld [vmem:[#allocation3] sm:$0xc]
      %v761 = vld [vmem:[#allocation3 + $0x4] sm:$0xf]
      %v762 = vld [vmem:[#allocation3 + $0x8] sm:$0xf]
      %v763 = vld [vmem:[#allocation3 + $0xc] sm:$0xf]
      %v764 = vld [vmem:[#allocation3 + $0x10] sm:$0xf]
      %v765 = vld [vmem:[#allocation3 + $0x14] sm:$0xf]
      %v766 = vld [vmem:[#allocation3 + $0x18] sm:$0xf]
      %v767 = vld [vmem:[#allocation3 + $0x1c] sm:$0xf]
      %v768 = vld [vmem:[#allocation3 + $0x20] sm:$0x3]
      %v769 = vld [vmem:[#allocation2] sm:$0xff]
      %v770 = vld [vmem:[#allocation2 + $0x8] sm:$0xff]
      %v771 = vld [vmem:[#allocation2 + $0x10] sm:$0xff]
      %v772 = vld [vmem:[#allocation2 + $0x18] sm:$0xff]
      %v773 = vld [vmem:[#allocation2 + $0x20] sm:$0xff]
      %v774 = vld [vmem:[#allocation2 + $0x28] sm:$0xff]
      %v775 = vld [vmem:[#allocation2 + $0x30] sm:$0xff]
      %v776 = vld [vmem:[#allocation2 + $0x38] sm:$0xff]
      %s777 = scalar_lea.vmem %s398, 128
      %v778 = vld [vmem:[%s777] sm:$0xf]
      %v779 = vld [vmem:[%s777 + $0x4] sm:$0xf]
      %v780 = vld [vmem:[%s777 + $0x8] sm:$0xf]
      %v781 = vld [vmem:[%s777 + $0xc] sm:$0xf]
      %v782 = vld [vmem:[%s777 + $0x10] sm:$0xf]
      %v783 = vld [vmem:[%s777 + $0x14] sm:$0xf]
      %v784 = vld [vmem:[%s777 + $0x18] sm:$0xf]
      %v785 = vld [vmem:[%s777 + $0x1c] sm:$0xf]
      %v786 = vld [vmem:[%s777 + $0x20] sm:$0xf]
      %v787 = vld [vmem:[%s777 + $0x24] sm:$0xf]
      %v788 = vld [vmem:[%s777 + $0x28] sm:$0xf]
      %v789 = vld [vmem:[%s777 + $0x2c] sm:$0xf]
      %v790 = vld [vmem:[%s777 + $0x30] sm:$0xf]
      %v791 = vld [vmem:[%s777 + $0x34] sm:$0xf]
      %v792 = vld [vmem:[%s777 + $0x38] sm:$0xf]
      %v793 = vld [vmem:[%s777 + $0x3c] sm:$0xf]
      %v803 = vunpack.c.l.b16 %v760
      %v804 = vunpack.c.l.b16 %v761
      %v805 = vunpack.c.l.b16 %v762
      %v806 = vunpack.c.l.b16 %v763
      %v807 = vunpack.c.l.b16 %v764
      %v808 = vunpack.c.l.b16 %v765
      %v809 = vunpack.c.l.b16 %v766
      %v810 = vunpack.c.l.b16 %v767
      %v811 = vunpack.c.l.b16 %v768
      %v812 = vpack.c.b16 %v804, %v803
      %v813 = vpack.c.b16 %v806, %v805
      %v814 = vpack.c.b16 %v808, %v807
      %v815 = vpack.c.b16 %v810, %v809
      %v816 = vpack.c.b16 %v811, %v811
      %vm817 = vcmask 1045504
      %v818 = vrot.slane %v812, 2
      %v819 = vrot.slane %v813, 2
      %v820 = vsel %vm817, %v818, %v819
      %v821 = vrot.slane %v814, 2
      %v822 = vsel %vm817, %v819, %v821
      %v823 = vrot.slane %v815, 2
      %v824 = vsel %vm817, %v821, %v823
      %v825 = vrot.slane %v816, 2
      %v826 = vsel %vm817, %v823, %v825
      %v847 = vunpack.c.l.b16 %v778
      %v848 = vunpack.c.l.b16 %v779
      %v849 = vunpack.c.l.b16 %v780
      %v850 = vunpack.c.l.b16 %v781
      %v851 = vunpack.c.l.b16 %v782
      %v852 = vunpack.c.l.b16 %v783
      %v853 = vunpack.c.l.b16 %v784
      %v854 = vunpack.c.l.b16 %v785
      %v855 = vunpack.c.l.b16 %v786
      %v856 = vunpack.c.l.b16 %v787
      %v857 = vunpack.c.l.b16 %v788
      %v858 = vunpack.c.l.b16 %v789
      %v859 = vunpack.c.l.b16 %v790
      %v860 = vunpack.c.l.b16 %v791
      %v861 = vunpack.c.l.b16 %v792
      %v862 = vunpack.c.l.b16 %v793
      %v863 = vpack.c.b16 %v848, %v847
      %v864 = vpack.c.b16 %v850, %v849
      %v865 = vpack.c.b16 %v852, %v851
      %v866 = vpack.c.b16 %v854, %v853
      %v867 = vpack.c.b16 %v856, %v855
      %v868 = vpack.c.b16 %v858, %v857
      %v869 = vpack.c.b16 %v860, %v859
      %v870 = vpack.c.b16 %v862, %v861
      %879 = vmatpush.bf16.msra.mxu0 %v870
      %880 = vmatpush.bf16.msra.mxu0 %v869
      %881 = vmatpush.bf16.msra.mxu0 %v868
      %882 = vmatpush.bf16.msra.mxu0 %v867
      %883 = vmatpush.bf16.msra.mxu0 %v866
      %884 = vmatpush.bf16.msra.mxu0 %v865
      %885 = vmatpush.bf16.msra.mxu0 %v864
      %886 = vmatpush.bf16.msra.mxu0 %v863
      %887 = vmatmul.bf16.gmra.mxu0 %v820
      %v888 = vpop.f32.mrf.mxu0
      %v889 = vadd.f32 0.0, %v888
      %v890 = vpop.f32.mrf.mxu0
      %v891 = vadd.f32 0.0, %v890
      %892 = vmatmul.bf16.gmra.mxu0 %v822
      %v893 = vpop.f32.mrf.mxu0
      %v894 = vadd.f32 0.0, %v893
      %v895 = vpop.f32.mrf.mxu0
      %v896 = vadd.f32 0.0, %v895
      %897 = vmatmul.bf16.gmra.mxu0 %v824
      %v898 = vpop.f32.mrf.mxu0
      %v899 = vadd.f32 0.0, %v898
      %v900 = vpop.f32.mrf.mxu0
      %v901 = vadd.f32 0.0, %v900
      %902 = vmatmul.bf16.gmra.mxu0 %v826
      %v903 = vpop.f32.mrf.mxu0
      %v904 = vadd.f32 0.0, %v903
      %v905 = vpop.f32.mrf.mxu0
      %v906 = vadd.f32 0.0, %v905
      %907 = vdwg.mxu0
      %v908 = vadd.f32 %v769, %v889
      %v909 = vadd.f32 %v770, %v891
      %v910 = vadd.f32 %v771, %v894
      %v911 = vadd.f32 %v772, %v896
      %v912 = vadd.f32 %v773, %v899
      %v913 = vadd.f32 %v774, %v901
      %v914 = vadd.f32 %v775, %v904
      %v915 = vadd.f32 %v776, %v906
      %916 = vst [vmem:[#allocation2] sm:$0xff] %v908
      %917 = vst [vmem:[#allocation2 + $0x8] sm:$0xff] %v909
      %918 = vst [vmem:[#allocation2 + $0x10] sm:$0xff] %v910
      %919 = vst [vmem:[#allocation2 + $0x18] sm:$0xff] %v911
      %920 = vst [vmem:[#allocation2 + $0x20] sm:$0xff] %v912
      %921 = vst [vmem:[#allocation2 + $0x28] sm:$0xff] %v913
      %922 = vst [vmem:[#allocation2 + $0x30] sm:$0xff] %v914
      %923 = vst [vmem:[#allocation2 + $0x38] sm:$0xff] %v915
      %v924 = vld [vmem:[#allocation3] sm:$0x8]
      %v925 = vld [vmem:[#allocation3 + $0x4] sm:$0xf]
      %v926 = vld [vmem:[#allocation3 + $0x8] sm:$0xf]
      %v927 = vld [vmem:[#allocation3 + $0xc] sm:$0xf]
      %v928 = vld [vmem:[#allocation3 + $0x10] sm:$0xf]
      %v929 = vld [vmem:[#allocation3 + $0x14] sm:$0xf]
      %v930 = vld [vmem:[#allocation3 + $0x18] sm:$0xf]
      %v931 = vld [vmem:[#allocation3 + $0x1c] sm:$0xf]
      %v932 = vld [vmem:[#allocation3 + $0x20] sm:$0x7]
      %v933 = vld [vmem:[#allocation2] sm:$0xff]
      %v934 = vld [vmem:[#allocation2 + $0x8] sm:$0xff]
      %v935 = vld [vmem:[#allocation2 + $0x10] sm:$0xff]
      %v936 = vld [vmem:[#allocation2 + $0x18] sm:$0xff]
      %v937 = vld [vmem:[#allocation2 + $0x20] sm:$0xff]
      %v938 = vld [vmem:[#allocation2 + $0x28] sm:$0xff]
      %v939 = vld [vmem:[#allocation2 + $0x30] sm:$0xff]
      %v940 = vld [vmem:[#allocation2 + $0x38] sm:$0xff]
      %s941 = scalar_lea.vmem %s398, 192
      %v942 = vld [vmem:[%s941] sm:$0xf]
      %v943 = vld [vmem:[%s941 + $0x4] sm:$0xf]
      %v944 = vld [vmem:[%s941 + $0x8] sm:$0xf]
      %v945 = vld [vmem:[%s941 + $0xc] sm:$0xf]
      %v946 = vld [vmem:[%s941 + $0x10] sm:$0xf]
      %v947 = vld [vmem:[%s941 + $0x14] sm:$0xf]
      %v948 = vld [vmem:[%s941 + $0x18] sm:$0xf]
      %v949 = vld [vmem:[%s941 + $0x1c] sm:$0xf]
      %v950 = vld [vmem:[%s941 + $0x20] sm:$0xf]
      %v951 = vld [vmem:[%s941 + $0x24] sm:$0xf]
      %v952 = vld [vmem:[%s941 + $0x28] sm:$0xf]
      %v953 = vld [vmem:[%s941 + $0x2c] sm:$0xf]
      %v954 = vld [vmem:[%s941 + $0x30] sm:$0xf]
      %v955 = vld [vmem:[%s941 + $0x34] sm:$0xf]
      %v956 = vld [vmem:[%s941 + $0x38] sm:$0xf]
      %v957 = vld [vmem:[%s941 + $0x3c] sm:$0xf]
      %v967 = vunpack.c.l.b16 %v924
      %v968 = vunpack.c.l.b16 %v925
      %v969 = vunpack.c.l.b16 %v926
      %v970 = vunpack.c.l.b16 %v927
      %v971 = vunpack.c.l.b16 %v928
      %v972 = vunpack.c.l.b16 %v929
      %v973 = vunpack.c.l.b16 %v930
      %v974 = vunpack.c.l.b16 %v931
      %v975 = vunpack.c.l.b16 %v932
      %v976 = vpack.c.b16 %v968, %v967
      %v977 = vpack.c.b16 %v970, %v969
      %v978 = vpack.c.b16 %v972, %v971
      %v979 = vpack.c.b16 %v974, %v973
      %v980 = vpack.c.b16 %v975, %v975
      %vm981 = vcmask 1044480
      %v982 = vrot.slane %v976, 3
      %v983 = vrot.slane %v977, 3
      %v984 = vsel %vm981, %v982, %v983
      %v985 = vrot.slane %v978, 3
      %v986 = vsel %vm981, %v983, %v985
      %v987 = vrot.slane %v979, 3
      %v988 = vsel %vm981, %v985, %v987
      %v989 = vrot.slane %v980, 3
      %v990 = vsel %vm981, %v987, %v989
      %v1011 = vunpack.c.l.b16 %v942
      %v1012 = vunpack.c.l.b16 %v943
      %v1013 = vunpack.c.l.b16 %v944
      %v1014 = vunpack.c.l.b16 %v945
      %v1015 = vunpack.c.l.b16 %v946
      %v1016 = vunpack.c.l.b16 %v947
      %v1017 = vunpack.c.l.b16 %v948
      %v1018 = vunpack.c.l.b16 %v949
      %v1019 = vunpack.c.l.b16 %v950
      %v1020 = vunpack.c.l.b16 %v951
      %v1021 = vunpack.c.l.b16 %v952
      %v1022 = vunpack.c.l.b16 %v953
      %v1023 = vunpack.c.l.b16 %v954
      %v1024 = vunpack.c.l.b16 %v955
      %v1025 = vunpack.c.l.b16 %v956
      %v1026 = vunpack.c.l.b16 %v957
      %v1027 = vpack.c.b16 %v1012, %v1011
      %v1028 = vpack.c.b16 %v1014, %v1013
      %v1029 = vpack.c.b16 %v1016, %v1015
      %v1030 = vpack.c.b16 %v1018, %v1017
      %v1031 = vpack.c.b16 %v1020, %v1019
      %v1032 = vpack.c.b16 %v1022, %v1021
      %v1033 = vpack.c.b16 %v1024, %v1023
      %v1034 = vpack.c.b16 %v1026, %v1025
      %1043 = vmatpush.bf16.msra.mxu0 %v1034
      %1044 = vmatpush.bf16.msra.mxu0 %v1033
      %1045 = vmatpush.bf16.msra.mxu0 %v1032
      %1046 = vmatpush.bf16.msra.mxu0 %v1031
      %1047 = vmatpush.bf16.msra.mxu0 %v1030
      %1048 = vmatpush.bf16.msra.mxu0 %v1029
      %1049 = vmatpush.bf16.msra.mxu0 %v1028
      %1050 = vmatpush.bf16.msra.mxu0 %v1027
      %1051 = vmatmul.bf16.gmra.mxu0 %v984
      %v1052 = vpop.f32.mrf.mxu0
      %v1053 = vadd.f32 0.0, %v1052
      %v1054 = vpop.f32.mrf.mxu0
      %v1055 = vadd.f32 0.0, %v1054
      %1056 = vmatmul.bf16.gmra.mxu0 %v986
      %v1057 = vpop.f32.mrf.mxu0
      %v1058 = vadd.f32 0.0, %v1057
      %v1059 = vpop.f32.mrf.mxu0
      %v1060 = vadd.f32 0.0, %v1059
      %1061 = vmatmul.bf16.gmra.mxu0 %v988
      %v1062 = vpop.f32.mrf.mxu0
      %v1063 = vadd.f32 0.0, %v1062
      %v1064 = vpop.f32.mrf.mxu0
      %v1065 = vadd.f32 0.0, %v1064
      %1066 = vmatmul.bf16.gmra.mxu0 %v990
      %v1067 = vpop.f32.mrf.mxu0
      %v1068 = vadd.f32 0.0, %v1067
      %v1069 = vpop.f32.mrf.mxu0
      %v1070 = vadd.f32 0.0, %v1069
      %1071 = vdwg.mxu0
      %v1072 = vadd.f32 %v933, %v1053
      %v1073 = vadd.f32 %v934, %v1055
      %v1074 = vadd.f32 %v935, %v1058
      %v1075 = vadd.f32 %v936, %v1060
      %v1076 = vadd.f32 %v937, %v1063
      %v1077 = vadd.f32 %v938, %v1065
      %v1078 = vadd.f32 %v939, %v1068
      %v1079 = vadd.f32 %v940, %v1070
      %1080 = vst [vmem:[#allocation2] sm:$0xff] %v1072
      %1081 = vst [vmem:[#allocation2 + $0x8] sm:$0xff] %v1073
      %1082 = vst [vmem:[#allocation2 + $0x10] sm:$0xff] %v1074
      %1083 = vst [vmem:[#allocation2 + $0x18] sm:$0xff] %v1075
      %1084 = vst [vmem:[#allocation2 + $0x20] sm:$0xff] %v1076
      %1085 = vst [vmem:[#allocation2 + $0x28] sm:$0xff] %v1077
      %1086 = vst [vmem:[#allocation2 + $0x30] sm:$0xff] %v1078
      %1087 = vst [vmem:[#allocation2 + $0x38] sm:$0xff] %v1079
      %v1088 = vld [vmem:[#allocation3 + $0x4] sm:$0xf]
      %v1089 = vld [vmem:[#allocation3 + $0x8] sm:$0xf]
      %v1090 = vld [vmem:[#allocation3 + $0xc] sm:$0xf]
      %v1091 = vld [vmem:[#allocation3 + $0x10] sm:$0xf]
      %v1092 = vld [vmem:[#allocation3 + $0x14] sm:$0xf]
      %v1093 = vld [vmem:[#allocation3 + $0x18] sm:$0xf]
      %v1094 = vld [vmem:[#allocation3 + $0x1c] sm:$0xf]
      %v1095 = vld [vmem:[#allocation3 + $0x20] sm:$0xf]
      %v1096 = vld [vmem:[#allocation2] sm:$0xff]
      %v1097 = vld [vmem:[#allocation2 + $0x8] sm:$0xff]
      %v1098 = vld [vmem:[#allocation2 + $0x10] sm:$0xff]
      %v1099 = vld [vmem:[#allocation2 + $0x18] sm:$0xff]
      %v1100 = vld [vmem:[#allocation2 + $0x20] sm:$0xff]
      %v1101 = vld [vmem:[#allocation2 + $0x28] sm:$0xff]
      %v1102 = vld [vmem:[#allocation2 + $0x30] sm:$0xff]
      %v1103 = vld [vmem:[#allocation2 + $0x38] sm:$0xff]
      %s1104 = scalar_lea.vmem %s398, 256
      %v1105 = vld [vmem:[%s1104] sm:$0xf]
      %v1106 = vld [vmem:[%s1104 + $0x4] sm:$0xf]
      %v1107 = vld [vmem:[%s1104 + $0x8] sm:$0xf]
      %v1108 = vld [vmem:[%s1104 + $0xc] sm:$0xf]
      %v1109 = vld [vmem:[%s1104 + $0x10] sm:$0xf]
      %v1110 = vld [vmem:[%s1104 + $0x14] sm:$0xf]
      %v1111 = vld [vmem:[%s1104 + $0x18] sm:$0xf]
      %v1112 = vld [vmem:[%s1104 + $0x1c] sm:$0xf]
      %v1113 = vld [vmem:[%s1104 + $0x20] sm:$0xf]
      %v1114 = vld [vmem:[%s1104 + $0x24] sm:$0xf]
      %v1115 = vld [vmem:[%s1104 + $0x28] sm:$0xf]
      %v1116 = vld [vmem:[%s1104 + $0x2c] sm:$0xf]
      %v1117 = vld [vmem:[%s1104 + $0x30] sm:$0xf]
      %v1118 = vld [vmem:[%s1104 + $0x34] sm:$0xf]
      %v1119 = vld [vmem:[%s1104 + $0x38] sm:$0xf]
      %v1120 = vld [vmem:[%s1104 + $0x3c] sm:$0xf]
      %v1129 = vunpack.c.l.b16 %v1088
      %v1130 = vunpack.c.l.b16 %v1089
      %v1131 = vunpack.c.l.b16 %v1090
      %v1132 = vunpack.c.l.b16 %v1091
      %v1133 = vunpack.c.l.b16 %v1092
      %v1134 = vunpack.c.l.b16 %v1093
      %v1135 = vunpack.c.l.b16 %v1094
      %v1136 = vunpack.c.l.b16 %v1095
      %v1137 = vpack.c.b16 %v1130, %v1129
      %v1138 = vpack.c.b16 %v1132, %v1131
      %v1139 = vpack.c.b16 %v1134, %v1133
      %v1140 = vpack.c.b16 %v1136, %v1135
      %v1161 = vunpack.c.l.b16 %v1105
      %v1162 = vunpack.c.l.b16 %v1106
      %v1163 = vunpack.c.l.b16 %v1107
      %v1164 = vunpack.c.l.b16 %v1108
      %v1165 = vunpack.c.l.b16 %v1109
      %v1166 = vunpack.c.l.b16 %v1110
      %v1167 = vunpack.c.l.b16 %v1111
      %v1168 = vunpack.c.l.b16 %v1112
      %v1169 = vunpack.c.l.b16 %v1113
      %v1170 = vunpack.c.l.b16 %v1114
      %v1171 = vunpack.c.l.b16 %v1115
      %v1172 = vunpack.c.l.b16 %v1116
      %v1173 = vunpack.c.l.b16 %v1117
      %v1174 = vunpack.c.l.b16 %v1118
      %v1175 = vunpack.c.l.b16 %v1119
      %v1176 = vunpack.c.l.b16 %v1120
      %v1177 = vpack.c.b16 %v1162, %v1161
      %v1178 = vpack.c.b16 %v1164, %v1163
      %v1179 = vpack.c.b16 %v1166, %v1165
      %v1180 = vpack.c.b16 %v1168, %v1167
      %v1181 = vpack.c.b16 %v1170, %v1169
      %v1182 = vpack.c.b16 %v1172, %v1171
      %v1183 = vpack.c.b16 %v1174, %v1173
      %v1184 = vpack.c.b16 %v1176, %v1175
      %1193 = vmatpush.bf16.msra.mxu0 %v1184
      %1194 = vmatpush.bf16.msra.mxu0 %v1183
      %1195 = vmatpush.bf16.msra.mxu0 %v1182
      %1196 = vmatpush.bf16.msra.mxu0 %v1181
      %1197 = vmatpush.bf16.msra.mxu0 %v1180
      %1198 = vmatpush.bf16.msra.mxu0 %v1179
      %1199 = vmatpush.bf16.msra.mxu0 %v1178
      %1200 = vmatpush.bf16.msra.mxu0 %v1177
      %1201 = vmatmul.bf16.gmra.mxu0 %v1137
      %v1202 = vpop.f32.mrf.mxu0
      %v1203 = vadd.f32 0.0, %v1202
      %v1204 = vpop.f32.mrf.mxu0
      %v1205 = vadd.f32 0.0, %v1204
      %1206 = vmatmul.bf16.gmra.mxu0 %v1138
      %v1207 = vpop.f32.mrf.mxu0
      %v1208 = vadd.f32 0.0, %v1207
      %v1209 = vpop.f32.mrf.mxu0
      %v1210 = vadd.f32 0.0, %v1209
      %1211 = vmatmul.bf16.gmra.mxu0 %v1139
      %v1212 = vpop.f32.mrf.mxu0
      %v1213 = vadd.f32 0.0, %v1212
      %v1214 = vpop.f32.mrf.mxu0
      %v1215 = vadd.f32 0.0, %v1214
      %1216 = vmatmul.bf16.gmra.mxu0 %v1140
      %v1217 = vpop.f32.mrf.mxu0
      %v1218 = vadd.f32 0.0, %v1217
      %v1219 = vpop.f32.mrf.mxu0
      %v1220 = vadd.f32 0.0, %v1219
      %1221 = vdwg.mxu0
      %v1222 = vadd.f32 %v1096, %v1203
      %v1223 = vadd.f32 %v1097, %v1205
      %v1224 = vadd.f32 %v1098, %v1208
      %v1225 = vadd.f32 %v1099, %v1210
      %v1226 = vadd.f32 %v1100, %v1213
      %v1227 = vadd.f32 %v1101, %v1215
      %v1228 = vadd.f32 %v1102, %v1218
      %v1229 = vadd.f32 %v1103, %v1220
      %1230 = vst [vmem:[#allocation2] sm:$0xff] %v1222
      %1231 = vst [vmem:[#allocation2 + $0x8] sm:$0xff] %v1223
      %1232 = vst [vmem:[#allocation2 + $0x10] sm:$0xff] %v1224
      %1233 = vst [vmem:[#allocation2 + $0x18] sm:$0xff] %v1225
      %1234 = vst [vmem:[#allocation2 + $0x20] sm:$0xff] %v1226
      %1235 = vst [vmem:[#allocation2 + $0x28] sm:$0xff] %v1227
      %1236 = vst [vmem:[#allocation2 + $0x30] sm:$0xff] %v1228
      %1237 = vst [vmem:[#allocation2 + $0x38] sm:$0xff] %v1229
      %v1238 = vld [vmem:[#allocation3 + $0x4] sm:$0xe]
      %v1239 = vld [vmem:[#allocation3 + $0x8] sm:$0xf]
      %v1240 = vld [vmem:[#allocation3 + $0xc] sm:$0xf]
      %v1241 = vld [vmem:[#allocation3 + $0x10] sm:$0xf]
      %v1242 = vld [vmem:[#allocation3 + $0x14] sm:$0xf]
      %v1243 = vld [vmem:[#allocation3 + $0x18] sm:$0xf]
      %v1244 = vld [vmem:[#allocation3 + $0x1c] sm:$0xf]
      %v1245 = vld [vmem:[#allocation3 + $0x20] sm:$0xf]
      %v1246 = vld [vmem:[#allocation3 + $0x24] sm:$0x1]
      %v1247 = vld [vmem:[#allocation2] sm:$0xff]
      %v1248 = vld [vmem:[#allocation2 + $0x8] sm:$0xff]
      %v1249 = vld [vmem:[#allocation2 + $0x10] sm:$0xff]
      %v1250 = vld [vmem:[#allocation2 + $0x18] sm:$0xff]
      %v1251 = vld [vmem:[#allocation2 + $0x20] sm:$0xff]
      %v1252 = vld [vmem:[#allocation2 + $0x28] sm:$0xff]
      %v1253 = vld [vmem:[#allocation2 + $0x30] sm:$0xff]
      %v1254 = vld [vmem:[#allocation2 + $0x38] sm:$0xff]
      %s1255 = scalar_lea.vmem %s398, 320
      %v1256 = vld [vmem:[%s1255] sm:$0xf]
      %v1257 = vld [vmem:[%s1255 + $0x4] sm:$0xf]
      %v1258 = vld [vmem:[%s1255 + $0x8] sm:$0xf]
      %v1259 = vld [vmem:[%s1255 + $0xc] sm:$0xf]
      %v1260 = vld [vmem:[%s1255 + $0x10] sm:$0xf]
      %v1261 = vld [vmem:[%s1255 + $0x14] sm:$0xf]
      %v1262 = vld [vmem:[%s1255 + $0x18] sm:$0xf]
      %v1263 = vld [vmem:[%s1255 + $0x1c] sm:$0xf]
      %v1264 = vld [vmem:[%s1255 + $0x20] sm:$0xf]
      %v1265 = vld [vmem:[%s1255 + $0x24] sm:$0xf]
      %v1266 = vld [vmem:[%s1255 + $0x28] sm:$0xf]
      %v1267 = vld [vmem:[%s1255 + $0x2c] sm:$0xf]
      %v1268 = vld [vmem:[%s1255 + $0x30] sm:$0xf]
      %v1269 = vld [vmem:[%s1255 + $0x34] sm:$0xf]
      %v1270 = vld [vmem:[%s1255 + $0x38] sm:$0xf]
      %v1271 = vld [vmem:[%s1255 + $0x3c] sm:$0xf]
      %v1281 = vunpack.c.l.b16 %v1238
      %v1282 = vunpack.c.l.b16 %v1239
      %v1283 = vunpack.c.l.b16 %v1240
      %v1284 = vunpack.c.l.b16 %v1241
      %v1285 = vunpack.c.l.b16 %v1242
      %v1286 = vunpack.c.l.b16 %v1243
      %v1287 = vunpack.c.l.b16 %v1244
      %v1288 = vunpack.c.l.b16 %v1245
      %v1289 = vunpack.c.l.b16 %v1246
      %v1290 = vpack.c.b16 %v1282, %v1281
      %v1291 = vpack.c.b16 %v1284, %v1283
      %v1292 = vpack.c.b16 %v1286, %v1285
      %v1293 = vpack.c.b16 %v1288, %v1287
      %v1294 = vpack.c.b16 %v1289, %v1289
      %v1295 = vrot.slane %v1290, 1
      %v1296 = vrot.slane %v1291, 1
      %v1297 = vsel %vm653, %v1295, %v1296
      %v1298 = vrot.slane %v1292, 1
      %v1299 = vsel %vm653, %v1296, %v1298
      %v1300 = vrot.slane %v1293, 1
      %v1301 = vsel %vm653, %v1298, %v1300
      %v1302 = vrot.slane %v1294, 1
      %v1303 = vsel %vm653, %v1300, %v1302
      %v1324 = vunpack.c.l.b16 %v1256
      %v1325 = vunpack.c.l.b16 %v1257
      %v1326 = vunpack.c.l.b16 %v1258
      %v1327 = vunpack.c.l.b16 %v1259
      %v1328 = vunpack.c.l.b16 %v1260
      %v1329 = vunpack.c.l.b16 %v1261
      %v1330 = vunpack.c.l.b16 %v1262
      %v1331 = vunpack.c.l.b16 %v1263
      %v1332 = vunpack.c.l.b16 %v1264
      %v1333 = vunpack.c.l.b16 %v1265
      %v1334 = vunpack.c.l.b16 %v1266
      %v1335 = vunpack.c.l.b16 %v1267
      %v1336 = vunpack.c.l.b16 %v1268
      %v1337 = vunpack.c.l.b16 %v1269
      %v1338 = vunpack.c.l.b16 %v1270
      %v1339 = vunpack.c.l.b16 %v1271
      %v1340 = vpack.c.b16 %v1325, %v1324
      %v1341 = vpack.c.b16 %v1327, %v1326
      %v1342 = vpack.c.b16 %v1329, %v1328
      %v1343 = vpack.c.b16 %v1331, %v1330
      %v1344 = vpack.c.b16 %v1333, %v1332
      %v1345 = vpack.c.b16 %v1335, %v1334
      %v1346 = vpack.c.b16 %v1337, %v1336
      %v1347 = vpack.c.b16 %v1339, %v1338
      %1356 = vmatpush.bf16.msra.mxu0 %v1347
      %1357 = vmatpush.bf16.msra.mxu0 %v1346
      %1358 = vmatpush.bf16.msra.mxu0 %v1345
      %1359 = vmatpush.bf16.msra.mxu0 %v1344
      %1360 = vmatpush.bf16.msra.mxu0 %v1343
      %1361 = vmatpush.bf16.msra.mxu0 %v1342
      %1362 = vmatpush.bf16.msra.mxu0 %v1341
      %1363 = vmatpush.bf16.msra.mxu0 %v1340
      %1364 = vmatmul.bf16.gmra.mxu0 %v1297
      %v1365 = vpop.f32.mrf.mxu0
      %v1366 = vadd.f32 0.0, %v1365
      %v1367 = vpop.f32.mrf.mxu0
      %v1368 = vadd.f32 0.0, %v1367
      %1369 = vmatmul.bf16.gmra.mxu0 %v1299
      %v1370 = vpop.f32.mrf.mxu0
      %v1371 = vadd.f32 0.0, %v1370
      %v1372 = vpop.f32.mrf.mxu0
      %v1373 = vadd.f32 0.0, %v1372
      %1374 = vmatmul.bf16.gmra.mxu0 %v1301
      %v1375 = vpop.f32.mrf.mxu0
      %v1376 = vadd.f32 0.0, %v1375
      %v1377 = vpop.f32.mrf.mxu0
      %v1378 = vadd.f32 0.0, %v1377
      %1379 = vmatmul.bf16.gmra.mxu0 %v1303
      %v1380 = vpop.f32.mrf.mxu0
      %v1381 = vadd.f32 0.0, %v1380
      %v1382 = vpop.f32.mrf.mxu0
      %v1383 = vadd.f32 0.0, %v1382
      %1384 = vdwg.mxu0
      %v1385 = vadd.f32 %v1247, %v1366
      %v1386 = vadd.f32 %v1248, %v1368
      %v1387 = vadd.f32 %v1249, %v1371
      %v1388 = vadd.f32 %v1250, %v1373
      %v1389 = vadd.f32 %v1251, %v1376
      %v1390 = vadd.f32 %v1252, %v1378
      %v1391 = vadd.f32 %v1253, %v1381
      %v1392 = vadd.f32 %v1254, %v1383
      %1393 = vst [vmem:[#allocation2] sm:$0xff] %v1385
      %1394 = vst [vmem:[#allocation2 + $0x8] sm:$0xff] %v1386
      %1395 = vst [vmem:[#allocation2 + $0x10] sm:$0xff] %v1387
      %1396 = vst [vmem:[#allocation2 + $0x18] sm:$0xff] %v1388
      %1397 = vst [vmem:[#allocation2 + $0x20] sm:$0xff] %v1389
      %1398 = vst [vmem:[#allocation2 + $0x28] sm:$0xff] %v1390
      %1399 = vst [vmem:[#allocation2 + $0x30] sm:$0xff] %v1391
      %1400 = vst [vmem:[#allocation2 + $0x38] sm:$0xff] %v1392
      %v1401 = vld [vmem:[#allocation3 + $0x4] sm:$0xc]
      %v1402 = vld [vmem:[#allocation3 + $0x8] sm:$0xf]
      %v1403 = vld [vmem:[#allocation3 + $0xc] sm:$0xf]
      %v1404 = vld [vmem:[#allocation3 + $0x10] sm:$0xf]
      %v1405 = vld [vmem:[#allocation3 + $0x14] sm:$0xf]
      %v1406 = vld [vmem:[#allocation3 + $0x18] sm:$0xf]
      %v1407 = vld [vmem:[#allocation3 + $0x1c] sm:$0xf]
      %v1408 = vld [vmem:[#allocation3 + $0x20] sm:$0xf]
      %v1409 = vld [vmem:[#allocation3 + $0x24] sm:$0x3]
      %v1410 = vld [vmem:[#allocation2] sm:$0xff]
      %v1411 = vld [vmem:[#allocation2 + $0x8] sm:$0xff]
      %v1412 = vld [vmem:[#allocation2 + $0x10] sm:$0xff]
      %v1413 = vld [vmem:[#allocation2 + $0x18] sm:$0xff]
      %v1414 = vld [vmem:[#allocation2 + $0x20] sm:$0xff]
      %v1415 = vld [vmem:[#allocation2 + $0x28] sm:$0xff]
      %v1416 = vld [vmem:[#allocation2 + $0x30] sm:$0xff]
      %v1417 = vld [vmem:[#allocation2 + $0x38] sm:$0xff]
      %s1418 = scalar_lea.vmem %s398, 384
      %v1419 = vld [vmem:[%s1418] sm:$0xf]
      %v1420 = vld [vmem:[%s1418 + $0x4] sm:$0xf]
      %v1421 = vld [vmem:[%s1418 + $0x8] sm:$0xf]
      %v1422 = vld [vmem:[%s1418 + $0xc] sm:$0xf]
      %v1423 = vld [vmem:[%s1418 + $0x10] sm:$0xf]
      %v1424 = vld [vmem:[%s1418 + $0x14] sm:$0xf]
      %v1425 = vld [vmem:[%s1418 + $0x18] sm:$0xf]
      %v1426 = vld [vmem:[%s1418 + $0x1c] sm:$0xf]
      %v1427 = vld [vmem:[%s1418 + $0x20] sm:$0xf]
      %v1428 = vld [vmem:[%s1418 + $0x24] sm:$0xf]
      %v1429 = vld [vmem:[%s1418 + $0x28] sm:$0xf]
      %v1430 = vld [vmem:[%s1418 + $0x2c] sm:$0xf]
      %v1431 = vld [vmem:[%s1418 + $0x30] sm:$0xf]
      %v1432 = vld [vmem:[%s1418 + $0x34] sm:$0xf]
      %v1433 = vld [vmem:[%s1418 + $0x38] sm:$0xf]
      %v1434 = vld [vmem:[%s1418 + $0x3c] sm:$0xf]
      %v1444 = vunpack.c.l.b16 %v1401
      %v1445 = vunpack.c.l.b16 %v1402
      %v1446 = vunpack.c.l.b16 %v1403
      %v1447 = vunpack.c.l.b16 %v1404
      %v1448 = vunpack.c.l.b16 %v1405
      %v1449 = vunpack.c.l.b16 %v1406
      %v1450 = vunpack.c.l.b16 %v1407
      %v1451 = vunpack.c.l.b16 %v1408
      %v1452 = vunpack.c.l.b16 %v1409
      %v1453 = vpack.c.b16 %v1445, %v1444
      %v1454 = vpack.c.b16 %v1447, %v1446
      %v1455 = vpack.c.b16 %v1449, %v1448
      %v1456 = vpack.c.b16 %v1451, %v1450
      %v1457 = vpack.c.b16 %v1452, %v1452
      %v1458 = vrot.slane %v1453, 2
      %v1459 = vrot.slane %v1454, 2
      %v1460 = vsel %vm817, %v1458, %v1459
      %v1461 = vrot.slane %v1455, 2
      %v1462 = vsel %vm817, %v1459, %v1461
      %v1463 = vrot.slane %v1456, 2
      %v1464 = vsel %vm817, %v1461, %v1463
      %v1465 = vrot.slane %v1457, 2
      %v1466 = vsel %vm817, %v1463, %v1465
      %v1487 = vunpack.c.l.b16 %v1419
      %v1488 = vunpack.c.l.b16 %v1420
      %v1489 = vunpack.c.l.b16 %v1421
      %v1490 = vunpack.c.l.b16 %v1422
      %v1491 = vunpack.c.l.b16 %v1423
      %v1492 = vunpack.c.l.b16 %v1424
      %v1493 = vunpack.c.l.b16 %v1425
      %v1494 = vunpack.c.l.b16 %v1426
      %v1495 = vunpack.c.l.b16 %v1427
      %v1496 = vunpack.c.l.b16 %v1428
      %v1497 = vunpack.c.l.b16 %v1429
      %v1498 = vunpack.c.l.b16 %v1430
      %v1499 = vunpack.c.l.b16 %v1431
      %v1500 = vunpack.c.l.b16 %v1432
      %v1501 = vunpack.c.l.b16 %v1433
      %v1502 = vunpack.c.l.b16 %v1434
      %v1503 = vpack.c.b16 %v1488, %v1487
      %v1504 = vpack.c.b16 %v1490, %v1489
      %v1505 = vpack.c.b16 %v1492, %v1491
      %v1506 = vpack.c.b16 %v1494, %v1493
      %v1507 = vpack.c.b16 %v1496, %v1495
      %v1508 = vpack.c.b16 %v1498, %v1497
      %v1509 = vpack.c.b16 %v1500, %v1499
      %v1510 = vpack.c.b16 %v1502, %v1501
      %1519 = vmatpush.bf16.msra.mxu0 %v1510
      %1520 = vmatpush.bf16.msra.mxu0 %v1509
      %1521 = vmatpush.bf16.msra.mxu0 %v1508
      %1522 = vmatpush.bf16.msra.mxu0 %v1507
      %1523 = vmatpush.bf16.msra.mxu0 %v1506
      %1524 = vmatpush.bf16.msra.mxu0 %v1505
      %1525 = vmatpush.bf16.msra.mxu0 %v1504
      %1526 = vmatpush.bf16.msra.mxu0 %v1503
      %1527 = vmatmul.bf16.gmra.mxu0 %v1460
      %v1528 = vpop.f32.mrf.mxu0
      %v1529 = vadd.f32 0.0, %v1528
      %v1530 = vpop.f32.mrf.mxu0
      %v1531 = vadd.f32 0.0, %v1530
      %1532 = vmatmul.bf16.gmra.mxu0 %v1462
      %v1533 = vpop.f32.mrf.mxu0
      %v1534 = vadd.f32 0.0, %v1533
      %v1535 = vpop.f32.mrf.mxu0
      %v1536 = vadd.f32 0.0, %v1535
      %1537 = vmatmul.bf16.gmra.mxu0 %v1464
      %v1538 = vpop.f32.mrf.mxu0
      %v1539 = vadd.f32 0.0, %v1538
      %v1540 = vpop.f32.mrf.mxu0
      %v1541 = vadd.f32 0.0, %v1540
      %1542 = vmatmul.bf16.gmra.mxu0 %v1466
      %v1543 = vpop.f32.mrf.mxu0
      %v1544 = vadd.f32 0.0, %v1543
      %v1545 = vpop.f32.mrf.mxu0
      %v1546 = vadd.f32 0.0, %v1545
      %1547 = vdwg.mxu0
      %v1548 = vadd.f32 %v1410, %v1529
      %v1549 = vadd.f32 %v1411, %v1531
      %v1550 = vadd.f32 %v1412, %v1534
      %v1551 = vadd.f32 %v1413, %v1536
      %v1552 = vadd.f32 %v1414, %v1539
      %v1553 = vadd.f32 %v1415, %v1541
      %v1554 = vadd.f32 %v1416, %v1544
      %v1555 = vadd.f32 %v1417, %v1546
      %1556 = vst [vmem:[#allocation2] sm:$0xff] %v1548
      %1557 = vst [vmem:[#allocation2 + $0x8] sm:$0xff] %v1549
      %1558 = vst [vmem:[#allocation2 + $0x10] sm:$0xff] %v1550
      %1559 = vst [vmem:[#allocation2 + $0x18] sm:$0xff] %v1551
      %1560 = vst [vmem:[#allocation2 + $0x20] sm:$0xff] %v1552
      %1561 = vst [vmem:[#allocation2 + $0x28] sm:$0xff] %v1553
      %1562 = vst [vmem:[#allocation2 + $0x30] sm:$0xff] %v1554
      %1563 = vst [vmem:[#allocation2 + $0x38] sm:$0xff] %v1555
      %v1564 = vld [vmem:[#allocation3 + $0x4] sm:$0x8]
      %v1565 = vld [vmem:[#allocation3 + $0x8] sm:$0xf]
      %v1566 = vld [vmem:[#allocation3 + $0xc] sm:$0xf]
      %v1567 = vld [vmem:[#allocation3 + $0x10] sm:$0xf]
      %v1568 = vld [vmem:[#allocation3 + $0x14] sm:$0xf]
      %v1569 = vld [vmem:[#allocation3 + $0x18] sm:$0xf]
      %v1570 = vld [vmem:[#allocation3 + $0x1c] sm:$0xf]
      %v1571 = vld [vmem:[#allocation3 + $0x20] sm:$0xf]
      %v1572 = vld [vmem:[#allocation3 + $0x24] sm:$0x7]
      %v1573 = vld [vmem:[#allocation2] sm:$0xff]
      %v1574 = vld [vmem:[#allocation2 + $0x8] sm:$0xff]
      %v1575 = vld [vmem:[#allocation2 + $0x10] sm:$0xff]
      %v1576 = vld [vmem:[#allocation2 + $0x18] sm:$0xff]
      %v1577 = vld [vmem:[#allocation2 + $0x20] sm:$0xff]
      %v1578 = vld [vmem:[#allocation2 + $0x28] sm:$0xff]
      %v1579 = vld [vmem:[#allocation2 + $0x30] sm:$0xff]
      %v1580 = vld [vmem:[#allocation2 + $0x38] sm:$0xff]
      %s1581 = scalar_lea.vmem %s398, 448
      %v1582 = vld [vmem:[%s1581] sm:$0xf]
      %v1583 = vld [vmem:[%s1581 + $0x4] sm:$0xf]
      %v1584 = vld [vmem:[%s1581 + $0x8] sm:$0xf]
      %v1585 = vld [vmem:[%s1581 + $0xc] sm:$0xf]
      %v1586 = vld [vmem:[%s1581 + $0x10] sm:$0xf]
      %v1587 = vld [vmem:[%s1581 + $0x14] sm:$0xf]
      %v1588 = vld [vmem:[%s1581 + $0x18] sm:$0xf]
      %v1589 = vld [vmem:[%s1581 + $0x1c] sm:$0xf]
      %v1590 = vld [vmem:[%s1581 + $0x20] sm:$0xf]
      %v1591 = vld [vmem:[%s1581 + $0x24] sm:$0xf]
      %v1592 = vld [vmem:[%s1581 + $0x28] sm:$0xf]
      %v1593 = vld [vmem:[%s1581 + $0x2c] sm:$0xf]
      %v1594 = vld [vmem:[%s1581 + $0x30] sm:$0xf]
      %v1595 = vld [vmem:[%s1581 + $0x34] sm:$0xf]
      %v1596 = vld [vmem:[%s1581 + $0x38] sm:$0xf]
      %v1597 = vld [vmem:[%s1581 + $0x3c] sm:$0xf]
      %v1607 = vunpack.c.l.b16 %v1564
      %v1608 = vunpack.c.l.b16 %v1565
      %v1609 = vunpack.c.l.b16 %v1566
      %v1610 = vunpack.c.l.b16 %v1567
      %v1611 = vunpack.c.l.b16 %v1568
      %v1612 = vunpack.c.l.b16 %v1569
      %v1613 = vunpack.c.l.b16 %v1570
      %v1614 = vunpack.c.l.b16 %v1571
      %v1615 = vunpack.c.l.b16 %v1572
      %v1616 = vpack.c.b16 %v1608, %v1607
      %v1617 = vpack.c.b16 %v1610, %v1609
      %v1618 = vpack.c.b16 %v1612, %v1611
      %v1619 = vpack.c.b16 %v1614, %v1613
      %v1620 = vpack.c.b16 %v1615, %v1615
      %v1621 = vrot.slane %v1616, 3
      %v1622 = vrot.slane %v1617, 3
      %v1623 = vsel %vm981, %v1621, %v1622
      %v1624 = vrot.slane %v1618, 3
      %v1625 = vsel %vm981, %v1622, %v1624
      %v1626 = vrot.slane %v1619, 3
      %v1627 = vsel %vm981, %v1624, %v1626
      %v1628 = vrot.slane %v1620, 3
      %v1629 = vsel %vm981, %v1626, %v1628
      %v1650 = vunpack.c.l.b16 %v1582
      %v1651 = vunpack.c.l.b16 %v1583
      %v1652 = vunpack.c.l.b16 %v1584
      %v1653 = vunpack.c.l.b16 %v1585
      %v1654 = vunpack.c.l.b16 %v1586
      %v1655 = vunpack.c.l.b16 %v1587
      %v1656 = vunpack.c.l.b16 %v1588
      %v1657 = vunpack.c.l.b16 %v1589
      %v1658 = vunpack.c.l.b16 %v1590
      %v1659 = vunpack.c.l.b16 %v1591
      %v1660 = vunpack.c.l.b16 %v1592
      %v1661 = vunpack.c.l.b16 %v1593
      %v1662 = vunpack.c.l.b16 %v1594
      %v1663 = vunpack.c.l.b16 %v1595
      %v1664 = vunpack.c.l.b16 %v1596
      %v1665 = vunpack.c.l.b16 %v1597
      %v1666 = vpack.c.b16 %v1651, %v1650
      %v1667 = vpack.c.b16 %v1653, %v1652
      %v1668 = vpack.c.b16 %v1655, %v1654
      %v1669 = vpack.c.b16 %v1657, %v1656
      %v1670 = vpack.c.b16 %v1659, %v1658
      %v1671 = vpack.c.b16 %v1661, %v1660
      %v1672 = vpack.c.b16 %v1663, %v1662
      %v1673 = vpack.c.b16 %v1665, %v1664
      %1682 = vmatpush.bf16.msra.mxu0 %v1673
      %1683 = vmatpush.bf16.msra.mxu0 %v1672
      %1684 = vmatpush.bf16.msra.mxu0 %v1671
      %1685 = vmatpush.bf16.msra.mxu0 %v1670
      %1686 = vmatpush.bf16.msra.mxu0 %v1669
      %1687 = vmatpush.bf16.msra.mxu0 %v1668
      %1688 = vmatpush.bf16.msra.mxu0 %v1667
      %1689 = vmatpush.bf16.msra.mxu0 %v1666
      %1690 = vmatmul.bf16.gmra.mxu0 %v1623
      %v1691 = vpop.f32.mrf.mxu0
      %v1692 = vadd.f32 0.0, %v1691
      %v1693 = vpop.f32.mrf.mxu0
      %v1694 = vadd.f32 0.0, %v1693
      %1695 = vmatmul.bf16.gmra.mxu0 %v1625
      %v1696 = vpop.f32.mrf.mxu0
      %v1697 = vadd.f32 0.0, %v1696
      %v1698 = vpop.f32.mrf.mxu0
      %v1699 = vadd.f32 0.0, %v1698
      %1700 = vmatmul.bf16.gmra.mxu0 %v1627
      %v1701 = vpop.f32.mrf.mxu0
      %v1702 = vadd.f32 0.0, %v1701
      %v1703 = vpop.f32.mrf.mxu0
      %v1704 = vadd.f32 0.0, %v1703
      %1705 = vmatmul.bf16.gmra.mxu0 %v1629
      %v1706 = vpop.f32.mrf.mxu0
      %v1707 = vadd.f32 0.0, %v1706
      %v1708 = vpop.f32.mrf.mxu0
      %v1709 = vadd.f32 0.0, %v1708
      %1710 = vdwg.mxu0
      %v1711 = vadd.f32 %v1573, %v1692
      %v1712 = vadd.f32 %v1574, %v1694
      %v1713 = vadd.f32 %v1575, %v1697
      %v1714 = vadd.f32 %v1576, %v1699
      %v1715 = vadd.f32 %v1577, %v1702
      %v1716 = vadd.f32 %v1578, %v1704
      %v1717 = vadd.f32 %v1579, %v1707
      %v1718 = vadd.f32 %v1580, %v1709
      %1719 = vst [vmem:[#allocation2] sm:$0xff] %v1711
      %1720 = vst [vmem:[#allocation2 + $0x8] sm:$0xff] %v1712
      %1721 = vst [vmem:[#allocation2 + $0x10] sm:$0xff] %v1713
      %1722 = vst [vmem:[#allocation2 + $0x18] sm:$0xff] %v1714
      %1723 = vst [vmem:[#allocation2 + $0x20] sm:$0xff] %v1715
      %1724 = vst [vmem:[#allocation2 + $0x28] sm:$0xff] %v1716
      %1725 = vst [vmem:[#allocation2 + $0x30] sm:$0xff] %v1717
      %1726 = vst [vmem:[#allocation2 + $0x38] sm:$0xff] %v1718
      // Predicated region
      $region49: #{beluga_forward.8} parent=39 // pred_check
        %p1727 = pneg %p556
      $region50: #{beluga_forward.8} parent=39 // pred_check_branch
        %1729 = sbr.rel (%p1727) target = $region52
      $region51: #{beluga_forward.8} parent=39 // pred_region
        %v1730 = vld [vmem:[#allocation2] sm:$0xff]
        %v1731 = vld [vmem:[#allocation2 + $0x8] sm:$0xff]
        %v1732 = vld [vmem:[#allocation2 + $0x10] sm:$0xff]
        %v1733 = vld [vmem:[#allocation2 + $0x18] sm:$0xff]
        %v1734 = vld [vmem:[#allocation2 + $0x20] sm:$0xff]
        %v1735 = vld [vmem:[#allocation2 + $0x28] sm:$0xff]
        %v1736 = vld [vmem:[#allocation2 + $0x30] sm:$0xff]
        %v1737 = vld [vmem:[#allocation2 + $0x38] sm:$0xff]
        %v1738 = vld [vmem:[%s402] sm:$0x1]
        %v1740 = vperm.slane %v1738, 0
        %v1742 = vmul.f32 %v1730, %v1740
        %v1743 = vmul.f32 %v1731, %v1740
        %v1744 = vmul.f32 %v1732, %v1740
        %v1745 = vmul.f32 %v1733, %v1740
        %v1746 = vmul.f32 %v1734, %v1740
        %v1747 = vmul.f32 %v1735, %v1740
        %v1748 = vmul.f32 %v1736, %v1740
        %v1749 = vmul.f32 %v1737, %v1740
        %v1750 = vld [vmem:[%s405] sm:$0x1]
        %v1752 = vperm.slane %v1750, 0
        %v1754 = vadd.f32 %v1742, %v1752
        %v1755 = vadd.f32 %v1743, %v1752
        %v1756 = vadd.f32 %v1744, %v1752
        %v1757 = vadd.f32 %v1745, %v1752
        %v1758 = vadd.f32 %v1746, %v1752
        %v1759 = vadd.f32 %v1747, %v1752
        %v1760 = vadd.f32 %v1748, %v1752
        %v1761 = vadd.f32 %v1749, %v1752
        %v1762 = vmax.f32 %v1754, 0.0
        %v1763 = vmax.f32 %v1755, 0.0
        %v1764 = vmax.f32 %v1756, 0.0
        %v1765 = vmax.f32 %v1757, 0.0
        %v1766 = vmax.f32 %v1758, 0.0
        %v1767 = vmax.f32 %v1759, 0.0
        %v1768 = vmax.f32 %v1760, 0.0
        %v1769 = vmax.f32 %v1761, 0.0
        %v1770 = vpack.c.bf16 %v1762, %v1762
        %v1771 = vpack.c.bf16 %v1763, %v1763
        %v1772 = vpack.c.bf16 %v1764, %v1764
        %v1773 = vpack.c.bf16 %v1765, %v1765
        %v1774 = vpack.c.bf16 %v1766, %v1766
        %v1775 = vpack.c.bf16 %v1767, %v1767
        %v1776 = vpack.c.bf16 %v1768, %v1768
        %v1777 = vpack.c.bf16 %v1769, %v1769
        %1778 = vst [vmem:[%s417] sm:$0xf] %v1770
        %1779 = vst [vmem:[%s417 + $0x4] sm:$0xf] %v1771
        %1780 = vst [vmem:[%s417 + $0x8] sm:$0xf] %v1772
        %1781 = vst [vmem:[%s417 + $0xc] sm:$0xf] %v1773
        %1782 = vst [vmem:[%s417 + $0x10] sm:$0xf] %v1774
        %1783 = vst [vmem:[%s417 + $0x14] sm:$0xf] %v1775
        %1784 = vst [vmem:[%s417 + $0x18] sm:$0xf] %v1776
        %1785 = vst [vmem:[%s417 + $0x1c] sm:$0xf] %v1777
      $region52: #{beluga_forward.8} parent=39 // pred_fallthru
        _
      %s1786 = smul.u32 8, %s23
      %p1787 = scmp.lt.s32.totalorder %s22, 1
      %s1788 = scalar_select %p1787, %s22, 1
      %p1789 = scmp.lt.s32.totalorder %s1786, 7
      %s1790 = scalar_select %p1789, %s1786, 7
      %p1791 = scmp.lt.s32.totalorder %s24, 0
      %s1792 = scalar_select %p1791, %s24, 0
      %s1793 = sadd.s32 %s1792, %s1790
      %s1794 = smul.addr %s1788, 8
      %s1795 = sadd.s32 %s1793, %s1794
      %s1796 = smul.addr %s1795, 4
      %s1797 = scalar_lea.vmem %s5, %s1796
      // Predicated region
      $region53: #{beluga_forward.8} parent=39 // pred_check
        %p1798 = pneg %p208
      $region54: #{beluga_forward.8} parent=39 // pred_check_branch
        %1800 = sbr.rel (%p1798) target = $region56
      $region55: #{beluga_forward.8} parent=39 // pred_region
        %s1801 = smul.u32 8, %s23
      $region56: #{beluga_forward.8} parent=39 // pred_fallthru
        _
    $region40: #{beluga_forward.8} parent=5 // pred_fallthru
      _
    %p1802 = scmp.le.s32.totalorder 2, %s11
    // Predicated region
    $region57: #{beluga_forward.8} parent=5 // pred_check
      %p1803 = pneg %p1802
    $region58: #{beluga_forward.8} parent=5 // pred_check_branch
      %1805 = sbr.rel (%p1803) target = $region60
    $region59: #{beluga_forward.8} parent=5 // pred_region
      %s1806 = ssub.s32 %s11, 2
      // Predicated region
      $region61: #{beluga_forward.8} parent=59 // pred_check
        %p1807 = pneg %p214
      $region62: #{beluga_forward.8} parent=59 // pred_check_branch
        %1809 = sbr.rel (%p1807) target = $region64
      $region63: #{beluga_forward.8} parent=59 // pred_region
        %s1810 = smul.u32 8, %s27
        %p1811 = scmp.lt.s32.totalorder %s26, 1
        %s1812 = scalar_select %p1811, %s26, 1
        %p1813 = scmp.lt.s32.totalorder %s1810, 7
        %s1814 = scalar_select %p1813, %s1810, 7
        %p1815 = scmp.lt.s32.totalorder %s28, 0
        %s1816 = scalar_select %p1815, %s28, 0
        %s1817 = sadd.s32 %s1816, %s1814
        %s1818 = smul.addr %s1812, 8
        %s1819 = sadd.s32 %s1817, %s1818
        %s1820 = smul.addr %s1819, 4
        %s1821 = scalar_lea.vmem %s5, %s1820
      $region64: #{beluga_forward.8} parent=59 // pred_fallthru
        _
    $region60: #{beluga_forward.8} parent=5 // pred_fallthru
      _
  $region6: #{beluga_forward.8} parent=0 // loop_footer
    %s15 = sadd.s32 1, %s11
  $region7: #{beluga_forward.8} parent=0 // loop_footer_branch
    %10 = sbr.rel target = $region3
  $region8: #{beluga_forward.8} parent=0 // loop_exit
    _

// kernel: beluga_forward.11
$region0: #{beluga_forward.11}
  #allocation0 [shape = 'u32[]', space=smem, size = 0x4, offset = 0x4, fixed_abs, tag = 'smem constant byte address 0x4 - core index']
  #allocation1 [shape = 'u32[72,128]{1,0:T(1,128)}', space=vmem, size = 0x9000, scoped, tag = 'internal scratch']
  #allocation2 [shape = 'f32[64,128]{1,0:T(8,128)}', space=vmem, size = 0x8000, scoped, tag = 'scratch operand']
  %s0 = inlined_call_operand.vmem [shape: bf16[2,64,128], index: 0, kind: input, shape index: {}]
  %s1 = inlined_call_operand.vmem [shape: bf16[1,128,128], index: 1, kind: input, shape index: {}]
  %s2 = inlined_call_operand.vmem [shape: f32[1,128], index: 2, kind: input, shape index: {}]
  %s3 = inlined_call_operand.vmem [shape: f32[1,128], index: 3, kind: input, shape index: {}]
  %s4 = inlined_call_operand.vmem [shape: f32[2,64,128], index: 4, kind: output, shape index: {}]
  %s5 = sld [smem:[#allocation0]]
  $region61: #{beluga_forward.11} parent=0
    _
  %s7 = ssub.s32 1, %s5
  %s8 = scalar_select 0, %s7, %s5
  loop: start=0, step=1, limit=4
  $region2: #{beluga_forward.11} parent=0 // loop_pre_header
    _
  $region3: #{beluga_forward.11} parent=0 // loop_header
    %s10 = sphi 0, %s14
    %p11 = scmp.ge.s32.totalorder %s10, 4
    %s17 = sphi 0, %s43
    %s18 = sphi 0, %s39
    %s19 = sphi 0, %s35
    %s20 = sphi 0, %s31
    %s21 = sphi 0, %s17
    %s22 = sphi 0, %s18
    %s23 = sphi 0, %s19
    %s24 = sphi 0, %s20
    %s25 = sphi 0, %s21
    %s26 = sphi 0, %s22
    %s27 = sphi 0, %s23
    %s28 = sphi 0, %s24
    %s50 = sphi 0, %s52
    %s53 = sphi 0, %s50
    %s54 = sphi 0, %s53
    %s70 = sphi 0, %s54
    %s78 = sphi 0, %s80
    %s81 = sphi 0, %s78
    %s82 = sphi 0, %s81
    %s98 = sphi 0, %s82
    %s104 = sphi 0, %s106
    %s107 = sphi 0, %s104
    %s108 = sphi 0, %s107
    %s124 = sphi 0, %s108
    %s130 = sphi 0, %s132
    %s133 = sphi 0, %s130
    %s134 = sphi 0, %s133
    %s150 = sphi 0, %s134
    %s160 = sphi 0, %s162
    %s163 = sphi 0, %s160
    %s164 = sphi 0, %s163
    %s180 = sphi 0, %s164
  $region4: #{beluga_forward.11} parent=0 // loop_header_branch
    %13 = sbr.rel (%p11) target = $region8
  $region5: #{beluga_forward.11} parent=0 // loop_body
    %s15 = ssub.s32 %s10, 1
    %s16 = ssub.s32 %s10, 2
    %s29 = sadd.s32 1, %s20
    %p30 = scmp.ge.s32.totalorder %s29, 1
    %s31 = scalar_select %p30, 0, %s29
    %s32 = sadd.s32 1, %s19
    %s33 = scalar_select %p30, %s32, %s19
    %p34 = scmp.ge.s32.totalorder %s33, 1
    %s35 = scalar_select %p34, 0, %s33
    %s36 = sadd.s32 1, %s18
    %s37 = scalar_select %p34, %s36, %s18
    %p38 = scmp.ge.s32.totalorder %s37, 1
    %s39 = scalar_select %p38, 0, %s37
    %s40 = sadd.s32 1, %s17
    %s41 = scalar_select %p38, %s40, %s17
    %p42 = scmp.ge.s32.totalorder %s41, 2
    %s43 = scalar_select %p42, 0, %s41
    %s44 = ssub.s32 %s17, %s43
    %s45 = ssub.s32 %s18, %s39
    %s46 = sor.u32 %s44, %s45
    %s47 = ssub.s32 %s20, %s31
    %s48 = sor.u32 %s46, %s47
    %p49 = scmp.eq.s32.totalorder %s48, 0
    %s51 = sadd.s32 %s50, 1
    %s52 = scalar_select %p49, %s50, %s51
    %p55 = pneg %p49
    %p56 = scmp.eq.s32.totalorder %s10, 1
    %p57 = por %p55, %p56
    %p58 = scmp.ne.s32.totalorder %s50, %s53
    %p59 = scmp.eq.s32.totalorder %s10, 0
    %p60 = por %p58, %p59
    %p61 = scmp.ne.s32.totalorder %s50, %s53
    %p62 = scmp.eq.s32.totalorder %s15, 1
    %p63 = por %p61, %p62
    %p64 = scmp.ne.s32.totalorder %s53, %s54
    %p65 = scmp.eq.s32.totalorder %s15, 0
    %p66 = por %p64, %p65
    %p67 = scmp.ne.s32.totalorder %s53, %s54
    %p68 = scmp.eq.s32.totalorder %s16, 1
    %p69 = por %p67, %p68
    %p71 = scmp.ne.s32.totalorder %s54, %s70
    %p72 = scmp.eq.s32.totalorder %s16, 0
    %p73 = por %p71, %p72
    %s74 = ssub.s32 %s20, %s31
    %s75 = ssub.s32 %s19, %s35
    %s76 = sor.u32 %s74, %s75
    %p77 = scmp.eq.s32.totalorder %s76, 0
    %s79 = sadd.s32 %s78, 1
    %s80 = scalar_select %p77, %s78, %s79
    %p83 = pneg %p77
    %p84 = scmp.eq.s32.totalorder %s10, 1
    %p85 = por %p83, %p84
    %p86 = scmp.ne.s32.totalorder %s78, %s81
    %p87 = scmp.eq.s32.totalorder %s10, 0
    %p88 = por %p86, %p87
    %p89 = scmp.ne.s32.totalorder %s78, %s81
    %p90 = scmp.eq.s32.totalorder %s15, 1
    %p91 = por %p89, %p90
    %p92 = scmp.ne.s32.totalorder %s81, %s82
    %p93 = scmp.eq.s32.totalorder %s15, 0
    %p94 = por %p92, %p93
    %p95 = scmp.ne.s32.totalorder %s81, %s82
    %p96 = scmp.eq.s32.totalorder %s16, 1
    %p97 = por %p95, %p96
    %p99 = scmp.ne.s32.totalorder %s82, %s98
    %p100 = scmp.eq.s32.totalorder %s16, 0
    %p101 = por %p99, %p100
    %s102 = ssub.s32 %s19, %s35
    %p103 = scmp.eq.s32.totalorder %s102, 0
    %s105 = sadd.s32 %s104, 1
    %s106 = scalar_select %p103, %s104, %s105
    %p109 = pneg %p103
    %p110 = scmp.eq.s32.totalorder %s10, 1
    %p111 = por %p109, %p110
    %p112 = scmp.ne.s32.totalorder %s104, %s107
    %p113 = scmp.eq.s32.totalorder %s10, 0
    %p114 = por %p112, %p113
    %p115 = scmp.ne.s32.totalorder %s104, %s107
    %p116 = scmp.eq.s32.totalorder %s15, 1
    %p117 = por %p115, %p116
    %p118 = scmp.ne.s32.totalorder %s107, %s108
    %p119 = scmp.eq.s32.totalorder %s15, 0
    %p120 = por %p118, %p119
    %p121 = scmp.ne.s32.totalorder %s107, %s108
    %p122 = scmp.eq.s32.totalorder %s16, 1
    %p123 = por %p121, %p122
    %p125 = scmp.ne.s32.totalorder %s108, %s124
    %p126 = scmp.eq.s32.totalorder %s16, 0
    %p127 = por %p125, %p126
    %s128 = ssub.s32 %s19, %s35
    %p129 = scmp.eq.s32.totalorder %s128, 0
    %s131 = sadd.s32 %s130, 1
    %s132 = scalar_select %p129, %s130, %s131
    %p135 = pneg %p129
    %p136 = scmp.eq.s32.totalorder %s10, 1
    %p137 = por %p135, %p136
    %p138 = scmp.ne.s32.totalorder %s130, %s133
    %p139 = scmp.eq.s32.totalorder %s10, 0
    %p140 = por %p138, %p139
    %p141 = scmp.ne.s32.totalorder %s130, %s133
    %p142 = scmp.eq.s32.totalorder %s15, 1
    %p143 = por %p141, %p142
    %p144 = scmp.ne.s32.totalorder %s133, %s134
    %p145 = scmp.eq.s32.totalorder %s15, 0
    %p146 = por %p144, %p145
    %p147 = scmp.ne.s32.totalorder %s133, %s134
    %p148 = scmp.eq.s32.totalorder %s16, 1
    %p149 = por %p147, %p148
    %p151 = scmp.ne.s32.totalorder %s134, %s150
    %p152 = scmp.eq.s32.totalorder %s16, 0
    %p153 = por %p151, %p152
    %s154 = ssub.s32 %s17, %s43
    %s155 = ssub.s32 %s18, %s39
    %s156 = sor.u32 %s154, %s155
    %s157 = ssub.s32 %s19, %s35
    %s158 = sor.u32 %s156, %s157
    %p159 = scmp.eq.s32.totalorder %s158, 0
    %s161 = sadd.s32 %s160, 1
    %s162 = scalar_select %p159, %s160, %s161
    %p165 = pneg %p159
    %p166 = scmp.eq.s32.totalorder %s10, 1
    %p167 = por %p165, %p166
    %p168 = scmp.ne.s32.totalorder %s160, %s163
    %p169 = scmp.eq.s32.totalorder %s10, 0
    %p170 = por %p168, %p169
    %p171 = scmp.ne.s32.totalorder %s160, %s163
    %p172 = scmp.eq.s32.totalorder %s15, 1
    %p173 = por %p171, %p172
    %p174 = scmp.ne.s32.totalorder %s163, %s164
    %p175 = scmp.eq.s32.totalorder %s15, 0
    %p176 = por %p174, %p175
    %p177 = scmp.ne.s32.totalorder %s163, %s164
    %p178 = scmp.eq.s32.totalorder %s16, 1
    %p179 = por %p177, %p178
    %p181 = scmp.ne.s32.totalorder %s164, %s180
    %p182 = scmp.eq.s32.totalorder %s16, 0
    %p183 = por %p181, %p182
    %p184 = scmp.le.s32.totalorder 1, %s10
    %p185 = scmp.lt.s32.totalorder %s10, 3
    %p186 = pnand %p184, %p185
    %p187 = pneg %p186
    // Predicated region
    $region9: #{beluga_forward.11} parent=5 // pred_check
      _
    $region10: #{beluga_forward.11} parent=5 // pred_check_branch
      %189 = sbr.rel (%p186) target = $region12
    $region11: #{beluga_forward.11} parent=5 // pred_region
      %s190 = ssub.s32 %s10, 1
      // Predicated region
      $region13: #{beluga_forward.11} parent=11 // pred_check
        %p191 = pneg %p94
      $region14: #{beluga_forward.11} parent=11 // pred_check_branch
        %193 = sbr.rel (%p191) target = $region16
      $region15: #{beluga_forward.11} parent=11 // pred_region
        %s194 = smul.u32 16, %s24
        %p195 = scmp.lt.s32.totalorder %s194, 15
        %s196 = scalar_select %p195, %s194, 15
        %p197 = scmp.lt.s32.totalorder %s23, 0
        %s198 = scalar_select %p197, %s23, 0
        %s199 = sadd.s32 %s198, %s196
        %s200 = smul.addr %s199, 4
        %s201 = scalar_lea.vmem %s1, %s200
        %s202 = smul.u32 16, %s24
      $region16: #{beluga_forward.11} parent=11 // pred_fallthru
        _
      // Predicated region
      $region17: #{beluga_forward.11} parent=11 // pred_check
        %p203 = pneg %p120
      $region18: #{beluga_forward.11} parent=11 // pred_check_branch
        %205 = sbr.rel (%p203) target = $region20
      $region19: #{beluga_forward.11} parent=11 // pred_region
        %p206 = scmp.lt.s32.totalorder %s23, 0
        %s207 = scalar_select %p206, %s23, 0
        %s208 = scalar_lea.vmem %s2, %s207
      $region20: #{beluga_forward.11} parent=11 // pred_fallthru
        _
      // Predicated region
      $region21: #{beluga_forward.11} parent=11 // pred_check
        %p209 = pneg %p146
      $region22: #{beluga_forward.11} parent=11 // pred_check_branch
        %211 = sbr.rel (%p209) target = $region24
      $region23: #{beluga_forward.11} parent=11 // pred_region
        %p212 = scmp.lt.s32.totalorder %s23, 0
        %s213 = scalar_select %p212, %s23, 0
        %s214 = scalar_lea.vmem %s3, %s213
      $region24: #{beluga_forward.11} parent=11 // pred_fallthru
        _
    $region12: #{beluga_forward.11} parent=5 // pred_fallthru
      _
    %p215 = scmp.lt.s32.totalorder %s10, 2
    // Predicated region
    $region25: #{beluga_forward.11} parent=5 // pred_check
      %p216 = pneg %p215
    $region26: #{beluga_forward.11} parent=5 // pred_check_branch
      %218 = sbr.rel (%p216) target = $region28
    $region27: #{beluga_forward.11} parent=5 // pred_region
      // Predicated region
      $region29: #{beluga_forward.11} parent=27 // pred_check
        %p219 = pneg %p60
      $region30: #{beluga_forward.11} parent=27 // pred_check_branch
        %221 = sbr.rel (%p219) target = $region32
      $region31: #{beluga_forward.11} parent=27 // pred_region
        %s222 = smul.u32 8, %s18
        %p223 = scmp.lt.s32.totalorder %s17, 1
        %s224 = scalar_select %p223, %s17, 1
        %p225 = scmp.lt.s32.totalorder %s222, 7
        %s226 = scalar_select %p225, %s222, 7
        %p227 = scmp.lt.s32.totalorder %s20, 0
        %s228 = scalar_select %p227, %s20, 0
        %s229 = sadd.s32 %s228, %s226
        %s230 = smul.addr %s224, 8
        %s231 = sadd.s32 %s229, %s230
        %s232 = smul.addr %s231, 4
        %s233 = scalar_lea.vmem %s0, %s232
        %s234 = smul.u32 8, %s18
      $region32: #{beluga_forward.11} parent=27 // pred_fallthru
        _
    $region28: #{beluga_forward.11} parent=5 // pred_fallthru
      _
    %p235 = scmp.le.s32.totalorder 1, %s10
    %p236 = scmp.lt.s32.totalorder %s10, 3
    %p237 = pnand %p235, %p236
    %p238 = pneg %p237
    // Predicated region
    $region33: #{beluga_forward.11} parent=5 // pred_check
      _
    $region34: #{beluga_forward.11} parent=5 // pred_check_branch
      %240 = sbr.rel (%p237) target = $region36
    $region35: #{beluga_forward.11} parent=5 // pred_region
      %s241 = ssub.s32 %s10, 1
      %s242 = smul.u32 8, %s22
      %p243 = scmp.lt.s32.totalorder %s21, 1
      %s244 = scalar_select %p243, %s21, 1
      %p245 = scmp.lt.s32.totalorder %s242, 7
      %s246 = scalar_select %p245, %s242, 7
      %p247 = scmp.lt.s32.totalorder %s24, 0
      %s248 = scalar_select %p247, %s24, 0
      %s249 = sadd.s32 %s248, %s246
      %s250 = smul.addr %s244, 8
      %s251 = sadd.s32 %s249, %s250
      %s252 = smul.addr %s251, 4
      %s253 = scalar_lea.vmem %s0, %s252
      %p254 = pneg %p66
      %p255 = pneg %p63
      %s256 = smul.u32 16, %s24
      %p257 = scmp.lt.s32.totalorder %s256, 15
      %s258 = scalar_select %p257, %s256, 15
      %p259 = scmp.lt.s32.totalorder %s23, 0
      %s260 = scalar_select %p259, %s23, 0
      %s261 = sadd.s32 %s260, %s258
      %s262 = smul.addr %s261, 4
      %s263 = scalar_lea.vmem %s1, %s262
      %p264 = pneg %p94
      %p265 = pneg %p91
      %p266 = scmp.lt.s32.totalorder %s23, 0
      %s267 = scalar_select %p266, %s23, 0
      %s268 = scalar_lea.vmem %s2, %s267
      %p269 = pneg %p120
      %p270 = pneg %p117
      %p271 = scmp.lt.s32.totalorder %s23, 0
      %s272 = scalar_select %p271, %s23, 0
      %s273 = scalar_lea.vmem %s3, %s272
      %p274 = pneg %p146
      %p275 = pneg %p143
      %p276 = pneg %p176
      %p277 = pneg %p173
      %s278 = smul.u32 8, %s22
      %p279 = scmp.lt.s32.totalorder %s21, 1
      %s280 = scalar_select %p279, %s21, 1
      %p281 = scmp.lt.s32.totalorder %s278, 7
      %s282 = scalar_select %p281, %s278, 7
      %p283 = scmp.lt.s32.totalorder %s23, 0
      %s284 = scalar_select %p283, %s23, 0
      %s285 = sadd.s32 %s284, %s282
      %s286 = smul.addr %s280, 8
      %s287 = sadd.s32 %s285, %s286
      %s288 = smul.addr %s287, 8
      %s289 = scalar_lea.vmem %s4, %s288
      %s290 = smul.u32 8, %s22
      %p291 = scmp.lt.s32.totalorder %s21, 1
      %s292 = scalar_select %p291, %s21, 1
      %p293 = scmp.lt.s32.totalorder %s290, 7
      %s294 = scalar_select %p293, %s290, 7
      %p295 = scmp.lt.s32.totalorder %s24, 0
      %s296 = scalar_select %p295, %s24, 0
      %s297 = sadd.s32 %s296, %s294
      %s298 = smul.addr %s292, 8
      %s299 = sadd.s32 %s297, %s298
      %s300 = smul.addr %s299, 4
      %s301 = scalar_lea.vmem %s0, %s300
      %s302 = smul.u32 8, %s22
      %s303 = smul.u32 16, %s24
      %p304 = scmp.lt.s32.totalorder %s303, 15
      %s305 = scalar_select %p304, %s303, 15
      %p306 = scmp.lt.s32.totalorder %s23, 0
      %s307 = scalar_select %p306, %s23, 0
      %s308 = sadd.s32 %s307, %s305
      %s309 = smul.addr %s308, 4
      %s310 = scalar_lea.vmem %s1, %s309
      %s311 = smul.u32 16, %s24
      %p312 = scmp.lt.s32.totalorder %s23, 0
      %s313 = scalar_select %p312, %s23, 0
      %s314 = scalar_lea.vmem %s2, %s313
      %p315 = scmp.lt.s32.totalorder %s23, 0
      %s316 = scalar_select %p315, %s23, 0
      %s317 = scalar_lea.vmem %s3, %s316
      %s318 = smul.u32 8, %s22
      %p319 = scmp.lt.s32.totalorder %s21, 1
      %s320 = scalar_select %p319, %s21, 1
      %p321 = scmp.lt.s32.totalorder %s318, 7
      %s322 = scalar_select %p321, %s318, 7
      %p323 = scmp.lt.s32.totalorder %s23, 0
      %s324 = scalar_select %p323, %s23, 0
      %s325 = sadd.s32 %s324, %s322
      %s326 = smul.addr %s320, 8
      %s327 = sadd.s32 %s325, %s326
      %s328 = smul.addr %s327, 8
      %s329 = scalar_lea.vmem %s4, %s328
      %s330 = smul.u32 8, %s22
      %v331 = vld [vmem:[%s301] sm:$0xf]
      %v332 = vld [vmem:[%s301 + $0x4] sm:$0xf]
      %v333 = vld [vmem:[%s301 + $0x8] sm:$0xf]
      %v334 = vld [vmem:[%s301 + $0xc] sm:$0xf]
      %v335 = vld [vmem:[%s301 + $0x10] sm:$0xf]
      %v336 = vld [vmem:[%s301 + $0x14] sm:$0xf]
      %v337 = vld [vmem:[%s301 + $0x18] sm:$0xf]
      %v338 = vld [vmem:[%s301 + $0x1c] sm:$0xf]
      %v339 = vld [vmem:[%s310] sm:$0xf]
      %v340 = vld [vmem:[%s310 + $0x4] sm:$0xf]
      %v341 = vld [vmem:[%s310 + $0x8] sm:$0xf]
      %v342 = vld [vmem:[%s310 + $0xc] sm:$0xf]
      %v343 = vld [vmem:[%s310 + $0x10] sm:$0xf]
      %v344 = vld [vmem:[%s310 + $0x14] sm:$0xf]
      %v345 = vld [vmem:[%s310 + $0x18] sm:$0xf]
      %v346 = vld [vmem:[%s310 + $0x1c] sm:$0xf]
      %v347 = vld [vmem:[%s310 + $0x20] sm:$0xf]
      %v348 = vld [vmem:[%s310 + $0x24] sm:$0xf]
      %v349 = vld [vmem:[%s310 + $0x28] sm:$0xf]
      %v350 = vld [vmem:[%s310 + $0x2c] sm:$0xf]
      %v351 = vld [vmem:[%s310 + $0x30] sm:$0xf]
      %v352 = vld [vmem:[%s310 + $0x34] sm:$0xf]
      %v353 = vld [vmem:[%s310 + $0x38] sm:$0xf]
      %v354 = vld [vmem:[%s310 + $0x3c] sm:$0xf]
      %v363 = vunpack.c.l.b16 %v331
      %v364 = vunpack.c.l.b16 %v332
      %v365 = vunpack.c.l.b16 %v333
      %v366 = vunpack.c.l.b16 %v334
      %v367 = vunpack.c.l.b16 %v335
      %v368 = vunpack.c.l.b16 %v336
      %v369 = vunpack.c.l.b16 %v337
      %v370 = vunpack.c.l.b16 %v338
      %v371 = vpack.c.b16 %v364, %v363
      %v372 = vpack.c.b16 %v366, %v365
      %v373 = vpack.c.b16 %v368, %v367
      %v374 = vpack.c.b16 %v370, %v369
      %v395 = vunpack.c.l.b16 %v339
      %v396 = vunpack.c.l.b16 %v340
      %v397 = vunpack.c.l.b16 %v341
      %v398 = vunpack.c.l.b16 %v342
      %v399 = vunpack.c.l.b16 %v343
      %v400 = vunpack.c.l.b16 %v344
      %v401 = vunpack.c.l.b16 %v345
      %v402 = vunpack.c.l.b16 %v346
      %v403 = vunpack.c.l.b16 %v347
      %v404 = vunpack.c.l.b16 %v348
      %v405 = vunpack.c.l.b16 %v349
      %v406 = vunpack.c.l.b16 %v350
      %v407 = vunpack.c.l.b16 %v351
      %v408 = vunpack.c.l.b16 %v352
      %v409 = vunpack.c.l.b16 %v353
      %v410 = vunpack.c.l.b16 %v354
      %v411 = vpack.c.b16 %v396, %v395
      %v412 = vpack.c.b16 %v398, %v397
      %v413 = vpack.c.b16 %v400, %v399
      %v414 = vpack.c.b16 %v402, %v401
      %v415 = vpack.c.b16 %v404, %v403
      %v416 = vpack.c.b16 %v406, %v405
      %v417 = vpack.c.b16 %v408, %v407
      %v418 = vpack.c.b16 %v410, %v409
      %427 = vmatpush.bf16.msra.mxu0 %v418
      %428 = vmatpush.bf16.msra.mxu0 %v417
      %429 = vmatpush.bf16.msra.mxu0 %v416
      %430 = vmatpush.bf16.msra.mxu0 %v415
      %431 = vmatpush.bf16.msra.mxu0 %v414
      %432 = vmatpush.bf16.msra.mxu0 %v413
      %433 = vmatpush.bf16.msra.mxu0 %v412
      %434 = vmatpush.bf16.msra.mxu0 %v411
      %435 = vmatmul.bf16.gmra.mxu0 %v371
      %v436 = vpop.f32.mrf.mxu0
      %v437 = vadd.f32 0.0, %v436
      %v438 = vpop.f32.mrf.mxu0
      %v439 = vadd.f32 0.0, %v438
      %440 = vmatmul.bf16.gmra.mxu0 %v372
      %v441 = vpop.f32.mrf.mxu0
      %v442 = vadd.f32 0.0, %v441
      %v443 = vpop.f32.mrf.mxu0
      %v444 = vadd.f32 0.0, %v443
      %445 = vmatmul.bf16.gmra.mxu0 %v373
      %v446 = vpop.f32.mrf.mxu0
      %v447 = vadd.f32 0.0, %v446
      %v448 = vpop.f32.mrf.mxu0
      %v449 = vadd.f32 0.0, %v448
      %450 = vmatmul.bf16.gmra.mxu0 %v374
      %v451 = vpop.f32.mrf.mxu0
      %v452 = vadd.f32 0.0, %v451
      %v453 = vpop.f32.mrf.mxu0
      %v454 = vadd.f32 0.0, %v453
      %455 = vdwg.mxu0
      %p456 = scmp.eq.s32.totalorder %s24, 0
      // Predicated region
      $region37: #{beluga_forward.11} parent=35 // pred_check
        %p457 = pneg %p456
      $region38: #{beluga_forward.11} parent=35 // pred_check_branch
        %459 = sbr.rel (%p457) target = $region40
      $region39: #{beluga_forward.11} parent=35 // pred_region
        %460 = vst [vmem:[#allocation2] sm:$0xff] %v437
        %461 = vst [vmem:[#allocation2 + $0x8] sm:$0xff] %v439
        %462 = vst [vmem:[#allocation2 + $0x10] sm:$0xff] %v442
        %463 = vst [vmem:[#allocation2 + $0x18] sm:$0xff] %v444
        %464 = vst [vmem:[#allocation2 + $0x20] sm:$0xff] %v447
        %465 = vst [vmem:[#allocation2 + $0x28] sm:$0xff] %v449
        %466 = vst [vmem:[#allocation2 + $0x30] sm:$0xff] %v452
        %467 = vst [vmem:[#allocation2 + $0x38] sm:$0xff] %v454
      $region40: #{beluga_forward.11} parent=35 // pred_fallthru
        _
      %p468 = scmp.ne.s32.totalorder %s24, 0
      // Predicated region
      $region41: #{beluga_forward.11} parent=35 // pred_check
        %p469 = pneg %p468
      $region42: #{beluga_forward.11} parent=35 // pred_check_branch
        %471 = sbr.rel (%p469) target = $region44
      $region43: #{beluga_forward.11} parent=35 // pred_region
        %v472 = vld [vmem:[#allocation2] sm:$0xff]
        %v473 = vld [vmem:[#allocation2 + $0x8] sm:$0xff]
        %v474 = vld [vmem:[#allocation2 + $0x10] sm:$0xff]
        %v475 = vld [vmem:[#allocation2 + $0x18] sm:$0xff]
        %v476 = vld [vmem:[#allocation2 + $0x20] sm:$0xff]
        %v477 = vld [vmem:[#allocation2 + $0x28] sm:$0xff]
        %v478 = vld [vmem:[#allocation2 + $0x30] sm:$0xff]
        %v479 = vld [vmem:[#allocation2 + $0x38] sm:$0xff]
        %v480 = vadd.f32 %v472, %v437
        %v481 = vadd.f32 %v473, %v439
        %v482 = vadd.f32 %v474, %v442
        %v483 = vadd.f32 %v475, %v444
        %v484 = vadd.f32 %v476, %v447
        %v485 = vadd.f32 %v477, %v449
        %v486 = vadd.f32 %v478, %v452
        %v487 = vadd.f32 %v479, %v454
        %488 = vst [vmem:[#allocation2] sm:$0xff] %v480
        %489 = vst [vmem:[#allocation2 + $0x8] sm:$0xff] %v481
        %490 = vst [vmem:[#allocation2 + $0x10] sm:$0xff] %v482
        %491 = vst [vmem:[#allocation2 + $0x18] sm:$0xff] %v483
        %492 = vst [vmem:[#allocation2 + $0x20] sm:$0xff] %v484
        %493 = vst [vmem:[#allocation2 + $0x28] sm:$0xff] %v485
        %494 = vst [vmem:[#allocation2 + $0x30] sm:$0xff] %v486
        %495 = vst [vmem:[#allocation2 + $0x38] sm:$0xff] %v487
      $region44: #{beluga_forward.11} parent=35 // pred_fallthru
        _
      // Predicated region
      $region45: #{beluga_forward.11} parent=35 // pred_check
        %p496 = pneg %p456
      $region46: #{beluga_forward.11} parent=35 // pred_check_branch
        %498 = sbr.rel (%p496) target = $region48
      $region47: #{beluga_forward.11} parent=35 // pred_region
        %v499 = vld [vmem:[#allocation2] sm:$0xff]
        %v500 = vld [vmem:[#allocation2 + $0x8] sm:$0xff]
        %v501 = vld [vmem:[#allocation2 + $0x10] sm:$0xff]
        %v502 = vld [vmem:[#allocation2 + $0x18] sm:$0xff]
        %v503 = vld [vmem:[#allocation2 + $0x20] sm:$0xff]
        %v504 = vld [vmem:[#allocation2 + $0x28] sm:$0xff]
        %v505 = vld [vmem:[#allocation2 + $0x30] sm:$0xff]
        %v506 = vld [vmem:[#allocation2 + $0x38] sm:$0xff]
        %v507 = vld [vmem:[%s314] sm:$0x1]
        %v509 = vperm.slane %v507, 0
        %v511 = vmul.f32 %v499, %v509
        %v512 = vmul.f32 %v500, %v509
        %v513 = vmul.f32 %v501, %v509
        %v514 = vmul.f32 %v502, %v509
        %v515 = vmul.f32 %v503, %v509
        %v516 = vmul.f32 %v504, %v509
        %v517 = vmul.f32 %v505, %v509
        %v518 = vmul.f32 %v506, %v509
        %v519 = vld [vmem:[%s317] sm:$0x1]
        %v521 = vperm.slane %v519, 0
        %v523 = vadd.f32 %v511, %v521
        %v524 = vadd.f32 %v512, %v521
        %v525 = vadd.f32 %v513, %v521
        %v526 = vadd.f32 %v514, %v521
        %v527 = vadd.f32 %v515, %v521
        %v528 = vadd.f32 %v516, %v521
        %v529 = vadd.f32 %v517, %v521
        %v530 = vadd.f32 %v518, %v521
        %531 = vst [vmem:[%s329] sm:$0xff] %v523
        %532 = vst [vmem:[%s329 + $0x8] sm:$0xff] %v524
        %533 = vst [vmem:[%s329 + $0x10] sm:$0xff] %v525
        %534 = vst [vmem:[%s329 + $0x18] sm:$0xff] %v526
        %535 = vst [vmem:[%s329 + $0x20] sm:$0xff] %v527
        %536 = vst [vmem:[%s329 + $0x28] sm:$0xff] %v528
        %537 = vst [vmem:[%s329 + $0x30] sm:$0xff] %v529
        %538 = vst [vmem:[%s329 + $0x38] sm:$0xff] %v530
      $region48: #{beluga_forward.11} parent=35 // pred_fallthru
        _
      %s539 = smul.u32 8, %s22
      %p540 = scmp.lt.s32.totalorder %s21, 1
      %s541 = scalar_select %p540, %s21, 1
      %p542 = scmp.lt.s32.totalorder %s539, 7
      %s543 = scalar_select %p542, %s539, 7
      %p544 = scmp.lt.s32.totalorder %s23, 0
      %s545 = scalar_select %p544, %s23, 0
      %s546 = sadd.s32 %s545, %s543
      %s547 = smul.addr %s541, 8
      %s548 = sadd.s32 %s546, %s547
      %s549 = smul.addr %s548, 8
      %s550 = scalar_lea.vmem %s4, %s549
      // Predicated region
      $region49: #{beluga_forward.11} parent=35 // pred_check
        %p551 = pneg %p173
      $region50: #{beluga_forward.11} parent=35 // pred_check_branch
        %553 = sbr.rel (%p551) target = $region52
      $region51: #{beluga_forward.11} parent=35 // pred_region
        %s554 = smul.u32 8, %s22
      $region52: #{beluga_forward.11} parent=35 // pred_fallthru
        _
    $region36: #{beluga_forward.11} parent=5 // pred_fallthru
      _
    %p555 = scmp.le.s32.totalorder 2, %s10
    // Predicated region
    $region53: #{beluga_forward.11} parent=5 // pred_check
      %p556 = pneg %p555
    $region54: #{beluga_forward.11} parent=5 // pred_check_branch
      %558 = sbr.rel (%p556) target = $region56
    $region55: #{beluga_forward.11} parent=5 // pred_region
      %s559 = ssub.s32 %s10, 2
      // Predicated region
      $region57: #{beluga_forward.11} parent=55 // pred_check
        %p560 = pneg %p179
      $region58: #{beluga_forward.11} parent=55 // pred_check_branch
        %562 = sbr.rel (%p560) target = $region60
      $region59: #{beluga_forward.11} parent=55 // pred_region
        %s563 = smul.u32 8, %s26
        %p564 = scmp.lt.s32.totalorder %s25, 1
        %s565 = scalar_select %p564, %s25, 1
        %p566 = scmp.lt.s32.totalorder %s563, 7
        %s567 = scalar_select %p566, %s563, 7
        %p568 = scmp.lt.s32.totalorder %s27, 0
        %s569 = scalar_select %p568, %s27, 0
        %s570 = sadd.s32 %s569, %s567
        %s571 = smul.addr %s565, 8
        %s572 = sadd.s32 %s570, %s571
        %s573 = smul.addr %s572, 8
        %s574 = scalar_lea.vmem %s4, %s573
      $region60: #{beluga_forward.11} parent=55 // pred_fallthru
        _
    $region56: #{beluga_forward.11} parent=5 // pred_fallthru
      _
  $region6: #{beluga_forward.11} parent=0 // loop_footer
    %s14 = sadd.s32 1, %s10
  $region7: #{beluga_forward.11} parent=0 // loop_footer_branch
    %9 = sbr.rel target = $region3
  $region8: #{beluga_forward.11} parent=0 // loop_exit
    _

</llo_original>
